<compile_context>
chip_gen: v6e
topology: v6e:2x2x1
jax: 0.10.0
libtpu: 0.0.40
codegen_flags: <defaults>
</compile_context>

<pallas_src>
import functools

import jax
import jax.numpy as jnp
import numpy as np
from jax import lax
from jax.experimental import pallas as pl
from jax.experimental.pallas import tpu as pltpu

_BN_EPS = 1e-5
_HIGHEST = jax.lax.Precision.HIGHEST


# ----------------------------- in-kernel helpers ------------------------------
def _bn_cm(x, g_ref, b_ref):
    """BatchNorm2d (training-mode batch statistics, biased variance, eps=1e-5) in
    channel-major layout.  x: (C, T) with T = all pixels of the batch (all 4 phases);
    g_ref/b_ref: (C, 1) gamma/beta.  One lane-axis (XLU) reduction per statistic;
    scale/shift folded once and applied with a single VPU fma.
    TODO(synk): running_mean / running_var buffer updates (training-mode side effect
    of nn.BatchNorm2d) are not reproduced; eval-mode BN is unsupported."""
    inv_t = 1.0 / x.shape[-1]
    mean = jnp.sum(x, axis=-1, keepdims=True) * inv_t
    var = jnp.sum((x - mean) ** 2, axis=-1, keepdims=True) * inv_t
    scale = lax.rsqrt(var + _BN_EPS) * g_ref[...]
    shift = b_ref[...] - mean * scale
    return x * scale + shift


def _gelu(x):
    # TODO(synk): PyTorch nn.GELU defaults to the exact erf form; the tanh
    # approximation is used here (EUP-friendly, diff < ~3e-3).  The reference
    # below uses the same approximation.
    return jax.nn.gelu(x, approximate=True)


def _level_kernel(patches_ref, w_up_ref, g_up_ref, b_up_ref, *rest, n_ffn):
    """One decoder level, fully fused in VMEM, channel-major (C, tokens) layout.

      patches_ref : (4, 4*Cin, M) f32   per-phase im2col patches, M = N*H*W
      w_up_ref    : (4, Cout, 4*Cin) f32  per-phase packed ConvTranspose2d taps
      g_up_ref    : (Cout, 1) f32       UpSample BN gamma
      b_up_ref    : (Cout, 1) f32       UpSample BN beta
      rest        : per FFN block: w1 (4C, C), g1 (4C,1), b1 (4C,1),
                                   w2 (C, 4C), g2 (C,1),  b2 (C,1)  (all f32)
                    last entry is o_ref
      o_ref       : (Cout, 4*M) f32     phase-packed, lane-dense level output

    Conv biases are omitted: they are exactly cancelled by the train-mode BN mean.
    """
    o_ref = rest[-1]
    ffn_refs = rest[:-1]

    # --- UpSample: 4 polyphase matmuls (Cout, 4Cin) @ (4Cin, M) -> concat along the
    # lane-dense token axis -> one (Cout, 4M) slab for BN and the FFN blocks. ---
    hs = [jnp.dot(w_up_ref[p], patches_ref[p],
                  preferred_element_type=jnp.float32, precision=_HIGHEST)
          for p in range(4)]
    h = jnp.concatenate(hs, axis=-1)                 # (Cout, 4*M)
    h = _bn_cm(h, g_up_ref, b_up_ref)

    # TODO(synk): Grapher block (graph convolution) — its definition is not part of
    # the provided spec, so it is not applied between UpSample and FFN.

    # --- FFN blocks: one matmul per projection over all phases/pixels. ---
    for j in range(n_ffn):
        w1_ref, g1_ref, b1_ref, w2_ref, g2_ref, b2_ref = ffn_refs[6 * j: 6 * j + 6]
        z = jnp.dot(w1_ref[...], h, preferred_element_type=jnp.float32,
                    precision=_HIGHEST)              # (4C, T)
        z = _gelu(_bn_cm(z, g1_ref, b1_ref))
        y = jnp.dot(w2_ref[...], z, preferred_element_type=jnp.float32,
                    precision=_HIGHEST)              # (C, T)
        h = _bn_cm(y, g2_ref, b2_ref) + h            # DropPath(0.) == Identity

    o_ref[...] = h.astype(o_ref.dtype)


# ------------------------------ wrapper plumbing -------------------------------
# Polyphase decomposition of ConvTranspose2d(k=4, s=2, p=1):
#   out[:, 2h+ph, 2w+pw] = sum over 2x2 taps of xpad[:, h+dh, w+dw] . W[:, :, kh, kw]
# with (dh, kh) in {(0,3),(1,1)} for phase 0 and {(1,2),(2,0)} for phase 1 (same
# mapping for the width phase pw).
_PHASE_TAPS = {0: ((0, 3), (1, 1)), 1: ((1, 2), (2, 0))}


def _build_patches_cm(x_cm):
    """Per-phase im2col patches (4, 4*Cin, M), channel-major, from a (Cin, N, H, W)
    input.  M = N*H*W is the lane-dense minor axis.  The zero-dilated transposed-conv
    input is never materialized.  Pure XLA layout plumbing (no NCHW<->NHWC)."""
    cin, n, h, w = x_cm.shape
    xp = jnp.pad(x_cm, ((0, 0), (0, 0), (1, 1), (1, 1)))
    phases = []
    for ph in range(2):
        for pw in range(2):
            taps = []
            for dh, _ in _PHASE_TAPS[ph]:
                for dw, _ in _PHASE_TAPS[pw]:
                    taps.append(xp[:, :, dh:dh + h, dw:dw + w].reshape(cin, n * h * w))
            phases.append(jnp.concatenate(taps, axis=0))      # (4*Cin, M)
    return jnp.stack(phases, 0)                               # (4, 4*Cin, M)


def _pack_upsample_weights(w_pt):
    """Per-phase packed ConvTranspose2d taps (4, Cout, 4*Cin) from the PyTorch
    (Cin, Cout, 4, 4) weight.  Tap order matches _build_patches_cm."""
    weights = []
    for ph in range(2):
        for pw in range(2):
            wparts = []
            for _, kh in _PHASE_TAPS[ph]:
                for _, kw in _PHASE_TAPS[pw]:
                    wparts.append(w_pt[:, :, kh, kw].T)        # (Cout, Cin)
            weights.append(jnp.concatenate(wparts, axis=1))    # (Cout, 4*Cin)
    return jnp.stack(weights, 0)


def _col(v):
    return jnp.asarray(v, jnp.float32).reshape(-1, 1)          # (C,) -> (C, 1)


def _decode_level(x_cm, level_params):
    """One resolution level (UpSample + FFN blocks) fused into one pallas_call.
    x_cm: channel-major (Cin, N, H, W) -> returns (Cout, N, 2H, 2W)."""
    up_w, up_b, up_g, up_be, ffn_params = level_params
    del up_b  # exactly cancelled by the train-mode BN that follows (dead compute)
    _, n, h, w = x_cm.shape
    cout = up_w.shape[1]
    m = n * h * w

    args = [_build_patches_cm(x_cm.astype(jnp.float32)),
            _pack_upsample_weights(up_w).astype(jnp.float32),
            _col(up_g), _col(up_be)]
    for (w1, b1, g1, be1, w2, b2, g2, be2) in ffn_params:
        del b1, b2  # cancelled by the train-mode BN
        args += [w1[:, :, 0, 0].astype(jnp.float32), _col(g1), _col(be1),   # (4C, C)
                 w2[:, :, 0, 0].astype(jnp.float32), _col(g2), _col(be2)]   # (C, 4C)

    vmem = pl.BlockSpec(memory_space=pltpu.MemorySpace.VMEM)
    out = pl.pallas_call(
        functools.partial(_level_kernel, n_ffn=len(ffn_params)),
        out_shape=jax.ShapeDtypeStruct((cout, 4 * m), jnp.float32),
        in_specs=[vmem] * len(args),
        out_specs=vmem,
        compiler_params=pltpu.CompilerParams(vmem_limit_bytes=32 * 1024 * 1024),
    )(*args)

    # De-interleave (Cout, [ph, pw, n, h, w]) -> channel-major (Cout, N, 2H, 2W).
    y = out.reshape(cout, 2, 2, n, h, w).transpose(0, 3, 4, 1, 5, 2)
    return y.reshape(cout, n, 2 * h, 2 * w)


def graph_decoder_forward(x_nchw, levels):
    """GraphDecoder.forward: for each i > 0, UpSample(hc[i-1]->hc[i]) followed by
    num_block[i] x (Grapher[TODO], FFN).  Works channel-major end to end."""
    x = jnp.transpose(x_nchw, (1, 0, 2, 3))        # NCHW -> (C, N, H, W)
    for level_params in levels:
        x = _decode_level(x, level_params)
    return jnp.transpose(x, (1, 0, 2, 3))          # (C, N, H, W) -> NCHW


# ----------------------------- pure-JAX reference ------------------------------
# Full-f32 math with precision=HIGHEST, mirroring the kernel's operand precision.
def _ref_bn(y, g, be):
    m = jnp.mean(y, axis=(0, 1, 2), keepdims=True)
    v = jnp.mean((y - m) ** 2, axis=(0, 1, 2), keepdims=True)
    return (y - m) * lax.rsqrt(v + _BN_EPS) * g + be


def _ref_level(x, level_params):
    up_w, up_b, up_g, up_be, ffn_params = level_params
    kh, kw = up_w.shape[2], up_w.shape[3]
    w_conv = jnp.flip(up_w, axis=(2, 3)).transpose(2, 3, 0, 1)     # HWIO
    y = lax.conv_general_dilated(
        x, w_conv, window_strides=(1, 1),
        padding=[(kh - 2, kh - 2), (kw - 2, kw - 2)],              # k-1-p with p=1
        lhs_dilation=(2, 2),
        dimension_numbers=("NHWC", "HWIO", "NHWC"),
        precision=_HIGHEST)
    y = _ref_bn(y + up_b[None, None, None, :], up_g, up_be)
    for (w1, b1, g1, be1, w2, b2, g2, be2) in ffn_params:
        sc = y
        z = jnp.einsum("nhwc,dc->nhwd", y, w1[:, :, 0, 0], precision=_HIGHEST) + b1
        z = jax.nn.gelu(_ref_bn(z, g1, be1), approximate=True)
        o = jnp.einsum("nhwd,cd->nhwc", z, w2[:, :, 0, 0], precision=_HIGHEST) + b2
        y = _ref_bn(o, g2, be2) + sc
    return y


def ref_forward(x_nchw, levels):
    x = jnp.transpose(x_nchw, (0, 2, 3, 1))
    for lp in levels:
        x = _ref_level(x, lp)
    return jnp.transpose(x, (0, 3, 1, 2))


# ------------------------------------ main -------------------------------------
if __name__ == "__main__":
    # GraphDecoder config: num_block=[1, 1, 1], hidden_channels=[32, 16, 8],
    # UpSample k=4/s=2/p=1, FFN hidden = 4x channels, act='gelu',
    # dpr=[0.0, 0.0, 0.0] (DropPath == Identity).  reduce_ratios only affect the
    # (omitted) Grapher blocks.
    num_block = [1, 1, 1]
    hidden_channels = [32, 16, 8]
    N, H0, W0 = 2, 8, 8

    key = jax.random.PRNGKey(0)

    def nrm(k, shape, scale=0.1):
        return scale * jax.random.normal(k, shape, jnp.float32)

    levels = []
    for i in range(1, len(num_block)):
        cin, c = hidden_channels[i - 1], hidden_channels[i]
        key, k1, k2, k3, k4 = jax.random.split(key, 5)
        up_w = nrm(k1, (cin, c, 4, 4))          # PyTorch ConvTranspose2d layout
        up_b = nrm(k2, (c,))
        up_g = 1.0 + nrm(k3, (c,))
        up_be = nrm(k4, (c,))
        ffns = []
        for _ in range(num_block[i]):
            d = 4 * c
            key, *ks = jax.random.split(key, 9)
            ffns.append((nrm(ks[0], (d, c, 1, 1)), nrm(ks[1], (d,)),   # fc1 conv
                         1.0 + nrm(ks[2], (d,)), nrm(ks[3], (d,)),     # fc1 BN
                         nrm(ks[4], (c, d, 1, 1)), nrm(ks[5], (c,)),   # fc2 conv
                         1.0 + nrm(ks[6], (c,)), nrm(ks[7], (c,))))    # fc2 BN
        levels.append((up_w, up_b, up_g, up_be, ffns))

    key, kx = jax.random.split(key)
    x = jax.random.normal(kx, (N, hidden_channels[0], H0, W0), jnp.float32)

    out = jax.block_until_ready(graph_decoder_forward(x, levels))
    ref = jax.block_until_ready(ref_forward(x, levels))

    assert out.shape == (N, hidden_channels[-1], 4 * H0, 4 * W0), out.shape
    np.testing.assert_allclose(np.asarray(out), np.asarray(ref),
                               rtol=2e-3, atol=2e-3)
    print("KERNEL_OK")
</pallas_src>

<mosaic_0001>
module attributes {stable_mosaic.version = 11 : i64} {
  func.func @_level_kernel(%arg0: memref<4x128x128xf32, #tpu.memory_space<vmem>>, %arg1: memref<4x16x128xf32, #tpu.memory_space<vmem>>, %arg2: memref<16x1xf32, #tpu.memory_space<vmem>>, %arg3: memref<16x1xf32, #tpu.memory_space<vmem>>, %arg4: memref<64x16xf32, #tpu.memory_space<vmem>>, %arg5: memref<64x1xf32, #tpu.memory_space<vmem>>, %arg6: memref<64x1xf32, #tpu.memory_space<vmem>>, %arg7: memref<16x64xf32, #tpu.memory_space<vmem>>, %arg8: memref<16x1xf32, #tpu.memory_space<vmem>>, %arg9: memref<16x1xf32, #tpu.memory_space<vmem>>, %arg10: memref<16x512xf32, #tpu.memory_space<vmem>>) attributes {dimension_semantics = [], scalar_prefetch = 0 : i64, scratch_operands = 0 : i64, tpu.core_type = #tpu.core_type<tc>} {
    %c0 = arith.constant 0 : index
    %c0_0 = arith.constant 0 : index
    %c0_1 = arith.constant 0 : index
    %0 = vector.load %arg1[%c0, %c0_0, %c0_1] : memref<4x16x128xf32, #tpu.memory_space<vmem>>, vector<1x16x128xf32>
    %1 = vector.shape_cast %0 : vector<1x16x128xf32> to vector<16x128xf32>
    %c0_2 = arith.constant 0 : index
    %c0_3 = arith.constant 0 : index
    %c0_4 = arith.constant 0 : index
    %2 = vector.load %arg0[%c0_2, %c0_3, %c0_4] : memref<4x128x128xf32, #tpu.memory_space<vmem>>, vector<1x128x128xf32>
    %3 = vector.shape_cast %2 : vector<1x128x128xf32> to vector<128x128xf32>
    %cst = arith.constant dense<0.000000e+00> : vector<16x128xf32>
    %4 = tpu.matmul %1, %3, %cst {dimension_numbers = #tpu.dot_dimension_numbers<[1], [0], [0], [1], [0, 0, 1, 1], [], []>, precision = #tpu.contract_precision<fp32>} : vector<16x128xf32>, vector<128x128xf32>, vector<16x128xf32> -> vector<16x128xf32>
    %c1 = arith.constant 1 : index
    %c0_5 = arith.constant 0 : index
    %c0_6 = arith.constant 0 : index
    %5 = vector.load %arg1[%c1, %c0_5, %c0_6] : memref<4x16x128xf32, #tpu.memory_space<vmem>>, vector<1x16x128xf32>
    %6 = vector.shape_cast %5 : vector<1x16x128xf32> to vector<16x128xf32>
    %c1_7 = arith.constant 1 : index
    %c0_8 = arith.constant 0 : index
    %c0_9 = arith.constant 0 : index
    %7 = vector.load %arg0[%c1_7, %c0_8, %c0_9] : memref<4x128x128xf32, #tpu.memory_space<vmem>>, vector<1x128x128xf32>
    %8 = vector.shape_cast %7 : vector<1x128x128xf32> to vector<128x128xf32>
    %cst_10 = arith.constant dense<0.000000e+00> : vector<16x128xf32>
    %9 = tpu.matmul %6, %8, %cst_10 {dimension_numbers = #tpu.dot_dimension_numbers<[1], [0], [0], [1], [0, 0, 1, 1], [], []>, precision = #tpu.contract_precision<fp32>} : vector<16x128xf32>, vector<128x128xf32>, vector<16x128xf32> -> vector<16x128xf32>
    %c2 = arith.constant 2 : index
    %c0_11 = arith.constant 0 : index
    %c0_12 = arith.constant 0 : index
    %10 = vector.load %arg1[%c2, %c0_11, %c0_12] : memref<4x16x128xf32, #tpu.memory_space<vmem>>, vector<1x16x128xf32>
    %11 = vector.shape_cast %10 : vector<1x16x128xf32> to vector<16x128xf32>
    %c2_13 = arith.constant 2 : index
    %c0_14 = arith.constant 0 : index
    %c0_15 = arith.constant 0 : index
    %12 = vector.load %arg0[%c2_13, %c0_14, %c0_15] : memref<4x128x128xf32, #tpu.memory_space<vmem>>, vector<1x128x128xf32>
    %13 = vector.shape_cast %12 : vector<1x128x128xf32> to vector<128x128xf32>
    %cst_16 = arith.constant dense<0.000000e+00> : vector<16x128xf32>
    %14 = tpu.matmul %11, %13, %cst_16 {dimension_numbers = #tpu.dot_dimension_numbers<[1], [0], [0], [1], [0, 0, 1, 1], [], []>, precision = #tpu.contract_precision<fp32>} : vector<16x128xf32>, vector<128x128xf32>, vector<16x128xf32> -> vector<16x128xf32>
    %c3 = arith.constant 3 : index
    %c0_17 = arith.constant 0 : index
    %c0_18 = arith.constant 0 : index
    %15 = vector.load %arg1[%c3, %c0_17, %c0_18] : memref<4x16x128xf32, #tpu.memory_space<vmem>>, vector<1x16x128xf32>
    %16 = vector.shape_cast %15 : vector<1x16x128xf32> to vector<16x128xf32>
    %c3_19 = arith.constant 3 : index
    %c0_20 = arith.constant 0 : index
    %c0_21 = arith.constant 0 : index
    %17 = vector.load %arg0[%c3_19, %c0_20, %c0_21] : memref<4x128x128xf32, #tpu.memory_space<vmem>>, vector<1x128x128xf32>
    %18 = vector.shape_cast %17 : vector<1x128x128xf32> to vector<128x128xf32>
    %cst_22 = arith.constant dense<0.000000e+00> : vector<16x128xf32>
    %19 = tpu.matmul %16, %18, %cst_22 {dimension_numbers = #tpu.dot_dimension_numbers<[1], [0], [0], [1], [0, 0, 1, 1], [], []>, precision = #tpu.contract_precision<fp32>} : vector<16x128xf32>, vector<128x128xf32>, vector<16x128xf32> -> vector<16x128xf32>
    %20 = tpu.concatenate %4, %9, %14, %19 in 1 : vector<16x128xf32>, vector<16x128xf32>, vector<16x128xf32>, vector<16x128xf32> -> vector<16x512xf32>
    %cst_23 = arith.constant dense<0.000000e+00> : vector<16xf32>
    %21 = vector.multi_reduction <add>, %20, %cst_23 [1] : vector<16x512xf32> to vector<16xf32>
    %22 = vector.shape_cast %21 : vector<16xf32> to vector<16x1xf32>
    %cst_24 = arith.constant 0.001953125 : f32
    %23 = vector.broadcast %cst_24 : f32 to vector<16x1xf32>
    %24 = arith.mulf %22, %23 : vector<16x1xf32>
    %25 = vector.broadcast %24 : vector<16x1xf32> to vector<16x512xf32>
    %26 = arith.subf %20, %25 : vector<16x512xf32>
    %27 = arith.mulf %26, %26 : vector<16x512xf32>
    %cst_25 = arith.constant dense<0.000000e+00> : vector<16xf32>
    %28 = vector.multi_reduction <add>, %27, %cst_25 [1] : vector<16x512xf32> to vector<16xf32>
    %29 = vector.shape_cast %28 : vector<16xf32> to vector<16x1xf32>
    %cst_26 = arith.constant 0.001953125 : f32
    %30 = vector.broadcast %cst_26 : f32 to vector<16x1xf32>
    %31 = arith.mulf %29, %30 : vector<16x1xf32>
    %cst_27 = arith.constant 9.99999974E-6 : f32
    %32 = vector.broadcast %cst_27 : f32 to vector<16x1xf32>
    %33 = arith.addf %31, %32 : vector<16x1xf32>
    %34 = math.rsqrt %33 : vector<16x1xf32>
    %c0_28 = arith.constant 0 : index
    %c0_29 = arith.constant 0 : index
    %35 = vector.load %arg2[%c0_28, %c0_29] : memref<16x1xf32, #tpu.memory_space<vmem>>, vector<16x1xf32>
    %36 = arith.mulf %34, %35 : vector<16x1xf32>
    %c0_30 = arith.constant 0 : index
    %c0_31 = arith.constant 0 : index
    %37 = vector.load %arg3[%c0_30, %c0_31] : memref<16x1xf32, #tpu.memory_space<vmem>>, vector<16x1xf32>
    %38 = arith.mulf %24, %36 : vector<16x1xf32>
    %39 = arith.subf %37, %38 : vector<16x1xf32>
    %40 = vector.broadcast %36 : vector<16x1xf32> to vector<16x512xf32>
    %41 = arith.mulf %20, %40 : vector<16x512xf32>
    %42 = vector.broadcast %39 : vector<16x1xf32> to vector<16x512xf32>
    %43 = arith.addf %41, %42 : vector<16x512xf32>
    %c0_32 = arith.constant 0 : index
    %c0_33 = arith.constant 0 : index
    %44 = vector.load %arg4[%c0_32, %c0_33] : memref<64x16xf32, #tpu.memory_space<vmem>>, vector<64x16xf32>
    %cst_34 = arith.constant dense<0.000000e+00> : vector<64x512xf32>
    %45 = tpu.matmul %44, %43, %cst_34 {dimension_numbers = #tpu.dot_dimension_numbers<[1], [0], [0], [1], [0, 0, 1, 1], [], []>, precision = #tpu.contract_precision<fp32>} : vector<64x16xf32>, vector<16x512xf32>, vector<64x512xf32> -> vector<64x512xf32>
    %cst_35 = arith.constant dense<0.000000e+00> : vector<64xf32>
    %46 = vector.multi_reduction <add>, %45, %cst_35 [1] : vector<64x512xf32> to vector<64xf32>
    %47 = vector.shape_cast %46 : vector<64xf32> to vector<64x1xf32>
    %cst_36 = arith.constant 0.001953125 : f32
    %48 = vector.broadcast %cst_36 : f32 to vector<64x1xf32>
    %49 = arith.mulf %47, %48 : vector<64x1xf32>
    %50 = vector.broadcast %49 : vector<64x1xf32> to vector<64x512xf32>
    %51 = arith.subf %45, %50 : vector<64x512xf32>
    %52 = arith.mulf %51, %51 : vector<64x512xf32>
    %cst_37 = arith.constant dense<0.000000e+00> : vector<64xf32>
    %53 = vector.multi_reduction <add>, %52, %cst_37 [1] : vector<64x512xf32> to vector<64xf32>
    %54 = vector.shape_cast %53 : vector<64xf32> to vector<64x1xf32>
    %cst_38 = arith.constant 0.001953125 : f32
    %55 = vector.broadcast %cst_38 : f32 to vector<64x1xf32>
    %56 = arith.mulf %54, %55 : vector<64x1xf32>
    %cst_39 = arith.constant 9.99999974E-6 : f32
    %57 = vector.broadcast %cst_39 : f32 to vector<64x1xf32>
    %58 = arith.addf %56, %57 : vector<64x1xf32>
    %59 = math.rsqrt %58 : vector<64x1xf32>
    %c0_40 = arith.constant 0 : index
    %c0_41 = arith.constant 0 : index
    %60 = vector.load %arg5[%c0_40, %c0_41] : memref<64x1xf32, #tpu.memory_space<vmem>>, vector<64x1xf32>
    %61 = arith.mulf %59, %60 : vector<64x1xf32>
    %c0_42 = arith.constant 0 : index
    %c0_43 = arith.constant 0 : index
    %62 = vector.load %arg6[%c0_42, %c0_43] : memref<64x1xf32, #tpu.memory_space<vmem>>, vector<64x1xf32>
    %63 = arith.mulf %49, %61 : vector<64x1xf32>
    %64 = arith.subf %62, %63 : vector<64x1xf32>
    %65 = vector.broadcast %61 : vector<64x1xf32> to vector<64x512xf32>
    %66 = arith.mulf %45, %65 : vector<64x512xf32>
    %67 = vector.broadcast %64 : vector<64x1xf32> to vector<64x512xf32>
    %68 = arith.addf %66, %67 : vector<64x512xf32>
    %69 = arith.mulf %68, %68 : vector<64x512xf32>
    %70 = arith.mulf %68, %69 : vector<64x512xf32>
    %cst_44 = arith.constant 4.471500e-02 : f32
    %71 = vector.broadcast %cst_44 : f32 to vector<64x512xf32>
    %72 = arith.mulf %71, %70 : vector<64x512xf32>
    %73 = arith.addf %68, %72 : vector<64x512xf32>
    %cst_45 = arith.constant 0.797884583 : f32
    %74 = vector.broadcast %cst_45 : f32 to vector<64x512xf32>
    %75 = arith.mulf %74, %73 : vector<64x512xf32>
    %76 = math.tanh %75 : vector<64x512xf32>
    %cst_46 = arith.constant 1.000000e+00 : f32
    %77 = vector.broadcast %cst_46 : f32 to vector<64x512xf32>
    %78 = arith.addf %77, %76 : vector<64x512xf32>
    %cst_47 = arith.constant 5.000000e-01 : f32
    %79 = vector.broadcast %cst_47 : f32 to vector<64x512xf32>
    %80 = arith.mulf %79, %78 : vector<64x512xf32>
    %81 = arith.mulf %68, %80 : vector<64x512xf32>
    %c0_48 = arith.constant 0 : index
    %c0_49 = arith.constant 0 : index
    %82 = vector.load %arg7[%c0_48, %c0_49] : memref<16x64xf32, #tpu.memory_space<vmem>>, vector<16x64xf32>
    %cst_50 = arith.constant dense<0.000000e+00> : vector<16x512xf32>
    %83 = tpu.matmul %82, %81, %cst_50 {dimension_numbers = #tpu.dot_dimension_numbers<[1], [0], [0], [1], [0, 0, 1, 1], [], []>, precision = #tpu.contract_precision<fp32>} : vector<16x64xf32>, vector<64x512xf32>, vector<16x512xf32> -> vector<16x512xf32>
    %cst_51 = arith.constant dense<0.000000e+00> : vector<16xf32>
    %84 = vector.multi_reduction <add>, %83, %cst_51 [1] : vector<16x512xf32> to vector<16xf32>
    %85 = vector.shape_cast %84 : vector<16xf32> to vector<16x1xf32>
    %cst_52 = arith.constant 0.001953125 : f32
    %86 = vector.broadcast %cst_52 : f32 to vector<16x1xf32>
    %87 = arith.mulf %85, %86 : vector<16x1xf32>
    %88 = vector.broadcast %87 : vector<16x1xf32> to vector<16x512xf32>
    %89 = arith.subf %83, %88 : vector<16x512xf32>
    %90 = arith.mulf %89, %89 : vector<16x512xf32>
    %cst_53 = arith.constant dense<0.000000e+00> : vector<16xf32>
    %91 = vector.multi_reduction <add>, %90, %cst_53 [1] : vector<16x512xf32> to vector<16xf32>
    %92 = vector.shape_cast %91 : vector<16xf32> to vector<16x1xf32>
    %cst_54 = arith.constant 0.001953125 : f32
    %93 = vector.broadcast %cst_54 : f32 to vector<16x1xf32>
    %94 = arith.mulf %92, %93 : vector<16x1xf32>
    %cst_55 = arith.constant 9.99999974E-6 : f32
    %95 = vector.broadcast %cst_55 : f32 to vector<16x1xf32>
    %96 = arith.addf %94, %95 : vector<16x1xf32>
    %97 = math.rsqrt %96 : vector<16x1xf32>
    %c0_56 = arith.constant 0 : index
    %c0_57 = arith.constant 0 : index
    %98 = vector.load %arg8[%c0_56, %c0_57] : memref<16x1xf32, #tpu.memory_space<vmem>>, vector<16x1xf32>
    %99 = arith.mulf %97, %98 : vector<16x1xf32>
    %c0_58 = arith.constant 0 : index
    %c0_59 = arith.constant 0 : index
    %100 = vector.load %arg9[%c0_58, %c0_59] : memref<16x1xf32, #tpu.memory_space<vmem>>, vector<16x1xf32>
    %101 = arith.mulf %87, %99 : vector<16x1xf32>
    %102 = arith.subf %100, %101 : vector<16x1xf32>
    %103 = vector.broadcast %99 : vector<16x1xf32> to vector<16x512xf32>
    %104 = arith.mulf %83, %103 : vector<16x512xf32>
    %105 = vector.broadcast %102 : vector<16x1xf32> to vector<16x512xf32>
    %106 = arith.addf %104, %105 : vector<16x512xf32>
    %107 = arith.addf %106, %43 : vector<16x512xf32>
    %c0_60 = arith.constant 0 : index
    %c0_61 = arith.constant 0 : index
    %108 = vector.load %arg10[%c0_60, %c0_61] : memref<16x512xf32, #tpu.memory_space<vmem>>, vector<16x512xf32>
    tpu.vector_store %arg10[%c0_60, %c0_61], %107 {strides = array<i32>} : memref<16x512xf32, #tpu.memory_space<vmem>>, vector<16x512xf32>,
    return
  }
}

</mosaic_0001>

<llo_original>
// kernel: tpu_custom_call.1
$region0: #{tpu_custom_call.1}
  #allocation0 [shape = 'u32[]', space=smem, size = 0x4, offset = 0x4, fixed_abs, tag = 'smem constant byte address 0x4 - core index']
  #allocation1 [shape = 'u32[144,128]{1,0:T(1,128)}', space=vmem, size = 0x12000, scoped, tag = 'internal scratch']
  %s0 = inlined_call_operand.hbm [shape: f32[4,128,128], index: 0, kind: input, shape index: {}]
  %s1 = inlined_call_operand.vmem [shape: f32[4,16,128], index: 1, kind: input, shape index: {}]
  %s2 = inlined_call_operand.vmem [shape: f32[16,1], index: 2, kind: input, shape index: {}]
  %s3 = inlined_call_operand.vmem [shape: f32[16,1], index: 3, kind: input, shape index: {}]
  %s4 = inlined_call_operand.vmem [shape: f32[64,16], index: 4, kind: input, shape index: {}]
  %s5 = inlined_call_operand.vmem [shape: f32[64,1], index: 5, kind: input, shape index: {}]
  %s6 = inlined_call_operand.vmem [shape: f32[64,1], index: 6, kind: input, shape index: {}]
  %s7 = inlined_call_operand.vmem [shape: f32[16,64], index: 7, kind: input, shape index: {}]
  %s8 = inlined_call_operand.vmem [shape: f32[16,1], index: 8, kind: input, shape index: {}]
  %s9 = inlined_call_operand.vmem [shape: f32[16,1], index: 9, kind: input, shape index: {}]
  %s10 = inlined_call_operand.hbm [shape: f32[16,512], index: 10, kind: output, shape index: {}]
  %s11 = sld [smem:[#allocation0]]
  $region54: #{tpu_custom_call.1} parent=0
    _
  %s13 = ssub.s32 1, %s11
  %s14 = scalar_select 0, %s13, %s11
  $region1: #{tpu_custom_call.1} parent=0
    #allocation2 [shape = 'u8[262144]{0}', space=vmem, size = 0x40000, scoped, tag = 'input window, operand 0, single buffered']
    #allocation3 [shape = 's32[1]{0}', space=sflag, size = 0x4, scoped, tag = 'scoped memory for tpu_custom_call.1']
    #allocation4 [shape = 's32[1]{0}', space=sflag, size = 0x4, scoped, tag = 'scoped memory for tpu_custom_call.1']
    #allocation5 [shape = 'u8[32768]{0}', space=vmem, size = 0x8000, scoped, tag = 'output window, operand 0, single buffered']
    %15 = vsyncpa [#allocation3], 0
    %16 = vsyncpa [#allocation4], 0
    // Predicated region
    $region2: #{tpu_custom_call.1} parent=1 // pred_check
      _
    $region3: #{tpu_custom_call.1} parent=1 // pred_check_branch
      %18 = sbr.rel (0) target = $region5
    $region4: #{tpu_custom_call.1} parent=1 // pred_region
      %s20 = ssub.s32 8192, 8192
      %21 = vsyncadd [#allocation3], %s20
      %s22 = sshll.u32 [#allocation2], 4
      %s23 = int_to_ptr.vmem [resolvable:$true] %s22
      %28 = dma.hbm_to_vmem [thread:$0]  %s0, 8192, %s23, [#allocation3], 128, 128, 8
    $region5: #{tpu_custom_call.1} parent=1 // pred_fallthru
      _
    // Predicated region
    $region6: #{tpu_custom_call.1} parent=1 // pred_check
      _
    $region7: #{tpu_custom_call.1} parent=1 // pred_check_branch
      %30 = sbr.rel (0) target = $region9
    $region8: #{tpu_custom_call.1} parent=1 // pred_region
      _
    $region9: #{tpu_custom_call.1} parent=1 // pred_fallthru
      _
    // Predicated region
    $region10: #{tpu_custom_call.1} parent=1 // pred_check
      _
    $region11: #{tpu_custom_call.1} parent=1 // pred_check_branch
      %32 = sbr.rel (0) target = $region13
    $region12: #{tpu_custom_call.1} parent=1 // pred_region
      _
    $region13: #{tpu_custom_call.1} parent=1 // pred_fallthru
      _
    // Predicated region
    $region14: #{tpu_custom_call.1} parent=1 // pred_check
      _
    $region15: #{tpu_custom_call.1} parent=1 // pred_check_branch
      %34 = sbr.rel (0) target = $region17
    $region16: #{tpu_custom_call.1} parent=1 // pred_region
      _
    $region17: #{tpu_custom_call.1} parent=1 // pred_fallthru
      _
    // Predicated region
    $region18: #{tpu_custom_call.1} parent=1 // pred_check
      _
    $region19: #{tpu_custom_call.1} parent=1 // pred_check_branch
      %36 = sbr.rel (0) target = $region21
    $region20: #{tpu_custom_call.1} parent=1 // pred_region
      _
    $region21: #{tpu_custom_call.1} parent=1 // pred_fallthru
      _
    // Predicated region
    $region22: #{tpu_custom_call.1} parent=1 // pred_check
      _
    $region23: #{tpu_custom_call.1} parent=1 // pred_check_branch
      %38 = sbr.rel (0) target = $region25
    $region24: #{tpu_custom_call.1} parent=1 // pred_region
      _
    $region25: #{tpu_custom_call.1} parent=1 // pred_fallthru
      _
    // Predicated region
    $region26: #{tpu_custom_call.1} parent=1 // pred_check
      _
    $region27: #{tpu_custom_call.1} parent=1 // pred_check_branch
      %40 = sbr.rel (0) target = $region29
    $region28: #{tpu_custom_call.1} parent=1 // pred_region
      _
    $region29: #{tpu_custom_call.1} parent=1 // pred_fallthru
      _
    // Predicated region
    $region30: #{tpu_custom_call.1} parent=1 // pred_check
      _
    $region31: #{tpu_custom_call.1} parent=1 // pred_check_branch
      %42 = sbr.rel (0) target = $region33
    $region32: #{tpu_custom_call.1} parent=1 // pred_region
      _
    $region33: #{tpu_custom_call.1} parent=1 // pred_fallthru
      _
    // Predicated region
    $region34: #{tpu_custom_call.1} parent=1 // pred_check
      _
    $region35: #{tpu_custom_call.1} parent=1 // pred_check_branch
      %44 = sbr.rel (0) target = $region37
    $region36: #{tpu_custom_call.1} parent=1 // pred_region
      _
    $region37: #{tpu_custom_call.1} parent=1 // pred_fallthru
      _
    // Predicated region
    $region38: #{tpu_custom_call.1} parent=1 // pred_check
      _
    $region39: #{tpu_custom_call.1} parent=1 // pred_check_branch
      %46 = sbr.rel (0) target = $region41
    $region40: #{tpu_custom_call.1} parent=1 // pred_region
      _
    $region41: #{tpu_custom_call.1} parent=1 // pred_fallthru
      _
    // Predicated region
    $region42: #{tpu_custom_call.1} parent=1 // pred_check
      _
    $region43: #{tpu_custom_call.1} parent=1 // pred_check_branch
      %48 = sbr.rel (0) target = $region45
    $region44: #{tpu_custom_call.1} parent=1 // pred_region
      %49 = dma.done [#allocation3], 8192
    $region45: #{tpu_custom_call.1} parent=1 // pred_fallthru
      _
    %v50 = vld [vmem:[%s1] sm:$0xff]
    %v51 = vld [vmem:[%s1 + $0x8] sm:$0xff]
    %v52 = vld [vmem:[#allocation2] sm:$0xff]
    %v53 = vld [vmem:[#allocation2 + $0x8] sm:$0xff]
    %v54 = vld [vmem:[#allocation2 + $0x10] sm:$0xff]
    %v55 = vld [vmem:[#allocation2 + $0x18] sm:$0xff]
    %v56 = vld [vmem:[#allocation2 + $0x20] sm:$0xff]
    %v57 = vld [vmem:[#allocation2 + $0x28] sm:$0xff]
    %v58 = vld [vmem:[#allocation2 + $0x30] sm:$0xff]
    %v59 = vld [vmem:[#allocation2 + $0x38] sm:$0xff]
    %v60 = vld [vmem:[#allocation2 + $0x40] sm:$0xff]
    %v61 = vld [vmem:[#allocation2 + $0x48] sm:$0xff]
    %v62 = vld [vmem:[#allocation2 + $0x50] sm:$0xff]
    %v63 = vld [vmem:[#allocation2 + $0x58] sm:$0xff]
    %v64 = vld [vmem:[#allocation2 + $0x60] sm:$0xff]
    %v65 = vld [vmem:[#allocation2 + $0x68] sm:$0xff]
    %v66 = vld [vmem:[#allocation2 + $0x70] sm:$0xff]
    %v67 = vld [vmem:[#allocation2 + $0x78] sm:$0xff]
    %68 = vmatprep.subr.mxu0 0.0
    %v69 = vand.u32 %v67, 4294901760
    %70 = vmatpush1.msra.mxu0 %v69
    %71 = vmatprep.subr.mxu0 0.0
    %v72 = vand.u32 %v66, 4294901760
    %73 = vmatpush1.msra.mxu0 %v72
    %74 = vmatprep.subr.mxu0 0.0
    %v75 = vand.u32 %v65, 4294901760
    %76 = vmatpush1.msra.mxu0 %v75
    %77 = vmatprep.subr.mxu0 0.0
    %v78 = vand.u32 %v64, 4294901760
    %79 = vmatpush1.msra.mxu0 %v78
    %80 = vmatprep.subr.mxu0 0.0
    %v81 = vand.u32 %v63, 4294901760
    %82 = vmatpush1.msra.mxu0 %v81
    %83 = vmatprep.subr.mxu0 0.0
    %v84 = vand.u32 %v62, 4294901760
    %85 = vmatpush1.msra.mxu0 %v84
    %86 = vmatprep.subr.mxu0 0.0
    %v87 = vand.u32 %v61, 4294901760
    %88 = vmatpush1.msra.mxu0 %v87
    %89 = vmatprep.subr.mxu0 0.0
    %v90 = vand.u32 %v60, 4294901760
    %91 = vmatpush1.msra.mxu0 %v90
    %92 = vmatprep.subr.mxu0 0.0
    %v93 = vand.u32 %v59, 4294901760
    %94 = vmatpush1.msra.mxu0 %v93
    %95 = vmatprep.subr.mxu0 0.0
    %v96 = vand.u32 %v58, 4294901760
    %97 = vmatpush1.msra.mxu0 %v96
    %98 = vmatprep.subr.mxu0 0.0
    %v99 = vand.u32 %v57, 4294901760
    %100 = vmatpush1.msra.mxu0 %v99
    %101 = vmatprep.subr.mxu0 0.0
    %v102 = vand.u32 %v56, 4294901760
    %103 = vmatpush1.msra.mxu0 %v102
    %104 = vmatprep.subr.mxu0 0.0
    %v105 = vand.u32 %v55, 4294901760
    %106 = vmatpush1.msra.mxu0 %v105
    %107 = vmatprep.subr.mxu0 0.0
    %v108 = vand.u32 %v54, 4294901760
    %109 = vmatpush1.msra.mxu0 %v108
    %110 = vmatprep.subr.mxu0 0.0
    %v111 = vand.u32 %v53, 4294901760
    %112 = vmatpush1.msra.mxu0 %v111
    %113 = vmatprep.subr.mxu0 0.0
    %v114 = vand.u32 %v52, 4294901760
    %115 = vmatpush1.msra.mxu0 %v114
    %116 = vmatprep.subr.mxu0 0.0
    %117 = vmatpush2.msra.mxu0 0.0
    %118 = vmatprep.subr.mxu0 0.0
    %119 = vmatpush2.msra.mxu0 0.0
    %120 = vmatprep.subr.mxu0 0.0
    %121 = vmatpush2.msra.mxu0 0.0
    %122 = vmatprep.subr.mxu0 0.0
    %123 = vmatpush2.msra.mxu0 0.0
    %124 = vmatprep.subr.mxu0 0.0
    %125 = vmatpush2.msra.mxu0 0.0
    %126 = vmatprep.subr.mxu0 0.0
    %127 = vmatpush2.msra.mxu0 0.0
    %128 = vmatprep.subr.mxu0 0.0
    %129 = vmatpush2.msra.mxu0 0.0
    %130 = vmatprep.subr.mxu0 0.0
    %131 = vmatpush2.msra.mxu0 0.0
    %132 = vmatprep.subr.mxu0 0.0
    %133 = vmatpush2.msra.mxu0 0.0
    %134 = vmatprep.subr.mxu0 0.0
    %135 = vmatpush2.msra.mxu0 0.0
    %136 = vmatprep.subr.mxu0 0.0
    %137 = vmatpush2.msra.mxu0 0.0
    %138 = vmatprep.subr.mxu0 0.0
    %139 = vmatpush2.msra.mxu0 0.0
    %140 = vmatprep.subr.mxu0 0.0
    %141 = vmatpush2.msra.mxu0 0.0
    %142 = vmatprep.subr.mxu0 0.0
    %143 = vmatpush2.msra.mxu0 0.0
    %144 = vmatprep.subr.mxu0 0.0
    %145 = vmatpush2.msra.mxu0 0.0
    %146 = vmatprep.subr.mxu0 0.0
    %147 = vmatpush2.msra.mxu0 0.0
    %148 = vmatprep.mubr.f32.mxu0 0.0
    %v149 = vand.u32 %v50, 4294901760
    %v150 = vsub.f32 %v50, %v149
    %v151 = vand.u32 %v150, 4294901760
    %v152 = vsub.f32 %v150, %v151
    %v153 = vand.u32 %v152, 4294901760
    %154 = vmatmul.mubr.f32.gmra.mxu0 %v153
    %v155 = vpop.f32.mrf.mxu0
    %v156 = vadd.f32 0.0, %v155
    %v157 = vpop.f32.mrf.mxu0
    %158 = vmatprep.mubr.f32.mxu0 0.0
    %v159 = vand.u32 %v51, 4294901760
    %v160 = vsub.f32 %v51, %v159
    %v161 = vand.u32 %v160, 4294901760
    %v162 = vsub.f32 %v160, %v161
    %v163 = vand.u32 %v162, 4294901760
    %164 = vmatmul.mubr.f32.gmra.mxu0 %v163
    %v165 = vpop.f32.mrf.mxu0
    %v166 = vadd.f32 0.0, %v165
    %v167 = vpop.f32.mrf.mxu0
    %168 = vdwg.mxu0
    %169 = vmatprep.subr.mxu0 0.0
    %v170 = vand.u32 %v67, 4294901760
    %v171 = vsub.f32 %v67, %v170
    %v172 = vand.u32 %v171, 4294901760
    %v173 = vsub.f32 %v171, %v172
    %v174 = vand.u32 %v173, 4294901760
    %175 = vmatpush1.msra.mxu0 %v174
    %176 = vmatprep.subr.mxu0 0.0
    %v177 = vand.u32 %v66, 4294901760
    %v178 = vsub.f32 %v66, %v177
    %v179 = vand.u32 %v178, 4294901760
    %v180 = vsub.f32 %v178, %v179
    %v181 = vand.u32 %v180, 4294901760
    %182 = vmatpush1.msra.mxu0 %v181
    %183 = vmatprep.subr.mxu0 0.0
    %v184 = vand.u32 %v65, 4294901760
    %v185 = vsub.f32 %v65, %v184
    %v186 = vand.u32 %v185, 4294901760
    %v187 = vsub.f32 %v185, %v186
    %v188 = vand.u32 %v187, 4294901760
    %189 = vmatpush1.msra.mxu0 %v188
    %190 = vmatprep.subr.mxu0 0.0
    %v191 = vand.u32 %v64, 4294901760
    %v192 = vsub.f32 %v64, %v191
    %v193 = vand.u32 %v192, 4294901760
    %v194 = vsub.f32 %v192, %v193
    %v195 = vand.u32 %v194, 4294901760
    %196 = vmatpush1.msra.mxu0 %v195
    %197 = vmatprep.subr.mxu0 0.0
    %v198 = vand.u32 %v63, 4294901760
    %v199 = vsub.f32 %v63, %v198
    %v200 = vand.u32 %v199, 4294901760
    %v201 = vsub.f32 %v199, %v200
    %v202 = vand.u32 %v201, 4294901760
    %203 = vmatpush1.msra.mxu0 %v202
    %204 = vmatprep.subr.mxu0 0.0
    %v205 = vand.u32 %v62, 4294901760
    %v206 = vsub.f32 %v62, %v205
    %v207 = vand.u32 %v206, 4294901760
    %v208 = vsub.f32 %v206, %v207
    %v209 = vand.u32 %v208, 4294901760
    %210 = vmatpush1.msra.mxu0 %v209
    %211 = vmatprep.subr.mxu0 0.0
    %v212 = vand.u32 %v61, 4294901760
    %v213 = vsub.f32 %v61, %v212
    %v214 = vand.u32 %v213, 4294901760
    %v215 = vsub.f32 %v213, %v214
    %v216 = vand.u32 %v215, 4294901760
    %217 = vmatpush1.msra.mxu0 %v216
    %218 = vmatprep.subr.mxu0 0.0
    %v219 = vand.u32 %v60, 4294901760
    %v220 = vsub.f32 %v60, %v219
    %v221 = vand.u32 %v220, 4294901760
    %v222 = vsub.f32 %v220, %v221
    %v223 = vand.u32 %v222, 4294901760
    %224 = vmatpush1.msra.mxu0 %v223
    %225 = vmatprep.subr.mxu0 0.0
    %v226 = vand.u32 %v59, 4294901760
    %v227 = vsub.f32 %v59, %v226
    %v228 = vand.u32 %v227, 4294901760
    %v229 = vsub.f32 %v227, %v228
    %v230 = vand.u32 %v229, 4294901760
    %231 = vmatpush1.msra.mxu0 %v230
    %232 = vmatprep.subr.mxu0 0.0
    %v233 = vand.u32 %v58, 4294901760
    %v234 = vsub.f32 %v58, %v233
    %v235 = vand.u32 %v234, 4294901760
    %v236 = vsub.f32 %v234, %v235
    %v237 = vand.u32 %v236, 4294901760
    %238 = vmatpush1.msra.mxu0 %v237
    %239 = vmatprep.subr.mxu0 0.0
    %v240 = vand.u32 %v57, 4294901760
    %v241 = vsub.f32 %v57, %v240
    %v242 = vand.u32 %v241, 4294901760
    %v243 = vsub.f32 %v241, %v242
    %v244 = vand.u32 %v243, 4294901760
    %245 = vmatpush1.msra.mxu0 %v244
    %246 = vmatprep.subr.mxu0 0.0
    %v247 = vand.u32 %v56, 4294901760
    %v248 = vsub.f32 %v56, %v247
    %v249 = vand.u32 %v248, 4294901760
    %v250 = vsub.f32 %v248, %v249
    %v251 = vand.u32 %v250, 4294901760
    %252 = vmatpush1.msra.mxu0 %v251
    %253 = vmatprep.subr.mxu0 0.0
    %v254 = vand.u32 %v55, 4294901760
    %v255 = vsub.f32 %v55, %v254
    %v256 = vand.u32 %v255, 4294901760
    %v257 = vsub.f32 %v255, %v256
    %v258 = vand.u32 %v257, 4294901760
    %259 = vmatpush1.msra.mxu0 %v258
    %260 = vmatprep.subr.mxu0 0.0
    %v261 = vand.u32 %v54, 4294901760
    %v262 = vsub.f32 %v54, %v261
    %v263 = vand.u32 %v262, 4294901760
    %v264 = vsub.f32 %v262, %v263
    %v265 = vand.u32 %v264, 4294901760
    %266 = vmatpush1.msra.mxu0 %v265
    %267 = vmatprep.subr.mxu0 0.0
    %v268 = vand.u32 %v53, 4294901760
    %v269 = vsub.f32 %v53, %v268
    %v270 = vand.u32 %v269, 4294901760
    %v271 = vsub.f32 %v269, %v270
    %v272 = vand.u32 %v271, 4294901760
    %273 = vmatpush1.msra.mxu0 %v272
    %274 = vmatprep.subr.mxu0 0.0
    %v275 = vand.u32 %v52, 4294901760
    %v276 = vsub.f32 %v52, %v275
    %v277 = vand.u32 %v276, 4294901760
    %v278 = vsub.f32 %v276, %v277
    %v279 = vand.u32 %v278, 4294901760
    %280 = vmatpush1.msra.mxu0 %v279
    %281 = vmatprep.subr.mxu0 0.0
    %282 = vmatpush2.msra.mxu0 0.0
    %283 = vmatprep.subr.mxu0 0.0
    %284 = vmatpush2.msra.mxu0 0.0
    %285 = vmatprep.subr.mxu0 0.0
    %286 = vmatpush2.msra.mxu0 0.0
    %287 = vmatprep.subr.mxu0 0.0
    %288 = vmatpush2.msra.mxu0 0.0
    %289 = vmatprep.subr.mxu0 0.0
    %290 = vmatpush2.msra.mxu0 0.0
    %291 = vmatprep.subr.mxu0 0.0
    %292 = vmatpush2.msra.mxu0 0.0
    %293 = vmatprep.subr.mxu0 0.0
    %294 = vmatpush2.msra.mxu0 0.0
    %295 = vmatprep.subr.mxu0 0.0
    %296 = vmatpush2.msra.mxu0 0.0
    %297 = vmatprep.subr.mxu0 0.0
    %298 = vmatpush2.msra.mxu0 0.0
    %299 = vmatprep.subr.mxu0 0.0
    %300 = vmatpush2.msra.mxu0 0.0
    %301 = vmatprep.subr.mxu0 0.0
    %302 = vmatpush2.msra.mxu0 0.0
    %303 = vmatprep.subr.mxu0 0.0
    %304 = vmatpush2.msra.mxu0 0.0
    %305 = vmatprep.subr.mxu0 0.0
    %306 = vmatpush2.msra.mxu0 0.0
    %307 = vmatprep.subr.mxu0 0.0
    %308 = vmatpush2.msra.mxu0 0.0
    %309 = vmatprep.subr.mxu0 0.0
    %310 = vmatpush2.msra.mxu0 0.0
    %311 = vmatprep.subr.mxu0 0.0
    %312 = vmatpush2.msra.mxu0 0.0
    %313 = vmatprep.mubr.f32.mxu0 0.0
    %v314 = vand.u32 %v50, 4294901760
    %315 = vmatmul.mubr.f32.gmra.mxu0 %v314
    %v316 = vpop.f32.mrf.mxu0
    %v317 = vadd.f32 %v156, %v316
    %v318 = vpop.f32.mrf.mxu0
    %319 = vmatprep.mubr.f32.mxu0 0.0
    %v320 = vand.u32 %v51, 4294901760
    %321 = vmatmul.mubr.f32.gmra.mxu0 %v320
    %v322 = vpop.f32.mrf.mxu0
    %v323 = vadd.f32 %v166, %v322
    %v324 = vpop.f32.mrf.mxu0
    %325 = vdwg.mxu0
    %326 = vmatprep.subr.mxu0 0.0
    %v327 = vand.u32 %v67, 4294901760
    %v328 = vsub.f32 %v67, %v327
    %329 = vmatpush1.msra.mxu0 %v328
    %330 = vmatprep.subr.mxu0 0.0
    %v331 = vand.u32 %v66, 4294901760
    %v332 = vsub.f32 %v66, %v331
    %333 = vmatpush1.msra.mxu0 %v332
    %334 = vmatprep.subr.mxu0 0.0
    %v335 = vand.u32 %v65, 4294901760
    %v336 = vsub.f32 %v65, %v335
    %337 = vmatpush1.msra.mxu0 %v336
    %338 = vmatprep.subr.mxu0 0.0
    %v339 = vand.u32 %v64, 4294901760
    %v340 = vsub.f32 %v64, %v339
    %341 = vmatpush1.msra.mxu0 %v340
    %342 = vmatprep.subr.mxu0 0.0
    %v343 = vand.u32 %v63, 4294901760
    %v344 = vsub.f32 %v63, %v343
    %345 = vmatpush1.msra.mxu0 %v344
    %346 = vmatprep.subr.mxu0 0.0
    %v347 = vand.u32 %v62, 4294901760
    %v348 = vsub.f32 %v62, %v347
    %349 = vmatpush1.msra.mxu0 %v348
    %350 = vmatprep.subr.mxu0 0.0
    %v351 = vand.u32 %v61, 4294901760
    %v352 = vsub.f32 %v61, %v351
    %353 = vmatpush1.msra.mxu0 %v352
    %354 = vmatprep.subr.mxu0 0.0
    %v355 = vand.u32 %v60, 4294901760
    %v356 = vsub.f32 %v60, %v355
    %357 = vmatpush1.msra.mxu0 %v356
    %358 = vmatprep.subr.mxu0 0.0
    %v359 = vand.u32 %v59, 4294901760
    %v360 = vsub.f32 %v59, %v359
    %361 = vmatpush1.msra.mxu0 %v360
    %362 = vmatprep.subr.mxu0 0.0
    %v363 = vand.u32 %v58, 4294901760
    %v364 = vsub.f32 %v58, %v363
    %365 = vmatpush1.msra.mxu0 %v364
    %366 = vmatprep.subr.mxu0 0.0
    %v367 = vand.u32 %v57, 4294901760
    %v368 = vsub.f32 %v57, %v367
    %369 = vmatpush1.msra.mxu0 %v368
    %370 = vmatprep.subr.mxu0 0.0
    %v371 = vand.u32 %v56, 4294901760
    %v372 = vsub.f32 %v56, %v371
    %373 = vmatpush1.msra.mxu0 %v372
    %374 = vmatprep.subr.mxu0 0.0
    %v375 = vand.u32 %v55, 4294901760
    %v376 = vsub.f32 %v55, %v375
    %377 = vmatpush1.msra.mxu0 %v376
    %378 = vmatprep.subr.mxu0 0.0
    %v379 = vand.u32 %v54, 4294901760
    %v380 = vsub.f32 %v54, %v379
    %381 = vmatpush1.msra.mxu0 %v380
    %382 = vmatprep.subr.mxu0 0.0
    %v383 = vand.u32 %v53, 4294901760
    %v384 = vsub.f32 %v53, %v383
    %385 = vmatpush1.msra.mxu0 %v384
    %386 = vmatprep.subr.mxu0 0.0
    %v387 = vand.u32 %v52, 4294901760
    %v388 = vsub.f32 %v52, %v387
    %389 = vmatpush1.msra.mxu0 %v388
    %390 = vmatprep.subr.mxu0 0.0
    %391 = vmatpush2.msra.mxu0 0.0
    %392 = vmatprep.subr.mxu0 0.0
    %393 = vmatpush2.msra.mxu0 0.0
    %394 = vmatprep.subr.mxu0 0.0
    %395 = vmatpush2.msra.mxu0 0.0
    %396 = vmatprep.subr.mxu0 0.0
    %397 = vmatpush2.msra.mxu0 0.0
    %398 = vmatprep.subr.mxu0 0.0
    %399 = vmatpush2.msra.mxu0 0.0
    %400 = vmatprep.subr.mxu0 0.0
    %401 = vmatpush2.msra.mxu0 0.0
    %402 = vmatprep.subr.mxu0 0.0
    %403 = vmatpush2.msra.mxu0 0.0
    %404 = vmatprep.subr.mxu0 0.0
    %405 = vmatpush2.msra.mxu0 0.0
    %406 = vmatprep.subr.mxu0 0.0
    %407 = vmatpush2.msra.mxu0 0.0
    %408 = vmatprep.subr.mxu0 0.0
    %409 = vmatpush2.msra.mxu0 0.0
    %410 = vmatprep.subr.mxu0 0.0
    %411 = vmatpush2.msra.mxu0 0.0
    %412 = vmatprep.subr.mxu0 0.0
    %413 = vmatpush2.msra.mxu0 0.0
    %414 = vmatprep.subr.mxu0 0.0
    %415 = vmatpush2.msra.mxu0 0.0
    %416 = vmatprep.subr.mxu0 0.0
    %417 = vmatpush2.msra.mxu0 0.0
    %418 = vmatprep.subr.mxu0 0.0
    %419 = vmatpush2.msra.mxu0 0.0
    %420 = vmatprep.subr.mxu0 0.0
    %421 = vmatpush2.msra.mxu0 0.0
    %422 = vmatprep.mubr.f32.mxu0 0.0
    %v423 = vand.u32 %v50, 4294901760
    %v424 = vsub.f32 %v50, %v423
    %425 = vmatmul.mubr.f32.gmra.mxu0 %v424
    %v426 = vpop.f32.mrf.mxu0
    %v427 = vadd.f32 %v317, %v426
    %v428 = vpop.f32.mrf.mxu0
    %429 = vmatprep.mubr.f32.mxu0 0.0
    %v430 = vand.u32 %v51, 4294901760
    %v431 = vsub.f32 %v51, %v430
    %432 = vmatmul.mubr.f32.gmra.mxu0 %v431
    %v433 = vpop.f32.mrf.mxu0
    %v434 = vadd.f32 %v323, %v433
    %v435 = vpop.f32.mrf.mxu0
    %436 = vdwg.mxu0
    %437 = vmatprep.subr.mxu0 0.0
    %v438 = vand.u32 %v67, 4294901760
    %439 = vmatpush1.msra.mxu0 %v438
    %440 = vmatprep.subr.mxu0 0.0
    %v441 = vand.u32 %v66, 4294901760
    %442 = vmatpush1.msra.mxu0 %v441
    %443 = vmatprep.subr.mxu0 0.0
    %v444 = vand.u32 %v65, 4294901760
    %445 = vmatpush1.msra.mxu0 %v444
    %446 = vmatprep.subr.mxu0 0.0
    %v447 = vand.u32 %v64, 4294901760
    %448 = vmatpush1.msra.mxu0 %v447
    %449 = vmatprep.subr.mxu0 0.0
    %v450 = vand.u32 %v63, 4294901760
    %451 = vmatpush1.msra.mxu0 %v450
    %452 = vmatprep.subr.mxu0 0.0
    %v453 = vand.u32 %v62, 4294901760
    %454 = vmatpush1.msra.mxu0 %v453
    %455 = vmatprep.subr.mxu0 0.0
    %v456 = vand.u32 %v61, 4294901760
    %457 = vmatpush1.msra.mxu0 %v456
    %458 = vmatprep.subr.mxu0 0.0
    %v459 = vand.u32 %v60, 4294901760
    %460 = vmatpush1.msra.mxu0 %v459
    %461 = vmatprep.subr.mxu0 0.0
    %v462 = vand.u32 %v59, 4294901760
    %463 = vmatpush1.msra.mxu0 %v462
    %464 = vmatprep.subr.mxu0 0.0
    %v465 = vand.u32 %v58, 4294901760
    %466 = vmatpush1.msra.mxu0 %v465
    %467 = vmatprep.subr.mxu0 0.0
    %v468 = vand.u32 %v57, 4294901760
    %469 = vmatpush1.msra.mxu0 %v468
    %470 = vmatprep.subr.mxu0 0.0
    %v471 = vand.u32 %v56, 4294901760
    %472 = vmatpush1.msra.mxu0 %v471
    %473 = vmatprep.subr.mxu0 0.0
    %v474 = vand.u32 %v55, 4294901760
    %475 = vmatpush1.msra.mxu0 %v474
    %476 = vmatprep.subr.mxu0 0.0
    %v477 = vand.u32 %v54, 4294901760
    %478 = vmatpush1.msra.mxu0 %v477
    %479 = vmatprep.subr.mxu0 0.0
    %v480 = vand.u32 %v53, 4294901760
    %481 = vmatpush1.msra.mxu0 %v480
    %482 = vmatprep.subr.mxu0 0.0
    %v483 = vand.u32 %v52, 4294901760
    %484 = vmatpush1.msra.mxu0 %v483
    %485 = vmatprep.subr.mxu0 0.0
    %486 = vmatpush2.msra.mxu0 0.0
    %487 = vmatprep.subr.mxu0 0.0
    %488 = vmatpush2.msra.mxu0 0.0
    %489 = vmatprep.subr.mxu0 0.0
    %490 = vmatpush2.msra.mxu0 0.0
    %491 = vmatprep.subr.mxu0 0.0
    %492 = vmatpush2.msra.mxu0 0.0
    %493 = vmatprep.subr.mxu0 0.0
    %494 = vmatpush2.msra.mxu0 0.0
    %495 = vmatprep.subr.mxu0 0.0
    %496 = vmatpush2.msra.mxu0 0.0
    %497 = vmatprep.subr.mxu0 0.0
    %498 = vmatpush2.msra.mxu0 0.0
    %499 = vmatprep.subr.mxu0 0.0
    %500 = vmatpush2.msra.mxu0 0.0
    %501 = vmatprep.subr.mxu0 0.0
    %502 = vmatpush2.msra.mxu0 0.0
    %503 = vmatprep.subr.mxu0 0.0
    %504 = vmatpush2.msra.mxu0 0.0
    %505 = vmatprep.subr.mxu0 0.0
    %506 = vmatpush2.msra.mxu0 0.0
    %507 = vmatprep.subr.mxu0 0.0
    %508 = vmatpush2.msra.mxu0 0.0
    %509 = vmatprep.subr.mxu0 0.0
    %510 = vmatpush2.msra.mxu0 0.0
    %511 = vmatprep.subr.mxu0 0.0
    %512 = vmatpush2.msra.mxu0 0.0
    %513 = vmatprep.subr.mxu0 0.0
    %514 = vmatpush2.msra.mxu0 0.0
    %515 = vmatprep.subr.mxu0 0.0
    %516 = vmatpush2.msra.mxu0 0.0
    %517 = vmatprep.mubr.f32.mxu0 0.0
    %v518 = vand.u32 %v50, 4294901760
    %v519 = vsub.f32 %v50, %v518
    %v520 = vand.u32 %v519, 4294901760
    %521 = vmatmul.mubr.f32.gmra.mxu0 %v520
    %v522 = vpop.f32.mrf.mxu0
    %v523 = vadd.f32 %v427, %v522
    %v524 = vpop.f32.mrf.mxu0
    %525 = vmatprep.mubr.f32.mxu0 0.0
    %v526 = vand.u32 %v51, 4294901760
    %v527 = vsub.f32 %v51, %v526
    %v528 = vand.u32 %v527, 4294901760
    %529 = vmatmul.mubr.f32.gmra.mxu0 %v528
    %v530 = vpop.f32.mrf.mxu0
    %v531 = vadd.f32 %v434, %v530
    %v532 = vpop.f32.mrf.mxu0
    %533 = vdwg.mxu0
    %534 = vmatprep.subr.mxu0 0.0
    %v535 = vand.u32 %v67, 4294901760
    %v536 = vsub.f32 %v67, %v535
    %v537 = vand.u32 %v536, 4294901760
    %538 = vmatpush1.msra.mxu0 %v537
    %539 = vmatprep.subr.mxu0 0.0
    %v540 = vand.u32 %v66, 4294901760
    %v541 = vsub.f32 %v66, %v540
    %v542 = vand.u32 %v541, 4294901760
    %543 = vmatpush1.msra.mxu0 %v542
    %544 = vmatprep.subr.mxu0 0.0
    %v545 = vand.u32 %v65, 4294901760
    %v546 = vsub.f32 %v65, %v545
    %v547 = vand.u32 %v546, 4294901760
    %548 = vmatpush1.msra.mxu0 %v547
    %549 = vmatprep.subr.mxu0 0.0
    %v550 = vand.u32 %v64, 4294901760
    %v551 = vsub.f32 %v64, %v550
    %v552 = vand.u32 %v551, 4294901760
    %553 = vmatpush1.msra.mxu0 %v552
    %554 = vmatprep.subr.mxu0 0.0
    %v555 = vand.u32 %v63, 4294901760
    %v556 = vsub.f32 %v63, %v555
    %v557 = vand.u32 %v556, 4294901760
    %558 = vmatpush1.msra.mxu0 %v557
    %559 = vmatprep.subr.mxu0 0.0
    %v560 = vand.u32 %v62, 4294901760
    %v561 = vsub.f32 %v62, %v560
    %v562 = vand.u32 %v561, 4294901760
    %563 = vmatpush1.msra.mxu0 %v562
    %564 = vmatprep.subr.mxu0 0.0
    %v565 = vand.u32 %v61, 4294901760
    %v566 = vsub.f32 %v61, %v565
    %v567 = vand.u32 %v566, 4294901760
    %568 = vmatpush1.msra.mxu0 %v567
    %569 = vmatprep.subr.mxu0 0.0
    %v570 = vand.u32 %v60, 4294901760
    %v571 = vsub.f32 %v60, %v570
    %v572 = vand.u32 %v571, 4294901760
    %573 = vmatpush1.msra.mxu0 %v572
    %574 = vmatprep.subr.mxu0 0.0
    %v575 = vand.u32 %v59, 4294901760
    %v576 = vsub.f32 %v59, %v575
    %v577 = vand.u32 %v576, 4294901760
    %578 = vmatpush1.msra.mxu0 %v577
    %579 = vmatprep.subr.mxu0 0.0
    %v580 = vand.u32 %v58, 4294901760
    %v581 = vsub.f32 %v58, %v580
    %v582 = vand.u32 %v581, 4294901760
    %583 = vmatpush1.msra.mxu0 %v582
    %584 = vmatprep.subr.mxu0 0.0
    %v585 = vand.u32 %v57, 4294901760
    %v586 = vsub.f32 %v57, %v585
    %v587 = vand.u32 %v586, 4294901760
    %588 = vmatpush1.msra.mxu0 %v587
    %589 = vmatprep.subr.mxu0 0.0
    %v590 = vand.u32 %v56, 4294901760
    %v591 = vsub.f32 %v56, %v590
    %v592 = vand.u32 %v591, 4294901760
    %593 = vmatpush1.msra.mxu0 %v592
    %594 = vmatprep.subr.mxu0 0.0
    %v595 = vand.u32 %v55, 4294901760
    %v596 = vsub.f32 %v55, %v595
    %v597 = vand.u32 %v596, 4294901760
    %598 = vmatpush1.msra.mxu0 %v597
    %599 = vmatprep.subr.mxu0 0.0
    %v600 = vand.u32 %v54, 4294901760
    %v601 = vsub.f32 %v54, %v600
    %v602 = vand.u32 %v601, 4294901760
    %603 = vmatpush1.msra.mxu0 %v602
    %604 = vmatprep.subr.mxu0 0.0
    %v605 = vand.u32 %v53, 4294901760
    %v606 = vsub.f32 %v53, %v605
    %v607 = vand.u32 %v606, 4294901760
    %608 = vmatpush1.msra.mxu0 %v607
    %609 = vmatprep.subr.mxu0 0.0
    %v610 = vand.u32 %v52, 4294901760
    %v611 = vsub.f32 %v52, %v610
    %v612 = vand.u32 %v611, 4294901760
    %613 = vmatpush1.msra.mxu0 %v612
    %614 = vmatprep.subr.mxu0 0.0
    %615 = vmatpush2.msra.mxu0 0.0
    %616 = vmatprep.subr.mxu0 0.0
    %617 = vmatpush2.msra.mxu0 0.0
    %618 = vmatprep.subr.mxu0 0.0
    %619 = vmatpush2.msra.mxu0 0.0
    %620 = vmatprep.subr.mxu0 0.0
    %621 = vmatpush2.msra.mxu0 0.0
    %622 = vmatprep.subr.mxu0 0.0
    %623 = vmatpush2.msra.mxu0 0.0
    %624 = vmatprep.subr.mxu0 0.0
    %625 = vmatpush2.msra.mxu0 0.0
    %626 = vmatprep.subr.mxu0 0.0
    %627 = vmatpush2.msra.mxu0 0.0
    %628 = vmatprep.subr.mxu0 0.0
    %629 = vmatpush2.msra.mxu0 0.0
    %630 = vmatprep.subr.mxu0 0.0
    %631 = vmatpush2.msra.mxu0 0.0
    %632 = vmatprep.subr.mxu0 0.0
    %633 = vmatpush2.msra.mxu0 0.0
    %634 = vmatprep.subr.mxu0 0.0
    %635 = vmatpush2.msra.mxu0 0.0
    %636 = vmatprep.subr.mxu0 0.0
    %637 = vmatpush2.msra.mxu0 0.0
    %638 = vmatprep.subr.mxu0 0.0
    %639 = vmatpush2.msra.mxu0 0.0
    %640 = vmatprep.subr.mxu0 0.0
    %641 = vmatpush2.msra.mxu0 0.0
    %642 = vmatprep.subr.mxu0 0.0
    %643 = vmatpush2.msra.mxu0 0.0
    %644 = vmatprep.subr.mxu0 0.0
    %645 = vmatpush2.msra.mxu0 0.0
    %646 = vmatprep.mubr.f32.mxu0 0.0
    %v647 = vand.u32 %v50, 4294901760
    %648 = vmatmul.mubr.f32.gmra.mxu0 %v647
    %v649 = vpop.f32.mrf.mxu0
    %v650 = vadd.f32 %v523, %v649
    %v651 = vpop.f32.mrf.mxu0
    %652 = vmatprep.mubr.f32.mxu0 0.0
    %v653 = vand.u32 %v51, 4294901760
    %654 = vmatmul.mubr.f32.gmra.mxu0 %v653
    %v655 = vpop.f32.mrf.mxu0
    %v656 = vadd.f32 %v531, %v655
    %v657 = vpop.f32.mrf.mxu0
    %658 = vdwg.mxu0
    %659 = vmatprep.subr.mxu0 0.0
    %v660 = vand.u32 %v67, 4294901760
    %661 = vmatpush1.msra.mxu0 %v660
    %662 = vmatprep.subr.mxu0 0.0
    %v663 = vand.u32 %v66, 4294901760
    %664 = vmatpush1.msra.mxu0 %v663
    %665 = vmatprep.subr.mxu0 0.0
    %v666 = vand.u32 %v65, 4294901760
    %667 = vmatpush1.msra.mxu0 %v666
    %668 = vmatprep.subr.mxu0 0.0
    %v669 = vand.u32 %v64, 4294901760
    %670 = vmatpush1.msra.mxu0 %v669
    %671 = vmatprep.subr.mxu0 0.0
    %v672 = vand.u32 %v63, 4294901760
    %673 = vmatpush1.msra.mxu0 %v672
    %674 = vmatprep.subr.mxu0 0.0
    %v675 = vand.u32 %v62, 4294901760
    %676 = vmatpush1.msra.mxu0 %v675
    %677 = vmatprep.subr.mxu0 0.0
    %v678 = vand.u32 %v61, 4294901760
    %679 = vmatpush1.msra.mxu0 %v678
    %680 = vmatprep.subr.mxu0 0.0
    %v681 = vand.u32 %v60, 4294901760
    %682 = vmatpush1.msra.mxu0 %v681
    %683 = vmatprep.subr.mxu0 0.0
    %v684 = vand.u32 %v59, 4294901760
    %685 = vmatpush1.msra.mxu0 %v684
    %686 = vmatprep.subr.mxu0 0.0
    %v687 = vand.u32 %v58, 4294901760
    %688 = vmatpush1.msra.mxu0 %v687
    %689 = vmatprep.subr.mxu0 0.0
    %v690 = vand.u32 %v57, 4294901760
    %691 = vmatpush1.msra.mxu0 %v690
    %692 = vmatprep.subr.mxu0 0.0
    %v693 = vand.u32 %v56, 4294901760
    %694 = vmatpush1.msra.mxu0 %v693
    %695 = vmatprep.subr.mxu0 0.0
    %v696 = vand.u32 %v55, 4294901760
    %697 = vmatpush1.msra.mxu0 %v696
    %698 = vmatprep.subr.mxu0 0.0
    %v699 = vand.u32 %v54, 4294901760
    %700 = vmatpush1.msra.mxu0 %v699
    %701 = vmatprep.subr.mxu0 0.0
    %v702 = vand.u32 %v53, 4294901760
    %703 = vmatpush1.msra.mxu0 %v702
    %704 = vmatprep.subr.mxu0 0.0
    %v705 = vand.u32 %v52, 4294901760
    %706 = vmatpush1.msra.mxu0 %v705
    %707 = vmatprep.subr.mxu0 0.0
    %708 = vmatpush2.msra.mxu0 0.0
    %709 = vmatprep.subr.mxu0 0.0
    %710 = vmatpush2.msra.mxu0 0.0
    %711 = vmatprep.subr.mxu0 0.0
    %712 = vmatpush2.msra.mxu0 0.0
    %713 = vmatprep.subr.mxu0 0.0
    %714 = vmatpush2.msra.mxu0 0.0
    %715 = vmatprep.subr.mxu0 0.0
    %716 = vmatpush2.msra.mxu0 0.0
    %717 = vmatprep.subr.mxu0 0.0
    %718 = vmatpush2.msra.mxu0 0.0
    %719 = vmatprep.subr.mxu0 0.0
    %720 = vmatpush2.msra.mxu0 0.0
    %721 = vmatprep.subr.mxu0 0.0
    %722 = vmatpush2.msra.mxu0 0.0
    %723 = vmatprep.subr.mxu0 0.0
    %724 = vmatpush2.msra.mxu0 0.0
    %725 = vmatprep.subr.mxu0 0.0
    %726 = vmatpush2.msra.mxu0 0.0
    %727 = vmatprep.subr.mxu0 0.0
    %728 = vmatpush2.msra.mxu0 0.0
    %729 = vmatprep.subr.mxu0 0.0
    %730 = vmatpush2.msra.mxu0 0.0
    %731 = vmatprep.subr.mxu0 0.0
    %732 = vmatpush2.msra.mxu0 0.0
    %733 = vmatprep.subr.mxu0 0.0
    %734 = vmatpush2.msra.mxu0 0.0
    %735 = vmatprep.subr.mxu0 0.0
    %736 = vmatpush2.msra.mxu0 0.0
    %737 = vmatprep.subr.mxu0 0.0
    %738 = vmatpush2.msra.mxu0 0.0
    %739 = vmatprep.mubr.f32.mxu0 0.0
    %v740 = vand.u32 %v50, 4294901760
    %741 = vmatmul.mubr.f32.gmra.mxu0 %v740
    %v742 = vpop.f32.mrf.mxu0
    %v743 = vadd.f32 %v650, %v742
    %v744 = vpop.f32.mrf.mxu0
    %745 = vmatprep.mubr.f32.mxu0 0.0
    %v746 = vand.u32 %v51, 4294901760
    %747 = vmatmul.mubr.f32.gmra.mxu0 %v746
    %v748 = vpop.f32.mrf.mxu0
    %v749 = vadd.f32 %v656, %v748
    %v750 = vpop.f32.mrf.mxu0
    %751 = vdwg.mxu0
    %s752 = scalar_lea.vmem %s1, 16
    %v753 = vld [vmem:[%s752] sm:$0xff]
    %v754 = vld [vmem:[%s752 + $0x8] sm:$0xff]
    %s755 = scalar_lea.vmem [#allocation2], 128
    %v756 = vld [vmem:[%s755] sm:$0xff]
    %v757 = vld [vmem:[%s755 + $0x8] sm:$0xff]
    %v758 = vld [vmem:[%s755 + $0x10] sm:$0xff]
    %v759 = vld [vmem:[%s755 + $0x18] sm:$0xff]
    %v760 = vld [vmem:[%s755 + $0x20] sm:$0xff]
    %v761 = vld [vmem:[%s755 + $0x28] sm:$0xff]
    %v762 = vld [vmem:[%s755 + $0x30] sm:$0xff]
    %v763 = vld [vmem:[%s755 + $0x38] sm:$0xff]
    %v764 = vld [vmem:[%s755 + $0x40] sm:$0xff]
    %v765 = vld [vmem:[%s755 + $0x48] sm:$0xff]
    %v766 = vld [vmem:[%s755 + $0x50] sm:$0xff]
    %v767 = vld [vmem:[%s755 + $0x58] sm:$0xff]
    %v768 = vld [vmem:[%s755 + $0x60] sm:$0xff]
    %v769 = vld [vmem:[%s755 + $0x68] sm:$0xff]
    %v770 = vld [vmem:[%s755 + $0x70] sm:$0xff]
    %v771 = vld [vmem:[%s755 + $0x78] sm:$0xff]
    %772 = vmatprep.subr.mxu0 0.0
    %v773 = vand.u32 %v771, 4294901760
    %774 = vmatpush1.msra.mxu0 %v773
    %775 = vmatprep.subr.mxu0 0.0
    %v776 = vand.u32 %v770, 4294901760
    %777 = vmatpush1.msra.mxu0 %v776
    %778 = vmatprep.subr.mxu0 0.0
    %v779 = vand.u32 %v769, 4294901760
    %780 = vmatpush1.msra.mxu0 %v779
    %781 = vmatprep.subr.mxu0 0.0
    %v782 = vand.u32 %v768, 4294901760
    %783 = vmatpush1.msra.mxu0 %v782
    %784 = vmatprep.subr.mxu0 0.0
    %v785 = vand.u32 %v767, 4294901760
    %786 = vmatpush1.msra.mxu0 %v785
    %787 = vmatprep.subr.mxu0 0.0
    %v788 = vand.u32 %v766, 4294901760
    %789 = vmatpush1.msra.mxu0 %v788
    %790 = vmatprep.subr.mxu0 0.0
    %v791 = vand.u32 %v765, 4294901760
    %792 = vmatpush1.msra.mxu0 %v791
    %793 = vmatprep.subr.mxu0 0.0
    %v794 = vand.u32 %v764, 4294901760
    %795 = vmatpush1.msra.mxu0 %v794
    %796 = vmatprep.subr.mxu0 0.0
    %v797 = vand.u32 %v763, 4294901760
    %798 = vmatpush1.msra.mxu0 %v797
    %799 = vmatprep.subr.mxu0 0.0
    %v800 = vand.u32 %v762, 4294901760
    %801 = vmatpush1.msra.mxu0 %v800
    %802 = vmatprep.subr.mxu0 0.0
    %v803 = vand.u32 %v761, 4294901760
    %804 = vmatpush1.msra.mxu0 %v803
    %805 = vmatprep.subr.mxu0 0.0
    %v806 = vand.u32 %v760, 4294901760
    %807 = vmatpush1.msra.mxu0 %v806
    %808 = vmatprep.subr.mxu0 0.0
    %v809 = vand.u32 %v759, 4294901760
    %810 = vmatpush1.msra.mxu0 %v809
    %811 = vmatprep.subr.mxu0 0.0
    %v812 = vand.u32 %v758, 4294901760
    %813 = vmatpush1.msra.mxu0 %v812
    %814 = vmatprep.subr.mxu0 0.0
    %v815 = vand.u32 %v757, 4294901760
    %816 = vmatpush1.msra.mxu0 %v815
    %817 = vmatprep.subr.mxu0 0.0
    %v818 = vand.u32 %v756, 4294901760
    %819 = vmatpush1.msra.mxu0 %v818
    %820 = vmatprep.subr.mxu0 0.0
    %821 = vmatpush2.msra.mxu0 0.0
    %822 = vmatprep.subr.mxu0 0.0
    %823 = vmatpush2.msra.mxu0 0.0
    %824 = vmatprep.subr.mxu0 0.0
    %825 = vmatpush2.msra.mxu0 0.0
    %826 = vmatprep.subr.mxu0 0.0
    %827 = vmatpush2.msra.mxu0 0.0
    %828 = vmatprep.subr.mxu0 0.0
    %829 = vmatpush2.msra.mxu0 0.0
    %830 = vmatprep.subr.mxu0 0.0
    %831 = vmatpush2.msra.mxu0 0.0
    %832 = vmatprep.subr.mxu0 0.0
    %833 = vmatpush2.msra.mxu0 0.0
    %834 = vmatprep.subr.mxu0 0.0
    %835 = vmatpush2.msra.mxu0 0.0
    %836 = vmatprep.subr.mxu0 0.0
    %837 = vmatpush2.msra.mxu0 0.0
    %838 = vmatprep.subr.mxu0 0.0
    %839 = vmatpush2.msra.mxu0 0.0
    %840 = vmatprep.subr.mxu0 0.0
    %841 = vmatpush2.msra.mxu0 0.0
    %842 = vmatprep.subr.mxu0 0.0
    %843 = vmatpush2.msra.mxu0 0.0
    %844 = vmatprep.subr.mxu0 0.0
    %845 = vmatpush2.msra.mxu0 0.0
    %846 = vmatprep.subr.mxu0 0.0
    %847 = vmatpush2.msra.mxu0 0.0
    %848 = vmatprep.subr.mxu0 0.0
    %849 = vmatpush2.msra.mxu0 0.0
    %850 = vmatprep.subr.mxu0 0.0
    %851 = vmatpush2.msra.mxu0 0.0
    %852 = vmatprep.mubr.f32.mxu0 0.0
    %v853 = vand.u32 %v753, 4294901760
    %v854 = vsub.f32 %v753, %v853
    %v855 = vand.u32 %v854, 4294901760
    %v856 = vsub.f32 %v854, %v855
    %v857 = vand.u32 %v856, 4294901760
    %858 = vmatmul.mubr.f32.gmra.mxu0 %v857
    %v859 = vpop.f32.mrf.mxu0
    %v860 = vadd.f32 0.0, %v859
    %v861 = vpop.f32.mrf.mxu0
    %862 = vmatprep.mubr.f32.mxu0 0.0
    %v863 = vand.u32 %v754, 4294901760
    %v864 = vsub.f32 %v754, %v863
    %v865 = vand.u32 %v864, 4294901760
    %v866 = vsub.f32 %v864, %v865
    %v867 = vand.u32 %v866, 4294901760
    %868 = vmatmul.mubr.f32.gmra.mxu0 %v867
    %v869 = vpop.f32.mrf.mxu0
    %v870 = vadd.f32 0.0, %v869
    %v871 = vpop.f32.mrf.mxu0
    %872 = vdwg.mxu0
    %873 = vmatprep.subr.mxu0 0.0
    %v874 = vand.u32 %v771, 4294901760
    %v875 = vsub.f32 %v771, %v874
    %v876 = vand.u32 %v875, 4294901760
    %v877 = vsub.f32 %v875, %v876
    %v878 = vand.u32 %v877, 4294901760
    %879 = vmatpush1.msra.mxu0 %v878
    %880 = vmatprep.subr.mxu0 0.0
    %v881 = vand.u32 %v770, 4294901760
    %v882 = vsub.f32 %v770, %v881
    %v883 = vand.u32 %v882, 4294901760
    %v884 = vsub.f32 %v882, %v883
    %v885 = vand.u32 %v884, 4294901760
    %886 = vmatpush1.msra.mxu0 %v885
    %887 = vmatprep.subr.mxu0 0.0
    %v888 = vand.u32 %v769, 4294901760
    %v889 = vsub.f32 %v769, %v888
    %v890 = vand.u32 %v889, 4294901760
    %v891 = vsub.f32 %v889, %v890
    %v892 = vand.u32 %v891, 4294901760
    %893 = vmatpush1.msra.mxu0 %v892
    %894 = vmatprep.subr.mxu0 0.0
    %v895 = vand.u32 %v768, 4294901760
    %v896 = vsub.f32 %v768, %v895
    %v897 = vand.u32 %v896, 4294901760
    %v898 = vsub.f32 %v896, %v897
    %v899 = vand.u32 %v898, 4294901760
    %900 = vmatpush1.msra.mxu0 %v899
    %901 = vmatprep.subr.mxu0 0.0
    %v902 = vand.u32 %v767, 4294901760
    %v903 = vsub.f32 %v767, %v902
    %v904 = vand.u32 %v903, 4294901760
    %v905 = vsub.f32 %v903, %v904
    %v906 = vand.u32 %v905, 4294901760
    %907 = vmatpush1.msra.mxu0 %v906
    %908 = vmatprep.subr.mxu0 0.0
    %v909 = vand.u32 %v766, 4294901760
    %v910 = vsub.f32 %v766, %v909
    %v911 = vand.u32 %v910, 4294901760
    %v912 = vsub.f32 %v910, %v911
    %v913 = vand.u32 %v912, 4294901760
    %914 = vmatpush1.msra.mxu0 %v913
    %915 = vmatprep.subr.mxu0 0.0
    %v916 = vand.u32 %v765, 4294901760
    %v917 = vsub.f32 %v765, %v916
    %v918 = vand.u32 %v917, 4294901760
    %v919 = vsub.f32 %v917, %v918
    %v920 = vand.u32 %v919, 4294901760
    %921 = vmatpush1.msra.mxu0 %v920
    %922 = vmatprep.subr.mxu0 0.0
    %v923 = vand.u32 %v764, 4294901760
    %v924 = vsub.f32 %v764, %v923
    %v925 = vand.u32 %v924, 4294901760
    %v926 = vsub.f32 %v924, %v925
    %v927 = vand.u32 %v926, 4294901760
    %928 = vmatpush1.msra.mxu0 %v927
    %929 = vmatprep.subr.mxu0 0.0
    %v930 = vand.u32 %v763, 4294901760
    %v931 = vsub.f32 %v763, %v930
    %v932 = vand.u32 %v931, 4294901760
    %v933 = vsub.f32 %v931, %v932
    %v934 = vand.u32 %v933, 4294901760
    %935 = vmatpush1.msra.mxu0 %v934
    %936 = vmatprep.subr.mxu0 0.0
    %v937 = vand.u32 %v762, 4294901760
    %v938 = vsub.f32 %v762, %v937
    %v939 = vand.u32 %v938, 4294901760
    %v940 = vsub.f32 %v938, %v939
    %v941 = vand.u32 %v940, 4294901760
    %942 = vmatpush1.msra.mxu0 %v941
    %943 = vmatprep.subr.mxu0 0.0
    %v944 = vand.u32 %v761, 4294901760
    %v945 = vsub.f32 %v761, %v944
    %v946 = vand.u32 %v945, 4294901760
    %v947 = vsub.f32 %v945, %v946
    %v948 = vand.u32 %v947, 4294901760
    %949 = vmatpush1.msra.mxu0 %v948
    %950 = vmatprep.subr.mxu0 0.0
    %v951 = vand.u32 %v760, 4294901760
    %v952 = vsub.f32 %v760, %v951
    %v953 = vand.u32 %v952, 4294901760
    %v954 = vsub.f32 %v952, %v953
    %v955 = vand.u32 %v954, 4294901760
    %956 = vmatpush1.msra.mxu0 %v955
    %957 = vmatprep.subr.mxu0 0.0
    %v958 = vand.u32 %v759, 4294901760
    %v959 = vsub.f32 %v759, %v958
    %v960 = vand.u32 %v959, 4294901760
    %v961 = vsub.f32 %v959, %v960
    %v962 = vand.u32 %v961, 4294901760
    %963 = vmatpush1.msra.mxu0 %v962
    %964 = vmatprep.subr.mxu0 0.0
    %v965 = vand.u32 %v758, 4294901760
    %v966 = vsub.f32 %v758, %v965
    %v967 = vand.u32 %v966, 4294901760
    %v968 = vsub.f32 %v966, %v967
    %v969 = vand.u32 %v968, 4294901760
    %970 = vmatpush1.msra.mxu0 %v969
    %971 = vmatprep.subr.mxu0 0.0
    %v972 = vand.u32 %v757, 4294901760
    %v973 = vsub.f32 %v757, %v972
    %v974 = vand.u32 %v973, 4294901760
    %v975 = vsub.f32 %v973, %v974
    %v976 = vand.u32 %v975, 4294901760
    %977 = vmatpush1.msra.mxu0 %v976
    %978 = vmatprep.subr.mxu0 0.0
    %v979 = vand.u32 %v756, 4294901760
    %v980 = vsub.f32 %v756, %v979
    %v981 = vand.u32 %v980, 4294901760
    %v982 = vsub.f32 %v980, %v981
    %v983 = vand.u32 %v982, 4294901760
    %984 = vmatpush1.msra.mxu0 %v983
    %985 = vmatprep.subr.mxu0 0.0
    %986 = vmatpush2.msra.mxu0 0.0
    %987 = vmatprep.subr.mxu0 0.0
    %988 = vmatpush2.msra.mxu0 0.0
    %989 = vmatprep.subr.mxu0 0.0
    %990 = vmatpush2.msra.mxu0 0.0
    %991 = vmatprep.subr.mxu0 0.0
    %992 = vmatpush2.msra.mxu0 0.0
    %993 = vmatprep.subr.mxu0 0.0
    %994 = vmatpush2.msra.mxu0 0.0
    %995 = vmatprep.subr.mxu0 0.0
    %996 = vmatpush2.msra.mxu0 0.0
    %997 = vmatprep.subr.mxu0 0.0
    %998 = vmatpush2.msra.mxu0 0.0
    %999 = vmatprep.subr.mxu0 0.0
    %1000 = vmatpush2.msra.mxu0 0.0
    %1001 = vmatprep.subr.mxu0 0.0
    %1002 = vmatpush2.msra.mxu0 0.0
    %1003 = vmatprep.subr.mxu0 0.0
    %1004 = vmatpush2.msra.mxu0 0.0
    %1005 = vmatprep.subr.mxu0 0.0
    %1006 = vmatpush2.msra.mxu0 0.0
    %1007 = vmatprep.subr.mxu0 0.0
    %1008 = vmatpush2.msra.mxu0 0.0
    %1009 = vmatprep.subr.mxu0 0.0
    %1010 = vmatpush2.msra.mxu0 0.0
    %1011 = vmatprep.subr.mxu0 0.0
    %1012 = vmatpush2.msra.mxu0 0.0
    %1013 = vmatprep.subr.mxu0 0.0
    %1014 = vmatpush2.msra.mxu0 0.0
    %1015 = vmatprep.subr.mxu0 0.0
    %1016 = vmatpush2.msra.mxu0 0.0
    %1017 = vmatprep.mubr.f32.mxu0 0.0
    %v1018 = vand.u32 %v753, 4294901760
    %1019 = vmatmul.mubr.f32.gmra.mxu0 %v1018
    %v1020 = vpop.f32.mrf.mxu0
    %v1021 = vadd.f32 %v860, %v1020
    %v1022 = vpop.f32.mrf.mxu0
    %1023 = vmatprep.mubr.f32.mxu0 0.0
    %v1024 = vand.u32 %v754, 4294901760
    %1025 = vmatmul.mubr.f32.gmra.mxu0 %v1024
    %v1026 = vpop.f32.mrf.mxu0
    %v1027 = vadd.f32 %v870, %v1026
    %v1028 = vpop.f32.mrf.mxu0
    %1029 = vdwg.mxu0
    %1030 = vmatprep.subr.mxu0 0.0
    %v1031 = vand.u32 %v771, 4294901760
    %v1032 = vsub.f32 %v771, %v1031
    %1033 = vmatpush1.msra.mxu0 %v1032
    %1034 = vmatprep.subr.mxu0 0.0
    %v1035 = vand.u32 %v770, 4294901760
    %v1036 = vsub.f32 %v770, %v1035
    %1037 = vmatpush1.msra.mxu0 %v1036
    %1038 = vmatprep.subr.mxu0 0.0
    %v1039 = vand.u32 %v769, 4294901760
    %v1040 = vsub.f32 %v769, %v1039
    %1041 = vmatpush1.msra.mxu0 %v1040
    %1042 = vmatprep.subr.mxu0 0.0
    %v1043 = vand.u32 %v768, 4294901760
    %v1044 = vsub.f32 %v768, %v1043
    %1045 = vmatpush1.msra.mxu0 %v1044
    %1046 = vmatprep.subr.mxu0 0.0
    %v1047 = vand.u32 %v767, 4294901760
    %v1048 = vsub.f32 %v767, %v1047
    %1049 = vmatpush1.msra.mxu0 %v1048
    %1050 = vmatprep.subr.mxu0 0.0
    %v1051 = vand.u32 %v766, 4294901760
    %v1052 = vsub.f32 %v766, %v1051
    %1053 = vmatpush1.msra.mxu0 %v1052
    %1054 = vmatprep.subr.mxu0 0.0
    %v1055 = vand.u32 %v765, 4294901760
    %v1056 = vsub.f32 %v765, %v1055
    %1057 = vmatpush1.msra.mxu0 %v1056
    %1058 = vmatprep.subr.mxu0 0.0
    %v1059 = vand.u32 %v764, 4294901760
    %v1060 = vsub.f32 %v764, %v1059
    %1061 = vmatpush1.msra.mxu0 %v1060
    %1062 = vmatprep.subr.mxu0 0.0
    %v1063 = vand.u32 %v763, 4294901760
    %v1064 = vsub.f32 %v763, %v1063
    %1065 = vmatpush1.msra.mxu0 %v1064
    %1066 = vmatprep.subr.mxu0 0.0
    %v1067 = vand.u32 %v762, 4294901760
    %v1068 = vsub.f32 %v762, %v1067
    %1069 = vmatpush1.msra.mxu0 %v1068
    %1070 = vmatprep.subr.mxu0 0.0
    %v1071 = vand.u32 %v761, 4294901760
    %v1072 = vsub.f32 %v761, %v1071
    %1073 = vmatpush1.msra.mxu0 %v1072
    %1074 = vmatprep.subr.mxu0 0.0
    %v1075 = vand.u32 %v760, 4294901760
    %v1076 = vsub.f32 %v760, %v1075
    %1077 = vmatpush1.msra.mxu0 %v1076
    %1078 = vmatprep.subr.mxu0 0.0
    %v1079 = vand.u32 %v759, 4294901760
    %v1080 = vsub.f32 %v759, %v1079
    %1081 = vmatpush1.msra.mxu0 %v1080
    %1082 = vmatprep.subr.mxu0 0.0
    %v1083 = vand.u32 %v758, 4294901760
    %v1084 = vsub.f32 %v758, %v1083
    %1085 = vmatpush1.msra.mxu0 %v1084
    %1086 = vmatprep.subr.mxu0 0.0
    %v1087 = vand.u32 %v757, 4294901760
    %v1088 = vsub.f32 %v757, %v1087
    %1089 = vmatpush1.msra.mxu0 %v1088
    %1090 = vmatprep.subr.mxu0 0.0
    %v1091 = vand.u32 %v756, 4294901760
    %v1092 = vsub.f32 %v756, %v1091
    %1093 = vmatpush1.msra.mxu0 %v1092
    %1094 = vmatprep.subr.mxu0 0.0
    %1095 = vmatpush2.msra.mxu0 0.0
    %1096 = vmatprep.subr.mxu0 0.0
    %1097 = vmatpush2.msra.mxu0 0.0
    %1098 = vmatprep.subr.mxu0 0.0
    %1099 = vmatpush2.msra.mxu0 0.0
    %1100 = vmatprep.subr.mxu0 0.0
    %1101 = vmatpush2.msra.mxu0 0.0
    %1102 = vmatprep.subr.mxu0 0.0
    %1103 = vmatpush2.msra.mxu0 0.0
    %1104 = vmatprep.subr.mxu0 0.0
    %1105 = vmatpush2.msra.mxu0 0.0
    %1106 = vmatprep.subr.mxu0 0.0
    %1107 = vmatpush2.msra.mxu0 0.0
    %1108 = vmatprep.subr.mxu0 0.0
    %1109 = vmatpush2.msra.mxu0 0.0
    %1110 = vmatprep.subr.mxu0 0.0
    %1111 = vmatpush2.msra.mxu0 0.0
    %1112 = vmatprep.subr.mxu0 0.0
    %1113 = vmatpush2.msra.mxu0 0.0
    %1114 = vmatprep.subr.mxu0 0.0
    %1115 = vmatpush2.msra.mxu0 0.0
    %1116 = vmatprep.subr.mxu0 0.0
    %1117 = vmatpush2.msra.mxu0 0.0
    %1118 = vmatprep.subr.mxu0 0.0
    %1119 = vmatpush2.msra.mxu0 0.0
    %1120 = vmatprep.subr.mxu0 0.0
    %1121 = vmatpush2.msra.mxu0 0.0
    %1122 = vmatprep.subr.mxu0 0.0
    %1123 = vmatpush2.msra.mxu0 0.0
    %1124 = vmatprep.subr.mxu0 0.0
    %1125 = vmatpush2.msra.mxu0 0.0
    %1126 = vmatprep.mubr.f32.mxu0 0.0
    %v1127 = vand.u32 %v753, 4294901760
    %v1128 = vsub.f32 %v753, %v1127
    %1129 = vmatmul.mubr.f32.gmra.mxu0 %v1128
    %v1130 = vpop.f32.mrf.mxu0
    %v1131 = vadd.f32 %v1021, %v1130
    %v1132 = vpop.f32.mrf.mxu0
    %1133 = vmatprep.mubr.f32.mxu0 0.0
    %v1134 = vand.u32 %v754, 4294901760
    %v1135 = vsub.f32 %v754, %v1134
    %1136 = vmatmul.mubr.f32.gmra.mxu0 %v1135
    %v1137 = vpop.f32.mrf.mxu0
    %v1138 = vadd.f32 %v1027, %v1137
    %v1139 = vpop.f32.mrf.mxu0
    %1140 = vdwg.mxu0
    %1141 = vmatprep.subr.mxu0 0.0
    %v1142 = vand.u32 %v771, 4294901760
    %1143 = vmatpush1.msra.mxu0 %v1142
    %1144 = vmatprep.subr.mxu0 0.0
    %v1145 = vand.u32 %v770, 4294901760
    %1146 = vmatpush1.msra.mxu0 %v1145
    %1147 = vmatprep.subr.mxu0 0.0
    %v1148 = vand.u32 %v769, 4294901760
    %1149 = vmatpush1.msra.mxu0 %v1148
    %1150 = vmatprep.subr.mxu0 0.0
    %v1151 = vand.u32 %v768, 4294901760
    %1152 = vmatpush1.msra.mxu0 %v1151
    %1153 = vmatprep.subr.mxu0 0.0
    %v1154 = vand.u32 %v767, 4294901760
    %1155 = vmatpush1.msra.mxu0 %v1154
    %1156 = vmatprep.subr.mxu0 0.0
    %v1157 = vand.u32 %v766, 4294901760
    %1158 = vmatpush1.msra.mxu0 %v1157
    %1159 = vmatprep.subr.mxu0 0.0
    %v1160 = vand.u32 %v765, 4294901760
    %1161 = vmatpush1.msra.mxu0 %v1160
    %1162 = vmatprep.subr.mxu0 0.0
    %v1163 = vand.u32 %v764, 4294901760
    %1164 = vmatpush1.msra.mxu0 %v1163
    %1165 = vmatprep.subr.mxu0 0.0
    %v1166 = vand.u32 %v763, 4294901760
    %1167 = vmatpush1.msra.mxu0 %v1166
    %1168 = vmatprep.subr.mxu0 0.0
    %v1169 = vand.u32 %v762, 4294901760
    %1170 = vmatpush1.msra.mxu0 %v1169
    %1171 = vmatprep.subr.mxu0 0.0
    %v1172 = vand.u32 %v761, 4294901760
    %1173 = vmatpush1.msra.mxu0 %v1172
    %1174 = vmatprep.subr.mxu0 0.0
    %v1175 = vand.u32 %v760, 4294901760
    %1176 = vmatpush1.msra.mxu0 %v1175
    %1177 = vmatprep.subr.mxu0 0.0
    %v1178 = vand.u32 %v759, 4294901760
    %1179 = vmatpush1.msra.mxu0 %v1178
    %1180 = vmatprep.subr.mxu0 0.0
    %v1181 = vand.u32 %v758, 4294901760
    %1182 = vmatpush1.msra.mxu0 %v1181
    %1183 = vmatprep.subr.mxu0 0.0
    %v1184 = vand.u32 %v757, 4294901760
    %1185 = vmatpush1.msra.mxu0 %v1184
    %1186 = vmatprep.subr.mxu0 0.0
    %v1187 = vand.u32 %v756, 4294901760
    %1188 = vmatpush1.msra.mxu0 %v1187
    %1189 = vmatprep.subr.mxu0 0.0
    %1190 = vmatpush2.msra.mxu0 0.0
    %1191 = vmatprep.subr.mxu0 0.0
    %1192 = vmatpush2.msra.mxu0 0.0
    %1193 = vmatprep.subr.mxu0 0.0
    %1194 = vmatpush2.msra.mxu0 0.0
    %1195 = vmatprep.subr.mxu0 0.0
    %1196 = vmatpush2.msra.mxu0 0.0
    %1197 = vmatprep.subr.mxu0 0.0
    %1198 = vmatpush2.msra.mxu0 0.0
    %1199 = vmatprep.subr.mxu0 0.0
    %1200 = vmatpush2.msra.mxu0 0.0
    %1201 = vmatprep.subr.mxu0 0.0
    %1202 = vmatpush2.msra.mxu0 0.0
    %1203 = vmatprep.subr.mxu0 0.0
    %1204 = vmatpush2.msra.mxu0 0.0
    %1205 = vmatprep.subr.mxu0 0.0
    %1206 = vmatpush2.msra.mxu0 0.0
    %1207 = vmatprep.subr.mxu0 0.0
    %1208 = vmatpush2.msra.mxu0 0.0
    %1209 = vmatprep.subr.mxu0 0.0
    %1210 = vmatpush2.msra.mxu0 0.0
    %1211 = vmatprep.subr.mxu0 0.0
    %1212 = vmatpush2.msra.mxu0 0.0
    %1213 = vmatprep.subr.mxu0 0.0
    %1214 = vmatpush2.msra.mxu0 0.0
    %1215 = vmatprep.subr.mxu0 0.0
    %1216 = vmatpush2.msra.mxu0 0.0
    %1217 = vmatprep.subr.mxu0 0.0
    %1218 = vmatpush2.msra.mxu0 0.0
    %1219 = vmatprep.subr.mxu0 0.0
    %1220 = vmatpush2.msra.mxu0 0.0
    %1221 = vmatprep.mubr.f32.mxu0 0.0
    %v1222 = vand.u32 %v753, 4294901760
    %v1223 = vsub.f32 %v753, %v1222
    %v1224 = vand.u32 %v1223, 4294901760
    %1225 = vmatmul.mubr.f32.gmra.mxu0 %v1224
    %v1226 = vpop.f32.mrf.mxu0
    %v1227 = vadd.f32 %v1131, %v1226
    %v1228 = vpop.f32.mrf.mxu0
    %1229 = vmatprep.mubr.f32.mxu0 0.0
    %v1230 = vand.u32 %v754, 4294901760
    %v1231 = vsub.f32 %v754, %v1230
    %v1232 = vand.u32 %v1231, 4294901760
    %1233 = vmatmul.mubr.f32.gmra.mxu0 %v1232
    %v1234 = vpop.f32.mrf.mxu0
    %v1235 = vadd.f32 %v1138, %v1234
    %v1236 = vpop.f32.mrf.mxu0
    %1237 = vdwg.mxu0
    %1238 = vmatprep.subr.mxu0 0.0
    %v1239 = vand.u32 %v771, 4294901760
    %v1240 = vsub.f32 %v771, %v1239
    %v1241 = vand.u32 %v1240, 4294901760
    %1242 = vmatpush1.msra.mxu0 %v1241
    %1243 = vmatprep.subr.mxu0 0.0
    %v1244 = vand.u32 %v770, 4294901760
    %v1245 = vsub.f32 %v770, %v1244
    %v1246 = vand.u32 %v1245, 4294901760
    %1247 = vmatpush1.msra.mxu0 %v1246
    %1248 = vmatprep.subr.mxu0 0.0
    %v1249 = vand.u32 %v769, 4294901760
    %v1250 = vsub.f32 %v769, %v1249
    %v1251 = vand.u32 %v1250, 4294901760
    %1252 = vmatpush1.msra.mxu0 %v1251
    %1253 = vmatprep.subr.mxu0 0.0
    %v1254 = vand.u32 %v768, 4294901760
    %v1255 = vsub.f32 %v768, %v1254
    %v1256 = vand.u32 %v1255, 4294901760
    %1257 = vmatpush1.msra.mxu0 %v1256
    %1258 = vmatprep.subr.mxu0 0.0
    %v1259 = vand.u32 %v767, 4294901760
    %v1260 = vsub.f32 %v767, %v1259
    %v1261 = vand.u32 %v1260, 4294901760
    %1262 = vmatpush1.msra.mxu0 %v1261
    %1263 = vmatprep.subr.mxu0 0.0
    %v1264 = vand.u32 %v766, 4294901760
    %v1265 = vsub.f32 %v766, %v1264
    %v1266 = vand.u32 %v1265, 4294901760
    %1267 = vmatpush1.msra.mxu0 %v1266
    %1268 = vmatprep.subr.mxu0 0.0
    %v1269 = vand.u32 %v765, 4294901760
    %v1270 = vsub.f32 %v765, %v1269
    %v1271 = vand.u32 %v1270, 4294901760
    %1272 = vmatpush1.msra.mxu0 %v1271
    %1273 = vmatprep.subr.mxu0 0.0
    %v1274 = vand.u32 %v764, 4294901760
    %v1275 = vsub.f32 %v764, %v1274
    %v1276 = vand.u32 %v1275, 4294901760
    %1277 = vmatpush1.msra.mxu0 %v1276
    %1278 = vmatprep.subr.mxu0 0.0
    %v1279 = vand.u32 %v763, 4294901760
    %v1280 = vsub.f32 %v763, %v1279
    %v1281 = vand.u32 %v1280, 4294901760
    %1282 = vmatpush1.msra.mxu0 %v1281
    %1283 = vmatprep.subr.mxu0 0.0
    %v1284 = vand.u32 %v762, 4294901760
    %v1285 = vsub.f32 %v762, %v1284
    %v1286 = vand.u32 %v1285, 4294901760
    %1287 = vmatpush1.msra.mxu0 %v1286
    %1288 = vmatprep.subr.mxu0 0.0
    %v1289 = vand.u32 %v761, 4294901760
    %v1290 = vsub.f32 %v761, %v1289
    %v1291 = vand.u32 %v1290, 4294901760
    %1292 = vmatpush1.msra.mxu0 %v1291
    %1293 = vmatprep.subr.mxu0 0.0
    %v1294 = vand.u32 %v760, 4294901760
    %v1295 = vsub.f32 %v760, %v1294
    %v1296 = vand.u32 %v1295, 4294901760
    %1297 = vmatpush1.msra.mxu0 %v1296
    %1298 = vmatprep.subr.mxu0 0.0
    %v1299 = vand.u32 %v759, 4294901760
    %v1300 = vsub.f32 %v759, %v1299
    %v1301 = vand.u32 %v1300, 4294901760
    %1302 = vmatpush1.msra.mxu0 %v1301
    %1303 = vmatprep.subr.mxu0 0.0
    %v1304 = vand.u32 %v758, 4294901760
    %v1305 = vsub.f32 %v758, %v1304
    %v1306 = vand.u32 %v1305, 4294901760
    %1307 = vmatpush1.msra.mxu0 %v1306
    %1308 = vmatprep.subr.mxu0 0.0
    %v1309 = vand.u32 %v757, 4294901760
    %v1310 = vsub.f32 %v757, %v1309
    %v1311 = vand.u32 %v1310, 4294901760
    %1312 = vmatpush1.msra.mxu0 %v1311
    %1313 = vmatprep.subr.mxu0 0.0
    %v1314 = vand.u32 %v756, 4294901760
    %v1315 = vsub.f32 %v756, %v1314
    %v1316 = vand.u32 %v1315, 4294901760
    %1317 = vmatpush1.msra.mxu0 %v1316
    %1318 = vmatprep.subr.mxu0 0.0
    %1319 = vmatpush2.msra.mxu0 0.0
    %1320 = vmatprep.subr.mxu0 0.0
    %1321 = vmatpush2.msra.mxu0 0.0
    %1322 = vmatprep.subr.mxu0 0.0
    %1323 = vmatpush2.msra.mxu0 0.0
    %1324 = vmatprep.subr.mxu0 0.0
    %1325 = vmatpush2.msra.mxu0 0.0
    %1326 = vmatprep.subr.mxu0 0.0
    %1327 = vmatpush2.msra.mxu0 0.0
    %1328 = vmatprep.subr.mxu0 0.0
    %1329 = vmatpush2.msra.mxu0 0.0
    %1330 = vmatprep.subr.mxu0 0.0
    %1331 = vmatpush2.msra.mxu0 0.0
    %1332 = vmatprep.subr.mxu0 0.0
    %1333 = vmatpush2.msra.mxu0 0.0
    %1334 = vmatprep.subr.mxu0 0.0
    %1335 = vmatpush2.msra.mxu0 0.0
    %1336 = vmatprep.subr.mxu0 0.0
    %1337 = vmatpush2.msra.mxu0 0.0
    %1338 = vmatprep.subr.mxu0 0.0
    %1339 = vmatpush2.msra.mxu0 0.0
    %1340 = vmatprep.subr.mxu0 0.0
    %1341 = vmatpush2.msra.mxu0 0.0
    %1342 = vmatprep.subr.mxu0 0.0
    %1343 = vmatpush2.msra.mxu0 0.0
    %1344 = vmatprep.subr.mxu0 0.0
    %1345 = vmatpush2.msra.mxu0 0.0
    %1346 = vmatprep.subr.mxu0 0.0
    %1347 = vmatpush2.msra.mxu0 0.0
    %1348 = vmatprep.subr.mxu0 0.0
    %1349 = vmatpush2.msra.mxu0 0.0
    %1350 = vmatprep.mubr.f32.mxu0 0.0
    %v1351 = vand.u32 %v753, 4294901760
    %1352 = vmatmul.mubr.f32.gmra.mxu0 %v1351
    %v1353 = vpop.f32.mrf.mxu0
    %v1354 = vadd.f32 %v1227, %v1353
    %v1355 = vpop.f32.mrf.mxu0
    %1356 = vmatprep.mubr.f32.mxu0 0.0
    %v1357 = vand.u32 %v754, 4294901760
    %1358 = vmatmul.mubr.f32.gmra.mxu0 %v1357
    %v1359 = vpop.f32.mrf.mxu0
    %v1360 = vadd.f32 %v1235, %v1359
    %v1361 = vpop.f32.mrf.mxu0
    %1362 = vdwg.mxu0
    %1363 = vmatprep.subr.mxu0 0.0
    %v1364 = vand.u32 %v771, 4294901760
    %1365 = vmatpush1.msra.mxu0 %v1364
    %1366 = vmatprep.subr.mxu0 0.0
    %v1367 = vand.u32 %v770, 4294901760
    %1368 = vmatpush1.msra.mxu0 %v1367
    %1369 = vmatprep.subr.mxu0 0.0
    %v1370 = vand.u32 %v769, 4294901760
    %1371 = vmatpush1.msra.mxu0 %v1370
    %1372 = vmatprep.subr.mxu0 0.0
    %v1373 = vand.u32 %v768, 4294901760
    %1374 = vmatpush1.msra.mxu0 %v1373
    %1375 = vmatprep.subr.mxu0 0.0
    %v1376 = vand.u32 %v767, 4294901760
    %1377 = vmatpush1.msra.mxu0 %v1376
    %1378 = vmatprep.subr.mxu0 0.0
    %v1379 = vand.u32 %v766, 4294901760
    %1380 = vmatpush1.msra.mxu0 %v1379
    %1381 = vmatprep.subr.mxu0 0.0
    %v1382 = vand.u32 %v765, 4294901760
    %1383 = vmatpush1.msra.mxu0 %v1382
    %1384 = vmatprep.subr.mxu0 0.0
    %v1385 = vand.u32 %v764, 4294901760
    %1386 = vmatpush1.msra.mxu0 %v1385
    %1387 = vmatprep.subr.mxu0 0.0
    %v1388 = vand.u32 %v763, 4294901760
    %1389 = vmatpush1.msra.mxu0 %v1388
    %1390 = vmatprep.subr.mxu0 0.0
    %v1391 = vand.u32 %v762, 4294901760
    %1392 = vmatpush1.msra.mxu0 %v1391
    %1393 = vmatprep.subr.mxu0 0.0
    %v1394 = vand.u32 %v761, 4294901760
    %1395 = vmatpush1.msra.mxu0 %v1394
    %1396 = vmatprep.subr.mxu0 0.0
    %v1397 = vand.u32 %v760, 4294901760
    %1398 = vmatpush1.msra.mxu0 %v1397
    %1399 = vmatprep.subr.mxu0 0.0
    %v1400 = vand.u32 %v759, 4294901760
    %1401 = vmatpush1.msra.mxu0 %v1400
    %1402 = vmatprep.subr.mxu0 0.0
    %v1403 = vand.u32 %v758, 4294901760
    %1404 = vmatpush1.msra.mxu0 %v1403
    %1405 = vmatprep.subr.mxu0 0.0
    %v1406 = vand.u32 %v757, 4294901760
    %1407 = vmatpush1.msra.mxu0 %v1406
    %1408 = vmatprep.subr.mxu0 0.0
    %v1409 = vand.u32 %v756, 4294901760
    %1410 = vmatpush1.msra.mxu0 %v1409
    %1411 = vmatprep.subr.mxu0 0.0
    %1412 = vmatpush2.msra.mxu0 0.0
    %1413 = vmatprep.subr.mxu0 0.0
    %1414 = vmatpush2.msra.mxu0 0.0
    %1415 = vmatprep.subr.mxu0 0.0
    %1416 = vmatpush2.msra.mxu0 0.0
    %1417 = vmatprep.subr.mxu0 0.0
    %1418 = vmatpush2.msra.mxu0 0.0
    %1419 = vmatprep.subr.mxu0 0.0
    %1420 = vmatpush2.msra.mxu0 0.0
    %1421 = vmatprep.subr.mxu0 0.0
    %1422 = vmatpush2.msra.mxu0 0.0
    %1423 = vmatprep.subr.mxu0 0.0
    %1424 = vmatpush2.msra.mxu0 0.0
    %1425 = vmatprep.subr.mxu0 0.0
    %1426 = vmatpush2.msra.mxu0 0.0
    %1427 = vmatprep.subr.mxu0 0.0
    %1428 = vmatpush2.msra.mxu0 0.0
    %1429 = vmatprep.subr.mxu0 0.0
    %1430 = vmatpush2.msra.mxu0 0.0
    %1431 = vmatprep.subr.mxu0 0.0
    %1432 = vmatpush2.msra.mxu0 0.0
    %1433 = vmatprep.subr.mxu0 0.0
    %1434 = vmatpush2.msra.mxu0 0.0
    %1435 = vmatprep.subr.mxu0 0.0
    %1436 = vmatpush2.msra.mxu0 0.0
    %1437 = vmatprep.subr.mxu0 0.0
    %1438 = vmatpush2.msra.mxu0 0.0
    %1439 = vmatprep.subr.mxu0 0.0
    %1440 = vmatpush2.msra.mxu0 0.0
    %1441 = vmatprep.subr.mxu0 0.0
    %1442 = vmatpush2.msra.mxu0 0.0
    %1443 = vmatprep.mubr.f32.mxu0 0.0
    %v1444 = vand.u32 %v753, 4294901760
    %1445 = vmatmul.mubr.f32.gmra.mxu0 %v1444
    %v1446 = vpop.f32.mrf.mxu0
    %v1447 = vadd.f32 %v1354, %v1446
    %v1448 = vpop.f32.mrf.mxu0
    %1449 = vmatprep.mubr.f32.mxu0 0.0
    %v1450 = vand.u32 %v754, 4294901760
    %1451 = vmatmul.mubr.f32.gmra.mxu0 %v1450
    %v1452 = vpop.f32.mrf.mxu0
    %v1453 = vadd.f32 %v1360, %v1452
    %v1454 = vpop.f32.mrf.mxu0
    %1455 = vdwg.mxu0
    %s1456 = scalar_lea.vmem %s1, 32
    %v1457 = vld [vmem:[%s1456] sm:$0xff]
    %v1458 = vld [vmem:[%s1456 + $0x8] sm:$0xff]
    %s1459 = scalar_lea.vmem [#allocation2], 256
    %v1460 = vld [vmem:[%s1459] sm:$0xff]
    %v1461 = vld [vmem:[%s1459 + $0x8] sm:$0xff]
    %v1462 = vld [vmem:[%s1459 + $0x10] sm:$0xff]
    %v1463 = vld [vmem:[%s1459 + $0x18] sm:$0xff]
    %v1464 = vld [vmem:[%s1459 + $0x20] sm:$0xff]
    %v1465 = vld [vmem:[%s1459 + $0x28] sm:$0xff]
    %v1466 = vld [vmem:[%s1459 + $0x30] sm:$0xff]
    %v1467 = vld [vmem:[%s1459 + $0x38] sm:$0xff]
    %v1468 = vld [vmem:[%s1459 + $0x40] sm:$0xff]
    %v1469 = vld [vmem:[%s1459 + $0x48] sm:$0xff]
    %v1470 = vld [vmem:[%s1459 + $0x50] sm:$0xff]
    %v1471 = vld [vmem:[%s1459 + $0x58] sm:$0xff]
    %v1472 = vld [vmem:[%s1459 + $0x60] sm:$0xff]
    %v1473 = vld [vmem:[%s1459 + $0x68] sm:$0xff]
    %v1474 = vld [vmem:[%s1459 + $0x70] sm:$0xff]
    %v1475 = vld [vmem:[%s1459 + $0x78] sm:$0xff]
    %1476 = vmatprep.subr.mxu0 0.0
    %v1477 = vand.u32 %v1475, 4294901760
    %1478 = vmatpush1.msra.mxu0 %v1477
    %1479 = vmatprep.subr.mxu0 0.0
    %v1480 = vand.u32 %v1474, 4294901760
    %1481 = vmatpush1.msra.mxu0 %v1480
    %1482 = vmatprep.subr.mxu0 0.0
    %v1483 = vand.u32 %v1473, 4294901760
    %1484 = vmatpush1.msra.mxu0 %v1483
    %1485 = vmatprep.subr.mxu0 0.0
    %v1486 = vand.u32 %v1472, 4294901760
    %1487 = vmatpush1.msra.mxu0 %v1486
    %1488 = vmatprep.subr.mxu0 0.0
    %v1489 = vand.u32 %v1471, 4294901760
    %1490 = vmatpush1.msra.mxu0 %v1489
    %1491 = vmatprep.subr.mxu0 0.0
    %v1492 = vand.u32 %v1470, 4294901760
    %1493 = vmatpush1.msra.mxu0 %v1492
    %1494 = vmatprep.subr.mxu0 0.0
    %v1495 = vand.u32 %v1469, 4294901760
    %1496 = vmatpush1.msra.mxu0 %v1495
    %1497 = vmatprep.subr.mxu0 0.0
    %v1498 = vand.u32 %v1468, 4294901760
    %1499 = vmatpush1.msra.mxu0 %v1498
    %1500 = vmatprep.subr.mxu0 0.0
    %v1501 = vand.u32 %v1467, 4294901760
    %1502 = vmatpush1.msra.mxu0 %v1501
    %1503 = vmatprep.subr.mxu0 0.0
    %v1504 = vand.u32 %v1466, 4294901760
    %1505 = vmatpush1.msra.mxu0 %v1504
    %1506 = vmatprep.subr.mxu0 0.0
    %v1507 = vand.u32 %v1465, 4294901760
    %1508 = vmatpush1.msra.mxu0 %v1507
    %1509 = vmatprep.subr.mxu0 0.0
    %v1510 = vand.u32 %v1464, 4294901760
    %1511 = vmatpush1.msra.mxu0 %v1510
    %1512 = vmatprep.subr.mxu0 0.0
    %v1513 = vand.u32 %v1463, 4294901760
    %1514 = vmatpush1.msra.mxu0 %v1513
    %1515 = vmatprep.subr.mxu0 0.0
    %v1516 = vand.u32 %v1462, 4294901760
    %1517 = vmatpush1.msra.mxu0 %v1516
    %1518 = vmatprep.subr.mxu0 0.0
    %v1519 = vand.u32 %v1461, 4294901760
    %1520 = vmatpush1.msra.mxu0 %v1519
    %1521 = vmatprep.subr.mxu0 0.0
    %v1522 = vand.u32 %v1460, 4294901760
    %1523 = vmatpush1.msra.mxu0 %v1522
    %1524 = vmatprep.subr.mxu0 0.0
    %1525 = vmatpush2.msra.mxu0 0.0
    %1526 = vmatprep.subr.mxu0 0.0
    %1527 = vmatpush2.msra.mxu0 0.0
    %1528 = vmatprep.subr.mxu0 0.0
    %1529 = vmatpush2.msra.mxu0 0.0
    %1530 = vmatprep.subr.mxu0 0.0
    %1531 = vmatpush2.msra.mxu0 0.0
    %1532 = vmatprep.subr.mxu0 0.0
    %1533 = vmatpush2.msra.mxu0 0.0
    %1534 = vmatprep.subr.mxu0 0.0
    %1535 = vmatpush2.msra.mxu0 0.0
    %1536 = vmatprep.subr.mxu0 0.0
    %1537 = vmatpush2.msra.mxu0 0.0
    %1538 = vmatprep.subr.mxu0 0.0
    %1539 = vmatpush2.msra.mxu0 0.0
    %1540 = vmatprep.subr.mxu0 0.0
    %1541 = vmatpush2.msra.mxu0 0.0
    %1542 = vmatprep.subr.mxu0 0.0
    %1543 = vmatpush2.msra.mxu0 0.0
    %1544 = vmatprep.subr.mxu0 0.0
    %1545 = vmatpush2.msra.mxu0 0.0
    %1546 = vmatprep.subr.mxu0 0.0
    %1547 = vmatpush2.msra.mxu0 0.0
    %1548 = vmatprep.subr.mxu0 0.0
    %1549 = vmatpush2.msra.mxu0 0.0
    %1550 = vmatprep.subr.mxu0 0.0
    %1551 = vmatpush2.msra.mxu0 0.0
    %1552 = vmatprep.subr.mxu0 0.0
    %1553 = vmatpush2.msra.mxu0 0.0
    %1554 = vmatprep.subr.mxu0 0.0
    %1555 = vmatpush2.msra.mxu0 0.0
    %1556 = vmatprep.mubr.f32.mxu0 0.0
    %v1557 = vand.u32 %v1457, 4294901760
    %v1558 = vsub.f32 %v1457, %v1557
    %v1559 = vand.u32 %v1558, 4294901760
    %v1560 = vsub.f32 %v1558, %v1559
    %v1561 = vand.u32 %v1560, 4294901760
    %1562 = vmatmul.mubr.f32.gmra.mxu0 %v1561
    %v1563 = vpop.f32.mrf.mxu0
    %v1564 = vadd.f32 0.0, %v1563
    %v1565 = vpop.f32.mrf.mxu0
    %1566 = vmatprep.mubr.f32.mxu0 0.0
    %v1567 = vand.u32 %v1458, 4294901760
    %v1568 = vsub.f32 %v1458, %v1567
    %v1569 = vand.u32 %v1568, 4294901760
    %v1570 = vsub.f32 %v1568, %v1569
    %v1571 = vand.u32 %v1570, 4294901760
    %1572 = vmatmul.mubr.f32.gmra.mxu0 %v1571
    %v1573 = vpop.f32.mrf.mxu0
    %v1574 = vadd.f32 0.0, %v1573
    %v1575 = vpop.f32.mrf.mxu0
    %1576 = vdwg.mxu0
    %1577 = vmatprep.subr.mxu0 0.0
    %v1578 = vand.u32 %v1475, 4294901760
    %v1579 = vsub.f32 %v1475, %v1578
    %v1580 = vand.u32 %v1579, 4294901760
    %v1581 = vsub.f32 %v1579, %v1580
    %v1582 = vand.u32 %v1581, 4294901760
    %1583 = vmatpush1.msra.mxu0 %v1582
    %1584 = vmatprep.subr.mxu0 0.0
    %v1585 = vand.u32 %v1474, 4294901760
    %v1586 = vsub.f32 %v1474, %v1585
    %v1587 = vand.u32 %v1586, 4294901760
    %v1588 = vsub.f32 %v1586, %v1587
    %v1589 = vand.u32 %v1588, 4294901760
    %1590 = vmatpush1.msra.mxu0 %v1589
    %1591 = vmatprep.subr.mxu0 0.0
    %v1592 = vand.u32 %v1473, 4294901760
    %v1593 = vsub.f32 %v1473, %v1592
    %v1594 = vand.u32 %v1593, 4294901760
    %v1595 = vsub.f32 %v1593, %v1594
    %v1596 = vand.u32 %v1595, 4294901760
    %1597 = vmatpush1.msra.mxu0 %v1596
    %1598 = vmatprep.subr.mxu0 0.0
    %v1599 = vand.u32 %v1472, 4294901760
    %v1600 = vsub.f32 %v1472, %v1599
    %v1601 = vand.u32 %v1600, 4294901760
    %v1602 = vsub.f32 %v1600, %v1601
    %v1603 = vand.u32 %v1602, 4294901760
    %1604 = vmatpush1.msra.mxu0 %v1603
    %1605 = vmatprep.subr.mxu0 0.0
    %v1606 = vand.u32 %v1471, 4294901760
    %v1607 = vsub.f32 %v1471, %v1606
    %v1608 = vand.u32 %v1607, 4294901760
    %v1609 = vsub.f32 %v1607, %v1608
    %v1610 = vand.u32 %v1609, 4294901760
    %1611 = vmatpush1.msra.mxu0 %v1610
    %1612 = vmatprep.subr.mxu0 0.0
    %v1613 = vand.u32 %v1470, 4294901760
    %v1614 = vsub.f32 %v1470, %v1613
    %v1615 = vand.u32 %v1614, 4294901760
    %v1616 = vsub.f32 %v1614, %v1615
    %v1617 = vand.u32 %v1616, 4294901760
    %1618 = vmatpush1.msra.mxu0 %v1617
    %1619 = vmatprep.subr.mxu0 0.0
    %v1620 = vand.u32 %v1469, 4294901760
    %v1621 = vsub.f32 %v1469, %v1620
    %v1622 = vand.u32 %v1621, 4294901760
    %v1623 = vsub.f32 %v1621, %v1622
    %v1624 = vand.u32 %v1623, 4294901760
    %1625 = vmatpush1.msra.mxu0 %v1624
    %1626 = vmatprep.subr.mxu0 0.0
    %v1627 = vand.u32 %v1468, 4294901760
    %v1628 = vsub.f32 %v1468, %v1627
    %v1629 = vand.u32 %v1628, 4294901760
    %v1630 = vsub.f32 %v1628, %v1629
    %v1631 = vand.u32 %v1630, 4294901760
    %1632 = vmatpush1.msra.mxu0 %v1631
    %1633 = vmatprep.subr.mxu0 0.0
    %v1634 = vand.u32 %v1467, 4294901760
    %v1635 = vsub.f32 %v1467, %v1634
    %v1636 = vand.u32 %v1635, 4294901760
    %v1637 = vsub.f32 %v1635, %v1636
    %v1638 = vand.u32 %v1637, 4294901760
    %1639 = vmatpush1.msra.mxu0 %v1638
    %1640 = vmatprep.subr.mxu0 0.0
    %v1641 = vand.u32 %v1466, 4294901760
    %v1642 = vsub.f32 %v1466, %v1641
    %v1643 = vand.u32 %v1642, 4294901760
    %v1644 = vsub.f32 %v1642, %v1643
    %v1645 = vand.u32 %v1644, 4294901760
    %1646 = vmatpush1.msra.mxu0 %v1645
    %1647 = vmatprep.subr.mxu0 0.0
    %v1648 = vand.u32 %v1465, 4294901760
    %v1649 = vsub.f32 %v1465, %v1648
    %v1650 = vand.u32 %v1649, 4294901760
    %v1651 = vsub.f32 %v1649, %v1650
    %v1652 = vand.u32 %v1651, 4294901760
    %1653 = vmatpush1.msra.mxu0 %v1652
    %1654 = vmatprep.subr.mxu0 0.0
    %v1655 = vand.u32 %v1464, 4294901760
    %v1656 = vsub.f32 %v1464, %v1655
    %v1657 = vand.u32 %v1656, 4294901760
    %v1658 = vsub.f32 %v1656, %v1657
    %v1659 = vand.u32 %v1658, 4294901760
    %1660 = vmatpush1.msra.mxu0 %v1659
    %1661 = vmatprep.subr.mxu0 0.0
    %v1662 = vand.u32 %v1463, 4294901760
    %v1663 = vsub.f32 %v1463, %v1662
    %v1664 = vand.u32 %v1663, 4294901760
    %v1665 = vsub.f32 %v1663, %v1664
    %v1666 = vand.u32 %v1665, 4294901760
    %1667 = vmatpush1.msra.mxu0 %v1666
    %1668 = vmatprep.subr.mxu0 0.0
    %v1669 = vand.u32 %v1462, 4294901760
    %v1670 = vsub.f32 %v1462, %v1669
    %v1671 = vand.u32 %v1670, 4294901760
    %v1672 = vsub.f32 %v1670, %v1671
    %v1673 = vand.u32 %v1672, 4294901760
    %1674 = vmatpush1.msra.mxu0 %v1673
    %1675 = vmatprep.subr.mxu0 0.0
    %v1676 = vand.u32 %v1461, 4294901760
    %v1677 = vsub.f32 %v1461, %v1676
    %v1678 = vand.u32 %v1677, 4294901760
    %v1679 = vsub.f32 %v1677, %v1678
    %v1680 = vand.u32 %v1679, 4294901760
    %1681 = vmatpush1.msra.mxu0 %v1680
    %1682 = vmatprep.subr.mxu0 0.0
    %v1683 = vand.u32 %v1460, 4294901760
    %v1684 = vsub.f32 %v1460, %v1683
    %v1685 = vand.u32 %v1684, 4294901760
    %v1686 = vsub.f32 %v1684, %v1685
    %v1687 = vand.u32 %v1686, 4294901760
    %1688 = vmatpush1.msra.mxu0 %v1687
    %1689 = vmatprep.subr.mxu0 0.0
    %1690 = vmatpush2.msra.mxu0 0.0
    %1691 = vmatprep.subr.mxu0 0.0
    %1692 = vmatpush2.msra.mxu0 0.0
    %1693 = vmatprep.subr.mxu0 0.0
    %1694 = vmatpush2.msra.mxu0 0.0
    %1695 = vmatprep.subr.mxu0 0.0
    %1696 = vmatpush2.msra.mxu0 0.0
    %1697 = vmatprep.subr.mxu0 0.0
    %1698 = vmatpush2.msra.mxu0 0.0
    %1699 = vmatprep.subr.mxu0 0.0
    %1700 = vmatpush2.msra.mxu0 0.0
    %1701 = vmatprep.subr.mxu0 0.0
    %1702 = vmatpush2.msra.mxu0 0.0
    %1703 = vmatprep.subr.mxu0 0.0
    %1704 = vmatpush2.msra.mxu0 0.0
    %1705 = vmatprep.subr.mxu0 0.0
    %1706 = vmatpush2.msra.mxu0 0.0
    %1707 = vmatprep.subr.mxu0 0.0
    %1708 = vmatpush2.msra.mxu0 0.0
    %1709 = vmatprep.subr.mxu0 0.0
    %1710 = vmatpush2.msra.mxu0 0.0
    %1711 = vmatprep.subr.mxu0 0.0
    %1712 = vmatpush2.msra.mxu0 0.0
    %1713 = vmatprep.subr.mxu0 0.0
    %1714 = vmatpush2.msra.mxu0 0.0
    %1715 = vmatprep.subr.mxu0 0.0
    %1716 = vmatpush2.msra.mxu0 0.0
    %1717 = vmatprep.subr.mxu0 0.0
    %1718 = vmatpush2.msra.mxu0 0.0
    %1719 = vmatprep.subr.mxu0 0.0
    %1720 = vmatpush2.msra.mxu0 0.0
    %1721 = vmatprep.mubr.f32.mxu0 0.0
    %v1722 = vand.u32 %v1457, 4294901760
    %1723 = vmatmul.mubr.f32.gmra.mxu0 %v1722
    %v1724 = vpop.f32.mrf.mxu0
    %v1725 = vadd.f32 %v1564, %v1724
    %v1726 = vpop.f32.mrf.mxu0
    %1727 = vmatprep.mubr.f32.mxu0 0.0
    %v1728 = vand.u32 %v1458, 4294901760
    %1729 = vmatmul.mubr.f32.gmra.mxu0 %v1728
    %v1730 = vpop.f32.mrf.mxu0
    %v1731 = vadd.f32 %v1574, %v1730
    %v1732 = vpop.f32.mrf.mxu0
    %1733 = vdwg.mxu0
    %1734 = vmatprep.subr.mxu0 0.0
    %v1735 = vand.u32 %v1475, 4294901760
    %v1736 = vsub.f32 %v1475, %v1735
    %1737 = vmatpush1.msra.mxu0 %v1736
    %1738 = vmatprep.subr.mxu0 0.0
    %v1739 = vand.u32 %v1474, 4294901760
    %v1740 = vsub.f32 %v1474, %v1739
    %1741 = vmatpush1.msra.mxu0 %v1740
    %1742 = vmatprep.subr.mxu0 0.0
    %v1743 = vand.u32 %v1473, 4294901760
    %v1744 = vsub.f32 %v1473, %v1743
    %1745 = vmatpush1.msra.mxu0 %v1744
    %1746 = vmatprep.subr.mxu0 0.0
    %v1747 = vand.u32 %v1472, 4294901760
    %v1748 = vsub.f32 %v1472, %v1747
    %1749 = vmatpush1.msra.mxu0 %v1748
    %1750 = vmatprep.subr.mxu0 0.0
    %v1751 = vand.u32 %v1471, 4294901760
    %v1752 = vsub.f32 %v1471, %v1751
    %1753 = vmatpush1.msra.mxu0 %v1752
    %1754 = vmatprep.subr.mxu0 0.0
    %v1755 = vand.u32 %v1470, 4294901760
    %v1756 = vsub.f32 %v1470, %v1755
    %1757 = vmatpush1.msra.mxu0 %v1756
    %1758 = vmatprep.subr.mxu0 0.0
    %v1759 = vand.u32 %v1469, 4294901760
    %v1760 = vsub.f32 %v1469, %v1759
    %1761 = vmatpush1.msra.mxu0 %v1760
    %1762 = vmatprep.subr.mxu0 0.0
    %v1763 = vand.u32 %v1468, 4294901760
    %v1764 = vsub.f32 %v1468, %v1763
    %1765 = vmatpush1.msra.mxu0 %v1764
    %1766 = vmatprep.subr.mxu0 0.0
    %v1767 = vand.u32 %v1467, 4294901760
    %v1768 = vsub.f32 %v1467, %v1767
    %1769 = vmatpush1.msra.mxu0 %v1768
    %1770 = vmatprep.subr.mxu0 0.0
    %v1771 = vand.u32 %v1466, 4294901760
    %v1772 = vsub.f32 %v1466, %v1771
    %1773 = vmatpush1.msra.mxu0 %v1772
    %1774 = vmatprep.subr.mxu0 0.0
    %v1775 = vand.u32 %v1465, 4294901760
    %v1776 = vsub.f32 %v1465, %v1775
    %1777 = vmatpush1.msra.mxu0 %v1776
    %1778 = vmatprep.subr.mxu0 0.0
    %v1779 = vand.u32 %v1464, 4294901760
    %v1780 = vsub.f32 %v1464, %v1779
    %1781 = vmatpush1.msra.mxu0 %v1780
    %1782 = vmatprep.subr.mxu0 0.0
    %v1783 = vand.u32 %v1463, 4294901760
    %v1784 = vsub.f32 %v1463, %v1783
    %1785 = vmatpush1.msra.mxu0 %v1784
    %1786 = vmatprep.subr.mxu0 0.0
    %v1787 = vand.u32 %v1462, 4294901760
    %v1788 = vsub.f32 %v1462, %v1787
    %1789 = vmatpush1.msra.mxu0 %v1788
    %1790 = vmatprep.subr.mxu0 0.0
    %v1791 = vand.u32 %v1461, 4294901760
    %v1792 = vsub.f32 %v1461, %v1791
    %1793 = vmatpush1.msra.mxu0 %v1792
    %1794 = vmatprep.subr.mxu0 0.0
    %v1795 = vand.u32 %v1460, 4294901760
    %v1796 = vsub.f32 %v1460, %v1795
    %1797 = vmatpush1.msra.mxu0 %v1796
    %1798 = vmatprep.subr.mxu0 0.0
    %1799 = vmatpush2.msra.mxu0 0.0
    %1800 = vmatprep.subr.mxu0 0.0
    %1801 = vmatpush2.msra.mxu0 0.0
    %1802 = vmatprep.subr.mxu0 0.0
    %1803 = vmatpush2.msra.mxu0 0.0
    %1804 = vmatprep.subr.mxu0 0.0
    %1805 = vmatpush2.msra.mxu0 0.0
    %1806 = vmatprep.subr.mxu0 0.0
    %1807 = vmatpush2.msra.mxu0 0.0
    %1808 = vmatprep.subr.mxu0 0.0
    %1809 = vmatpush2.msra.mxu0 0.0
    %1810 = vmatprep.subr.mxu0 0.0
    %1811 = vmatpush2.msra.mxu0 0.0
    %1812 = vmatprep.subr.mxu0 0.0
    %1813 = vmatpush2.msra.mxu0 0.0
    %1814 = vmatprep.subr.mxu0 0.0
    %1815 = vmatpush2.msra.mxu0 0.0
    %1816 = vmatprep.subr.mxu0 0.0
    %1817 = vmatpush2.msra.mxu0 0.0
    %1818 = vmatprep.subr.mxu0 0.0
    %1819 = vmatpush2.msra.mxu0 0.0
    %1820 = vmatprep.subr.mxu0 0.0
    %1821 = vmatpush2.msra.mxu0 0.0
    %1822 = vmatprep.subr.mxu0 0.0
    %1823 = vmatpush2.msra.mxu0 0.0
    %1824 = vmatprep.subr.mxu0 0.0
    %1825 = vmatpush2.msra.mxu0 0.0
    %1826 = vmatprep.subr.mxu0 0.0
    %1827 = vmatpush2.msra.mxu0 0.0
    %1828 = vmatprep.subr.mxu0 0.0
    %1829 = vmatpush2.msra.mxu0 0.0
    %1830 = vmatprep.mubr.f32.mxu0 0.0
    %v1831 = vand.u32 %v1457, 4294901760
    %v1832 = vsub.f32 %v1457, %v1831
    %1833 = vmatmul.mubr.f32.gmra.mxu0 %v1832
    %v1834 = vpop.f32.mrf.mxu0
    %v1835 = vadd.f32 %v1725, %v1834
    %v1836 = vpop.f32.mrf.mxu0
    %1837 = vmatprep.mubr.f32.mxu0 0.0
    %v1838 = vand.u32 %v1458, 4294901760
    %v1839 = vsub.f32 %v1458, %v1838
    %1840 = vmatmul.mubr.f32.gmra.mxu0 %v1839
    %v1841 = vpop.f32.mrf.mxu0
    %v1842 = vadd.f32 %v1731, %v1841
    %v1843 = vpop.f32.mrf.mxu0
    %1844 = vdwg.mxu0
    %1845 = vmatprep.subr.mxu0 0.0
    %v1846 = vand.u32 %v1475, 4294901760
    %1847 = vmatpush1.msra.mxu0 %v1846
    %1848 = vmatprep.subr.mxu0 0.0
    %v1849 = vand.u32 %v1474, 4294901760
    %1850 = vmatpush1.msra.mxu0 %v1849
    %1851 = vmatprep.subr.mxu0 0.0
    %v1852 = vand.u32 %v1473, 4294901760
    %1853 = vmatpush1.msra.mxu0 %v1852
    %1854 = vmatprep.subr.mxu0 0.0
    %v1855 = vand.u32 %v1472, 4294901760
    %1856 = vmatpush1.msra.mxu0 %v1855
    %1857 = vmatprep.subr.mxu0 0.0
    %v1858 = vand.u32 %v1471, 4294901760
    %1859 = vmatpush1.msra.mxu0 %v1858
    %1860 = vmatprep.subr.mxu0 0.0
    %v1861 = vand.u32 %v1470, 4294901760
    %1862 = vmatpush1.msra.mxu0 %v1861
    %1863 = vmatprep.subr.mxu0 0.0
    %v1864 = vand.u32 %v1469, 4294901760
    %1865 = vmatpush1.msra.mxu0 %v1864
    %1866 = vmatprep.subr.mxu0 0.0
    %v1867 = vand.u32 %v1468, 4294901760
    %1868 = vmatpush1.msra.mxu0 %v1867
    %1869 = vmatprep.subr.mxu0 0.0
    %v1870 = vand.u32 %v1467, 4294901760
    %1871 = vmatpush1.msra.mxu0 %v1870
    %1872 = vmatprep.subr.mxu0 0.0
    %v1873 = vand.u32 %v1466, 4294901760
    %1874 = vmatpush1.msra.mxu0 %v1873
    %1875 = vmatprep.subr.mxu0 0.0
    %v1876 = vand.u32 %v1465, 4294901760
    %1877 = vmatpush1.msra.mxu0 %v1876
    %1878 = vmatprep.subr.mxu0 0.0
    %v1879 = vand.u32 %v1464, 4294901760
    %1880 = vmatpush1.msra.mxu0 %v1879
    %1881 = vmatprep.subr.mxu0 0.0
    %v1882 = vand.u32 %v1463, 4294901760
    %1883 = vmatpush1.msra.mxu0 %v1882
    %1884 = vmatprep.subr.mxu0 0.0
    %v1885 = vand.u32 %v1462, 4294901760
    %1886 = vmatpush1.msra.mxu0 %v1885
    %1887 = vmatprep.subr.mxu0 0.0
    %v1888 = vand.u32 %v1461, 4294901760
    %1889 = vmatpush1.msra.mxu0 %v1888
    %1890 = vmatprep.subr.mxu0 0.0
    %v1891 = vand.u32 %v1460, 4294901760
    %1892 = vmatpush1.msra.mxu0 %v1891
    %1893 = vmatprep.subr.mxu0 0.0
    %1894 = vmatpush2.msra.mxu0 0.0
    %1895 = vmatprep.subr.mxu0 0.0
    %1896 = vmatpush2.msra.mxu0 0.0
    %1897 = vmatprep.subr.mxu0 0.0
    %1898 = vmatpush2.msra.mxu0 0.0
    %1899 = vmatprep.subr.mxu0 0.0
    %1900 = vmatpush2.msra.mxu0 0.0
    %1901 = vmatprep.subr.mxu0 0.0
    %1902 = vmatpush2.msra.mxu0 0.0
    %1903 = vmatprep.subr.mxu0 0.0
    %1904 = vmatpush2.msra.mxu0 0.0
    %1905 = vmatprep.subr.mxu0 0.0
    %1906 = vmatpush2.msra.mxu0 0.0
    %1907 = vmatprep.subr.mxu0 0.0
    %1908 = vmatpush2.msra.mxu0 0.0
    %1909 = vmatprep.subr.mxu0 0.0
    %1910 = vmatpush2.msra.mxu0 0.0
    %1911 = vmatprep.subr.mxu0 0.0
    %1912 = vmatpush2.msra.mxu0 0.0
    %1913 = vmatprep.subr.mxu0 0.0
    %1914 = vmatpush2.msra.mxu0 0.0
    %1915 = vmatprep.subr.mxu0 0.0
    %1916 = vmatpush2.msra.mxu0 0.0
    %1917 = vmatprep.subr.mxu0 0.0
    %1918 = vmatpush2.msra.mxu0 0.0
    %1919 = vmatprep.subr.mxu0 0.0
    %1920 = vmatpush2.msra.mxu0 0.0
    %1921 = vmatprep.subr.mxu0 0.0
    %1922 = vmatpush2.msra.mxu0 0.0
    %1923 = vmatprep.subr.mxu0 0.0
    %1924 = vmatpush2.msra.mxu0 0.0
    %1925 = vmatprep.mubr.f32.mxu0 0.0
    %v1926 = vand.u32 %v1457, 4294901760
    %v1927 = vsub.f32 %v1457, %v1926
    %v1928 = vand.u32 %v1927, 4294901760
    %1929 = vmatmul.mubr.f32.gmra.mxu0 %v1928
    %v1930 = vpop.f32.mrf.mxu0
    %v1931 = vadd.f32 %v1835, %v1930
    %v1932 = vpop.f32.mrf.mxu0
    %1933 = vmatprep.mubr.f32.mxu0 0.0
    %v1934 = vand.u32 %v1458, 4294901760
    %v1935 = vsub.f32 %v1458, %v1934
    %v1936 = vand.u32 %v1935, 4294901760
    %1937 = vmatmul.mubr.f32.gmra.mxu0 %v1936
    %v1938 = vpop.f32.mrf.mxu0
    %v1939 = vadd.f32 %v1842, %v1938
    %v1940 = vpop.f32.mrf.mxu0
    %1941 = vdwg.mxu0
    %1942 = vmatprep.subr.mxu0 0.0
    %v1943 = vand.u32 %v1475, 4294901760
    %v1944 = vsub.f32 %v1475, %v1943
    %v1945 = vand.u32 %v1944, 4294901760
    %1946 = vmatpush1.msra.mxu0 %v1945
    %1947 = vmatprep.subr.mxu0 0.0
    %v1948 = vand.u32 %v1474, 4294901760
    %v1949 = vsub.f32 %v1474, %v1948
    %v1950 = vand.u32 %v1949, 4294901760
    %1951 = vmatpush1.msra.mxu0 %v1950
    %1952 = vmatprep.subr.mxu0 0.0
    %v1953 = vand.u32 %v1473, 4294901760
    %v1954 = vsub.f32 %v1473, %v1953
    %v1955 = vand.u32 %v1954, 4294901760
    %1956 = vmatpush1.msra.mxu0 %v1955
    %1957 = vmatprep.subr.mxu0 0.0
    %v1958 = vand.u32 %v1472, 4294901760
    %v1959 = vsub.f32 %v1472, %v1958
    %v1960 = vand.u32 %v1959, 4294901760
    %1961 = vmatpush1.msra.mxu0 %v1960
    %1962 = vmatprep.subr.mxu0 0.0
    %v1963 = vand.u32 %v1471, 4294901760
    %v1964 = vsub.f32 %v1471, %v1963
    %v1965 = vand.u32 %v1964, 4294901760
    %1966 = vmatpush1.msra.mxu0 %v1965
    %1967 = vmatprep.subr.mxu0 0.0
    %v1968 = vand.u32 %v1470, 4294901760
    %v1969 = vsub.f32 %v1470, %v1968
    %v1970 = vand.u32 %v1969, 4294901760
    %1971 = vmatpush1.msra.mxu0 %v1970
    %1972 = vmatprep.subr.mxu0 0.0
    %v1973 = vand.u32 %v1469, 4294901760
    %v1974 = vsub.f32 %v1469, %v1973
    %v1975 = vand.u32 %v1974, 4294901760
    %1976 = vmatpush1.msra.mxu0 %v1975
    %1977 = vmatprep.subr.mxu0 0.0
    %v1978 = vand.u32 %v1468, 4294901760
    %v1979 = vsub.f32 %v1468, %v1978
    %v1980 = vand.u32 %v1979, 4294901760
    %1981 = vmatpush1.msra.mxu0 %v1980
    %1982 = vmatprep.subr.mxu0 0.0
    %v1983 = vand.u32 %v1467, 4294901760
    %v1984 = vsub.f32 %v1467, %v1983
    %v1985 = vand.u32 %v1984, 4294901760
    %1986 = vmatpush1.msra.mxu0 %v1985
    %1987 = vmatprep.subr.mxu0 0.0
    %v1988 = vand.u32 %v1466, 4294901760
    %v1989 = vsub.f32 %v1466, %v1988
    %v1990 = vand.u32 %v1989, 4294901760
    %1991 = vmatpush1.msra.mxu0 %v1990
    %1992 = vmatprep.subr.mxu0 0.0
    %v1993 = vand.u32 %v1465, 4294901760
    %v1994 = vsub.f32 %v1465, %v1993
    %v1995 = vand.u32 %v1994, 4294901760
    %1996 = vmatpush1.msra.mxu0 %v1995
    %1997 = vmatprep.subr.mxu0 0.0
    %v1998 = vand.u32 %v1464, 4294901760
    %v1999 = vsub.f32 %v1464, %v1998
    %v2000 = vand.u32 %v1999, 4294901760
    %2001 = vmatpush1.msra.mxu0 %v2000
    %2002 = vmatprep.subr.mxu0 0.0
    %v2003 = vand.u32 %v1463, 4294901760
    %v2004 = vsub.f32 %v1463, %v2003
    %v2005 = vand.u32 %v2004, 4294901760
    %2006 = vmatpush1.msra.mxu0 %v2005
    %2007 = vmatprep.subr.mxu0 0.0
    %v2008 = vand.u32 %v1462, 4294901760
    %v2009 = vsub.f32 %v1462, %v2008
    %v2010 = vand.u32 %v2009, 4294901760
    %2011 = vmatpush1.msra.mxu0 %v2010
    %2012 = vmatprep.subr.mxu0 0.0
    %v2013 = vand.u32 %v1461, 4294901760
    %v2014 = vsub.f32 %v1461, %v2013
    %v2015 = vand.u32 %v2014, 4294901760
    %2016 = vmatpush1.msra.mxu0 %v2015
    %2017 = vmatprep.subr.mxu0 0.0
    %v2018 = vand.u32 %v1460, 4294901760
    %v2019 = vsub.f32 %v1460, %v2018
    %v2020 = vand.u32 %v2019, 4294901760
    %2021 = vmatpush1.msra.mxu0 %v2020
    %2022 = vmatprep.subr.mxu0 0.0
    %2023 = vmatpush2.msra.mxu0 0.0
    %2024 = vmatprep.subr.mxu0 0.0
    %2025 = vmatpush2.msra.mxu0 0.0
    %2026 = vmatprep.subr.mxu0 0.0
    %2027 = vmatpush2.msra.mxu0 0.0
    %2028 = vmatprep.subr.mxu0 0.0
    %2029 = vmatpush2.msra.mxu0 0.0
    %2030 = vmatprep.subr.mxu0 0.0
    %2031 = vmatpush2.msra.mxu0 0.0
    %2032 = vmatprep.subr.mxu0 0.0
    %2033 = vmatpush2.msra.mxu0 0.0
    %2034 = vmatprep.subr.mxu0 0.0
    %2035 = vmatpush2.msra.mxu0 0.0
    %2036 = vmatprep.subr.mxu0 0.0
    %2037 = vmatpush2.msra.mxu0 0.0
    %2038 = vmatprep.subr.mxu0 0.0
    %2039 = vmatpush2.msra.mxu0 0.0
    %2040 = vmatprep.subr.mxu0 0.0
    %2041 = vmatpush2.msra.mxu0 0.0
    %2042 = vmatprep.subr.mxu0 0.0
    %2043 = vmatpush2.msra.mxu0 0.0
    %2044 = vmatprep.subr.mxu0 0.0
    %2045 = vmatpush2.msra.mxu0 0.0
    %2046 = vmatprep.subr.mxu0 0.0
    %2047 = vmatpush2.msra.mxu0 0.0
    %2048 = vmatprep.subr.mxu0 0.0
    %2049 = vmatpush2.msra.mxu0 0.0
    %2050 = vmatprep.subr.mxu0 0.0
    %2051 = vmatpush2.msra.mxu0 0.0
    %2052 = vmatprep.subr.mxu0 0.0
    %2053 = vmatpush2.msra.mxu0 0.0
    %2054 = vmatprep.mubr.f32.mxu0 0.0
    %v2055 = vand.u32 %v1457, 4294901760
    %2056 = vmatmul.mubr.f32.gmra.mxu0 %v2055
    %v2057 = vpop.f32.mrf.mxu0
    %v2058 = vadd.f32 %v1931, %v2057
    %v2059 = vpop.f32.mrf.mxu0
    %2060 = vmatprep.mubr.f32.mxu0 0.0
    %v2061 = vand.u32 %v1458, 4294901760
    %2062 = vmatmul.mubr.f32.gmra.mxu0 %v2061
    %v2063 = vpop.f32.mrf.mxu0
    %v2064 = vadd.f32 %v1939, %v2063
    %v2065 = vpop.f32.mrf.mxu0
    %2066 = vdwg.mxu0
    %2067 = vmatprep.subr.mxu0 0.0
    %v2068 = vand.u32 %v1475, 4294901760
    %2069 = vmatpush1.msra.mxu0 %v2068
    %2070 = vmatprep.subr.mxu0 0.0
    %v2071 = vand.u32 %v1474, 4294901760
    %2072 = vmatpush1.msra.mxu0 %v2071
    %2073 = vmatprep.subr.mxu0 0.0
    %v2074 = vand.u32 %v1473, 4294901760
    %2075 = vmatpush1.msra.mxu0 %v2074
    %2076 = vmatprep.subr.mxu0 0.0
    %v2077 = vand.u32 %v1472, 4294901760
    %2078 = vmatpush1.msra.mxu0 %v2077
    %2079 = vmatprep.subr.mxu0 0.0
    %v2080 = vand.u32 %v1471, 4294901760
    %2081 = vmatpush1.msra.mxu0 %v2080
    %2082 = vmatprep.subr.mxu0 0.0
    %v2083 = vand.u32 %v1470, 4294901760
    %2084 = vmatpush1.msra.mxu0 %v2083
    %2085 = vmatprep.subr.mxu0 0.0
    %v2086 = vand.u32 %v1469, 4294901760
    %2087 = vmatpush1.msra.mxu0 %v2086
    %2088 = vmatprep.subr.mxu0 0.0
    %v2089 = vand.u32 %v1468, 4294901760
    %2090 = vmatpush1.msra.mxu0 %v2089
    %2091 = vmatprep.subr.mxu0 0.0
    %v2092 = vand.u32 %v1467, 4294901760
    %2093 = vmatpush1.msra.mxu0 %v2092
    %2094 = vmatprep.subr.mxu0 0.0
    %v2095 = vand.u32 %v1466, 4294901760
    %2096 = vmatpush1.msra.mxu0 %v2095
    %2097 = vmatprep.subr.mxu0 0.0
    %v2098 = vand.u32 %v1465, 4294901760
    %2099 = vmatpush1.msra.mxu0 %v2098
    %2100 = vmatprep.subr.mxu0 0.0
    %v2101 = vand.u32 %v1464, 4294901760
    %2102 = vmatpush1.msra.mxu0 %v2101
    %2103 = vmatprep.subr.mxu0 0.0
    %v2104 = vand.u32 %v1463, 4294901760
    %2105 = vmatpush1.msra.mxu0 %v2104
    %2106 = vmatprep.subr.mxu0 0.0
    %v2107 = vand.u32 %v1462, 4294901760
    %2108 = vmatpush1.msra.mxu0 %v2107
    %2109 = vmatprep.subr.mxu0 0.0
    %v2110 = vand.u32 %v1461, 4294901760
    %2111 = vmatpush1.msra.mxu0 %v2110
    %2112 = vmatprep.subr.mxu0 0.0
    %v2113 = vand.u32 %v1460, 4294901760
    %2114 = vmatpush1.msra.mxu0 %v2113
    %2115 = vmatprep.subr.mxu0 0.0
    %2116 = vmatpush2.msra.mxu0 0.0
    %2117 = vmatprep.subr.mxu0 0.0
    %2118 = vmatpush2.msra.mxu0 0.0
    %2119 = vmatprep.subr.mxu0 0.0
    %2120 = vmatpush2.msra.mxu0 0.0
    %2121 = vmatprep.subr.mxu0 0.0
    %2122 = vmatpush2.msra.mxu0 0.0
    %2123 = vmatprep.subr.mxu0 0.0
    %2124 = vmatpush2.msra.mxu0 0.0
    %2125 = vmatprep.subr.mxu0 0.0
    %2126 = vmatpush2.msra.mxu0 0.0
    %2127 = vmatprep.subr.mxu0 0.0
    %2128 = vmatpush2.msra.mxu0 0.0
    %2129 = vmatprep.subr.mxu0 0.0
    %2130 = vmatpush2.msra.mxu0 0.0
    %2131 = vmatprep.subr.mxu0 0.0
    %2132 = vmatpush2.msra.mxu0 0.0
    %2133 = vmatprep.subr.mxu0 0.0
    %2134 = vmatpush2.msra.mxu0 0.0
    %2135 = vmatprep.subr.mxu0 0.0
    %2136 = vmatpush2.msra.mxu0 0.0
    %2137 = vmatprep.subr.mxu0 0.0
    %2138 = vmatpush2.msra.mxu0 0.0
    %2139 = vmatprep.subr.mxu0 0.0
    %2140 = vmatpush2.msra.mxu0 0.0
    %2141 = vmatprep.subr.mxu0 0.0
    %2142 = vmatpush2.msra.mxu0 0.0
    %2143 = vmatprep.subr.mxu0 0.0
    %2144 = vmatpush2.msra.mxu0 0.0
    %2145 = vmatprep.subr.mxu0 0.0
    %2146 = vmatpush2.msra.mxu0 0.0
    %2147 = vmatprep.mubr.f32.mxu0 0.0
    %v2148 = vand.u32 %v1457, 4294901760
    %2149 = vmatmul.mubr.f32.gmra.mxu0 %v2148
    %v2150 = vpop.f32.mrf.mxu0
    %v2151 = vadd.f32 %v2058, %v2150
    %v2152 = vpop.f32.mrf.mxu0
    %2153 = vmatprep.mubr.f32.mxu0 0.0
    %v2154 = vand.u32 %v1458, 4294901760
    %2155 = vmatmul.mubr.f32.gmra.mxu0 %v2154
    %v2156 = vpop.f32.mrf.mxu0
    %v2157 = vadd.f32 %v2064, %v2156
    %v2158 = vpop.f32.mrf.mxu0
    %2159 = vdwg.mxu0
    %s2160 = scalar_lea.vmem %s1, 48
    %v2161 = vld [vmem:[%s2160] sm:$0xff]
    %v2162 = vld [vmem:[%s2160 + $0x8] sm:$0xff]
    %s2163 = scalar_lea.vmem [#allocation2], 384
    %v2164 = vld [vmem:[%s2163] sm:$0xff]
    %v2165 = vld [vmem:[%s2163 + $0x8] sm:$0xff]
    %v2166 = vld [vmem:[%s2163 + $0x10] sm:$0xff]
    %v2167 = vld [vmem:[%s2163 + $0x18] sm:$0xff]
    %v2168 = vld [vmem:[%s2163 + $0x20] sm:$0xff]
    %v2169 = vld [vmem:[%s2163 + $0x28] sm:$0xff]
    %v2170 = vld [vmem:[%s2163 + $0x30] sm:$0xff]
    %v2171 = vld [vmem:[%s2163 + $0x38] sm:$0xff]
    %v2172 = vld [vmem:[%s2163 + $0x40] sm:$0xff]
    %v2173 = vld [vmem:[%s2163 + $0x48] sm:$0xff]
    %v2174 = vld [vmem:[%s2163 + $0x50] sm:$0xff]
    %v2175 = vld [vmem:[%s2163 + $0x58] sm:$0xff]
    %v2176 = vld [vmem:[%s2163 + $0x60] sm:$0xff]
    %v2177 = vld [vmem:[%s2163 + $0x68] sm:$0xff]
    %v2178 = vld [vmem:[%s2163 + $0x70] sm:$0xff]
    %v2179 = vld [vmem:[%s2163 + $0x78] sm:$0xff]
    %2180 = vmatprep.subr.mxu0 0.0
    %v2181 = vand.u32 %v2179, 4294901760
    %2182 = vmatpush1.msra.mxu0 %v2181
    %2183 = vmatprep.subr.mxu0 0.0
    %v2184 = vand.u32 %v2178, 4294901760
    %2185 = vmatpush1.msra.mxu0 %v2184
    %2186 = vmatprep.subr.mxu0 0.0
    %v2187 = vand.u32 %v2177, 4294901760
    %2188 = vmatpush1.msra.mxu0 %v2187
    %2189 = vmatprep.subr.mxu0 0.0
    %v2190 = vand.u32 %v2176, 4294901760
    %2191 = vmatpush1.msra.mxu0 %v2190
    %2192 = vmatprep.subr.mxu0 0.0
    %v2193 = vand.u32 %v2175, 4294901760
    %2194 = vmatpush1.msra.mxu0 %v2193
    %2195 = vmatprep.subr.mxu0 0.0
    %v2196 = vand.u32 %v2174, 4294901760
    %2197 = vmatpush1.msra.mxu0 %v2196
    %2198 = vmatprep.subr.mxu0 0.0
    %v2199 = vand.u32 %v2173, 4294901760
    %2200 = vmatpush1.msra.mxu0 %v2199
    %2201 = vmatprep.subr.mxu0 0.0
    %v2202 = vand.u32 %v2172, 4294901760
    %2203 = vmatpush1.msra.mxu0 %v2202
    %2204 = vmatprep.subr.mxu0 0.0
    %v2205 = vand.u32 %v2171, 4294901760
    %2206 = vmatpush1.msra.mxu0 %v2205
    %2207 = vmatprep.subr.mxu0 0.0
    %v2208 = vand.u32 %v2170, 4294901760
    %2209 = vmatpush1.msra.mxu0 %v2208
    %2210 = vmatprep.subr.mxu0 0.0
    %v2211 = vand.u32 %v2169, 4294901760
    %2212 = vmatpush1.msra.mxu0 %v2211
    %2213 = vmatprep.subr.mxu0 0.0
    %v2214 = vand.u32 %v2168, 4294901760
    %2215 = vmatpush1.msra.mxu0 %v2214
    %2216 = vmatprep.subr.mxu0 0.0
    %v2217 = vand.u32 %v2167, 4294901760
    %2218 = vmatpush1.msra.mxu0 %v2217
    %2219 = vmatprep.subr.mxu0 0.0
    %v2220 = vand.u32 %v2166, 4294901760
    %2221 = vmatpush1.msra.mxu0 %v2220
    %2222 = vmatprep.subr.mxu0 0.0
    %v2223 = vand.u32 %v2165, 4294901760
    %2224 = vmatpush1.msra.mxu0 %v2223
    %2225 = vmatprep.subr.mxu0 0.0
    %v2226 = vand.u32 %v2164, 4294901760
    %2227 = vmatpush1.msra.mxu0 %v2226
    %2228 = vmatprep.subr.mxu0 0.0
    %2229 = vmatpush2.msra.mxu0 0.0
    %2230 = vmatprep.subr.mxu0 0.0
    %2231 = vmatpush2.msra.mxu0 0.0
    %2232 = vmatprep.subr.mxu0 0.0
    %2233 = vmatpush2.msra.mxu0 0.0
    %2234 = vmatprep.subr.mxu0 0.0
    %2235 = vmatpush2.msra.mxu0 0.0
    %2236 = vmatprep.subr.mxu0 0.0
    %2237 = vmatpush2.msra.mxu0 0.0
    %2238 = vmatprep.subr.mxu0 0.0
    %2239 = vmatpush2.msra.mxu0 0.0
    %2240 = vmatprep.subr.mxu0 0.0
    %2241 = vmatpush2.msra.mxu0 0.0
    %2242 = vmatprep.subr.mxu0 0.0
    %2243 = vmatpush2.msra.mxu0 0.0
    %2244 = vmatprep.subr.mxu0 0.0
    %2245 = vmatpush2.msra.mxu0 0.0
    %2246 = vmatprep.subr.mxu0 0.0
    %2247 = vmatpush2.msra.mxu0 0.0
    %2248 = vmatprep.subr.mxu0 0.0
    %2249 = vmatpush2.msra.mxu0 0.0
    %2250 = vmatprep.subr.mxu0 0.0
    %2251 = vmatpush2.msra.mxu0 0.0
    %2252 = vmatprep.subr.mxu0 0.0
    %2253 = vmatpush2.msra.mxu0 0.0
    %2254 = vmatprep.subr.mxu0 0.0
    %2255 = vmatpush2.msra.mxu0 0.0
    %2256 = vmatprep.subr.mxu0 0.0
    %2257 = vmatpush2.msra.mxu0 0.0
    %2258 = vmatprep.subr.mxu0 0.0
    %2259 = vmatpush2.msra.mxu0 0.0
    %2260 = vmatprep.mubr.f32.mxu0 0.0
    %v2261 = vand.u32 %v2161, 4294901760
    %v2262 = vsub.f32 %v2161, %v2261
    %v2263 = vand.u32 %v2262, 4294901760
    %v2264 = vsub.f32 %v2262, %v2263
    %v2265 = vand.u32 %v2264, 4294901760
    %2266 = vmatmul.mubr.f32.gmra.mxu0 %v2265
    %v2267 = vpop.f32.mrf.mxu0
    %v2268 = vadd.f32 0.0, %v2267
    %v2269 = vpop.f32.mrf.mxu0
    %2270 = vmatprep.mubr.f32.mxu0 0.0
    %v2271 = vand.u32 %v2162, 4294901760
    %v2272 = vsub.f32 %v2162, %v2271
    %v2273 = vand.u32 %v2272, 4294901760
    %v2274 = vsub.f32 %v2272, %v2273
    %v2275 = vand.u32 %v2274, 4294901760
    %2276 = vmatmul.mubr.f32.gmra.mxu0 %v2275
    %v2277 = vpop.f32.mrf.mxu0
    %v2278 = vadd.f32 0.0, %v2277
    %v2279 = vpop.f32.mrf.mxu0
    %2280 = vdwg.mxu0
    %2281 = vmatprep.subr.mxu0 0.0
    %v2282 = vand.u32 %v2179, 4294901760
    %v2283 = vsub.f32 %v2179, %v2282
    %v2284 = vand.u32 %v2283, 4294901760
    %v2285 = vsub.f32 %v2283, %v2284
    %v2286 = vand.u32 %v2285, 4294901760
    %2287 = vmatpush1.msra.mxu0 %v2286
    %2288 = vmatprep.subr.mxu0 0.0
    %v2289 = vand.u32 %v2178, 4294901760
    %v2290 = vsub.f32 %v2178, %v2289
    %v2291 = vand.u32 %v2290, 4294901760
    %v2292 = vsub.f32 %v2290, %v2291
    %v2293 = vand.u32 %v2292, 4294901760
    %2294 = vmatpush1.msra.mxu0 %v2293
    %2295 = vmatprep.subr.mxu0 0.0
    %v2296 = vand.u32 %v2177, 4294901760
    %v2297 = vsub.f32 %v2177, %v2296
    %v2298 = vand.u32 %v2297, 4294901760
    %v2299 = vsub.f32 %v2297, %v2298
    %v2300 = vand.u32 %v2299, 4294901760
    %2301 = vmatpush1.msra.mxu0 %v2300
    %2302 = vmatprep.subr.mxu0 0.0
    %v2303 = vand.u32 %v2176, 4294901760
    %v2304 = vsub.f32 %v2176, %v2303
    %v2305 = vand.u32 %v2304, 4294901760
    %v2306 = vsub.f32 %v2304, %v2305
    %v2307 = vand.u32 %v2306, 4294901760
    %2308 = vmatpush1.msra.mxu0 %v2307
    %2309 = vmatprep.subr.mxu0 0.0
    %v2310 = vand.u32 %v2175, 4294901760
    %v2311 = vsub.f32 %v2175, %v2310
    %v2312 = vand.u32 %v2311, 4294901760
    %v2313 = vsub.f32 %v2311, %v2312
    %v2314 = vand.u32 %v2313, 4294901760
    %2315 = vmatpush1.msra.mxu0 %v2314
    %2316 = vmatprep.subr.mxu0 0.0
    %v2317 = vand.u32 %v2174, 4294901760
    %v2318 = vsub.f32 %v2174, %v2317
    %v2319 = vand.u32 %v2318, 4294901760
    %v2320 = vsub.f32 %v2318, %v2319
    %v2321 = vand.u32 %v2320, 4294901760
    %2322 = vmatpush1.msra.mxu0 %v2321
    %2323 = vmatprep.subr.mxu0 0.0
    %v2324 = vand.u32 %v2173, 4294901760
    %v2325 = vsub.f32 %v2173, %v2324
    %v2326 = vand.u32 %v2325, 4294901760
    %v2327 = vsub.f32 %v2325, %v2326
    %v2328 = vand.u32 %v2327, 4294901760
    %2329 = vmatpush1.msra.mxu0 %v2328
    %2330 = vmatprep.subr.mxu0 0.0
    %v2331 = vand.u32 %v2172, 4294901760
    %v2332 = vsub.f32 %v2172, %v2331
    %v2333 = vand.u32 %v2332, 4294901760
    %v2334 = vsub.f32 %v2332, %v2333
    %v2335 = vand.u32 %v2334, 4294901760
    %2336 = vmatpush1.msra.mxu0 %v2335
    %2337 = vmatprep.subr.mxu0 0.0
    %v2338 = vand.u32 %v2171, 4294901760
    %v2339 = vsub.f32 %v2171, %v2338
    %v2340 = vand.u32 %v2339, 4294901760
    %v2341 = vsub.f32 %v2339, %v2340
    %v2342 = vand.u32 %v2341, 4294901760
    %2343 = vmatpush1.msra.mxu0 %v2342
    %2344 = vmatprep.subr.mxu0 0.0
    %v2345 = vand.u32 %v2170, 4294901760
    %v2346 = vsub.f32 %v2170, %v2345
    %v2347 = vand.u32 %v2346, 4294901760
    %v2348 = vsub.f32 %v2346, %v2347
    %v2349 = vand.u32 %v2348, 4294901760
    %2350 = vmatpush1.msra.mxu0 %v2349
    %2351 = vmatprep.subr.mxu0 0.0
    %v2352 = vand.u32 %v2169, 4294901760
    %v2353 = vsub.f32 %v2169, %v2352
    %v2354 = vand.u32 %v2353, 4294901760
    %v2355 = vsub.f32 %v2353, %v2354
    %v2356 = vand.u32 %v2355, 4294901760
    %2357 = vmatpush1.msra.mxu0 %v2356
    %2358 = vmatprep.subr.mxu0 0.0
    %v2359 = vand.u32 %v2168, 4294901760
    %v2360 = vsub.f32 %v2168, %v2359
    %v2361 = vand.u32 %v2360, 4294901760
    %v2362 = vsub.f32 %v2360, %v2361
    %v2363 = vand.u32 %v2362, 4294901760
    %2364 = vmatpush1.msra.mxu0 %v2363
    %2365 = vmatprep.subr.mxu0 0.0
    %v2366 = vand.u32 %v2167, 4294901760
    %v2367 = vsub.f32 %v2167, %v2366
    %v2368 = vand.u32 %v2367, 4294901760
    %v2369 = vsub.f32 %v2367, %v2368
    %v2370 = vand.u32 %v2369, 4294901760
    %2371 = vmatpush1.msra.mxu0 %v2370
    %2372 = vmatprep.subr.mxu0 0.0
    %v2373 = vand.u32 %v2166, 4294901760
    %v2374 = vsub.f32 %v2166, %v2373
    %v2375 = vand.u32 %v2374, 4294901760
    %v2376 = vsub.f32 %v2374, %v2375
    %v2377 = vand.u32 %v2376, 4294901760
    %2378 = vmatpush1.msra.mxu0 %v2377
    %2379 = vmatprep.subr.mxu0 0.0
    %v2380 = vand.u32 %v2165, 4294901760
    %v2381 = vsub.f32 %v2165, %v2380
    %v2382 = vand.u32 %v2381, 4294901760
    %v2383 = vsub.f32 %v2381, %v2382
    %v2384 = vand.u32 %v2383, 4294901760
    %2385 = vmatpush1.msra.mxu0 %v2384
    %2386 = vmatprep.subr.mxu0 0.0
    %v2387 = vand.u32 %v2164, 4294901760
    %v2388 = vsub.f32 %v2164, %v2387
    %v2389 = vand.u32 %v2388, 4294901760
    %v2390 = vsub.f32 %v2388, %v2389
    %v2391 = vand.u32 %v2390, 4294901760
    %2392 = vmatpush1.msra.mxu0 %v2391
    %2393 = vmatprep.subr.mxu0 0.0
    %2394 = vmatpush2.msra.mxu0 0.0
    %2395 = vmatprep.subr.mxu0 0.0
    %2396 = vmatpush2.msra.mxu0 0.0
    %2397 = vmatprep.subr.mxu0 0.0
    %2398 = vmatpush2.msra.mxu0 0.0
    %2399 = vmatprep.subr.mxu0 0.0
    %2400 = vmatpush2.msra.mxu0 0.0
    %2401 = vmatprep.subr.mxu0 0.0
    %2402 = vmatpush2.msra.mxu0 0.0
    %2403 = vmatprep.subr.mxu0 0.0
    %2404 = vmatpush2.msra.mxu0 0.0
    %2405 = vmatprep.subr.mxu0 0.0
    %2406 = vmatpush2.msra.mxu0 0.0
    %2407 = vmatprep.subr.mxu0 0.0
    %2408 = vmatpush2.msra.mxu0 0.0
    %2409 = vmatprep.subr.mxu0 0.0
    %2410 = vmatpush2.msra.mxu0 0.0
    %2411 = vmatprep.subr.mxu0 0.0
    %2412 = vmatpush2.msra.mxu0 0.0
    %2413 = vmatprep.subr.mxu0 0.0
    %2414 = vmatpush2.msra.mxu0 0.0
    %2415 = vmatprep.subr.mxu0 0.0
    %2416 = vmatpush2.msra.mxu0 0.0
    %2417 = vmatprep.subr.mxu0 0.0
    %2418 = vmatpush2.msra.mxu0 0.0
    %2419 = vmatprep.subr.mxu0 0.0
    %2420 = vmatpush2.msra.mxu0 0.0
    %2421 = vmatprep.subr.mxu0 0.0
    %2422 = vmatpush2.msra.mxu0 0.0
    %2423 = vmatprep.subr.mxu0 0.0
    %2424 = vmatpush2.msra.mxu0 0.0
    %2425 = vmatprep.mubr.f32.mxu0 0.0
    %v2426 = vand.u32 %v2161, 4294901760
    %2427 = vmatmul.mubr.f32.gmra.mxu0 %v2426
    %v2428 = vpop.f32.mrf.mxu0
    %v2429 = vadd.f32 %v2268, %v2428
    %v2430 = vpop.f32.mrf.mxu0
    %2431 = vmatprep.mubr.f32.mxu0 0.0
    %v2432 = vand.u32 %v2162, 4294901760
    %2433 = vmatmul.mubr.f32.gmra.mxu0 %v2432
    %v2434 = vpop.f32.mrf.mxu0
    %v2435 = vadd.f32 %v2278, %v2434
    %v2436 = vpop.f32.mrf.mxu0
    %2437 = vdwg.mxu0
    %2438 = vmatprep.subr.mxu0 0.0
    %v2439 = vand.u32 %v2179, 4294901760
    %v2440 = vsub.f32 %v2179, %v2439
    %2441 = vmatpush1.msra.mxu0 %v2440
    %2442 = vmatprep.subr.mxu0 0.0
    %v2443 = vand.u32 %v2178, 4294901760
    %v2444 = vsub.f32 %v2178, %v2443
    %2445 = vmatpush1.msra.mxu0 %v2444
    %2446 = vmatprep.subr.mxu0 0.0
    %v2447 = vand.u32 %v2177, 4294901760
    %v2448 = vsub.f32 %v2177, %v2447
    %2449 = vmatpush1.msra.mxu0 %v2448
    %2450 = vmatprep.subr.mxu0 0.0
    %v2451 = vand.u32 %v2176, 4294901760
    %v2452 = vsub.f32 %v2176, %v2451
    %2453 = vmatpush1.msra.mxu0 %v2452
    %2454 = vmatprep.subr.mxu0 0.0
    %v2455 = vand.u32 %v2175, 4294901760
    %v2456 = vsub.f32 %v2175, %v2455
    %2457 = vmatpush1.msra.mxu0 %v2456
    %2458 = vmatprep.subr.mxu0 0.0
    %v2459 = vand.u32 %v2174, 4294901760
    %v2460 = vsub.f32 %v2174, %v2459
    %2461 = vmatpush1.msra.mxu0 %v2460
    %2462 = vmatprep.subr.mxu0 0.0
    %v2463 = vand.u32 %v2173, 4294901760
    %v2464 = vsub.f32 %v2173, %v2463
    %2465 = vmatpush1.msra.mxu0 %v2464
    %2466 = vmatprep.subr.mxu0 0.0
    %v2467 = vand.u32 %v2172, 4294901760
    %v2468 = vsub.f32 %v2172, %v2467
    %2469 = vmatpush1.msra.mxu0 %v2468
    %2470 = vmatprep.subr.mxu0 0.0
    %v2471 = vand.u32 %v2171, 4294901760
    %v2472 = vsub.f32 %v2171, %v2471
    %2473 = vmatpush1.msra.mxu0 %v2472
    %2474 = vmatprep.subr.mxu0 0.0
    %v2475 = vand.u32 %v2170, 4294901760
    %v2476 = vsub.f32 %v2170, %v2475
    %2477 = vmatpush1.msra.mxu0 %v2476
    %2478 = vmatprep.subr.mxu0 0.0
    %v2479 = vand.u32 %v2169, 4294901760
    %v2480 = vsub.f32 %v2169, %v2479
    %2481 = vmatpush1.msra.mxu0 %v2480
    %2482 = vmatprep.subr.mxu0 0.0
    %v2483 = vand.u32 %v2168, 4294901760
    %v2484 = vsub.f32 %v2168, %v2483
    %2485 = vmatpush1.msra.mxu0 %v2484
    %2486 = vmatprep.subr.mxu0 0.0
    %v2487 = vand.u32 %v2167, 4294901760
    %v2488 = vsub.f32 %v2167, %v2487
    %2489 = vmatpush1.msra.mxu0 %v2488
    %2490 = vmatprep.subr.mxu0 0.0
    %v2491 = vand.u32 %v2166, 4294901760
    %v2492 = vsub.f32 %v2166, %v2491
    %2493 = vmatpush1.msra.mxu0 %v2492
    %2494 = vmatprep.subr.mxu0 0.0
    %v2495 = vand.u32 %v2165, 4294901760
    %v2496 = vsub.f32 %v2165, %v2495
    %2497 = vmatpush1.msra.mxu0 %v2496
    %2498 = vmatprep.subr.mxu0 0.0
    %v2499 = vand.u32 %v2164, 4294901760
    %v2500 = vsub.f32 %v2164, %v2499
    %2501 = vmatpush1.msra.mxu0 %v2500
    %2502 = vmatprep.subr.mxu0 0.0
    %2503 = vmatpush2.msra.mxu0 0.0
    %2504 = vmatprep.subr.mxu0 0.0
    %2505 = vmatpush2.msra.mxu0 0.0
    %2506 = vmatprep.subr.mxu0 0.0
    %2507 = vmatpush2.msra.mxu0 0.0
    %2508 = vmatprep.subr.mxu0 0.0
    %2509 = vmatpush2.msra.mxu0 0.0
    %2510 = vmatprep.subr.mxu0 0.0
    %2511 = vmatpush2.msra.mxu0 0.0
    %2512 = vmatprep.subr.mxu0 0.0
    %2513 = vmatpush2.msra.mxu0 0.0
    %2514 = vmatprep.subr.mxu0 0.0
    %2515 = vmatpush2.msra.mxu0 0.0
    %2516 = vmatprep.subr.mxu0 0.0
    %2517 = vmatpush2.msra.mxu0 0.0
    %2518 = vmatprep.subr.mxu0 0.0
    %2519 = vmatpush2.msra.mxu0 0.0
    %2520 = vmatprep.subr.mxu0 0.0
    %2521 = vmatpush2.msra.mxu0 0.0
    %2522 = vmatprep.subr.mxu0 0.0
    %2523 = vmatpush2.msra.mxu0 0.0
    %2524 = vmatprep.subr.mxu0 0.0
    %2525 = vmatpush2.msra.mxu0 0.0
    %2526 = vmatprep.subr.mxu0 0.0
    %2527 = vmatpush2.msra.mxu0 0.0
    %2528 = vmatprep.subr.mxu0 0.0
    %2529 = vmatpush2.msra.mxu0 0.0
    %2530 = vmatprep.subr.mxu0 0.0
    %2531 = vmatpush2.msra.mxu0 0.0
    %2532 = vmatprep.subr.mxu0 0.0
    %2533 = vmatpush2.msra.mxu0 0.0
    %2534 = vmatprep.mubr.f32.mxu0 0.0
    %v2535 = vand.u32 %v2161, 4294901760
    %v2536 = vsub.f32 %v2161, %v2535
    %2537 = vmatmul.mubr.f32.gmra.mxu0 %v2536
    %v2538 = vpop.f32.mrf.mxu0
    %v2539 = vadd.f32 %v2429, %v2538
    %v2540 = vpop.f32.mrf.mxu0
    %2541 = vmatprep.mubr.f32.mxu0 0.0
    %v2542 = vand.u32 %v2162, 4294901760
    %v2543 = vsub.f32 %v2162, %v2542
    %2544 = vmatmul.mubr.f32.gmra.mxu0 %v2543
    %v2545 = vpop.f32.mrf.mxu0
    %v2546 = vadd.f32 %v2435, %v2545
    %v2547 = vpop.f32.mrf.mxu0
    %2548 = vdwg.mxu0
    %2549 = vmatprep.subr.mxu0 0.0
    %v2550 = vand.u32 %v2179, 4294901760
    %2551 = vmatpush1.msra.mxu0 %v2550
    %2552 = vmatprep.subr.mxu0 0.0
    %v2553 = vand.u32 %v2178, 4294901760
    %2554 = vmatpush1.msra.mxu0 %v2553
    %2555 = vmatprep.subr.mxu0 0.0
    %v2556 = vand.u32 %v2177, 4294901760
    %2557 = vmatpush1.msra.mxu0 %v2556
    %2558 = vmatprep.subr.mxu0 0.0
    %v2559 = vand.u32 %v2176, 4294901760
    %2560 = vmatpush1.msra.mxu0 %v2559
    %2561 = vmatprep.subr.mxu0 0.0
    %v2562 = vand.u32 %v2175, 4294901760
    %2563 = vmatpush1.msra.mxu0 %v2562
    %2564 = vmatprep.subr.mxu0 0.0
    %v2565 = vand.u32 %v2174, 4294901760
    %2566 = vmatpush1.msra.mxu0 %v2565
    %2567 = vmatprep.subr.mxu0 0.0
    %v2568 = vand.u32 %v2173, 4294901760
    %2569 = vmatpush1.msra.mxu0 %v2568
    %2570 = vmatprep.subr.mxu0 0.0
    %v2571 = vand.u32 %v2172, 4294901760
    %2572 = vmatpush1.msra.mxu0 %v2571
    %2573 = vmatprep.subr.mxu0 0.0
    %v2574 = vand.u32 %v2171, 4294901760
    %2575 = vmatpush1.msra.mxu0 %v2574
    %2576 = vmatprep.subr.mxu0 0.0
    %v2577 = vand.u32 %v2170, 4294901760
    %2578 = vmatpush1.msra.mxu0 %v2577
    %2579 = vmatprep.subr.mxu0 0.0
    %v2580 = vand.u32 %v2169, 4294901760
    %2581 = vmatpush1.msra.mxu0 %v2580
    %2582 = vmatprep.subr.mxu0 0.0
    %v2583 = vand.u32 %v2168, 4294901760
    %2584 = vmatpush1.msra.mxu0 %v2583
    %2585 = vmatprep.subr.mxu0 0.0
    %v2586 = vand.u32 %v2167, 4294901760
    %2587 = vmatpush1.msra.mxu0 %v2586
    %2588 = vmatprep.subr.mxu0 0.0
    %v2589 = vand.u32 %v2166, 4294901760
    %2590 = vmatpush1.msra.mxu0 %v2589
    %2591 = vmatprep.subr.mxu0 0.0
    %v2592 = vand.u32 %v2165, 4294901760
    %2593 = vmatpush1.msra.mxu0 %v2592
    %2594 = vmatprep.subr.mxu0 0.0
    %v2595 = vand.u32 %v2164, 4294901760
    %2596 = vmatpush1.msra.mxu0 %v2595
    %2597 = vmatprep.subr.mxu0 0.0
    %2598 = vmatpush2.msra.mxu0 0.0
    %2599 = vmatprep.subr.mxu0 0.0
    %2600 = vmatpush2.msra.mxu0 0.0
    %2601 = vmatprep.subr.mxu0 0.0
    %2602 = vmatpush2.msra.mxu0 0.0
    %2603 = vmatprep.subr.mxu0 0.0
    %2604 = vmatpush2.msra.mxu0 0.0
    %2605 = vmatprep.subr.mxu0 0.0
    %2606 = vmatpush2.msra.mxu0 0.0
    %2607 = vmatprep.subr.mxu0 0.0
    %2608 = vmatpush2.msra.mxu0 0.0
    %2609 = vmatprep.subr.mxu0 0.0
    %2610 = vmatpush2.msra.mxu0 0.0
    %2611 = vmatprep.subr.mxu0 0.0
    %2612 = vmatpush2.msra.mxu0 0.0
    %2613 = vmatprep.subr.mxu0 0.0
    %2614 = vmatpush2.msra.mxu0 0.0
    %2615 = vmatprep.subr.mxu0 0.0
    %2616 = vmatpush2.msra.mxu0 0.0
    %2617 = vmatprep.subr.mxu0 0.0
    %2618 = vmatpush2.msra.mxu0 0.0
    %2619 = vmatprep.subr.mxu0 0.0
    %2620 = vmatpush2.msra.mxu0 0.0
    %2621 = vmatprep.subr.mxu0 0.0
    %2622 = vmatpush2.msra.mxu0 0.0
    %2623 = vmatprep.subr.mxu0 0.0
    %2624 = vmatpush2.msra.mxu0 0.0
    %2625 = vmatprep.subr.mxu0 0.0
    %2626 = vmatpush2.msra.mxu0 0.0
    %2627 = vmatprep.subr.mxu0 0.0
    %2628 = vmatpush2.msra.mxu0 0.0
    %2629 = vmatprep.mubr.f32.mxu0 0.0
    %v2630 = vand.u32 %v2161, 4294901760
    %v2631 = vsub.f32 %v2161, %v2630
    %v2632 = vand.u32 %v2631, 4294901760
    %2633 = vmatmul.mubr.f32.gmra.mxu0 %v2632
    %v2634 = vpop.f32.mrf.mxu0
    %v2635 = vadd.f32 %v2539, %v2634
    %v2636 = vpop.f32.mrf.mxu0
    %2637 = vmatprep.mubr.f32.mxu0 0.0
    %v2638 = vand.u32 %v2162, 4294901760
    %v2639 = vsub.f32 %v2162, %v2638
    %v2640 = vand.u32 %v2639, 4294901760
    %2641 = vmatmul.mubr.f32.gmra.mxu0 %v2640
    %v2642 = vpop.f32.mrf.mxu0
    %v2643 = vadd.f32 %v2546, %v2642
    %v2644 = vpop.f32.mrf.mxu0
    %2645 = vdwg.mxu0
    %2646 = vmatprep.subr.mxu0 0.0
    %v2647 = vand.u32 %v2179, 4294901760
    %v2648 = vsub.f32 %v2179, %v2647
    %v2649 = vand.u32 %v2648, 4294901760
    %2650 = vmatpush1.msra.mxu0 %v2649
    %2651 = vmatprep.subr.mxu0 0.0
    %v2652 = vand.u32 %v2178, 4294901760
    %v2653 = vsub.f32 %v2178, %v2652
    %v2654 = vand.u32 %v2653, 4294901760
    %2655 = vmatpush1.msra.mxu0 %v2654
    %2656 = vmatprep.subr.mxu0 0.0
    %v2657 = vand.u32 %v2177, 4294901760
    %v2658 = vsub.f32 %v2177, %v2657
    %v2659 = vand.u32 %v2658, 4294901760
    %2660 = vmatpush1.msra.mxu0 %v2659
    %2661 = vmatprep.subr.mxu0 0.0
    %v2662 = vand.u32 %v2176, 4294901760
    %v2663 = vsub.f32 %v2176, %v2662
    %v2664 = vand.u32 %v2663, 4294901760
    %2665 = vmatpush1.msra.mxu0 %v2664
    %2666 = vmatprep.subr.mxu0 0.0
    %v2667 = vand.u32 %v2175, 4294901760
    %v2668 = vsub.f32 %v2175, %v2667
    %v2669 = vand.u32 %v2668, 4294901760
    %2670 = vmatpush1.msra.mxu0 %v2669
    %2671 = vmatprep.subr.mxu0 0.0
    %v2672 = vand.u32 %v2174, 4294901760
    %v2673 = vsub.f32 %v2174, %v2672
    %v2674 = vand.u32 %v2673, 4294901760
    %2675 = vmatpush1.msra.mxu0 %v2674
    %2676 = vmatprep.subr.mxu0 0.0
    %v2677 = vand.u32 %v2173, 4294901760
    %v2678 = vsub.f32 %v2173, %v2677
    %v2679 = vand.u32 %v2678, 4294901760
    %2680 = vmatpush1.msra.mxu0 %v2679
    %2681 = vmatprep.subr.mxu0 0.0
    %v2682 = vand.u32 %v2172, 4294901760
    %v2683 = vsub.f32 %v2172, %v2682
    %v2684 = vand.u32 %v2683, 4294901760
    %2685 = vmatpush1.msra.mxu0 %v2684
    %2686 = vmatprep.subr.mxu0 0.0
    %v2687 = vand.u32 %v2171, 4294901760
    %v2688 = vsub.f32 %v2171, %v2687
    %v2689 = vand.u32 %v2688, 4294901760
    %2690 = vmatpush1.msra.mxu0 %v2689
    %2691 = vmatprep.subr.mxu0 0.0
    %v2692 = vand.u32 %v2170, 4294901760
    %v2693 = vsub.f32 %v2170, %v2692
    %v2694 = vand.u32 %v2693, 4294901760
    %2695 = vmatpush1.msra.mxu0 %v2694
    %2696 = vmatprep.subr.mxu0 0.0
    %v2697 = vand.u32 %v2169, 4294901760
    %v2698 = vsub.f32 %v2169, %v2697
    %v2699 = vand.u32 %v2698, 4294901760
    %2700 = vmatpush1.msra.mxu0 %v2699
    %2701 = vmatprep.subr.mxu0 0.0
    %v2702 = vand.u32 %v2168, 4294901760
    %v2703 = vsub.f32 %v2168, %v2702
    %v2704 = vand.u32 %v2703, 4294901760
    %2705 = vmatpush1.msra.mxu0 %v2704
    %2706 = vmatprep.subr.mxu0 0.0
    %v2707 = vand.u32 %v2167, 4294901760
    %v2708 = vsub.f32 %v2167, %v2707
    %v2709 = vand.u32 %v2708, 4294901760
    %2710 = vmatpush1.msra.mxu0 %v2709
    %2711 = vmatprep.subr.mxu0 0.0
    %v2712 = vand.u32 %v2166, 4294901760
    %v2713 = vsub.f32 %v2166, %v2712
    %v2714 = vand.u32 %v2713, 4294901760
    %2715 = vmatpush1.msra.mxu0 %v2714
    %2716 = vmatprep.subr.mxu0 0.0
    %v2717 = vand.u32 %v2165, 4294901760
    %v2718 = vsub.f32 %v2165, %v2717
    %v2719 = vand.u32 %v2718, 4294901760
    %2720 = vmatpush1.msra.mxu0 %v2719
    %2721 = vmatprep.subr.mxu0 0.0
    %v2722 = vand.u32 %v2164, 4294901760
    %v2723 = vsub.f32 %v2164, %v2722
    %v2724 = vand.u32 %v2723, 4294901760
    %2725 = vmatpush1.msra.mxu0 %v2724
    %2726 = vmatprep.subr.mxu0 0.0
    %2727 = vmatpush2.msra.mxu0 0.0
    %2728 = vmatprep.subr.mxu0 0.0
    %2729 = vmatpush2.msra.mxu0 0.0
    %2730 = vmatprep.subr.mxu0 0.0
    %2731 = vmatpush2.msra.mxu0 0.0
    %2732 = vmatprep.subr.mxu0 0.0
    %2733 = vmatpush2.msra.mxu0 0.0
    %2734 = vmatprep.subr.mxu0 0.0
    %2735 = vmatpush2.msra.mxu0 0.0
    %2736 = vmatprep.subr.mxu0 0.0
    %2737 = vmatpush2.msra.mxu0 0.0
    %2738 = vmatprep.subr.mxu0 0.0
    %2739 = vmatpush2.msra.mxu0 0.0
    %2740 = vmatprep.subr.mxu0 0.0
    %2741 = vmatpush2.msra.mxu0 0.0
    %2742 = vmatprep.subr.mxu0 0.0
    %2743 = vmatpush2.msra.mxu0 0.0
    %2744 = vmatprep.subr.mxu0 0.0
    %2745 = vmatpush2.msra.mxu0 0.0
    %2746 = vmatprep.subr.mxu0 0.0
    %2747 = vmatpush2.msra.mxu0 0.0
    %2748 = vmatprep.subr.mxu0 0.0
    %2749 = vmatpush2.msra.mxu0 0.0
    %2750 = vmatprep.subr.mxu0 0.0
    %2751 = vmatpush2.msra.mxu0 0.0
    %2752 = vmatprep.subr.mxu0 0.0
    %2753 = vmatpush2.msra.mxu0 0.0
    %2754 = vmatprep.subr.mxu0 0.0
    %2755 = vmatpush2.msra.mxu0 0.0
    %2756 = vmatprep.subr.mxu0 0.0
    %2757 = vmatpush2.msra.mxu0 0.0
    %2758 = vmatprep.mubr.f32.mxu0 0.0
    %v2759 = vand.u32 %v2161, 4294901760
    %2760 = vmatmul.mubr.f32.gmra.mxu0 %v2759
    %v2761 = vpop.f32.mrf.mxu0
    %v2762 = vadd.f32 %v2635, %v2761
    %v2763 = vpop.f32.mrf.mxu0
    %2764 = vmatprep.mubr.f32.mxu0 0.0
    %v2765 = vand.u32 %v2162, 4294901760
    %2766 = vmatmul.mubr.f32.gmra.mxu0 %v2765
    %v2767 = vpop.f32.mrf.mxu0
    %v2768 = vadd.f32 %v2643, %v2767
    %v2769 = vpop.f32.mrf.mxu0
    %2770 = vdwg.mxu0
    %2771 = vmatprep.subr.mxu0 0.0
    %v2772 = vand.u32 %v2179, 4294901760
    %2773 = vmatpush1.msra.mxu0 %v2772
    %2774 = vmatprep.subr.mxu0 0.0
    %v2775 = vand.u32 %v2178, 4294901760
    %2776 = vmatpush1.msra.mxu0 %v2775
    %2777 = vmatprep.subr.mxu0 0.0
    %v2778 = vand.u32 %v2177, 4294901760
    %2779 = vmatpush1.msra.mxu0 %v2778
    %2780 = vmatprep.subr.mxu0 0.0
    %v2781 = vand.u32 %v2176, 4294901760
    %2782 = vmatpush1.msra.mxu0 %v2781
    %2783 = vmatprep.subr.mxu0 0.0
    %v2784 = vand.u32 %v2175, 4294901760
    %2785 = vmatpush1.msra.mxu0 %v2784
    %2786 = vmatprep.subr.mxu0 0.0
    %v2787 = vand.u32 %v2174, 4294901760
    %2788 = vmatpush1.msra.mxu0 %v2787
    %2789 = vmatprep.subr.mxu0 0.0
    %v2790 = vand.u32 %v2173, 4294901760
    %2791 = vmatpush1.msra.mxu0 %v2790
    %2792 = vmatprep.subr.mxu0 0.0
    %v2793 = vand.u32 %v2172, 4294901760
    %2794 = vmatpush1.msra.mxu0 %v2793
    %2795 = vmatprep.subr.mxu0 0.0
    %v2796 = vand.u32 %v2171, 4294901760
    %2797 = vmatpush1.msra.mxu0 %v2796
    %2798 = vmatprep.subr.mxu0 0.0
    %v2799 = vand.u32 %v2170, 4294901760
    %2800 = vmatpush1.msra.mxu0 %v2799
    %2801 = vmatprep.subr.mxu0 0.0
    %v2802 = vand.u32 %v2169, 4294901760
    %2803 = vmatpush1.msra.mxu0 %v2802
    %2804 = vmatprep.subr.mxu0 0.0
    %v2805 = vand.u32 %v2168, 4294901760
    %2806 = vmatpush1.msra.mxu0 %v2805
    %2807 = vmatprep.subr.mxu0 0.0
    %v2808 = vand.u32 %v2167, 4294901760
    %2809 = vmatpush1.msra.mxu0 %v2808
    %2810 = vmatprep.subr.mxu0 0.0
    %v2811 = vand.u32 %v2166, 4294901760
    %2812 = vmatpush1.msra.mxu0 %v2811
    %2813 = vmatprep.subr.mxu0 0.0
    %v2814 = vand.u32 %v2165, 4294901760
    %2815 = vmatpush1.msra.mxu0 %v2814
    %2816 = vmatprep.subr.mxu0 0.0
    %v2817 = vand.u32 %v2164, 4294901760
    %2818 = vmatpush1.msra.mxu0 %v2817
    %2819 = vmatprep.subr.mxu0 0.0
    %2820 = vmatpush2.msra.mxu0 0.0
    %2821 = vmatprep.subr.mxu0 0.0
    %2822 = vmatpush2.msra.mxu0 0.0
    %2823 = vmatprep.subr.mxu0 0.0
    %2824 = vmatpush2.msra.mxu0 0.0
    %2825 = vmatprep.subr.mxu0 0.0
    %2826 = vmatpush2.msra.mxu0 0.0
    %2827 = vmatprep.subr.mxu0 0.0
    %2828 = vmatpush2.msra.mxu0 0.0
    %2829 = vmatprep.subr.mxu0 0.0
    %2830 = vmatpush2.msra.mxu0 0.0
    %2831 = vmatprep.subr.mxu0 0.0
    %2832 = vmatpush2.msra.mxu0 0.0
    %2833 = vmatprep.subr.mxu0 0.0
    %2834 = vmatpush2.msra.mxu0 0.0
    %2835 = vmatprep.subr.mxu0 0.0
    %2836 = vmatpush2.msra.mxu0 0.0
    %2837 = vmatprep.subr.mxu0 0.0
    %2838 = vmatpush2.msra.mxu0 0.0
    %2839 = vmatprep.subr.mxu0 0.0
    %2840 = vmatpush2.msra.mxu0 0.0
    %2841 = vmatprep.subr.mxu0 0.0
    %2842 = vmatpush2.msra.mxu0 0.0
    %2843 = vmatprep.subr.mxu0 0.0
    %2844 = vmatpush2.msra.mxu0 0.0
    %2845 = vmatprep.subr.mxu0 0.0
    %2846 = vmatpush2.msra.mxu0 0.0
    %2847 = vmatprep.subr.mxu0 0.0
    %2848 = vmatpush2.msra.mxu0 0.0
    %2849 = vmatprep.subr.mxu0 0.0
    %2850 = vmatpush2.msra.mxu0 0.0
    %2851 = vmatprep.mubr.f32.mxu0 0.0
    %v2852 = vand.u32 %v2161, 4294901760
    %2853 = vmatmul.mubr.f32.gmra.mxu0 %v2852
    %v2854 = vpop.f32.mrf.mxu0
    %v2855 = vadd.f32 %v2762, %v2854
    %v2856 = vpop.f32.mrf.mxu0
    %2857 = vmatprep.mubr.f32.mxu0 0.0
    %v2858 = vand.u32 %v2162, 4294901760
    %2859 = vmatmul.mubr.f32.gmra.mxu0 %v2858
    %v2860 = vpop.f32.mrf.mxu0
    %v2861 = vadd.f32 %v2768, %v2860
    %v2862 = vpop.f32.mrf.mxu0
    %2863 = vdwg.mxu0
    %v2864 = vadd.f32 %v743, %v1447
    %v2865 = vadd.f32 %v2864, %v2151
    %v2866 = vadd.f32 %v2865, %v2855
    %2867 = vadd.xlane.f32.xlu0 %v2866
    %v2868 = vpop.xlane.xlu0 %2867
    %v2869 = vadd.f32 %v749, %v1453
    %v2870 = vadd.f32 %v2869, %v2157
    %v2871 = vadd.f32 %v2870, %v2861
    %2872 = vadd.xlane.f32.xlu0 %v2871
    %v2873 = vpop.xlane.xlu0 %2872
    %v2874 = vmul.f32 %v2868, 0.001953125
    %v2875 = vmul.f32 %v2873, 0.001953125
    %v2876 = vsub.f32 %v743, %v2874
    %v2877 = vsub.f32 %v1447, %v2874
    %v2878 = vsub.f32 %v2151, %v2874
    %v2879 = vsub.f32 %v2855, %v2874
    %v2880 = vsub.f32 %v749, %v2875
    %v2881 = vsub.f32 %v1453, %v2875
    %v2882 = vsub.f32 %v2157, %v2875
    %v2883 = vsub.f32 %v2861, %v2875
    %v2884 = vmul.f32 %v2876, %v2876
    %v2885 = vmul.f32 %v2877, %v2877
    %v2886 = vmul.f32 %v2878, %v2878
    %v2887 = vmul.f32 %v2879, %v2879
    %v2888 = vmul.f32 %v2880, %v2880
    %v2889 = vmul.f32 %v2881, %v2881
    %v2890 = vmul.f32 %v2882, %v2882
    %v2891 = vmul.f32 %v2883, %v2883
    %v2892 = vadd.f32 %v2884, %v2885
    %v2893 = vadd.f32 %v2892, %v2886
    %v2894 = vadd.f32 %v2893, %v2887
    %2895 = vadd.xlane.f32.xlu0 %v2894
    %v2896 = vpop.xlane.xlu0 %2895
    %v2897 = vadd.f32 %v2888, %v2889
    %v2898 = vadd.f32 %v2897, %v2890
    %v2899 = vadd.f32 %v2898, %v2891
    %2900 = vadd.xlane.f32.xlu0 %v2899
    %v2901 = vpop.xlane.xlu0 %2900
    %v2902 = vmul.f32 %v2896, 0.001953125
    %v2903 = vmul.f32 %v2901, 0.001953125
    %v2904 = vadd.f32 %v2902, 1e-05
    %v2905 = vadd.f32 %v2903, 1e-05
    %v2906 = vrsqrt.pop %v2904
    %v2907 = vrsqrt.pop %v2905
    %v2908 = vld [vmem:[%s2] sm:$0xff]
    %v2909 = vld [vmem:[%s2 + $0x8] sm:$0xff]
    %v2910 = vmul.f32 %v2906, %v2908
    %v2911 = vmul.f32 %v2907, %v2909
    %v2912 = vld [vmem:[%s3] sm:$0xff]
    %v2913 = vld [vmem:[%s3 + $0x8] sm:$0xff]
    %v2914 = vmul.f32 %v2874, %v2910
    %v2915 = vmul.f32 %v2875, %v2911
    %v2916 = vsub.f32 %v2912, %v2914
    %v2917 = vsub.f32 %v2913, %v2915
    %2919 = vset.pattern.permute.xlu0 0
    %2920 = vperm.xlu0 %2919, %v2910
    %v2921 = vpop.permute.xlu0 %2920
    %2924 = vset.pattern.permute.xlu0 0
    %2925 = vperm.xlu0 %2924, %v2911
    %v2926 = vpop.permute.xlu0 %2925
    %v2928 = vmul.f32 %v743, %v2921
    %v2929 = vmul.f32 %v1447, %v2921
    %v2930 = vmul.f32 %v2151, %v2921
    %v2931 = vmul.f32 %v2855, %v2921
    %v2932 = vmul.f32 %v749, %v2926
    %v2933 = vmul.f32 %v1453, %v2926
    %v2934 = vmul.f32 %v2157, %v2926
    %v2935 = vmul.f32 %v2861, %v2926
    %2937 = vset.pattern.permute.xlu0 0
    %2938 = vperm.xlu0 %2937, %v2916
    %v2939 = vpop.permute.xlu0 %2938
    %2942 = vset.pattern.permute.xlu0 0
    %2943 = vperm.xlu0 %2942, %v2917
    %v2944 = vpop.permute.xlu0 %2943
    %v2946 = vadd.f32 %v2928, %v2939
    %v2947 = vadd.f32 %v2929, %v2939
    %v2948 = vadd.f32 %v2930, %v2939
    %v2949 = vadd.f32 %v2931, %v2939
    %v2950 = vadd.f32 %v2932, %v2944
    %v2951 = vadd.f32 %v2933, %v2944
    %v2952 = vadd.f32 %v2934, %v2944
    %v2953 = vadd.f32 %v2935, %v2944
    %v2954 = vld [vmem:[%s4] sm:$0xff]
    %v2955 = vld [vmem:[%s4 + $0x8] sm:$0xff]
    %v2956 = vld [vmem:[%s4 + $0x10] sm:$0xff]
    %v2957 = vld [vmem:[%s4 + $0x18] sm:$0xff]
    %v2958 = vld [vmem:[%s4 + $0x20] sm:$0xff]
    %v2959 = vld [vmem:[%s4 + $0x28] sm:$0xff]
    %v2960 = vld [vmem:[%s4 + $0x30] sm:$0xff]
    %v2961 = vld [vmem:[%s4 + $0x38] sm:$0xff]
    %vm2962 = vcmask 130048
    %v2964 = vsel %vm2962, %v2954, 0
    %v2967 = vsel %vm2962, %v2955, 0
    %v2970 = vsel %vm2962, %v2956, 0
    %v2973 = vsel %vm2962, %v2957, 0
    %v2976 = vsel %vm2962, %v2958, 0
    %v2979 = vsel %vm2962, %v2959, 0
    %v2982 = vsel %vm2962, %v2960, 0
    %v2985 = vsel %vm2962, %v2961, 0
    %2987 = vmatprep.subr.mxu0 0.0
    %2988 = vmatpush1.msra.mxu0 0.0
    %2989 = vmatprep.subr.mxu0 0.0
    %2990 = vmatpush1.msra.mxu0 0.0
    %2991 = vmatprep.subr.mxu0 0.0
    %2992 = vmatpush1.msra.mxu0 0.0
    %2993 = vmatprep.subr.mxu0 0.0
    %2994 = vmatpush1.msra.mxu0 0.0
    %2995 = vmatprep.subr.mxu0 0.0
    %2996 = vmatpush1.msra.mxu0 0.0
    %2997 = vmatprep.subr.mxu0 0.0
    %2998 = vmatpush1.msra.mxu0 0.0
    %2999 = vmatprep.subr.mxu0 0.0
    %3000 = vmatpush1.msra.mxu0 0.0
    %3001 = vmatprep.subr.mxu0 0.0
    %3002 = vmatpush1.msra.mxu0 0.0
    %3003 = vmatprep.subr.mxu0 0.0
    %3004 = vmatpush1.msra.mxu0 0.0
    %3005 = vmatprep.subr.mxu0 0.0
    %3006 = vmatpush1.msra.mxu0 0.0
    %3007 = vmatprep.subr.mxu0 0.0
    %3008 = vmatpush1.msra.mxu0 0.0
    %3009 = vmatprep.subr.mxu0 0.0
    %3010 = vmatpush1.msra.mxu0 0.0
    %3011 = vmatprep.subr.mxu0 0.0
    %3012 = vmatpush1.msra.mxu0 0.0
    %3013 = vmatprep.subr.mxu0 0.0
    %3014 = vmatpush1.msra.mxu0 0.0
    %v3015 = vand.u32 %v2951, 4294901760
    %3016 = vmatprep.subr.mxu0 %v3015
    %v3017 = vand.u32 %v2950, 4294901760
    %3018 = vmatpush1.msra.mxu0 %v3017
    %v3019 = vand.u32 %v2947, 4294901760
    %3020 = vmatprep.subr.mxu0 %v3019
    %v3021 = vand.u32 %v2946, 4294901760
    %3022 = vmatpush1.msra.mxu0 %v3021
    %3023 = vmatprep.subr.mxu0 0.0
    %3024 = vmatpush2.msra.mxu0 0.0
    %3025 = vmatprep.subr.mxu0 0.0
    %3026 = vmatpush2.msra.mxu0 0.0
    %3027 = vmatprep.subr.mxu0 0.0
    %3028 = vmatpush2.msra.mxu0 0.0
    %3029 = vmatprep.subr.mxu0 0.0
    %3030 = vmatpush2.msra.mxu0 0.0
    %3031 = vmatprep.subr.mxu0 0.0
    %3032 = vmatpush2.msra.mxu0 0.0
    %3033 = vmatprep.subr.mxu0 0.0
    %3034 = vmatpush2.msra.mxu0 0.0
    %3035 = vmatprep.subr.mxu0 0.0
    %3036 = vmatpush2.msra.mxu0 0.0
    %3037 = vmatprep.subr.mxu0 0.0
    %3038 = vmatpush2.msra.mxu0 0.0
    %3039 = vmatprep.subr.mxu0 0.0
    %3040 = vmatpush2.msra.mxu0 0.0
    %3041 = vmatprep.subr.mxu0 0.0
    %3042 = vmatpush2.msra.mxu0 0.0
    %3043 = vmatprep.subr.mxu0 0.0
    %3044 = vmatpush2.msra.mxu0 0.0
    %3045 = vmatprep.subr.mxu0 0.0
    %3046 = vmatpush2.msra.mxu0 0.0
    %3047 = vmatprep.subr.mxu0 0.0
    %3048 = vmatpush2.msra.mxu0 0.0
    %3049 = vmatprep.subr.mxu0 0.0
    %3050 = vmatpush2.msra.mxu0 0.0
    %3051 = vmatprep.subr.mxu0 0.0
    %3052 = vmatpush2.msra.mxu0 0.0
    %3053 = vmatprep.subr.mxu0 0.0
    %3054 = vmatpush2.msra.mxu0 0.0
    %3055 = vmatprep.mubr.f32.mxu0 0.0
    %v3056 = vand.u32 %v2964, 4294901760
    %v3057 = vsub.f32 %v2964, %v3056
    %v3058 = vand.u32 %v3057, 4294901760
    %v3059 = vsub.f32 %v3057, %v3058
    %v3060 = vand.u32 %v3059, 4294901760
    %3061 = vmatmul.mubr.f32.gmra.mxu0 %v3060
    %v3062 = vpop.f32.mrf.mxu0
    %v3063 = vadd.f32 0.0, %v3062
    %v3064 = vpop.f32.mrf.mxu0
    %v3065 = vadd.f32 0.0, %v3064
    %3066 = vmatprep.mubr.f32.mxu0 0.0
    %v3067 = vand.u32 %v2967, 4294901760
    %v3068 = vsub.f32 %v2967, %v3067
    %v3069 = vand.u32 %v3068, 4294901760
    %v3070 = vsub.f32 %v3068, %v3069
    %v3071 = vand.u32 %v3070, 4294901760
    %3072 = vmatmul.mubr.f32.gmra.mxu0 %v3071
    %v3073 = vpop.f32.mrf.mxu0
    %v3074 = vadd.f32 0.0, %v3073
    %v3075 = vpop.f32.mrf.mxu0
    %v3076 = vadd.f32 0.0, %v3075
    %3077 = vmatprep.mubr.f32.mxu0 0.0
    %v3078 = vand.u32 %v2970, 4294901760
    %v3079 = vsub.f32 %v2970, %v3078
    %v3080 = vand.u32 %v3079, 4294901760
    %v3081 = vsub.f32 %v3079, %v3080
    %v3082 = vand.u32 %v3081, 4294901760
    %3083 = vmatmul.mubr.f32.gmra.mxu0 %v3082
    %v3084 = vpop.f32.mrf.mxu0
    %v3085 = vadd.f32 0.0, %v3084
    %v3086 = vpop.f32.mrf.mxu0
    %v3087 = vadd.f32 0.0, %v3086
    %3088 = vmatprep.mubr.f32.mxu0 0.0
    %v3089 = vand.u32 %v2973, 4294901760
    %v3090 = vsub.f32 %v2973, %v3089
    %v3091 = vand.u32 %v3090, 4294901760
    %v3092 = vsub.f32 %v3090, %v3091
    %v3093 = vand.u32 %v3092, 4294901760
    %3094 = vmatmul.mubr.f32.gmra.mxu0 %v3093
    %v3095 = vpop.f32.mrf.mxu0
    %v3096 = vadd.f32 0.0, %v3095
    %v3097 = vpop.f32.mrf.mxu0
    %v3098 = vadd.f32 0.0, %v3097
    %3099 = vmatprep.mubr.f32.mxu0 0.0
    %v3100 = vand.u32 %v2976, 4294901760
    %v3101 = vsub.f32 %v2976, %v3100
    %v3102 = vand.u32 %v3101, 4294901760
    %v3103 = vsub.f32 %v3101, %v3102
    %v3104 = vand.u32 %v3103, 4294901760
    %3105 = vmatmul.mubr.f32.gmra.mxu0 %v3104
    %v3106 = vpop.f32.mrf.mxu0
    %v3107 = vadd.f32 0.0, %v3106
    %v3108 = vpop.f32.mrf.mxu0
    %v3109 = vadd.f32 0.0, %v3108
    %3110 = vmatprep.mubr.f32.mxu0 0.0
    %v3111 = vand.u32 %v2979, 4294901760
    %v3112 = vsub.f32 %v2979, %v3111
    %v3113 = vand.u32 %v3112, 4294901760
    %v3114 = vsub.f32 %v3112, %v3113
    %v3115 = vand.u32 %v3114, 4294901760
    %3116 = vmatmul.mubr.f32.gmra.mxu0 %v3115
    %v3117 = vpop.f32.mrf.mxu0
    %v3118 = vadd.f32 0.0, %v3117
    %v3119 = vpop.f32.mrf.mxu0
    %v3120 = vadd.f32 0.0, %v3119
    %3121 = vmatprep.mubr.f32.mxu0 0.0
    %v3122 = vand.u32 %v2982, 4294901760
    %v3123 = vsub.f32 %v2982, %v3122
    %v3124 = vand.u32 %v3123, 4294901760
    %v3125 = vsub.f32 %v3123, %v3124
    %v3126 = vand.u32 %v3125, 4294901760
    %3127 = vmatmul.mubr.f32.gmra.mxu0 %v3126
    %v3128 = vpop.f32.mrf.mxu0
    %v3129 = vadd.f32 0.0, %v3128
    %v3130 = vpop.f32.mrf.mxu0
    %v3131 = vadd.f32 0.0, %v3130
    %3132 = vmatprep.mubr.f32.mxu0 0.0
    %v3133 = vand.u32 %v2985, 4294901760
    %v3134 = vsub.f32 %v2985, %v3133
    %v3135 = vand.u32 %v3134, 4294901760
    %v3136 = vsub.f32 %v3134, %v3135
    %v3137 = vand.u32 %v3136, 4294901760
    %3138 = vmatmul.mubr.f32.gmra.mxu0 %v3137
    %v3139 = vpop.f32.mrf.mxu0
    %v3140 = vadd.f32 0.0, %v3139
    %v3141 = vpop.f32.mrf.mxu0
    %v3142 = vadd.f32 0.0, %v3141
    %3143 = vdwg.mxu0
    %3144 = vmatprep.subr.mxu0 0.0
    %3145 = vmatpush1.msra.mxu0 0.0
    %3146 = vmatprep.subr.mxu0 0.0
    %3147 = vmatpush1.msra.mxu0 0.0
    %3148 = vmatprep.subr.mxu0 0.0
    %3149 = vmatpush1.msra.mxu0 0.0
    %3150 = vmatprep.subr.mxu0 0.0
    %3151 = vmatpush1.msra.mxu0 0.0
    %3152 = vmatprep.subr.mxu0 0.0
    %3153 = vmatpush1.msra.mxu0 0.0
    %3154 = vmatprep.subr.mxu0 0.0
    %3155 = vmatpush1.msra.mxu0 0.0
    %3156 = vmatprep.subr.mxu0 0.0
    %3157 = vmatpush1.msra.mxu0 0.0
    %3158 = vmatprep.subr.mxu0 0.0
    %3159 = vmatpush1.msra.mxu0 0.0
    %3160 = vmatprep.subr.mxu0 0.0
    %3161 = vmatpush1.msra.mxu0 0.0
    %3162 = vmatprep.subr.mxu0 0.0
    %3163 = vmatpush1.msra.mxu0 0.0
    %3164 = vmatprep.subr.mxu0 0.0
    %3165 = vmatpush1.msra.mxu0 0.0
    %3166 = vmatprep.subr.mxu0 0.0
    %3167 = vmatpush1.msra.mxu0 0.0
    %3168 = vmatprep.subr.mxu0 0.0
    %3169 = vmatpush1.msra.mxu0 0.0
    %3170 = vmatprep.subr.mxu0 0.0
    %3171 = vmatpush1.msra.mxu0 0.0
    %v3172 = vand.u32 %v2951, 4294901760
    %v3173 = vsub.f32 %v2951, %v3172
    %v3174 = vand.u32 %v3173, 4294901760
    %v3175 = vsub.f32 %v3173, %v3174
    %v3176 = vand.u32 %v3175, 4294901760
    %3177 = vmatprep.subr.mxu0 %v3176
    %v3178 = vand.u32 %v2950, 4294901760
    %v3179 = vsub.f32 %v2950, %v3178
    %v3180 = vand.u32 %v3179, 4294901760
    %v3181 = vsub.f32 %v3179, %v3180
    %v3182 = vand.u32 %v3181, 4294901760
    %3183 = vmatpush1.msra.mxu0 %v3182
    %v3184 = vand.u32 %v2947, 4294901760
    %v3185 = vsub.f32 %v2947, %v3184
    %v3186 = vand.u32 %v3185, 4294901760
    %v3187 = vsub.f32 %v3185, %v3186
    %v3188 = vand.u32 %v3187, 4294901760
    %3189 = vmatprep.subr.mxu0 %v3188
    %v3190 = vand.u32 %v2946, 4294901760
    %v3191 = vsub.f32 %v2946, %v3190
    %v3192 = vand.u32 %v3191, 4294901760
    %v3193 = vsub.f32 %v3191, %v3192
    %v3194 = vand.u32 %v3193, 4294901760
    %3195 = vmatpush1.msra.mxu0 %v3194
    %3196 = vmatprep.subr.mxu0 0.0
    %3197 = vmatpush2.msra.mxu0 0.0
    %3198 = vmatprep.subr.mxu0 0.0
    %3199 = vmatpush2.msra.mxu0 0.0
    %3200 = vmatprep.subr.mxu0 0.0
    %3201 = vmatpush2.msra.mxu0 0.0
    %3202 = vmatprep.subr.mxu0 0.0
    %3203 = vmatpush2.msra.mxu0 0.0
    %3204 = vmatprep.subr.mxu0 0.0
    %3205 = vmatpush2.msra.mxu0 0.0
    %3206 = vmatprep.subr.mxu0 0.0
    %3207 = vmatpush2.msra.mxu0 0.0
    %3208 = vmatprep.subr.mxu0 0.0
    %3209 = vmatpush2.msra.mxu0 0.0
    %3210 = vmatprep.subr.mxu0 0.0
    %3211 = vmatpush2.msra.mxu0 0.0
    %3212 = vmatprep.subr.mxu0 0.0
    %3213 = vmatpush2.msra.mxu0 0.0
    %3214 = vmatprep.subr.mxu0 0.0
    %3215 = vmatpush2.msra.mxu0 0.0
    %3216 = vmatprep.subr.mxu0 0.0
    %3217 = vmatpush2.msra.mxu0 0.0
    %3218 = vmatprep.subr.mxu0 0.0
    %3219 = vmatpush2.msra.mxu0 0.0
    %3220 = vmatprep.subr.mxu0 0.0
    %3221 = vmatpush2.msra.mxu0 0.0
    %3222 = vmatprep.subr.mxu0 0.0
    %3223 = vmatpush2.msra.mxu0 0.0
    %3224 = vmatprep.subr.mxu0 0.0
    %3225 = vmatpush2.msra.mxu0 0.0
    %3226 = vmatprep.subr.mxu0 0.0
    %3227 = vmatpush2.msra.mxu0 0.0
    %3228 = vmatprep.mubr.f32.mxu0 0.0
    %v3229 = vand.u32 %v2964, 4294901760
    %3230 = vmatmul.mubr.f32.gmra.mxu0 %v3229
    %v3231 = vpop.f32.mrf.mxu0
    %v3232 = vadd.f32 %v3063, %v3231
    %v3233 = vpop.f32.mrf.mxu0
    %v3234 = vadd.f32 %v3065, %v3233
    %3235 = vmatprep.mubr.f32.mxu0 0.0
    %v3236 = vand.u32 %v2967, 4294901760
    %3237 = vmatmul.mubr.f32.gmra.mxu0 %v3236
    %v3238 = vpop.f32.mrf.mxu0
    %v3239 = vadd.f32 %v3074, %v3238
    %v3240 = vpop.f32.mrf.mxu0
    %v3241 = vadd.f32 %v3076, %v3240
    %3242 = vmatprep.mubr.f32.mxu0 0.0
    %v3243 = vand.u32 %v2970, 4294901760
    %3244 = vmatmul.mubr.f32.gmra.mxu0 %v3243
    %v3245 = vpop.f32.mrf.mxu0
    %v3246 = vadd.f32 %v3085, %v3245
    %v3247 = vpop.f32.mrf.mxu0
    %v3248 = vadd.f32 %v3087, %v3247
    %3249 = vmatprep.mubr.f32.mxu0 0.0
    %v3250 = vand.u32 %v2973, 4294901760
    %3251 = vmatmul.mubr.f32.gmra.mxu0 %v3250
    %v3252 = vpop.f32.mrf.mxu0
    %v3253 = vadd.f32 %v3096, %v3252
    %v3254 = vpop.f32.mrf.mxu0
    %v3255 = vadd.f32 %v3098, %v3254
    %3256 = vmatprep.mubr.f32.mxu0 0.0
    %v3257 = vand.u32 %v2976, 4294901760
    %3258 = vmatmul.mubr.f32.gmra.mxu0 %v3257
    %v3259 = vpop.f32.mrf.mxu0
    %v3260 = vadd.f32 %v3107, %v3259
    %v3261 = vpop.f32.mrf.mxu0
    %v3262 = vadd.f32 %v3109, %v3261
    %3263 = vmatprep.mubr.f32.mxu0 0.0
    %v3264 = vand.u32 %v2979, 4294901760
    %3265 = vmatmul.mubr.f32.gmra.mxu0 %v3264
    %v3266 = vpop.f32.mrf.mxu0
    %v3267 = vadd.f32 %v3118, %v3266
    %v3268 = vpop.f32.mrf.mxu0
    %v3269 = vadd.f32 %v3120, %v3268
    %3270 = vmatprep.mubr.f32.mxu0 0.0
    %v3271 = vand.u32 %v2982, 4294901760
    %3272 = vmatmul.mubr.f32.gmra.mxu0 %v3271
    %v3273 = vpop.f32.mrf.mxu0
    %v3274 = vadd.f32 %v3129, %v3273
    %v3275 = vpop.f32.mrf.mxu0
    %v3276 = vadd.f32 %v3131, %v3275
    %3277 = vmatprep.mubr.f32.mxu0 0.0
    %v3278 = vand.u32 %v2985, 4294901760
    %3279 = vmatmul.mubr.f32.gmra.mxu0 %v3278
    %v3280 = vpop.f32.mrf.mxu0
    %v3281 = vadd.f32 %v3140, %v3280
    %v3282 = vpop.f32.mrf.mxu0
    %v3283 = vadd.f32 %v3142, %v3282
    %3284 = vdwg.mxu0
    %3285 = vmatprep.subr.mxu0 0.0
    %3286 = vmatpush1.msra.mxu0 0.0
    %3287 = vmatprep.subr.mxu0 0.0
    %3288 = vmatpush1.msra.mxu0 0.0
    %3289 = vmatprep.subr.mxu0 0.0
    %3290 = vmatpush1.msra.mxu0 0.0
    %3291 = vmatprep.subr.mxu0 0.0
    %3292 = vmatpush1.msra.mxu0 0.0
    %3293 = vmatprep.subr.mxu0 0.0
    %3294 = vmatpush1.msra.mxu0 0.0
    %3295 = vmatprep.subr.mxu0 0.0
    %3296 = vmatpush1.msra.mxu0 0.0
    %3297 = vmatprep.subr.mxu0 0.0
    %3298 = vmatpush1.msra.mxu0 0.0
    %3299 = vmatprep.subr.mxu0 0.0
    %3300 = vmatpush1.msra.mxu0 0.0
    %3301 = vmatprep.subr.mxu0 0.0
    %3302 = vmatpush1.msra.mxu0 0.0
    %3303 = vmatprep.subr.mxu0 0.0
    %3304 = vmatpush1.msra.mxu0 0.0
    %3305 = vmatprep.subr.mxu0 0.0
    %3306 = vmatpush1.msra.mxu0 0.0
    %3307 = vmatprep.subr.mxu0 0.0
    %3308 = vmatpush1.msra.mxu0 0.0
    %3309 = vmatprep.subr.mxu0 0.0
    %3310 = vmatpush1.msra.mxu0 0.0
    %3311 = vmatprep.subr.mxu0 0.0
    %3312 = vmatpush1.msra.mxu0 0.0
    %v3313 = vand.u32 %v2951, 4294901760
    %v3314 = vsub.f32 %v2951, %v3313
    %3315 = vmatprep.subr.mxu0 %v3314
    %v3316 = vand.u32 %v2950, 4294901760
    %v3317 = vsub.f32 %v2950, %v3316
    %3318 = vmatpush1.msra.mxu0 %v3317
    %v3319 = vand.u32 %v2947, 4294901760
    %v3320 = vsub.f32 %v2947, %v3319
    %3321 = vmatprep.subr.mxu0 %v3320
    %v3322 = vand.u32 %v2946, 4294901760
    %v3323 = vsub.f32 %v2946, %v3322
    %3324 = vmatpush1.msra.mxu0 %v3323
    %3325 = vmatprep.subr.mxu0 0.0
    %3326 = vmatpush2.msra.mxu0 0.0
    %3327 = vmatprep.subr.mxu0 0.0
    %3328 = vmatpush2.msra.mxu0 0.0
    %3329 = vmatprep.subr.mxu0 0.0
    %3330 = vmatpush2.msra.mxu0 0.0
    %3331 = vmatprep.subr.mxu0 0.0
    %3332 = vmatpush2.msra.mxu0 0.0
    %3333 = vmatprep.subr.mxu0 0.0
    %3334 = vmatpush2.msra.mxu0 0.0
    %3335 = vmatprep.subr.mxu0 0.0
    %3336 = vmatpush2.msra.mxu0 0.0
    %3337 = vmatprep.subr.mxu0 0.0
    %3338 = vmatpush2.msra.mxu0 0.0
    %3339 = vmatprep.subr.mxu0 0.0
    %3340 = vmatpush2.msra.mxu0 0.0
    %3341 = vmatprep.subr.mxu0 0.0
    %3342 = vmatpush2.msra.mxu0 0.0
    %3343 = vmatprep.subr.mxu0 0.0
    %3344 = vmatpush2.msra.mxu0 0.0
    %3345 = vmatprep.subr.mxu0 0.0
    %3346 = vmatpush2.msra.mxu0 0.0
    %3347 = vmatprep.subr.mxu0 0.0
    %3348 = vmatpush2.msra.mxu0 0.0
    %3349 = vmatprep.subr.mxu0 0.0
    %3350 = vmatpush2.msra.mxu0 0.0
    %3351 = vmatprep.subr.mxu0 0.0
    %3352 = vmatpush2.msra.mxu0 0.0
    %3353 = vmatprep.subr.mxu0 0.0
    %3354 = vmatpush2.msra.mxu0 0.0
    %3355 = vmatprep.subr.mxu0 0.0
    %3356 = vmatpush2.msra.mxu0 0.0
    %3357 = vmatprep.mubr.f32.mxu0 0.0
    %v3358 = vand.u32 %v2964, 4294901760
    %v3359 = vsub.f32 %v2964, %v3358
    %3360 = vmatmul.mubr.f32.gmra.mxu0 %v3359
    %v3361 = vpop.f32.mrf.mxu0
    %v3362 = vadd.f32 %v3232, %v3361
    %v3363 = vpop.f32.mrf.mxu0
    %v3364 = vadd.f32 %v3234, %v3363
    %3365 = vmatprep.mubr.f32.mxu0 0.0
    %v3366 = vand.u32 %v2967, 4294901760
    %v3367 = vsub.f32 %v2967, %v3366
    %3368 = vmatmul.mubr.f32.gmra.mxu0 %v3367
    %v3369 = vpop.f32.mrf.mxu0
    %v3370 = vadd.f32 %v3239, %v3369
    %v3371 = vpop.f32.mrf.mxu0
    %v3372 = vadd.f32 %v3241, %v3371
    %3373 = vmatprep.mubr.f32.mxu0 0.0
    %v3374 = vand.u32 %v2970, 4294901760
    %v3375 = vsub.f32 %v2970, %v3374
    %3376 = vmatmul.mubr.f32.gmra.mxu0 %v3375
    %v3377 = vpop.f32.mrf.mxu0
    %v3378 = vadd.f32 %v3246, %v3377
    %v3379 = vpop.f32.mrf.mxu0
    %v3380 = vadd.f32 %v3248, %v3379
    %3381 = vmatprep.mubr.f32.mxu0 0.0
    %v3382 = vand.u32 %v2973, 4294901760
    %v3383 = vsub.f32 %v2973, %v3382
    %3384 = vmatmul.mubr.f32.gmra.mxu0 %v3383
    %v3385 = vpop.f32.mrf.mxu0
    %v3386 = vadd.f32 %v3253, %v3385
    %v3387 = vpop.f32.mrf.mxu0
    %v3388 = vadd.f32 %v3255, %v3387
    %3389 = vmatprep.mubr.f32.mxu0 0.0
    %v3390 = vand.u32 %v2976, 4294901760
    %v3391 = vsub.f32 %v2976, %v3390
    %3392 = vmatmul.mubr.f32.gmra.mxu0 %v3391
    %v3393 = vpop.f32.mrf.mxu0
    %v3394 = vadd.f32 %v3260, %v3393
    %v3395 = vpop.f32.mrf.mxu0
    %v3396 = vadd.f32 %v3262, %v3395
    %3397 = vmatprep.mubr.f32.mxu0 0.0
    %v3398 = vand.u32 %v2979, 4294901760
    %v3399 = vsub.f32 %v2979, %v3398
    %3400 = vmatmul.mubr.f32.gmra.mxu0 %v3399
    %v3401 = vpop.f32.mrf.mxu0
    %v3402 = vadd.f32 %v3267, %v3401
    %v3403 = vpop.f32.mrf.mxu0
    %v3404 = vadd.f32 %v3269, %v3403
    %3405 = vmatprep.mubr.f32.mxu0 0.0
    %v3406 = vand.u32 %v2982, 4294901760
    %v3407 = vsub.f32 %v2982, %v3406
    %3408 = vmatmul.mubr.f32.gmra.mxu0 %v3407
    %v3409 = vpop.f32.mrf.mxu0
    %v3410 = vadd.f32 %v3274, %v3409
    %v3411 = vpop.f32.mrf.mxu0
    %v3412 = vadd.f32 %v3276, %v3411
    %3413 = vmatprep.mubr.f32.mxu0 0.0
    %v3414 = vand.u32 %v2985, 4294901760
    %v3415 = vsub.f32 %v2985, %v3414
    %3416 = vmatmul.mubr.f32.gmra.mxu0 %v3415
    %v3417 = vpop.f32.mrf.mxu0
    %v3418 = vadd.f32 %v3281, %v3417
    %v3419 = vpop.f32.mrf.mxu0
    %v3420 = vadd.f32 %v3283, %v3419
    %3421 = vdwg.mxu0
    %3422 = vmatprep.subr.mxu0 0.0
    %3423 = vmatpush1.msra.mxu0 0.0
    %3424 = vmatprep.subr.mxu0 0.0
    %3425 = vmatpush1.msra.mxu0 0.0
    %3426 = vmatprep.subr.mxu0 0.0
    %3427 = vmatpush1.msra.mxu0 0.0
    %3428 = vmatprep.subr.mxu0 0.0
    %3429 = vmatpush1.msra.mxu0 0.0
    %3430 = vmatprep.subr.mxu0 0.0
    %3431 = vmatpush1.msra.mxu0 0.0
    %3432 = vmatprep.subr.mxu0 0.0
    %3433 = vmatpush1.msra.mxu0 0.0
    %3434 = vmatprep.subr.mxu0 0.0
    %3435 = vmatpush1.msra.mxu0 0.0
    %3436 = vmatprep.subr.mxu0 0.0
    %3437 = vmatpush1.msra.mxu0 0.0
    %3438 = vmatprep.subr.mxu0 0.0
    %3439 = vmatpush1.msra.mxu0 0.0
    %3440 = vmatprep.subr.mxu0 0.0
    %3441 = vmatpush1.msra.mxu0 0.0
    %3442 = vmatprep.subr.mxu0 0.0
    %3443 = vmatpush1.msra.mxu0 0.0
    %3444 = vmatprep.subr.mxu0 0.0
    %3445 = vmatpush1.msra.mxu0 0.0
    %3446 = vmatprep.subr.mxu0 0.0
    %3447 = vmatpush1.msra.mxu0 0.0
    %3448 = vmatprep.subr.mxu0 0.0
    %3449 = vmatpush1.msra.mxu0 0.0
    %v3450 = vand.u32 %v2951, 4294901760
    %3451 = vmatprep.subr.mxu0 %v3450
    %v3452 = vand.u32 %v2950, 4294901760
    %3453 = vmatpush1.msra.mxu0 %v3452
    %v3454 = vand.u32 %v2947, 4294901760
    %3455 = vmatprep.subr.mxu0 %v3454
    %v3456 = vand.u32 %v2946, 4294901760
    %3457 = vmatpush1.msra.mxu0 %v3456
    %3458 = vmatprep.subr.mxu0 0.0
    %3459 = vmatpush2.msra.mxu0 0.0
    %3460 = vmatprep.subr.mxu0 0.0
    %3461 = vmatpush2.msra.mxu0 0.0
    %3462 = vmatprep.subr.mxu0 0.0
    %3463 = vmatpush2.msra.mxu0 0.0
    %3464 = vmatprep.subr.mxu0 0.0
    %3465 = vmatpush2.msra.mxu0 0.0
    %3466 = vmatprep.subr.mxu0 0.0
    %3467 = vmatpush2.msra.mxu0 0.0
    %3468 = vmatprep.subr.mxu0 0.0
    %3469 = vmatpush2.msra.mxu0 0.0
    %3470 = vmatprep.subr.mxu0 0.0
    %3471 = vmatpush2.msra.mxu0 0.0
    %3472 = vmatprep.subr.mxu0 0.0
    %3473 = vmatpush2.msra.mxu0 0.0
    %3474 = vmatprep.subr.mxu0 0.0
    %3475 = vmatpush2.msra.mxu0 0.0
    %3476 = vmatprep.subr.mxu0 0.0
    %3477 = vmatpush2.msra.mxu0 0.0
    %3478 = vmatprep.subr.mxu0 0.0
    %3479 = vmatpush2.msra.mxu0 0.0
    %3480 = vmatprep.subr.mxu0 0.0
    %3481 = vmatpush2.msra.mxu0 0.0
    %3482 = vmatprep.subr.mxu0 0.0
    %3483 = vmatpush2.msra.mxu0 0.0
    %3484 = vmatprep.subr.mxu0 0.0
    %3485 = vmatpush2.msra.mxu0 0.0
    %3486 = vmatprep.subr.mxu0 0.0
    %3487 = vmatpush2.msra.mxu0 0.0
    %3488 = vmatprep.subr.mxu0 0.0
    %3489 = vmatpush2.msra.mxu0 0.0
    %3490 = vmatprep.mubr.f32.mxu0 0.0
    %v3491 = vand.u32 %v2964, 4294901760
    %v3492 = vsub.f32 %v2964, %v3491
    %v3493 = vand.u32 %v3492, 4294901760
    %3494 = vmatmul.mubr.f32.gmra.mxu0 %v3493
    %v3495 = vpop.f32.mrf.mxu0
    %v3496 = vadd.f32 %v3362, %v3495
    %v3497 = vpop.f32.mrf.mxu0
    %v3498 = vadd.f32 %v3364, %v3497
    %3499 = vmatprep.mubr.f32.mxu0 0.0
    %v3500 = vand.u32 %v2967, 4294901760
    %v3501 = vsub.f32 %v2967, %v3500
    %v3502 = vand.u32 %v3501, 4294901760
    %3503 = vmatmul.mubr.f32.gmra.mxu0 %v3502
    %v3504 = vpop.f32.mrf.mxu0
    %v3505 = vadd.f32 %v3370, %v3504
    %v3506 = vpop.f32.mrf.mxu0
    %v3507 = vadd.f32 %v3372, %v3506
    %3508 = vmatprep.mubr.f32.mxu0 0.0
    %v3509 = vand.u32 %v2970, 4294901760
    %v3510 = vsub.f32 %v2970, %v3509
    %v3511 = vand.u32 %v3510, 4294901760
    %3512 = vmatmul.mubr.f32.gmra.mxu0 %v3511
    %v3513 = vpop.f32.mrf.mxu0
    %v3514 = vadd.f32 %v3378, %v3513
    %v3515 = vpop.f32.mrf.mxu0
    %v3516 = vadd.f32 %v3380, %v3515
    %3517 = vmatprep.mubr.f32.mxu0 0.0
    %v3518 = vand.u32 %v2973, 4294901760
    %v3519 = vsub.f32 %v2973, %v3518
    %v3520 = vand.u32 %v3519, 4294901760
    %3521 = vmatmul.mubr.f32.gmra.mxu0 %v3520
    %v3522 = vpop.f32.mrf.mxu0
    %v3523 = vadd.f32 %v3386, %v3522
    %v3524 = vpop.f32.mrf.mxu0
    %v3525 = vadd.f32 %v3388, %v3524
    %3526 = vmatprep.mubr.f32.mxu0 0.0
    %v3527 = vand.u32 %v2976, 4294901760
    %v3528 = vsub.f32 %v2976, %v3527
    %v3529 = vand.u32 %v3528, 4294901760
    %3530 = vmatmul.mubr.f32.gmra.mxu0 %v3529
    %v3531 = vpop.f32.mrf.mxu0
    %v3532 = vadd.f32 %v3394, %v3531
    %v3533 = vpop.f32.mrf.mxu0
    %v3534 = vadd.f32 %v3396, %v3533
    %3535 = vmatprep.mubr.f32.mxu0 0.0
    %v3536 = vand.u32 %v2979, 4294901760
    %v3537 = vsub.f32 %v2979, %v3536
    %v3538 = vand.u32 %v3537, 4294901760
    %3539 = vmatmul.mubr.f32.gmra.mxu0 %v3538
    %v3540 = vpop.f32.mrf.mxu0
    %v3541 = vadd.f32 %v3402, %v3540
    %v3542 = vpop.f32.mrf.mxu0
    %v3543 = vadd.f32 %v3404, %v3542
    %3544 = vmatprep.mubr.f32.mxu0 0.0
    %v3545 = vand.u32 %v2982, 4294901760
    %v3546 = vsub.f32 %v2982, %v3545
    %v3547 = vand.u32 %v3546, 4294901760
    %3548 = vmatmul.mubr.f32.gmra.mxu0 %v3547
    %v3549 = vpop.f32.mrf.mxu0
    %v3550 = vadd.f32 %v3410, %v3549
    %v3551 = vpop.f32.mrf.mxu0
    %v3552 = vadd.f32 %v3412, %v3551
    %3553 = vmatprep.mubr.f32.mxu0 0.0
    %v3554 = vand.u32 %v2985, 4294901760
    %v3555 = vsub.f32 %v2985, %v3554
    %v3556 = vand.u32 %v3555, 4294901760
    %3557 = vmatmul.mubr.f32.gmra.mxu0 %v3556
    %v3558 = vpop.f32.mrf.mxu0
    %v3559 = vadd.f32 %v3418, %v3558
    %v3560 = vpop.f32.mrf.mxu0
    %v3561 = vadd.f32 %v3420, %v3560
    %3562 = vdwg.mxu0
    %3563 = vmatprep.subr.mxu0 0.0
    %3564 = vmatpush1.msra.mxu0 0.0
    %3565 = vmatprep.subr.mxu0 0.0
    %3566 = vmatpush1.msra.mxu0 0.0
    %3567 = vmatprep.subr.mxu0 0.0
    %3568 = vmatpush1.msra.mxu0 0.0
    %3569 = vmatprep.subr.mxu0 0.0
    %3570 = vmatpush1.msra.mxu0 0.0
    %3571 = vmatprep.subr.mxu0 0.0
    %3572 = vmatpush1.msra.mxu0 0.0
    %3573 = vmatprep.subr.mxu0 0.0
    %3574 = vmatpush1.msra.mxu0 0.0
    %3575 = vmatprep.subr.mxu0 0.0
    %3576 = vmatpush1.msra.mxu0 0.0
    %3577 = vmatprep.subr.mxu0 0.0
    %3578 = vmatpush1.msra.mxu0 0.0
    %3579 = vmatprep.subr.mxu0 0.0
    %3580 = vmatpush1.msra.mxu0 0.0
    %3581 = vmatprep.subr.mxu0 0.0
    %3582 = vmatpush1.msra.mxu0 0.0
    %3583 = vmatprep.subr.mxu0 0.0
    %3584 = vmatpush1.msra.mxu0 0.0
    %3585 = vmatprep.subr.mxu0 0.0
    %3586 = vmatpush1.msra.mxu0 0.0
    %3587 = vmatprep.subr.mxu0 0.0
    %3588 = vmatpush1.msra.mxu0 0.0
    %3589 = vmatprep.subr.mxu0 0.0
    %3590 = vmatpush1.msra.mxu0 0.0
    %v3591 = vand.u32 %v2951, 4294901760
    %v3592 = vsub.f32 %v2951, %v3591
    %v3593 = vand.u32 %v3592, 4294901760
    %3594 = vmatprep.subr.mxu0 %v3593
    %v3595 = vand.u32 %v2950, 4294901760
    %v3596 = vsub.f32 %v2950, %v3595
    %v3597 = vand.u32 %v3596, 4294901760
    %3598 = vmatpush1.msra.mxu0 %v3597
    %v3599 = vand.u32 %v2947, 4294901760
    %v3600 = vsub.f32 %v2947, %v3599
    %v3601 = vand.u32 %v3600, 4294901760
    %3602 = vmatprep.subr.mxu0 %v3601
    %v3603 = vand.u32 %v2946, 4294901760
    %v3604 = vsub.f32 %v2946, %v3603
    %v3605 = vand.u32 %v3604, 4294901760
    %3606 = vmatpush1.msra.mxu0 %v3605
    %3607 = vmatprep.subr.mxu0 0.0
    %3608 = vmatpush2.msra.mxu0 0.0
    %3609 = vmatprep.subr.mxu0 0.0
    %3610 = vmatpush2.msra.mxu0 0.0
    %3611 = vmatprep.subr.mxu0 0.0
    %3612 = vmatpush2.msra.mxu0 0.0
    %3613 = vmatprep.subr.mxu0 0.0
    %3614 = vmatpush2.msra.mxu0 0.0
    %3615 = vmatprep.subr.mxu0 0.0
    %3616 = vmatpush2.msra.mxu0 0.0
    %3617 = vmatprep.subr.mxu0 0.0
    %3618 = vmatpush2.msra.mxu0 0.0
    %3619 = vmatprep.subr.mxu0 0.0
    %3620 = vmatpush2.msra.mxu0 0.0
    %3621 = vmatprep.subr.mxu0 0.0
    %3622 = vmatpush2.msra.mxu0 0.0
    %3623 = vmatprep.subr.mxu0 0.0
    %3624 = vmatpush2.msra.mxu0 0.0
    %3625 = vmatprep.subr.mxu0 0.0
    %3626 = vmatpush2.msra.mxu0 0.0
    %3627 = vmatprep.subr.mxu0 0.0
    %3628 = vmatpush2.msra.mxu0 0.0
    %3629 = vmatprep.subr.mxu0 0.0
    %3630 = vmatpush2.msra.mxu0 0.0
    %3631 = vmatprep.subr.mxu0 0.0
    %3632 = vmatpush2.msra.mxu0 0.0
    %3633 = vmatprep.subr.mxu0 0.0
    %3634 = vmatpush2.msra.mxu0 0.0
    %3635 = vmatprep.subr.mxu0 0.0
    %3636 = vmatpush2.msra.mxu0 0.0
    %3637 = vmatprep.subr.mxu0 0.0
    %3638 = vmatpush2.msra.mxu0 0.0
    %3639 = vmatprep.mubr.f32.mxu0 0.0
    %v3640 = vand.u32 %v2964, 4294901760
    %3641 = vmatmul.mubr.f32.gmra.mxu0 %v3640
    %v3642 = vpop.f32.mrf.mxu0
    %v3643 = vadd.f32 %v3496, %v3642
    %v3644 = vpop.f32.mrf.mxu0
    %v3645 = vadd.f32 %v3498, %v3644
    %3646 = vmatprep.mubr.f32.mxu0 0.0
    %v3647 = vand.u32 %v2967, 4294901760
    %3648 = vmatmul.mubr.f32.gmra.mxu0 %v3647
    %v3649 = vpop.f32.mrf.mxu0
    %v3650 = vadd.f32 %v3505, %v3649
    %v3651 = vpop.f32.mrf.mxu0
    %v3652 = vadd.f32 %v3507, %v3651
    %3653 = vmatprep.mubr.f32.mxu0 0.0
    %v3654 = vand.u32 %v2970, 4294901760
    %3655 = vmatmul.mubr.f32.gmra.mxu0 %v3654
    %v3656 = vpop.f32.mrf.mxu0
    %v3657 = vadd.f32 %v3514, %v3656
    %v3658 = vpop.f32.mrf.mxu0
    %v3659 = vadd.f32 %v3516, %v3658
    %3660 = vmatprep.mubr.f32.mxu0 0.0
    %v3661 = vand.u32 %v2973, 4294901760
    %3662 = vmatmul.mubr.f32.gmra.mxu0 %v3661
    %v3663 = vpop.f32.mrf.mxu0
    %v3664 = vadd.f32 %v3523, %v3663
    %v3665 = vpop.f32.mrf.mxu0
    %v3666 = vadd.f32 %v3525, %v3665
    %3667 = vmatprep.mubr.f32.mxu0 0.0
    %v3668 = vand.u32 %v2976, 4294901760
    %3669 = vmatmul.mubr.f32.gmra.mxu0 %v3668
    %v3670 = vpop.f32.mrf.mxu0
    %v3671 = vadd.f32 %v3532, %v3670
    %v3672 = vpop.f32.mrf.mxu0
    %v3673 = vadd.f32 %v3534, %v3672
    %3674 = vmatprep.mubr.f32.mxu0 0.0
    %v3675 = vand.u32 %v2979, 4294901760
    %3676 = vmatmul.mubr.f32.gmra.mxu0 %v3675
    %v3677 = vpop.f32.mrf.mxu0
    %v3678 = vadd.f32 %v3541, %v3677
    %v3679 = vpop.f32.mrf.mxu0
    %v3680 = vadd.f32 %v3543, %v3679
    %3681 = vmatprep.mubr.f32.mxu0 0.0
    %v3682 = vand.u32 %v2982, 4294901760
    %3683 = vmatmul.mubr.f32.gmra.mxu0 %v3682
    %v3684 = vpop.f32.mrf.mxu0
    %v3685 = vadd.f32 %v3550, %v3684
    %v3686 = vpop.f32.mrf.mxu0
    %v3687 = vadd.f32 %v3552, %v3686
    %3688 = vmatprep.mubr.f32.mxu0 0.0
    %v3689 = vand.u32 %v2985, 4294901760
    %3690 = vmatmul.mubr.f32.gmra.mxu0 %v3689
    %v3691 = vpop.f32.mrf.mxu0
    %v3692 = vadd.f32 %v3559, %v3691
    %v3693 = vpop.f32.mrf.mxu0
    %v3694 = vadd.f32 %v3561, %v3693
    %3695 = vdwg.mxu0
    %3696 = vmatprep.subr.mxu0 0.0
    %3697 = vmatpush1.msra.mxu0 0.0
    %3698 = vmatprep.subr.mxu0 0.0
    %3699 = vmatpush1.msra.mxu0 0.0
    %3700 = vmatprep.subr.mxu0 0.0
    %3701 = vmatpush1.msra.mxu0 0.0
    %3702 = vmatprep.subr.mxu0 0.0
    %3703 = vmatpush1.msra.mxu0 0.0
    %3704 = vmatprep.subr.mxu0 0.0
    %3705 = vmatpush1.msra.mxu0 0.0
    %3706 = vmatprep.subr.mxu0 0.0
    %3707 = vmatpush1.msra.mxu0 0.0
    %3708 = vmatprep.subr.mxu0 0.0
    %3709 = vmatpush1.msra.mxu0 0.0
    %3710 = vmatprep.subr.mxu0 0.0
    %3711 = vmatpush1.msra.mxu0 0.0
    %3712 = vmatprep.subr.mxu0 0.0
    %3713 = vmatpush1.msra.mxu0 0.0
    %3714 = vmatprep.subr.mxu0 0.0
    %3715 = vmatpush1.msra.mxu0 0.0
    %3716 = vmatprep.subr.mxu0 0.0
    %3717 = vmatpush1.msra.mxu0 0.0
    %3718 = vmatprep.subr.mxu0 0.0
    %3719 = vmatpush1.msra.mxu0 0.0
    %3720 = vmatprep.subr.mxu0 0.0
    %3721 = vmatpush1.msra.mxu0 0.0
    %3722 = vmatprep.subr.mxu0 0.0
    %3723 = vmatpush1.msra.mxu0 0.0
    %v3724 = vand.u32 %v2951, 4294901760
    %3725 = vmatprep.subr.mxu0 %v3724
    %v3726 = vand.u32 %v2950, 4294901760
    %3727 = vmatpush1.msra.mxu0 %v3726
    %v3728 = vand.u32 %v2947, 4294901760
    %3729 = vmatprep.subr.mxu0 %v3728
    %v3730 = vand.u32 %v2946, 4294901760
    %3731 = vmatpush1.msra.mxu0 %v3730
    %3732 = vmatprep.subr.mxu0 0.0
    %3733 = vmatpush2.msra.mxu0 0.0
    %3734 = vmatprep.subr.mxu0 0.0
    %3735 = vmatpush2.msra.mxu0 0.0
    %3736 = vmatprep.subr.mxu0 0.0
    %3737 = vmatpush2.msra.mxu0 0.0
    %3738 = vmatprep.subr.mxu0 0.0
    %3739 = vmatpush2.msra.mxu0 0.0
    %3740 = vmatprep.subr.mxu0 0.0
    %3741 = vmatpush2.msra.mxu0 0.0
    %3742 = vmatprep.subr.mxu0 0.0
    %3743 = vmatpush2.msra.mxu0 0.0
    %3744 = vmatprep.subr.mxu0 0.0
    %3745 = vmatpush2.msra.mxu0 0.0
    %3746 = vmatprep.subr.mxu0 0.0
    %3747 = vmatpush2.msra.mxu0 0.0
    %3748 = vmatprep.subr.mxu0 0.0
    %3749 = vmatpush2.msra.mxu0 0.0
    %3750 = vmatprep.subr.mxu0 0.0
    %3751 = vmatpush2.msra.mxu0 0.0
    %3752 = vmatprep.subr.mxu0 0.0
    %3753 = vmatpush2.msra.mxu0 0.0
    %3754 = vmatprep.subr.mxu0 0.0
    %3755 = vmatpush2.msra.mxu0 0.0
    %3756 = vmatprep.subr.mxu0 0.0
    %3757 = vmatpush2.msra.mxu0 0.0
    %3758 = vmatprep.subr.mxu0 0.0
    %3759 = vmatpush2.msra.mxu0 0.0
    %3760 = vmatprep.subr.mxu0 0.0
    %3761 = vmatpush2.msra.mxu0 0.0
    %3762 = vmatprep.subr.mxu0 0.0
    %3763 = vmatpush2.msra.mxu0 0.0
    %3764 = vmatprep.mubr.f32.mxu0 0.0
    %v3765 = vand.u32 %v2964, 4294901760
    %3766 = vmatmul.mubr.f32.gmra.mxu0 %v3765
    %v3767 = vpop.f32.mrf.mxu0
    %v3768 = vadd.f32 %v3643, %v3767
    %v3769 = vpop.f32.mrf.mxu0
    %v3770 = vadd.f32 %v3645, %v3769
    %3771 = vmatprep.mubr.f32.mxu0 0.0
    %v3772 = vand.u32 %v2967, 4294901760
    %3773 = vmatmul.mubr.f32.gmra.mxu0 %v3772
    %v3774 = vpop.f32.mrf.mxu0
    %v3775 = vadd.f32 %v3650, %v3774
    %v3776 = vpop.f32.mrf.mxu0
    %v3777 = vadd.f32 %v3652, %v3776
    %3778 = vmatprep.mubr.f32.mxu0 0.0
    %v3779 = vand.u32 %v2970, 4294901760
    %3780 = vmatmul.mubr.f32.gmra.mxu0 %v3779
    %v3781 = vpop.f32.mrf.mxu0
    %v3782 = vadd.f32 %v3657, %v3781
    %v3783 = vpop.f32.mrf.mxu0
    %v3784 = vadd.f32 %v3659, %v3783
    %3785 = vmatprep.mubr.f32.mxu0 0.0
    %v3786 = vand.u32 %v2973, 4294901760
    %3787 = vmatmul.mubr.f32.gmra.mxu0 %v3786
    %v3788 = vpop.f32.mrf.mxu0
    %v3789 = vadd.f32 %v3664, %v3788
    %v3790 = vpop.f32.mrf.mxu0
    %v3791 = vadd.f32 %v3666, %v3790
    %3792 = vmatprep.mubr.f32.mxu0 0.0
    %v3793 = vand.u32 %v2976, 4294901760
    %3794 = vmatmul.mubr.f32.gmra.mxu0 %v3793
    %v3795 = vpop.f32.mrf.mxu0
    %v3796 = vadd.f32 %v3671, %v3795
    %v3797 = vpop.f32.mrf.mxu0
    %v3798 = vadd.f32 %v3673, %v3797
    %3799 = vmatprep.mubr.f32.mxu0 0.0
    %v3800 = vand.u32 %v2979, 4294901760
    %3801 = vmatmul.mubr.f32.gmra.mxu0 %v3800
    %v3802 = vpop.f32.mrf.mxu0
    %v3803 = vadd.f32 %v3678, %v3802
    %v3804 = vpop.f32.mrf.mxu0
    %v3805 = vadd.f32 %v3680, %v3804
    %3806 = vmatprep.mubr.f32.mxu0 0.0
    %v3807 = vand.u32 %v2982, 4294901760
    %3808 = vmatmul.mubr.f32.gmra.mxu0 %v3807
    %v3809 = vpop.f32.mrf.mxu0
    %v3810 = vadd.f32 %v3685, %v3809
    %v3811 = vpop.f32.mrf.mxu0
    %v3812 = vadd.f32 %v3687, %v3811
    %3813 = vmatprep.mubr.f32.mxu0 0.0
    %v3814 = vand.u32 %v2985, 4294901760
    %3815 = vmatmul.mubr.f32.gmra.mxu0 %v3814
    %v3816 = vpop.f32.mrf.mxu0
    %v3817 = vadd.f32 %v3692, %v3816
    %v3818 = vpop.f32.mrf.mxu0
    %v3819 = vadd.f32 %v3694, %v3818
    %3820 = vdwg.mxu0
    %3821 = vmatprep.subr.mxu0 0.0
    %3822 = vmatpush1.msra.mxu0 0.0
    %3823 = vmatprep.subr.mxu0 0.0
    %3824 = vmatpush1.msra.mxu0 0.0
    %3825 = vmatprep.subr.mxu0 0.0
    %3826 = vmatpush1.msra.mxu0 0.0
    %3827 = vmatprep.subr.mxu0 0.0
    %3828 = vmatpush1.msra.mxu0 0.0
    %3829 = vmatprep.subr.mxu0 0.0
    %3830 = vmatpush1.msra.mxu0 0.0
    %3831 = vmatprep.subr.mxu0 0.0
    %3832 = vmatpush1.msra.mxu0 0.0
    %3833 = vmatprep.subr.mxu0 0.0
    %3834 = vmatpush1.msra.mxu0 0.0
    %3835 = vmatprep.subr.mxu0 0.0
    %3836 = vmatpush1.msra.mxu0 0.0
    %3837 = vmatprep.subr.mxu0 0.0
    %3838 = vmatpush1.msra.mxu0 0.0
    %3839 = vmatprep.subr.mxu0 0.0
    %3840 = vmatpush1.msra.mxu0 0.0
    %3841 = vmatprep.subr.mxu0 0.0
    %3842 = vmatpush1.msra.mxu0 0.0
    %3843 = vmatprep.subr.mxu0 0.0
    %3844 = vmatpush1.msra.mxu0 0.0
    %3845 = vmatprep.subr.mxu0 0.0
    %3846 = vmatpush1.msra.mxu0 0.0
    %3847 = vmatprep.subr.mxu0 0.0
    %3848 = vmatpush1.msra.mxu0 0.0
    %v3849 = vand.u32 %v2953, 4294901760
    %3850 = vmatprep.subr.mxu0 %v3849
    %v3851 = vand.u32 %v2952, 4294901760
    %3852 = vmatpush1.msra.mxu0 %v3851
    %v3853 = vand.u32 %v2949, 4294901760
    %3854 = vmatprep.subr.mxu0 %v3853
    %v3855 = vand.u32 %v2948, 4294901760
    %3856 = vmatpush1.msra.mxu0 %v3855
    %3857 = vmatprep.subr.mxu0 0.0
    %3858 = vmatpush2.msra.mxu0 0.0
    %3859 = vmatprep.subr.mxu0 0.0
    %3860 = vmatpush2.msra.mxu0 0.0
    %3861 = vmatprep.subr.mxu0 0.0
    %3862 = vmatpush2.msra.mxu0 0.0
    %3863 = vmatprep.subr.mxu0 0.0
    %3864 = vmatpush2.msra.mxu0 0.0
    %3865 = vmatprep.subr.mxu0 0.0
    %3866 = vmatpush2.msra.mxu0 0.0
    %3867 = vmatprep.subr.mxu0 0.0
    %3868 = vmatpush2.msra.mxu0 0.0
    %3869 = vmatprep.subr.mxu0 0.0
    %3870 = vmatpush2.msra.mxu0 0.0
    %3871 = vmatprep.subr.mxu0 0.0
    %3872 = vmatpush2.msra.mxu0 0.0
    %3873 = vmatprep.subr.mxu0 0.0
    %3874 = vmatpush2.msra.mxu0 0.0
    %3875 = vmatprep.subr.mxu0 0.0
    %3876 = vmatpush2.msra.mxu0 0.0
    %3877 = vmatprep.subr.mxu0 0.0
    %3878 = vmatpush2.msra.mxu0 0.0
    %3879 = vmatprep.subr.mxu0 0.0
    %3880 = vmatpush2.msra.mxu0 0.0
    %3881 = vmatprep.subr.mxu0 0.0
    %3882 = vmatpush2.msra.mxu0 0.0
    %3883 = vmatprep.subr.mxu0 0.0
    %3884 = vmatpush2.msra.mxu0 0.0
    %3885 = vmatprep.subr.mxu0 0.0
    %3886 = vmatpush2.msra.mxu0 0.0
    %3887 = vmatprep.subr.mxu0 0.0
    %3888 = vmatpush2.msra.mxu0 0.0
    %3889 = vmatprep.mubr.f32.mxu0 0.0
    %v3890 = vand.u32 %v2964, 4294901760
    %v3891 = vsub.f32 %v2964, %v3890
    %v3892 = vand.u32 %v3891, 4294901760
    %v3893 = vsub.f32 %v3891, %v3892
    %v3894 = vand.u32 %v3893, 4294901760
    %3895 = vmatmul.mubr.f32.gmra.mxu0 %v3894
    %v3896 = vpop.f32.mrf.mxu0
    %v3897 = vadd.f32 0.0, %v3896
    %v3898 = vpop.f32.mrf.mxu0
    %v3899 = vadd.f32 0.0, %v3898
    %3900 = vmatprep.mubr.f32.mxu0 0.0
    %v3901 = vand.u32 %v2967, 4294901760
    %v3902 = vsub.f32 %v2967, %v3901
    %v3903 = vand.u32 %v3902, 4294901760
    %v3904 = vsub.f32 %v3902, %v3903
    %v3905 = vand.u32 %v3904, 4294901760
    %3906 = vmatmul.mubr.f32.gmra.mxu0 %v3905
    %v3907 = vpop.f32.mrf.mxu0
    %v3908 = vadd.f32 0.0, %v3907
    %v3909 = vpop.f32.mrf.mxu0
    %v3910 = vadd.f32 0.0, %v3909
    %3911 = vmatprep.mubr.f32.mxu0 0.0
    %v3912 = vand.u32 %v2970, 4294901760
    %v3913 = vsub.f32 %v2970, %v3912
    %v3914 = vand.u32 %v3913, 4294901760
    %v3915 = vsub.f32 %v3913, %v3914
    %v3916 = vand.u32 %v3915, 4294901760
    %3917 = vmatmul.mubr.f32.gmra.mxu0 %v3916
    %v3918 = vpop.f32.mrf.mxu0
    %v3919 = vadd.f32 0.0, %v3918
    %v3920 = vpop.f32.mrf.mxu0
    %v3921 = vadd.f32 0.0, %v3920
    %3922 = vmatprep.mubr.f32.mxu0 0.0
    %v3923 = vand.u32 %v2973, 4294901760
    %v3924 = vsub.f32 %v2973, %v3923
    %v3925 = vand.u32 %v3924, 4294901760
    %v3926 = vsub.f32 %v3924, %v3925
    %v3927 = vand.u32 %v3926, 4294901760
    %3928 = vmatmul.mubr.f32.gmra.mxu0 %v3927
    %v3929 = vpop.f32.mrf.mxu0
    %v3930 = vadd.f32 0.0, %v3929
    %v3931 = vpop.f32.mrf.mxu0
    %v3932 = vadd.f32 0.0, %v3931
    %3933 = vmatprep.mubr.f32.mxu0 0.0
    %v3934 = vand.u32 %v2976, 4294901760
    %v3935 = vsub.f32 %v2976, %v3934
    %v3936 = vand.u32 %v3935, 4294901760
    %v3937 = vsub.f32 %v3935, %v3936
    %v3938 = vand.u32 %v3937, 4294901760
    %3939 = vmatmul.mubr.f32.gmra.mxu0 %v3938
    %v3940 = vpop.f32.mrf.mxu0
    %v3941 = vadd.f32 0.0, %v3940
    %v3942 = vpop.f32.mrf.mxu0
    %v3943 = vadd.f32 0.0, %v3942
    %3944 = vmatprep.mubr.f32.mxu0 0.0
    %v3945 = vand.u32 %v2979, 4294901760
    %v3946 = vsub.f32 %v2979, %v3945
    %v3947 = vand.u32 %v3946, 4294901760
    %v3948 = vsub.f32 %v3946, %v3947
    %v3949 = vand.u32 %v3948, 4294901760
    %3950 = vmatmul.mubr.f32.gmra.mxu0 %v3949
    %v3951 = vpop.f32.mrf.mxu0
    %v3952 = vadd.f32 0.0, %v3951
    %v3953 = vpop.f32.mrf.mxu0
    %v3954 = vadd.f32 0.0, %v3953
    %3955 = vmatprep.mubr.f32.mxu0 0.0
    %v3956 = vand.u32 %v2982, 4294901760
    %v3957 = vsub.f32 %v2982, %v3956
    %v3958 = vand.u32 %v3957, 4294901760
    %v3959 = vsub.f32 %v3957, %v3958
    %v3960 = vand.u32 %v3959, 4294901760
    %3961 = vmatmul.mubr.f32.gmra.mxu0 %v3960
    %v3962 = vpop.f32.mrf.mxu0
    %v3963 = vadd.f32 0.0, %v3962
    %v3964 = vpop.f32.mrf.mxu0
    %v3965 = vadd.f32 0.0, %v3964
    %3966 = vmatprep.mubr.f32.mxu0 0.0
    %v3967 = vand.u32 %v2985, 4294901760
    %v3968 = vsub.f32 %v2985, %v3967
    %v3969 = vand.u32 %v3968, 4294901760
    %v3970 = vsub.f32 %v3968, %v3969
    %v3971 = vand.u32 %v3970, 4294901760
    %3972 = vmatmul.mubr.f32.gmra.mxu0 %v3971
    %v3973 = vpop.f32.mrf.mxu0
    %v3974 = vadd.f32 0.0, %v3973
    %v3975 = vpop.f32.mrf.mxu0
    %v3976 = vadd.f32 0.0, %v3975
    %3977 = vdwg.mxu0
    %3978 = vmatprep.subr.mxu0 0.0
    %3979 = vmatpush1.msra.mxu0 0.0
    %3980 = vmatprep.subr.mxu0 0.0
    %3981 = vmatpush1.msra.mxu0 0.0
    %3982 = vmatprep.subr.mxu0 0.0
    %3983 = vmatpush1.msra.mxu0 0.0
    %3984 = vmatprep.subr.mxu0 0.0
    %3985 = vmatpush1.msra.mxu0 0.0
    %3986 = vmatprep.subr.mxu0 0.0
    %3987 = vmatpush1.msra.mxu0 0.0
    %3988 = vmatprep.subr.mxu0 0.0
    %3989 = vmatpush1.msra.mxu0 0.0
    %3990 = vmatprep.subr.mxu0 0.0
    %3991 = vmatpush1.msra.mxu0 0.0
    %3992 = vmatprep.subr.mxu0 0.0
    %3993 = vmatpush1.msra.mxu0 0.0
    %3994 = vmatprep.subr.mxu0 0.0
    %3995 = vmatpush1.msra.mxu0 0.0
    %3996 = vmatprep.subr.mxu0 0.0
    %3997 = vmatpush1.msra.mxu0 0.0
    %3998 = vmatprep.subr.mxu0 0.0
    %3999 = vmatpush1.msra.mxu0 0.0
    %4000 = vmatprep.subr.mxu0 0.0
    %4001 = vmatpush1.msra.mxu0 0.0
    %4002 = vmatprep.subr.mxu0 0.0
    %4003 = vmatpush1.msra.mxu0 0.0
    %4004 = vmatprep.subr.mxu0 0.0
    %4005 = vmatpush1.msra.mxu0 0.0
    %v4006 = vand.u32 %v2953, 4294901760
    %v4007 = vsub.f32 %v2953, %v4006
    %v4008 = vand.u32 %v4007, 4294901760
    %v4009 = vsub.f32 %v4007, %v4008
    %v4010 = vand.u32 %v4009, 4294901760
    %4011 = vmatprep.subr.mxu0 %v4010
    %v4012 = vand.u32 %v2952, 4294901760
    %v4013 = vsub.f32 %v2952, %v4012
    %v4014 = vand.u32 %v4013, 4294901760
    %v4015 = vsub.f32 %v4013, %v4014
    %v4016 = vand.u32 %v4015, 4294901760
    %4017 = vmatpush1.msra.mxu0 %v4016
    %v4018 = vand.u32 %v2949, 4294901760
    %v4019 = vsub.f32 %v2949, %v4018
    %v4020 = vand.u32 %v4019, 4294901760
    %v4021 = vsub.f32 %v4019, %v4020
    %v4022 = vand.u32 %v4021, 4294901760
    %4023 = vmatprep.subr.mxu0 %v4022
    %v4024 = vand.u32 %v2948, 4294901760
    %v4025 = vsub.f32 %v2948, %v4024
    %v4026 = vand.u32 %v4025, 4294901760
    %v4027 = vsub.f32 %v4025, %v4026
    %v4028 = vand.u32 %v4027, 4294901760
    %4029 = vmatpush1.msra.mxu0 %v4028
    %4030 = vmatprep.subr.mxu0 0.0
    %4031 = vmatpush2.msra.mxu0 0.0
    %4032 = vmatprep.subr.mxu0 0.0
    %4033 = vmatpush2.msra.mxu0 0.0
    %4034 = vmatprep.subr.mxu0 0.0
    %4035 = vmatpush2.msra.mxu0 0.0
    %4036 = vmatprep.subr.mxu0 0.0
    %4037 = vmatpush2.msra.mxu0 0.0
    %4038 = vmatprep.subr.mxu0 0.0
    %4039 = vmatpush2.msra.mxu0 0.0
    %4040 = vmatprep.subr.mxu0 0.0
    %4041 = vmatpush2.msra.mxu0 0.0
    %4042 = vmatprep.subr.mxu0 0.0
    %4043 = vmatpush2.msra.mxu0 0.0
    %4044 = vmatprep.subr.mxu0 0.0
    %4045 = vmatpush2.msra.mxu0 0.0
    %4046 = vmatprep.subr.mxu0 0.0
    %4047 = vmatpush2.msra.mxu0 0.0
    %4048 = vmatprep.subr.mxu0 0.0
    %4049 = vmatpush2.msra.mxu0 0.0
    %4050 = vmatprep.subr.mxu0 0.0
    %4051 = vmatpush2.msra.mxu0 0.0
    %4052 = vmatprep.subr.mxu0 0.0
    %4053 = vmatpush2.msra.mxu0 0.0
    %4054 = vmatprep.subr.mxu0 0.0
    %4055 = vmatpush2.msra.mxu0 0.0
    %4056 = vmatprep.subr.mxu0 0.0
    %4057 = vmatpush2.msra.mxu0 0.0
    %4058 = vmatprep.subr.mxu0 0.0
    %4059 = vmatpush2.msra.mxu0 0.0
    %4060 = vmatprep.subr.mxu0 0.0
    %4061 = vmatpush2.msra.mxu0 0.0
    %4062 = vmatprep.mubr.f32.mxu0 0.0
    %v4063 = vand.u32 %v2964, 4294901760
    %4064 = vmatmul.mubr.f32.gmra.mxu0 %v4063
    %v4065 = vpop.f32.mrf.mxu0
    %v4066 = vadd.f32 %v3897, %v4065
    %v4067 = vpop.f32.mrf.mxu0
    %v4068 = vadd.f32 %v3899, %v4067
    %4069 = vmatprep.mubr.f32.mxu0 0.0
    %v4070 = vand.u32 %v2967, 4294901760
    %4071 = vmatmul.mubr.f32.gmra.mxu0 %v4070
    %v4072 = vpop.f32.mrf.mxu0
    %v4073 = vadd.f32 %v3908, %v4072
    %v4074 = vpop.f32.mrf.mxu0
    %v4075 = vadd.f32 %v3910, %v4074
    %4076 = vmatprep.mubr.f32.mxu0 0.0
    %v4077 = vand.u32 %v2970, 4294901760
    %4078 = vmatmul.mubr.f32.gmra.mxu0 %v4077
    %v4079 = vpop.f32.mrf.mxu0
    %v4080 = vadd.f32 %v3919, %v4079
    %v4081 = vpop.f32.mrf.mxu0
    %v4082 = vadd.f32 %v3921, %v4081
    %4083 = vmatprep.mubr.f32.mxu0 0.0
    %v4084 = vand.u32 %v2973, 4294901760
    %4085 = vmatmul.mubr.f32.gmra.mxu0 %v4084
    %v4086 = vpop.f32.mrf.mxu0
    %v4087 = vadd.f32 %v3930, %v4086
    %v4088 = vpop.f32.mrf.mxu0
    %v4089 = vadd.f32 %v3932, %v4088
    %4090 = vmatprep.mubr.f32.mxu0 0.0
    %v4091 = vand.u32 %v2976, 4294901760
    %4092 = vmatmul.mubr.f32.gmra.mxu0 %v4091
    %v4093 = vpop.f32.mrf.mxu0
    %v4094 = vadd.f32 %v3941, %v4093
    %v4095 = vpop.f32.mrf.mxu0
    %v4096 = vadd.f32 %v3943, %v4095
    %4097 = vmatprep.mubr.f32.mxu0 0.0
    %v4098 = vand.u32 %v2979, 4294901760
    %4099 = vmatmul.mubr.f32.gmra.mxu0 %v4098
    %v4100 = vpop.f32.mrf.mxu0
    %v4101 = vadd.f32 %v3952, %v4100
    %v4102 = vpop.f32.mrf.mxu0
    %v4103 = vadd.f32 %v3954, %v4102
    %4104 = vmatprep.mubr.f32.mxu0 0.0
    %v4105 = vand.u32 %v2982, 4294901760
    %4106 = vmatmul.mubr.f32.gmra.mxu0 %v4105
    %v4107 = vpop.f32.mrf.mxu0
    %v4108 = vadd.f32 %v3963, %v4107
    %v4109 = vpop.f32.mrf.mxu0
    %v4110 = vadd.f32 %v3965, %v4109
    %4111 = vmatprep.mubr.f32.mxu0 0.0
    %v4112 = vand.u32 %v2985, 4294901760
    %4113 = vmatmul.mubr.f32.gmra.mxu0 %v4112
    %v4114 = vpop.f32.mrf.mxu0
    %v4115 = vadd.f32 %v3974, %v4114
    %v4116 = vpop.f32.mrf.mxu0
    %v4117 = vadd.f32 %v3976, %v4116
    %4118 = vdwg.mxu0
    %4119 = vmatprep.subr.mxu0 0.0
    %4120 = vmatpush1.msra.mxu0 0.0
    %4121 = vmatprep.subr.mxu0 0.0
    %4122 = vmatpush1.msra.mxu0 0.0
    %4123 = vmatprep.subr.mxu0 0.0
    %4124 = vmatpush1.msra.mxu0 0.0
    %4125 = vmatprep.subr.mxu0 0.0
    %4126 = vmatpush1.msra.mxu0 0.0
    %4127 = vmatprep.subr.mxu0 0.0
    %4128 = vmatpush1.msra.mxu0 0.0
    %4129 = vmatprep.subr.mxu0 0.0
    %4130 = vmatpush1.msra.mxu0 0.0
    %4131 = vmatprep.subr.mxu0 0.0
    %4132 = vmatpush1.msra.mxu0 0.0
    %4133 = vmatprep.subr.mxu0 0.0
    %4134 = vmatpush1.msra.mxu0 0.0
    %4135 = vmatprep.subr.mxu0 0.0
    %4136 = vmatpush1.msra.mxu0 0.0
    %4137 = vmatprep.subr.mxu0 0.0
    %4138 = vmatpush1.msra.mxu0 0.0
    %4139 = vmatprep.subr.mxu0 0.0
    %4140 = vmatpush1.msra.mxu0 0.0
    %4141 = vmatprep.subr.mxu0 0.0
    %4142 = vmatpush1.msra.mxu0 0.0
    %4143 = vmatprep.subr.mxu0 0.0
    %4144 = vmatpush1.msra.mxu0 0.0
    %4145 = vmatprep.subr.mxu0 0.0
    %4146 = vmatpush1.msra.mxu0 0.0
    %v4147 = vand.u32 %v2953, 4294901760
    %v4148 = vsub.f32 %v2953, %v4147
    %4149 = vmatprep.subr.mxu0 %v4148
    %v4150 = vand.u32 %v2952, 4294901760
    %v4151 = vsub.f32 %v2952, %v4150
    %4152 = vmatpush1.msra.mxu0 %v4151
    %v4153 = vand.u32 %v2949, 4294901760
    %v4154 = vsub.f32 %v2949, %v4153
    %4155 = vmatprep.subr.mxu0 %v4154
    %v4156 = vand.u32 %v2948, 4294901760
    %v4157 = vsub.f32 %v2948, %v4156
    %4158 = vmatpush1.msra.mxu0 %v4157
    %4159 = vmatprep.subr.mxu0 0.0
    %4160 = vmatpush2.msra.mxu0 0.0
    %4161 = vmatprep.subr.mxu0 0.0
    %4162 = vmatpush2.msra.mxu0 0.0
    %4163 = vmatprep.subr.mxu0 0.0
    %4164 = vmatpush2.msra.mxu0 0.0
    %4165 = vmatprep.subr.mxu0 0.0
    %4166 = vmatpush2.msra.mxu0 0.0
    %4167 = vmatprep.subr.mxu0 0.0
    %4168 = vmatpush2.msra.mxu0 0.0
    %4169 = vmatprep.subr.mxu0 0.0
    %4170 = vmatpush2.msra.mxu0 0.0
    %4171 = vmatprep.subr.mxu0 0.0
    %4172 = vmatpush2.msra.mxu0 0.0
    %4173 = vmatprep.subr.mxu0 0.0
    %4174 = vmatpush2.msra.mxu0 0.0
    %4175 = vmatprep.subr.mxu0 0.0
    %4176 = vmatpush2.msra.mxu0 0.0
    %4177 = vmatprep.subr.mxu0 0.0
    %4178 = vmatpush2.msra.mxu0 0.0
    %4179 = vmatprep.subr.mxu0 0.0
    %4180 = vmatpush2.msra.mxu0 0.0
    %4181 = vmatprep.subr.mxu0 0.0
    %4182 = vmatpush2.msra.mxu0 0.0
    %4183 = vmatprep.subr.mxu0 0.0
    %4184 = vmatpush2.msra.mxu0 0.0
    %4185 = vmatprep.subr.mxu0 0.0
    %4186 = vmatpush2.msra.mxu0 0.0
    %4187 = vmatprep.subr.mxu0 0.0
    %4188 = vmatpush2.msra.mxu0 0.0
    %4189 = vmatprep.subr.mxu0 0.0
    %4190 = vmatpush2.msra.mxu0 0.0
    %4191 = vmatprep.mubr.f32.mxu0 0.0
    %v4192 = vand.u32 %v2964, 4294901760
    %v4193 = vsub.f32 %v2964, %v4192
    %4194 = vmatmul.mubr.f32.gmra.mxu0 %v4193
    %v4195 = vpop.f32.mrf.mxu0
    %v4196 = vadd.f32 %v4066, %v4195
    %v4197 = vpop.f32.mrf.mxu0
    %v4198 = vadd.f32 %v4068, %v4197
    %4199 = vmatprep.mubr.f32.mxu0 0.0
    %v4200 = vand.u32 %v2967, 4294901760
    %v4201 = vsub.f32 %v2967, %v4200
    %4202 = vmatmul.mubr.f32.gmra.mxu0 %v4201
    %v4203 = vpop.f32.mrf.mxu0
    %v4204 = vadd.f32 %v4073, %v4203
    %v4205 = vpop.f32.mrf.mxu0
    %v4206 = vadd.f32 %v4075, %v4205
    %4207 = vmatprep.mubr.f32.mxu0 0.0
    %v4208 = vand.u32 %v2970, 4294901760
    %v4209 = vsub.f32 %v2970, %v4208
    %4210 = vmatmul.mubr.f32.gmra.mxu0 %v4209
    %v4211 = vpop.f32.mrf.mxu0
    %v4212 = vadd.f32 %v4080, %v4211
    %v4213 = vpop.f32.mrf.mxu0
    %v4214 = vadd.f32 %v4082, %v4213
    %4215 = vmatprep.mubr.f32.mxu0 0.0
    %v4216 = vand.u32 %v2973, 4294901760
    %v4217 = vsub.f32 %v2973, %v4216
    %4218 = vmatmul.mubr.f32.gmra.mxu0 %v4217
    %v4219 = vpop.f32.mrf.mxu0
    %v4220 = vadd.f32 %v4087, %v4219
    %v4221 = vpop.f32.mrf.mxu0
    %v4222 = vadd.f32 %v4089, %v4221
    %4223 = vmatprep.mubr.f32.mxu0 0.0
    %v4224 = vand.u32 %v2976, 4294901760
    %v4225 = vsub.f32 %v2976, %v4224
    %4226 = vmatmul.mubr.f32.gmra.mxu0 %v4225
    %v4227 = vpop.f32.mrf.mxu0
    %v4228 = vadd.f32 %v4094, %v4227
    %v4229 = vpop.f32.mrf.mxu0
    %v4230 = vadd.f32 %v4096, %v4229
    %4231 = vmatprep.mubr.f32.mxu0 0.0
    %v4232 = vand.u32 %v2979, 4294901760
    %v4233 = vsub.f32 %v2979, %v4232
    %4234 = vmatmul.mubr.f32.gmra.mxu0 %v4233
    %v4235 = vpop.f32.mrf.mxu0
    %v4236 = vadd.f32 %v4101, %v4235
    %v4237 = vpop.f32.mrf.mxu0
    %v4238 = vadd.f32 %v4103, %v4237
    %4239 = vmatprep.mubr.f32.mxu0 0.0
    %v4240 = vand.u32 %v2982, 4294901760
    %v4241 = vsub.f32 %v2982, %v4240
    %4242 = vmatmul.mubr.f32.gmra.mxu0 %v4241
    %v4243 = vpop.f32.mrf.mxu0
    %v4244 = vadd.f32 %v4108, %v4243
    %v4245 = vpop.f32.mrf.mxu0
    %v4246 = vadd.f32 %v4110, %v4245
    %4247 = vmatprep.mubr.f32.mxu0 0.0
    %v4248 = vand.u32 %v2985, 4294901760
    %v4249 = vsub.f32 %v2985, %v4248
    %4250 = vmatmul.mubr.f32.gmra.mxu0 %v4249
    %v4251 = vpop.f32.mrf.mxu0
    %v4252 = vadd.f32 %v4115, %v4251
    %v4253 = vpop.f32.mrf.mxu0
    %v4254 = vadd.f32 %v4117, %v4253
    %4255 = vdwg.mxu0
    %4256 = vmatprep.subr.mxu0 0.0
    %4257 = vmatpush1.msra.mxu0 0.0
    %4258 = vmatprep.subr.mxu0 0.0
    %4259 = vmatpush1.msra.mxu0 0.0
    %4260 = vmatprep.subr.mxu0 0.0
    %4261 = vmatpush1.msra.mxu0 0.0
    %4262 = vmatprep.subr.mxu0 0.0
    %4263 = vmatpush1.msra.mxu0 0.0
    %4264 = vmatprep.subr.mxu0 0.0
    %4265 = vmatpush1.msra.mxu0 0.0
    %4266 = vmatprep.subr.mxu0 0.0
    %4267 = vmatpush1.msra.mxu0 0.0
    %4268 = vmatprep.subr.mxu0 0.0
    %4269 = vmatpush1.msra.mxu0 0.0
    %4270 = vmatprep.subr.mxu0 0.0
    %4271 = vmatpush1.msra.mxu0 0.0
    %4272 = vmatprep.subr.mxu0 0.0
    %4273 = vmatpush1.msra.mxu0 0.0
    %4274 = vmatprep.subr.mxu0 0.0
    %4275 = vmatpush1.msra.mxu0 0.0
    %4276 = vmatprep.subr.mxu0 0.0
    %4277 = vmatpush1.msra.mxu0 0.0
    %4278 = vmatprep.subr.mxu0 0.0
    %4279 = vmatpush1.msra.mxu0 0.0
    %4280 = vmatprep.subr.mxu0 0.0
    %4281 = vmatpush1.msra.mxu0 0.0
    %4282 = vmatprep.subr.mxu0 0.0
    %4283 = vmatpush1.msra.mxu0 0.0
    %v4284 = vand.u32 %v2953, 4294901760
    %4285 = vmatprep.subr.mxu0 %v4284
    %v4286 = vand.u32 %v2952, 4294901760
    %4287 = vmatpush1.msra.mxu0 %v4286
    %v4288 = vand.u32 %v2949, 4294901760
    %4289 = vmatprep.subr.mxu0 %v4288
    %v4290 = vand.u32 %v2948, 4294901760
    %4291 = vmatpush1.msra.mxu0 %v4290
    %4292 = vmatprep.subr.mxu0 0.0
    %4293 = vmatpush2.msra.mxu0 0.0
    %4294 = vmatprep.subr.mxu0 0.0
    %4295 = vmatpush2.msra.mxu0 0.0
    %4296 = vmatprep.subr.mxu0 0.0
    %4297 = vmatpush2.msra.mxu0 0.0
    %4298 = vmatprep.subr.mxu0 0.0
    %4299 = vmatpush2.msra.mxu0 0.0
    %4300 = vmatprep.subr.mxu0 0.0
    %4301 = vmatpush2.msra.mxu0 0.0
    %4302 = vmatprep.subr.mxu0 0.0
    %4303 = vmatpush2.msra.mxu0 0.0
    %4304 = vmatprep.subr.mxu0 0.0
    %4305 = vmatpush2.msra.mxu0 0.0
    %4306 = vmatprep.subr.mxu0 0.0
    %4307 = vmatpush2.msra.mxu0 0.0
    %4308 = vmatprep.subr.mxu0 0.0
    %4309 = vmatpush2.msra.mxu0 0.0
    %4310 = vmatprep.subr.mxu0 0.0
    %4311 = vmatpush2.msra.mxu0 0.0
    %4312 = vmatprep.subr.mxu0 0.0
    %4313 = vmatpush2.msra.mxu0 0.0
    %4314 = vmatprep.subr.mxu0 0.0
    %4315 = vmatpush2.msra.mxu0 0.0
    %4316 = vmatprep.subr.mxu0 0.0
    %4317 = vmatpush2.msra.mxu0 0.0
    %4318 = vmatprep.subr.mxu0 0.0
    %4319 = vmatpush2.msra.mxu0 0.0
    %4320 = vmatprep.subr.mxu0 0.0
    %4321 = vmatpush2.msra.mxu0 0.0
    %4322 = vmatprep.subr.mxu0 0.0
    %4323 = vmatpush2.msra.mxu0 0.0
    %4324 = vmatprep.mubr.f32.mxu0 0.0
    %v4325 = vand.u32 %v2964, 4294901760
    %v4326 = vsub.f32 %v2964, %v4325
    %v4327 = vand.u32 %v4326, 4294901760
    %4328 = vmatmul.mubr.f32.gmra.mxu0 %v4327
    %v4329 = vpop.f32.mrf.mxu0
    %v4330 = vadd.f32 %v4196, %v4329
    %v4331 = vpop.f32.mrf.mxu0
    %v4332 = vadd.f32 %v4198, %v4331
    %4333 = vmatprep.mubr.f32.mxu0 0.0
    %v4334 = vand.u32 %v2967, 4294901760
    %v4335 = vsub.f32 %v2967, %v4334
    %v4336 = vand.u32 %v4335, 4294901760
    %4337 = vmatmul.mubr.f32.gmra.mxu0 %v4336
    %v4338 = vpop.f32.mrf.mxu0
    %v4339 = vadd.f32 %v4204, %v4338
    %v4340 = vpop.f32.mrf.mxu0
    %v4341 = vadd.f32 %v4206, %v4340
    %4342 = vmatprep.mubr.f32.mxu0 0.0
    %v4343 = vand.u32 %v2970, 4294901760
    %v4344 = vsub.f32 %v2970, %v4343
    %v4345 = vand.u32 %v4344, 4294901760
    %4346 = vmatmul.mubr.f32.gmra.mxu0 %v4345
    %v4347 = vpop.f32.mrf.mxu0
    %v4348 = vadd.f32 %v4212, %v4347
    %v4349 = vpop.f32.mrf.mxu0
    %v4350 = vadd.f32 %v4214, %v4349
    %4351 = vmatprep.mubr.f32.mxu0 0.0
    %v4352 = vand.u32 %v2973, 4294901760
    %v4353 = vsub.f32 %v2973, %v4352
    %v4354 = vand.u32 %v4353, 4294901760
    %4355 = vmatmul.mubr.f32.gmra.mxu0 %v4354
    %v4356 = vpop.f32.mrf.mxu0
    %v4357 = vadd.f32 %v4220, %v4356
    %v4358 = vpop.f32.mrf.mxu0
    %v4359 = vadd.f32 %v4222, %v4358
    %4360 = vmatprep.mubr.f32.mxu0 0.0
    %v4361 = vand.u32 %v2976, 4294901760
    %v4362 = vsub.f32 %v2976, %v4361
    %v4363 = vand.u32 %v4362, 4294901760
    %4364 = vmatmul.mubr.f32.gmra.mxu0 %v4363
    %v4365 = vpop.f32.mrf.mxu0
    %v4366 = vadd.f32 %v4228, %v4365
    %v4367 = vpop.f32.mrf.mxu0
    %v4368 = vadd.f32 %v4230, %v4367
    %4369 = vmatprep.mubr.f32.mxu0 0.0
    %v4370 = vand.u32 %v2979, 4294901760
    %v4371 = vsub.f32 %v2979, %v4370
    %v4372 = vand.u32 %v4371, 4294901760
    %4373 = vmatmul.mubr.f32.gmra.mxu0 %v4372
    %v4374 = vpop.f32.mrf.mxu0
    %v4375 = vadd.f32 %v4236, %v4374
    %v4376 = vpop.f32.mrf.mxu0
    %v4377 = vadd.f32 %v4238, %v4376
    %4378 = vmatprep.mubr.f32.mxu0 0.0
    %v4379 = vand.u32 %v2982, 4294901760
    %v4380 = vsub.f32 %v2982, %v4379
    %v4381 = vand.u32 %v4380, 4294901760
    %4382 = vmatmul.mubr.f32.gmra.mxu0 %v4381
    %v4383 = vpop.f32.mrf.mxu0
    %v4384 = vadd.f32 %v4244, %v4383
    %v4385 = vpop.f32.mrf.mxu0
    %v4386 = vadd.f32 %v4246, %v4385
    %4387 = vmatprep.mubr.f32.mxu0 0.0
    %v4388 = vand.u32 %v2985, 4294901760
    %v4389 = vsub.f32 %v2985, %v4388
    %v4390 = vand.u32 %v4389, 4294901760
    %4391 = vmatmul.mubr.f32.gmra.mxu0 %v4390
    %v4392 = vpop.f32.mrf.mxu0
    %v4393 = vadd.f32 %v4252, %v4392
    %v4394 = vpop.f32.mrf.mxu0
    %v4395 = vadd.f32 %v4254, %v4394
    %4396 = vdwg.mxu0
    %4397 = vmatprep.subr.mxu0 0.0
    %4398 = vmatpush1.msra.mxu0 0.0
    %4399 = vmatprep.subr.mxu0 0.0
    %4400 = vmatpush1.msra.mxu0 0.0
    %4401 = vmatprep.subr.mxu0 0.0
    %4402 = vmatpush1.msra.mxu0 0.0
    %4403 = vmatprep.subr.mxu0 0.0
    %4404 = vmatpush1.msra.mxu0 0.0
    %4405 = vmatprep.subr.mxu0 0.0
    %4406 = vmatpush1.msra.mxu0 0.0
    %4407 = vmatprep.subr.mxu0 0.0
    %4408 = vmatpush1.msra.mxu0 0.0
    %4409 = vmatprep.subr.mxu0 0.0
    %4410 = vmatpush1.msra.mxu0 0.0
    %4411 = vmatprep.subr.mxu0 0.0
    %4412 = vmatpush1.msra.mxu0 0.0
    %4413 = vmatprep.subr.mxu0 0.0
    %4414 = vmatpush1.msra.mxu0 0.0
    %4415 = vmatprep.subr.mxu0 0.0
    %4416 = vmatpush1.msra.mxu0 0.0
    %4417 = vmatprep.subr.mxu0 0.0
    %4418 = vmatpush1.msra.mxu0 0.0
    %4419 = vmatprep.subr.mxu0 0.0
    %4420 = vmatpush1.msra.mxu0 0.0
    %4421 = vmatprep.subr.mxu0 0.0
    %4422 = vmatpush1.msra.mxu0 0.0
    %4423 = vmatprep.subr.mxu0 0.0
    %4424 = vmatpush1.msra.mxu0 0.0
    %v4425 = vand.u32 %v2953, 4294901760
    %v4426 = vsub.f32 %v2953, %v4425
    %v4427 = vand.u32 %v4426, 4294901760
    %4428 = vmatprep.subr.mxu0 %v4427
    %v4429 = vand.u32 %v2952, 4294901760
    %v4430 = vsub.f32 %v2952, %v4429
    %v4431 = vand.u32 %v4430, 4294901760
    %4432 = vmatpush1.msra.mxu0 %v4431
    %v4433 = vand.u32 %v2949, 4294901760
    %v4434 = vsub.f32 %v2949, %v4433
    %v4435 = vand.u32 %v4434, 4294901760
    %4436 = vmatprep.subr.mxu0 %v4435
    %v4437 = vand.u32 %v2948, 4294901760
    %v4438 = vsub.f32 %v2948, %v4437
    %v4439 = vand.u32 %v4438, 4294901760
    %4440 = vmatpush1.msra.mxu0 %v4439
    %4441 = vmatprep.subr.mxu0 0.0
    %4442 = vmatpush2.msra.mxu0 0.0
    %4443 = vmatprep.subr.mxu0 0.0
    %4444 = vmatpush2.msra.mxu0 0.0
    %4445 = vmatprep.subr.mxu0 0.0
    %4446 = vmatpush2.msra.mxu0 0.0
    %4447 = vmatprep.subr.mxu0 0.0
    %4448 = vmatpush2.msra.mxu0 0.0
    %4449 = vmatprep.subr.mxu0 0.0
    %4450 = vmatpush2.msra.mxu0 0.0
    %4451 = vmatprep.subr.mxu0 0.0
    %4452 = vmatpush2.msra.mxu0 0.0
    %4453 = vmatprep.subr.mxu0 0.0
    %4454 = vmatpush2.msra.mxu0 0.0
    %4455 = vmatprep.subr.mxu0 0.0
    %4456 = vmatpush2.msra.mxu0 0.0
    %4457 = vmatprep.subr.mxu0 0.0
    %4458 = vmatpush2.msra.mxu0 0.0
    %4459 = vmatprep.subr.mxu0 0.0
    %4460 = vmatpush2.msra.mxu0 0.0
    %4461 = vmatprep.subr.mxu0 0.0
    %4462 = vmatpush2.msra.mxu0 0.0
    %4463 = vmatprep.subr.mxu0 0.0
    %4464 = vmatpush2.msra.mxu0 0.0
    %4465 = vmatprep.subr.mxu0 0.0
    %4466 = vmatpush2.msra.mxu0 0.0
    %4467 = vmatprep.subr.mxu0 0.0
    %4468 = vmatpush2.msra.mxu0 0.0
    %4469 = vmatprep.subr.mxu0 0.0
    %4470 = vmatpush2.msra.mxu0 0.0
    %4471 = vmatprep.subr.mxu0 0.0
    %4472 = vmatpush2.msra.mxu0 0.0
    %4473 = vmatprep.mubr.f32.mxu0 0.0
    %v4474 = vand.u32 %v2964, 4294901760
    %4475 = vmatmul.mubr.f32.gmra.mxu0 %v4474
    %v4476 = vpop.f32.mrf.mxu0
    %v4477 = vadd.f32 %v4330, %v4476
    %v4478 = vpop.f32.mrf.mxu0
    %v4479 = vadd.f32 %v4332, %v4478
    %4480 = vmatprep.mubr.f32.mxu0 0.0
    %v4481 = vand.u32 %v2967, 4294901760
    %4482 = vmatmul.mubr.f32.gmra.mxu0 %v4481
    %v4483 = vpop.f32.mrf.mxu0
    %v4484 = vadd.f32 %v4339, %v4483
    %v4485 = vpop.f32.mrf.mxu0
    %v4486 = vadd.f32 %v4341, %v4485
    %4487 = vmatprep.mubr.f32.mxu0 0.0
    %v4488 = vand.u32 %v2970, 4294901760
    %4489 = vmatmul.mubr.f32.gmra.mxu0 %v4488
    %v4490 = vpop.f32.mrf.mxu0
    %v4491 = vadd.f32 %v4348, %v4490
    %v4492 = vpop.f32.mrf.mxu0
    %v4493 = vadd.f32 %v4350, %v4492
    %4494 = vmatprep.mubr.f32.mxu0 0.0
    %v4495 = vand.u32 %v2973, 4294901760
    %4496 = vmatmul.mubr.f32.gmra.mxu0 %v4495
    %v4497 = vpop.f32.mrf.mxu0
    %v4498 = vadd.f32 %v4357, %v4497
    %v4499 = vpop.f32.mrf.mxu0
    %v4500 = vadd.f32 %v4359, %v4499
    %4501 = vmatprep.mubr.f32.mxu0 0.0
    %v4502 = vand.u32 %v2976, 4294901760
    %4503 = vmatmul.mubr.f32.gmra.mxu0 %v4502
    %v4504 = vpop.f32.mrf.mxu0
    %v4505 = vadd.f32 %v4366, %v4504
    %v4506 = vpop.f32.mrf.mxu0
    %v4507 = vadd.f32 %v4368, %v4506
    %4508 = vmatprep.mubr.f32.mxu0 0.0
    %v4509 = vand.u32 %v2979, 4294901760
    %4510 = vmatmul.mubr.f32.gmra.mxu0 %v4509
    %v4511 = vpop.f32.mrf.mxu0
    %v4512 = vadd.f32 %v4375, %v4511
    %v4513 = vpop.f32.mrf.mxu0
    %v4514 = vadd.f32 %v4377, %v4513
    %4515 = vmatprep.mubr.f32.mxu0 0.0
    %v4516 = vand.u32 %v2982, 4294901760
    %4517 = vmatmul.mubr.f32.gmra.mxu0 %v4516
    %v4518 = vpop.f32.mrf.mxu0
    %v4519 = vadd.f32 %v4384, %v4518
    %v4520 = vpop.f32.mrf.mxu0
    %v4521 = vadd.f32 %v4386, %v4520
    %4522 = vmatprep.mubr.f32.mxu0 0.0
    %v4523 = vand.u32 %v2985, 4294901760
    %4524 = vmatmul.mubr.f32.gmra.mxu0 %v4523
    %v4525 = vpop.f32.mrf.mxu0
    %v4526 = vadd.f32 %v4393, %v4525
    %v4527 = vpop.f32.mrf.mxu0
    %v4528 = vadd.f32 %v4395, %v4527
    %4529 = vdwg.mxu0
    %4530 = vmatprep.subr.mxu0 0.0
    %4531 = vmatpush1.msra.mxu0 0.0
    %4532 = vmatprep.subr.mxu0 0.0
    %4533 = vmatpush1.msra.mxu0 0.0
    %4534 = vmatprep.subr.mxu0 0.0
    %4535 = vmatpush1.msra.mxu0 0.0
    %4536 = vmatprep.subr.mxu0 0.0
    %4537 = vmatpush1.msra.mxu0 0.0
    %4538 = vmatprep.subr.mxu0 0.0
    %4539 = vmatpush1.msra.mxu0 0.0
    %4540 = vmatprep.subr.mxu0 0.0
    %4541 = vmatpush1.msra.mxu0 0.0
    %4542 = vmatprep.subr.mxu0 0.0
    %4543 = vmatpush1.msra.mxu0 0.0
    %4544 = vmatprep.subr.mxu0 0.0
    %4545 = vmatpush1.msra.mxu0 0.0
    %4546 = vmatprep.subr.mxu0 0.0
    %4547 = vmatpush1.msra.mxu0 0.0
    %4548 = vmatprep.subr.mxu0 0.0
    %4549 = vmatpush1.msra.mxu0 0.0
    %4550 = vmatprep.subr.mxu0 0.0
    %4551 = vmatpush1.msra.mxu0 0.0
    %4552 = vmatprep.subr.mxu0 0.0
    %4553 = vmatpush1.msra.mxu0 0.0
    %4554 = vmatprep.subr.mxu0 0.0
    %4555 = vmatpush1.msra.mxu0 0.0
    %4556 = vmatprep.subr.mxu0 0.0
    %4557 = vmatpush1.msra.mxu0 0.0
    %v4558 = vand.u32 %v2953, 4294901760
    %4559 = vmatprep.subr.mxu0 %v4558
    %v4560 = vand.u32 %v2952, 4294901760
    %4561 = vmatpush1.msra.mxu0 %v4560
    %v4562 = vand.u32 %v2949, 4294901760
    %4563 = vmatprep.subr.mxu0 %v4562
    %v4564 = vand.u32 %v2948, 4294901760
    %4565 = vmatpush1.msra.mxu0 %v4564
    %4566 = vmatprep.subr.mxu0 0.0
    %4567 = vmatpush2.msra.mxu0 0.0
    %4568 = vmatprep.subr.mxu0 0.0
    %4569 = vmatpush2.msra.mxu0 0.0
    %4570 = vmatprep.subr.mxu0 0.0
    %4571 = vmatpush2.msra.mxu0 0.0
    %4572 = vmatprep.subr.mxu0 0.0
    %4573 = vmatpush2.msra.mxu0 0.0
    %4574 = vmatprep.subr.mxu0 0.0
    %4575 = vmatpush2.msra.mxu0 0.0
    %4576 = vmatprep.subr.mxu0 0.0
    %4577 = vmatpush2.msra.mxu0 0.0
    %4578 = vmatprep.subr.mxu0 0.0
    %4579 = vmatpush2.msra.mxu0 0.0
    %4580 = vmatprep.subr.mxu0 0.0
    %4581 = vmatpush2.msra.mxu0 0.0
    %4582 = vmatprep.subr.mxu0 0.0
    %4583 = vmatpush2.msra.mxu0 0.0
    %4584 = vmatprep.subr.mxu0 0.0
    %4585 = vmatpush2.msra.mxu0 0.0
    %4586 = vmatprep.subr.mxu0 0.0
    %4587 = vmatpush2.msra.mxu0 0.0
    %4588 = vmatprep.subr.mxu0 0.0
    %4589 = vmatpush2.msra.mxu0 0.0
    %4590 = vmatprep.subr.mxu0 0.0
    %4591 = vmatpush2.msra.mxu0 0.0
    %4592 = vmatprep.subr.mxu0 0.0
    %4593 = vmatpush2.msra.mxu0 0.0
    %4594 = vmatprep.subr.mxu0 0.0
    %4595 = vmatpush2.msra.mxu0 0.0
    %4596 = vmatprep.subr.mxu0 0.0
    %4597 = vmatpush2.msra.mxu0 0.0
    %4598 = vmatprep.mubr.f32.mxu0 0.0
    %v4599 = vand.u32 %v2964, 4294901760
    %4600 = vmatmul.mubr.f32.gmra.mxu0 %v4599
    %v4601 = vpop.f32.mrf.mxu0
    %v4602 = vadd.f32 %v4477, %v4601
    %v4603 = vpop.f32.mrf.mxu0
    %v4604 = vadd.f32 %v4479, %v4603
    %4605 = vmatprep.mubr.f32.mxu0 0.0
    %v4606 = vand.u32 %v2967, 4294901760
    %4607 = vmatmul.mubr.f32.gmra.mxu0 %v4606
    %v4608 = vpop.f32.mrf.mxu0
    %v4609 = vadd.f32 %v4484, %v4608
    %v4610 = vpop.f32.mrf.mxu0
    %v4611 = vadd.f32 %v4486, %v4610
    %4612 = vmatprep.mubr.f32.mxu0 0.0
    %v4613 = vand.u32 %v2970, 4294901760
    %4614 = vmatmul.mubr.f32.gmra.mxu0 %v4613
    %v4615 = vpop.f32.mrf.mxu0
    %v4616 = vadd.f32 %v4491, %v4615
    %v4617 = vpop.f32.mrf.mxu0
    %v4618 = vadd.f32 %v4493, %v4617
    %4619 = vmatprep.mubr.f32.mxu0 0.0
    %v4620 = vand.u32 %v2973, 4294901760
    %4621 = vmatmul.mubr.f32.gmra.mxu0 %v4620
    %v4622 = vpop.f32.mrf.mxu0
    %v4623 = vadd.f32 %v4498, %v4622
    %v4624 = vpop.f32.mrf.mxu0
    %v4625 = vadd.f32 %v4500, %v4624
    %4626 = vmatprep.mubr.f32.mxu0 0.0
    %v4627 = vand.u32 %v2976, 4294901760
    %4628 = vmatmul.mubr.f32.gmra.mxu0 %v4627
    %v4629 = vpop.f32.mrf.mxu0
    %v4630 = vadd.f32 %v4505, %v4629
    %v4631 = vpop.f32.mrf.mxu0
    %v4632 = vadd.f32 %v4507, %v4631
    %4633 = vmatprep.mubr.f32.mxu0 0.0
    %v4634 = vand.u32 %v2979, 4294901760
    %4635 = vmatmul.mubr.f32.gmra.mxu0 %v4634
    %v4636 = vpop.f32.mrf.mxu0
    %v4637 = vadd.f32 %v4512, %v4636
    %v4638 = vpop.f32.mrf.mxu0
    %v4639 = vadd.f32 %v4514, %v4638
    %4640 = vmatprep.mubr.f32.mxu0 0.0
    %v4641 = vand.u32 %v2982, 4294901760
    %4642 = vmatmul.mubr.f32.gmra.mxu0 %v4641
    %v4643 = vpop.f32.mrf.mxu0
    %v4644 = vadd.f32 %v4519, %v4643
    %v4645 = vpop.f32.mrf.mxu0
    %v4646 = vadd.f32 %v4521, %v4645
    %4647 = vmatprep.mubr.f32.mxu0 0.0
    %v4648 = vand.u32 %v2985, 4294901760
    %4649 = vmatmul.mubr.f32.gmra.mxu0 %v4648
    %v4650 = vpop.f32.mrf.mxu0
    %v4651 = vadd.f32 %v4526, %v4650
    %v4652 = vpop.f32.mrf.mxu0
    %v4653 = vadd.f32 %v4528, %v4652
    %4654 = vdwg.mxu0
    %v4655 = vadd.f32 %v3768, %v3770
    %v4656 = vadd.f32 %v4655, %v4602
    %v4657 = vadd.f32 %v4656, %v4604
    %4658 = vadd.xlane.f32.xlu0 %v4657
    %v4659 = vpop.xlane.xlu0 %4658
    %v4660 = vadd.f32 %v3775, %v3777
    %v4661 = vadd.f32 %v4660, %v4609
    %v4662 = vadd.f32 %v4661, %v4611
    %4663 = vadd.xlane.f32.xlu0 %v4662
    %v4664 = vpop.xlane.xlu0 %4663
    %v4665 = vadd.f32 %v3782, %v3784
    %v4666 = vadd.f32 %v4665, %v4616
    %v4667 = vadd.f32 %v4666, %v4618
    %4668 = vadd.xlane.f32.xlu0 %v4667
    %v4669 = vpop.xlane.xlu0 %4668
    %v4670 = vadd.f32 %v3789, %v3791
    %v4671 = vadd.f32 %v4670, %v4623
    %v4672 = vadd.f32 %v4671, %v4625
    %4673 = vadd.xlane.f32.xlu0 %v4672
    %v4674 = vpop.xlane.xlu0 %4673
    %v4675 = vadd.f32 %v3796, %v3798
    %v4676 = vadd.f32 %v4675, %v4630
    %v4677 = vadd.f32 %v4676, %v4632
    %4678 = vadd.xlane.f32.xlu0 %v4677
    %v4679 = vpop.xlane.xlu0 %4678
    %v4680 = vadd.f32 %v3803, %v3805
    %v4681 = vadd.f32 %v4680, %v4637
    %v4682 = vadd.f32 %v4681, %v4639
    %4683 = vadd.xlane.f32.xlu0 %v4682
    %v4684 = vpop.xlane.xlu0 %4683
    %v4685 = vadd.f32 %v3810, %v3812
    %v4686 = vadd.f32 %v4685, %v4644
    %v4687 = vadd.f32 %v4686, %v4646
    %4688 = vadd.xlane.f32.xlu0 %v4687
    %v4689 = vpop.xlane.xlu0 %4688
    %v4690 = vadd.f32 %v3817, %v3819
    %v4691 = vadd.f32 %v4690, %v4651
    %v4692 = vadd.f32 %v4691, %v4653
    %4693 = vadd.xlane.f32.xlu0 %v4692
    %v4694 = vpop.xlane.xlu0 %4693
    %v4695 = vmul.f32 %v4659, 0.001953125
    %v4696 = vmul.f32 %v4664, 0.001953125
    %v4697 = vmul.f32 %v4669, 0.001953125
    %v4698 = vmul.f32 %v4674, 0.001953125
    %v4699 = vmul.f32 %v4679, 0.001953125
    %v4700 = vmul.f32 %v4684, 0.001953125
    %v4701 = vmul.f32 %v4689, 0.001953125
    %v4702 = vmul.f32 %v4694, 0.001953125
    %v4703 = vsub.f32 %v3768, %v4695
    %v4704 = vsub.f32 %v3770, %v4695
    %v4705 = vsub.f32 %v4602, %v4695
    %v4706 = vsub.f32 %v4604, %v4695
    %v4707 = vsub.f32 %v3775, %v4696
    %v4708 = vsub.f32 %v3777, %v4696
    %v4709 = vsub.f32 %v4609, %v4696
    %v4710 = vsub.f32 %v4611, %v4696
    %v4711 = vsub.f32 %v3782, %v4697
    %v4712 = vsub.f32 %v3784, %v4697
    %v4713 = vsub.f32 %v4616, %v4697
    %v4714 = vsub.f32 %v4618, %v4697
    %v4715 = vsub.f32 %v3789, %v4698
    %v4716 = vsub.f32 %v3791, %v4698
    %v4717 = vsub.f32 %v4623, %v4698
    %v4718 = vsub.f32 %v4625, %v4698
    %v4719 = vsub.f32 %v3796, %v4699
    %v4720 = vsub.f32 %v3798, %v4699
    %v4721 = vsub.f32 %v4630, %v4699
    %v4722 = vsub.f32 %v4632, %v4699
    %v4723 = vsub.f32 %v3803, %v4700
    %v4724 = vsub.f32 %v3805, %v4700
    %v4725 = vsub.f32 %v4637, %v4700
    %v4726 = vsub.f32 %v4639, %v4700
    %v4727 = vsub.f32 %v3810, %v4701
    %v4728 = vsub.f32 %v3812, %v4701
    %v4729 = vsub.f32 %v4644, %v4701
    %v4730 = vsub.f32 %v4646, %v4701
    %v4731 = vsub.f32 %v3817, %v4702
    %v4732 = vsub.f32 %v3819, %v4702
    %v4733 = vsub.f32 %v4651, %v4702
    %v4734 = vsub.f32 %v4653, %v4702
    %v4735 = vmul.f32 %v4703, %v4703
    %v4736 = vmul.f32 %v4704, %v4704
    %v4737 = vmul.f32 %v4705, %v4705
    %v4738 = vmul.f32 %v4706, %v4706
    %v4739 = vmul.f32 %v4707, %v4707
    %v4740 = vmul.f32 %v4708, %v4708
    %v4741 = vmul.f32 %v4709, %v4709
    %v4742 = vmul.f32 %v4710, %v4710
    %v4743 = vmul.f32 %v4711, %v4711
    %v4744 = vmul.f32 %v4712, %v4712
    %v4745 = vmul.f32 %v4713, %v4713
    %v4746 = vmul.f32 %v4714, %v4714
    %v4747 = vmul.f32 %v4715, %v4715
    %v4748 = vmul.f32 %v4716, %v4716
    %v4749 = vmul.f32 %v4717, %v4717
    %v4750 = vmul.f32 %v4718, %v4718
    %v4751 = vmul.f32 %v4719, %v4719
    %v4752 = vmul.f32 %v4720, %v4720
    %v4753 = vmul.f32 %v4721, %v4721
    %v4754 = vmul.f32 %v4722, %v4722
    %v4755 = vmul.f32 %v4723, %v4723
    %v4756 = vmul.f32 %v4724, %v4724
    %v4757 = vmul.f32 %v4725, %v4725
    %v4758 = vmul.f32 %v4726, %v4726
    %v4759 = vmul.f32 %v4727, %v4727
    %v4760 = vmul.f32 %v4728, %v4728
    %v4761 = vmul.f32 %v4729, %v4729
    %v4762 = vmul.f32 %v4730, %v4730
    %v4763 = vmul.f32 %v4731, %v4731
    %v4764 = vmul.f32 %v4732, %v4732
    %v4765 = vmul.f32 %v4733, %v4733
    %v4766 = vmul.f32 %v4734, %v4734
    %v4767 = vadd.f32 %v4735, %v4736
    %v4768 = vadd.f32 %v4767, %v4737
    %v4769 = vadd.f32 %v4768, %v4738
    %4770 = vadd.xlane.f32.xlu0 %v4769
    %v4771 = vpop.xlane.xlu0 %4770
    %v4772 = vadd.f32 %v4739, %v4740
    %v4773 = vadd.f32 %v4772, %v4741
    %v4774 = vadd.f32 %v4773, %v4742
    %4775 = vadd.xlane.f32.xlu0 %v4774
    %v4776 = vpop.xlane.xlu0 %4775
    %v4777 = vadd.f32 %v4743, %v4744
    %v4778 = vadd.f32 %v4777, %v4745
    %v4779 = vadd.f32 %v4778, %v4746
    %4780 = vadd.xlane.f32.xlu0 %v4779
    %v4781 = vpop.xlane.xlu0 %4780
    %v4782 = vadd.f32 %v4747, %v4748
    %v4783 = vadd.f32 %v4782, %v4749
    %v4784 = vadd.f32 %v4783, %v4750
    %4785 = vadd.xlane.f32.xlu0 %v4784
    %v4786 = vpop.xlane.xlu0 %4785
    %v4787 = vadd.f32 %v4751, %v4752
    %v4788 = vadd.f32 %v4787, %v4753
    %v4789 = vadd.f32 %v4788, %v4754
    %4790 = vadd.xlane.f32.xlu0 %v4789
    %v4791 = vpop.xlane.xlu0 %4790
    %v4792 = vadd.f32 %v4755, %v4756
    %v4793 = vadd.f32 %v4792, %v4757
    %v4794 = vadd.f32 %v4793, %v4758
    %4795 = vadd.xlane.f32.xlu0 %v4794
    %v4796 = vpop.xlane.xlu0 %4795
    %v4797 = vadd.f32 %v4759, %v4760
    %v4798 = vadd.f32 %v4797, %v4761
    %v4799 = vadd.f32 %v4798, %v4762
    %4800 = vadd.xlane.f32.xlu0 %v4799
    %v4801 = vpop.xlane.xlu0 %4800
    %v4802 = vadd.f32 %v4763, %v4764
    %v4803 = vadd.f32 %v4802, %v4765
    %v4804 = vadd.f32 %v4803, %v4766
    %4805 = vadd.xlane.f32.xlu0 %v4804
    %v4806 = vpop.xlane.xlu0 %4805
    %v4807 = vmul.f32 %v4771, 0.001953125
    %v4808 = vmul.f32 %v4776, 0.001953125
    %v4809 = vmul.f32 %v4781, 0.001953125
    %v4810 = vmul.f32 %v4786, 0.001953125
    %v4811 = vmul.f32 %v4791, 0.001953125
    %v4812 = vmul.f32 %v4796, 0.001953125
    %v4813 = vmul.f32 %v4801, 0.001953125
    %v4814 = vmul.f32 %v4806, 0.001953125
    %v4815 = vadd.f32 %v4807, 1e-05
    %v4816 = vadd.f32 %v4808, 1e-05
    %v4817 = vadd.f32 %v4809, 1e-05
    %v4818 = vadd.f32 %v4810, 1e-05
    %v4819 = vadd.f32 %v4811, 1e-05
    %v4820 = vadd.f32 %v4812, 1e-05
    %v4821 = vadd.f32 %v4813, 1e-05
    %v4822 = vadd.f32 %v4814, 1e-05
    %v4823 = vrsqrt.pop %v4815
    %v4824 = vrsqrt.pop %v4816
    %v4825 = vrsqrt.pop %v4817
    %v4826 = vrsqrt.pop %v4818
    %v4827 = vrsqrt.pop %v4819
    %v4828 = vrsqrt.pop %v4820
    %v4829 = vrsqrt.pop %v4821
    %v4830 = vrsqrt.pop %v4822
    %v4831 = vld [vmem:[%s5] sm:$0xff]
    %v4832 = vld [vmem:[%s5 + $0x8] sm:$0xff]
    %v4833 = vld [vmem:[%s5 + $0x10] sm:$0xff]
    %v4834 = vld [vmem:[%s5 + $0x18] sm:$0xff]
    %v4835 = vld [vmem:[%s5 + $0x20] sm:$0xff]
    %v4836 = vld [vmem:[%s5 + $0x28] sm:$0xff]
    %v4837 = vld [vmem:[%s5 + $0x30] sm:$0xff]
    %v4838 = vld [vmem:[%s5 + $0x38] sm:$0xff]
    %v4839 = vmul.f32 %v4823, %v4831
    %v4840 = vmul.f32 %v4824, %v4832
    %v4841 = vmul.f32 %v4825, %v4833
    %v4842 = vmul.f32 %v4826, %v4834
    %v4843 = vmul.f32 %v4827, %v4835
    %v4844 = vmul.f32 %v4828, %v4836
    %v4845 = vmul.f32 %v4829, %v4837
    %v4846 = vmul.f32 %v4830, %v4838
    %v4847 = vld [vmem:[%s6] sm:$0xff]
    %v4848 = vld [vmem:[%s6 + $0x8] sm:$0xff]
    %v4849 = vld [vmem:[%s6 + $0x10] sm:$0xff]
    %v4850 = vld [vmem:[%s6 + $0x18] sm:$0xff]
    %v4851 = vld [vmem:[%s6 + $0x20] sm:$0xff]
    %v4852 = vld [vmem:[%s6 + $0x28] sm:$0xff]
    %v4853 = vld [vmem:[%s6 + $0x30] sm:$0xff]
    %v4854 = vld [vmem:[%s6 + $0x38] sm:$0xff]
    %v4855 = vmul.f32 %v4695, %v4839
    %v4856 = vmul.f32 %v4696, %v4840
    %v4857 = vmul.f32 %v4697, %v4841
    %v4858 = vmul.f32 %v4698, %v4842
    %v4859 = vmul.f32 %v4699, %v4843
    %v4860 = vmul.f32 %v4700, %v4844
    %v4861 = vmul.f32 %v4701, %v4845
    %v4862 = vmul.f32 %v4702, %v4846
    %v4863 = vsub.f32 %v4847, %v4855
    %v4864 = vsub.f32 %v4848, %v4856
    %v4865 = vsub.f32 %v4849, %v4857
    %v4866 = vsub.f32 %v4850, %v4858
    %v4867 = vsub.f32 %v4851, %v4859
    %v4868 = vsub.f32 %v4852, %v4860
    %v4869 = vsub.f32 %v4853, %v4861
    %v4870 = vsub.f32 %v4854, %v4862
    %4872 = vset.pattern.permute.xlu0 0
    %4873 = vperm.xlu0 %4872, %v4839
    %v4874 = vpop.permute.xlu0 %4873
    %4877 = vset.pattern.permute.xlu0 0
    %4878 = vperm.xlu0 %4877, %v4840
    %v4879 = vpop.permute.xlu0 %4878
    %4882 = vset.pattern.permute.xlu0 0
    %4883 = vperm.xlu0 %4882, %v4841
    %v4884 = vpop.permute.xlu0 %4883
    %4887 = vset.pattern.permute.xlu0 0
    %4888 = vperm.xlu0 %4887, %v4842
    %v4889 = vpop.permute.xlu0 %4888
    %4892 = vset.pattern.permute.xlu0 0
    %4893 = vperm.xlu0 %4892, %v4843
    %v4894 = vpop.permute.xlu0 %4893
    %4897 = vset.pattern.permute.xlu0 0
    %4898 = vperm.xlu0 %4897, %v4844
    %v4899 = vpop.permute.xlu0 %4898
    %4902 = vset.pattern.permute.xlu0 0
    %4903 = vperm.xlu0 %4902, %v4845
    %v4904 = vpop.permute.xlu0 %4903
    %4907 = vset.pattern.permute.xlu0 0
    %4908 = vperm.xlu0 %4907, %v4846
    %v4909 = vpop.permute.xlu0 %4908
    %v4911 = vmul.f32 %v3768, %v4874
    %v4912 = vmul.f32 %v3770, %v4874
    %v4913 = vmul.f32 %v4602, %v4874
    %v4914 = vmul.f32 %v4604, %v4874
    %v4915 = vmul.f32 %v3775, %v4879
    %v4916 = vmul.f32 %v3777, %v4879
    %v4917 = vmul.f32 %v4609, %v4879
    %v4918 = vmul.f32 %v4611, %v4879
    %v4919 = vmul.f32 %v3782, %v4884
    %v4920 = vmul.f32 %v3784, %v4884
    %v4921 = vmul.f32 %v4616, %v4884
    %v4922 = vmul.f32 %v4618, %v4884
    %v4923 = vmul.f32 %v3789, %v4889
    %v4924 = vmul.f32 %v3791, %v4889
    %v4925 = vmul.f32 %v4623, %v4889
    %v4926 = vmul.f32 %v4625, %v4889
    %v4927 = vmul.f32 %v3796, %v4894
    %v4928 = vmul.f32 %v3798, %v4894
    %v4929 = vmul.f32 %v4630, %v4894
    %v4930 = vmul.f32 %v4632, %v4894
    %v4931 = vmul.f32 %v3803, %v4899
    %v4932 = vmul.f32 %v3805, %v4899
    %v4933 = vmul.f32 %v4637, %v4899
    %v4934 = vmul.f32 %v4639, %v4899
    %v4935 = vmul.f32 %v3810, %v4904
    %v4936 = vmul.f32 %v3812, %v4904
    %v4937 = vmul.f32 %v4644, %v4904
    %v4938 = vmul.f32 %v4646, %v4904
    %v4939 = vmul.f32 %v3817, %v4909
    %v4940 = vmul.f32 %v3819, %v4909
    %v4941 = vmul.f32 %v4651, %v4909
    %v4942 = vmul.f32 %v4653, %v4909
    %4944 = vset.pattern.permute.xlu0 0
    %4945 = vperm.xlu0 %4944, %v4863
    %v4946 = vpop.permute.xlu0 %4945
    %4949 = vset.pattern.permute.xlu0 0
    %4950 = vperm.xlu0 %4949, %v4864
    %v4951 = vpop.permute.xlu0 %4950
    %4954 = vset.pattern.permute.xlu0 0
    %4955 = vperm.xlu0 %4954, %v4865
    %v4956 = vpop.permute.xlu0 %4955
    %4959 = vset.pattern.permute.xlu0 0
    %4960 = vperm.xlu0 %4959, %v4866
    %v4961 = vpop.permute.xlu0 %4960
    %4964 = vset.pattern.permute.xlu0 0
    %4965 = vperm.xlu0 %4964, %v4867
    %v4966 = vpop.permute.xlu0 %4965
    %4969 = vset.pattern.permute.xlu0 0
    %4970 = vperm.xlu0 %4969, %v4868
    %v4971 = vpop.permute.xlu0 %4970
    %4974 = vset.pattern.permute.xlu0 0
    %4975 = vperm.xlu0 %4974, %v4869
    %v4976 = vpop.permute.xlu0 %4975
    %4979 = vset.pattern.permute.xlu0 0
    %4980 = vperm.xlu0 %4979, %v4870
    %v4981 = vpop.permute.xlu0 %4980
    %v4983 = vadd.f32 %v4911, %v4946
    %v4984 = vadd.f32 %v4912, %v4946
    %v4985 = vadd.f32 %v4913, %v4946
    %v4986 = vadd.f32 %v4914, %v4946
    %v4987 = vadd.f32 %v4915, %v4951
    %v4988 = vadd.f32 %v4916, %v4951
    %v4989 = vadd.f32 %v4917, %v4951
    %v4990 = vadd.f32 %v4918, %v4951
    %v4991 = vadd.f32 %v4919, %v4956
    %v4992 = vadd.f32 %v4920, %v4956
    %v4993 = vadd.f32 %v4921, %v4956
    %v4994 = vadd.f32 %v4922, %v4956
    %v4995 = vadd.f32 %v4923, %v4961
    %v4996 = vadd.f32 %v4924, %v4961
    %v4997 = vadd.f32 %v4925, %v4961
    %v4998 = vadd.f32 %v4926, %v4961
    %v4999 = vadd.f32 %v4927, %v4966
    %v5000 = vadd.f32 %v4928, %v4966
    %v5001 = vadd.f32 %v4929, %v4966
    %v5002 = vadd.f32 %v4930, %v4966
    %v5003 = vadd.f32 %v4931, %v4971
    %v5004 = vadd.f32 %v4932, %v4971
    %v5005 = vadd.f32 %v4933, %v4971
    %v5006 = vadd.f32 %v4934, %v4971
    %v5007 = vadd.f32 %v4935, %v4976
    %v5008 = vadd.f32 %v4936, %v4976
    %v5009 = vadd.f32 %v4937, %v4976
    %v5010 = vadd.f32 %v4938, %v4976
    %v5011 = vadd.f32 %v4939, %v4981
    %v5012 = vadd.f32 %v4940, %v4981
    %v5013 = vadd.f32 %v4941, %v4981
    %v5014 = vadd.f32 %v4942, %v4981
    %v5015 = vmul.f32 %v4983, %v4983
    %v5016 = vmul.f32 %v4984, %v4984
    %v5017 = vmul.f32 %v4985, %v4985
    %v5018 = vmul.f32 %v4986, %v4986
    %v5019 = vmul.f32 %v4987, %v4987
    %v5020 = vmul.f32 %v4988, %v4988
    %v5021 = vmul.f32 %v4989, %v4989
    %v5022 = vmul.f32 %v4990, %v4990
    %v5023 = vmul.f32 %v4991, %v4991
    %v5024 = vmul.f32 %v4992, %v4992
    %v5025 = vmul.f32 %v4993, %v4993
    %v5026 = vmul.f32 %v4994, %v4994
    %v5027 = vmul.f32 %v4995, %v4995
    %v5028 = vmul.f32 %v4996, %v4996
    %v5029 = vmul.f32 %v4997, %v4997
    %v5030 = vmul.f32 %v4998, %v4998
    %v5031 = vmul.f32 %v4999, %v4999
    %v5032 = vmul.f32 %v5000, %v5000
    %v5033 = vmul.f32 %v5001, %v5001
    %v5034 = vmul.f32 %v5002, %v5002
    %v5035 = vmul.f32 %v5003, %v5003
    %v5036 = vmul.f32 %v5004, %v5004
    %v5037 = vmul.f32 %v5005, %v5005
    %v5038 = vmul.f32 %v5006, %v5006
    %v5039 = vmul.f32 %v5007, %v5007
    %v5040 = vmul.f32 %v5008, %v5008
    %v5041 = vmul.f32 %v5009, %v5009
    %v5042 = vmul.f32 %v5010, %v5010
    %v5043 = vmul.f32 %v5011, %v5011
    %v5044 = vmul.f32 %v5012, %v5012
    %v5045 = vmul.f32 %v5013, %v5013
    %v5046 = vmul.f32 %v5014, %v5014
    %v5047 = vmul.f32 %v4983, %v5015
    %v5048 = vmul.f32 %v4984, %v5016
    %v5049 = vmul.f32 %v4985, %v5017
    %v5050 = vmul.f32 %v4986, %v5018
    %v5051 = vmul.f32 %v4987, %v5019
    %v5052 = vmul.f32 %v4988, %v5020
    %v5053 = vmul.f32 %v4989, %v5021
    %v5054 = vmul.f32 %v4990, %v5022
    %v5055 = vmul.f32 %v4991, %v5023
    %v5056 = vmul.f32 %v4992, %v5024
    %v5057 = vmul.f32 %v4993, %v5025
    %v5058 = vmul.f32 %v4994, %v5026
    %v5059 = vmul.f32 %v4995, %v5027
    %v5060 = vmul.f32 %v4996, %v5028
    %v5061 = vmul.f32 %v4997, %v5029
    %v5062 = vmul.f32 %v4998, %v5030
    %v5063 = vmul.f32 %v4999, %v5031
    %v5064 = vmul.f32 %v5000, %v5032
    %v5065 = vmul.f32 %v5001, %v5033
    %v5066 = vmul.f32 %v5002, %v5034
    %v5067 = vmul.f32 %v5003, %v5035
    %v5068 = vmul.f32 %v5004, %v5036
    %v5069 = vmul.f32 %v5005, %v5037
    %v5070 = vmul.f32 %v5006, %v5038
    %v5071 = vmul.f32 %v5007, %v5039
    %v5072 = vmul.f32 %v5008, %v5040
    %v5073 = vmul.f32 %v5009, %v5041
    %v5074 = vmul.f32 %v5010, %v5042
    %v5075 = vmul.f32 %v5011, %v5043
    %v5076 = vmul.f32 %v5012, %v5044
    %v5077 = vmul.f32 %v5013, %v5045
    %v5078 = vmul.f32 %v5014, %v5046
    %v5079 = vmul.f32 %v5047, 0.044715
    %v5080 = vmul.f32 %v5048, 0.044715
    %v5081 = vmul.f32 %v5049, 0.044715
    %v5082 = vmul.f32 %v5050, 0.044715
    %v5083 = vmul.f32 %v5051, 0.044715
    %v5084 = vmul.f32 %v5052, 0.044715
    %v5085 = vmul.f32 %v5053, 0.044715
    %v5086 = vmul.f32 %v5054, 0.044715
    %v5087 = vmul.f32 %v5055, 0.044715
    %v5088 = vmul.f32 %v5056, 0.044715
    %v5089 = vmul.f32 %v5057, 0.044715
    %v5090 = vmul.f32 %v5058, 0.044715
    %v5091 = vmul.f32 %v5059, 0.044715
    %v5092 = vmul.f32 %v5060, 0.044715
    %v5093 = vmul.f32 %v5061, 0.044715
    %v5094 = vmul.f32 %v5062, 0.044715
    %v5095 = vmul.f32 %v5063, 0.044715
    %v5096 = vmul.f32 %v5064, 0.044715
    %v5097 = vmul.f32 %v5065, 0.044715
    %v5098 = vmul.f32 %v5066, 0.044715
    %v5099 = vmul.f32 %v5067, 0.044715
    %v5100 = vmul.f32 %v5068, 0.044715
    %v5101 = vmul.f32 %v5069, 0.044715
    %v5102 = vmul.f32 %v5070, 0.044715
    %v5103 = vmul.f32 %v5071, 0.044715
    %v5104 = vmul.f32 %v5072, 0.044715
    %v5105 = vmul.f32 %v5073, 0.044715
    %v5106 = vmul.f32 %v5074, 0.044715
    %v5107 = vmul.f32 %v5075, 0.044715
    %v5108 = vmul.f32 %v5076, 0.044715
    %v5109 = vmul.f32 %v5077, 0.044715
    %v5110 = vmul.f32 %v5078, 0.044715
    %v5111 = vadd.f32 %v4983, %v5079
    %v5112 = vadd.f32 %v4984, %v5080
    %v5113 = vadd.f32 %v4985, %v5081
    %v5114 = vadd.f32 %v4986, %v5082
    %v5115 = vadd.f32 %v4987, %v5083
    %v5116 = vadd.f32 %v4988, %v5084
    %v5117 = vadd.f32 %v4989, %v5085
    %v5118 = vadd.f32 %v4990, %v5086
    %v5119 = vadd.f32 %v4991, %v5087
    %v5120 = vadd.f32 %v4992, %v5088
    %v5121 = vadd.f32 %v4993, %v5089
    %v5122 = vadd.f32 %v4994, %v5090
    %v5123 = vadd.f32 %v4995, %v5091
    %v5124 = vadd.f32 %v4996, %v5092
    %v5125 = vadd.f32 %v4997, %v5093
    %v5126 = vadd.f32 %v4998, %v5094
    %v5127 = vadd.f32 %v4999, %v5095
    %v5128 = vadd.f32 %v5000, %v5096
    %v5129 = vadd.f32 %v5001, %v5097
    %v5130 = vadd.f32 %v5002, %v5098
    %v5131 = vadd.f32 %v5003, %v5099
    %v5132 = vadd.f32 %v5004, %v5100
    %v5133 = vadd.f32 %v5005, %v5101
    %v5134 = vadd.f32 %v5006, %v5102
    %v5135 = vadd.f32 %v5007, %v5103
    %v5136 = vadd.f32 %v5008, %v5104
    %v5137 = vadd.f32 %v5009, %v5105
    %v5138 = vadd.f32 %v5010, %v5106
    %v5139 = vadd.f32 %v5011, %v5107
    %v5140 = vadd.f32 %v5012, %v5108
    %v5141 = vadd.f32 %v5013, %v5109
    %v5142 = vadd.f32 %v5014, %v5110
    %v5143 = vmul.f32 %v5111, 0.7978846
    %v5144 = vmul.f32 %v5112, 0.7978846
    %v5145 = vmul.f32 %v5113, 0.7978846
    %v5146 = vmul.f32 %v5114, 0.7978846
    %v5147 = vmul.f32 %v5115, 0.7978846
    %v5148 = vmul.f32 %v5116, 0.7978846
    %v5149 = vmul.f32 %v5117, 0.7978846
    %v5150 = vmul.f32 %v5118, 0.7978846
    %v5151 = vmul.f32 %v5119, 0.7978846
    %v5152 = vmul.f32 %v5120, 0.7978846
    %v5153 = vmul.f32 %v5121, 0.7978846
    %v5154 = vmul.f32 %v5122, 0.7978846
    %v5155 = vmul.f32 %v5123, 0.7978846
    %v5156 = vmul.f32 %v5124, 0.7978846
    %v5157 = vmul.f32 %v5125, 0.7978846
    %v5158 = vmul.f32 %v5126, 0.7978846
    %v5159 = vmul.f32 %v5127, 0.7978846
    %v5160 = vmul.f32 %v5128, 0.7978846
    %v5161 = vmul.f32 %v5129, 0.7978846
    %v5162 = vmul.f32 %v5130, 0.7978846
    %v5163 = vmul.f32 %v5131, 0.7978846
    %v5164 = vmul.f32 %v5132, 0.7978846
    %v5165 = vmul.f32 %v5133, 0.7978846
    %v5166 = vmul.f32 %v5134, 0.7978846
    %v5167 = vmul.f32 %v5135, 0.7978846
    %v5168 = vmul.f32 %v5136, 0.7978846
    %v5169 = vmul.f32 %v5137, 0.7978846
    %v5170 = vmul.f32 %v5138, 0.7978846
    %v5171 = vmul.f32 %v5139, 0.7978846
    %v5172 = vmul.f32 %v5140, 0.7978846
    %v5173 = vmul.f32 %v5141, 0.7978846
    %v5174 = vmul.f32 %v5142, 0.7978846
    %v5175 = vtanh.pop %v5143
    %v5176 = vtanh.pop %v5144
    %v5177 = vtanh.pop %v5145
    %v5178 = vtanh.pop %v5146
    %v5179 = vtanh.pop %v5147
    %v5180 = vtanh.pop %v5148
    %v5181 = vtanh.pop %v5149
    %v5182 = vtanh.pop %v5150
    %v5183 = vtanh.pop %v5151
    %v5184 = vtanh.pop %v5152
    %v5185 = vtanh.pop %v5153
    %v5186 = vtanh.pop %v5154
    %v5187 = vtanh.pop %v5155
    %v5188 = vtanh.pop %v5156
    %v5189 = vtanh.pop %v5157
    %v5190 = vtanh.pop %v5158
    %v5191 = vtanh.pop %v5159
    %v5192 = vtanh.pop %v5160
    %v5193 = vtanh.pop %v5161
    %v5194 = vtanh.pop %v5162
    %v5195 = vtanh.pop %v5163
    %v5196 = vtanh.pop %v5164
    %v5197 = vtanh.pop %v5165
    %v5198 = vtanh.pop %v5166
    %v5199 = vtanh.pop %v5167
    %v5200 = vtanh.pop %v5168
    %v5201 = vtanh.pop %v5169
    %v5202 = vtanh.pop %v5170
    %v5203 = vtanh.pop %v5171
    %v5204 = vtanh.pop %v5172
    %v5205 = vtanh.pop %v5173
    %v5206 = vtanh.pop %v5174
    %v5207 = vadd.f32 %v5175, 1.0
    %v5208 = vadd.f32 %v5176, 1.0
    %v5209 = vadd.f32 %v5177, 1.0
    %v5210 = vadd.f32 %v5178, 1.0
    %v5211 = vadd.f32 %v5179, 1.0
    %v5212 = vadd.f32 %v5180, 1.0
    %v5213 = vadd.f32 %v5181, 1.0
    %v5214 = vadd.f32 %v5182, 1.0
    %v5215 = vadd.f32 %v5183, 1.0
    %v5216 = vadd.f32 %v5184, 1.0
    %v5217 = vadd.f32 %v5185, 1.0
    %v5218 = vadd.f32 %v5186, 1.0
    %v5219 = vadd.f32 %v5187, 1.0
    %v5220 = vadd.f32 %v5188, 1.0
    %v5221 = vadd.f32 %v5189, 1.0
    %v5222 = vadd.f32 %v5190, 1.0
    %v5223 = vadd.f32 %v5191, 1.0
    %v5224 = vadd.f32 %v5192, 1.0
    %v5225 = vadd.f32 %v5193, 1.0
    %v5226 = vadd.f32 %v5194, 1.0
    %v5227 = vadd.f32 %v5195, 1.0
    %v5228 = vadd.f32 %v5196, 1.0
    %v5229 = vadd.f32 %v5197, 1.0
    %v5230 = vadd.f32 %v5198, 1.0
    %v5231 = vadd.f32 %v5199, 1.0
    %v5232 = vadd.f32 %v5200, 1.0
    %v5233 = vadd.f32 %v5201, 1.0
    %v5234 = vadd.f32 %v5202, 1.0
    %v5235 = vadd.f32 %v5203, 1.0
    %v5236 = vadd.f32 %v5204, 1.0
    %v5237 = vadd.f32 %v5205, 1.0
    %v5238 = vadd.f32 %v5206, 1.0
    %v5239 = vmul.f32 %v5207, 0.5
    %v5240 = vmul.f32 %v5208, 0.5
    %v5241 = vmul.f32 %v5209, 0.5
    %v5242 = vmul.f32 %v5210, 0.5
    %v5243 = vmul.f32 %v5211, 0.5
    %v5244 = vmul.f32 %v5212, 0.5
    %v5245 = vmul.f32 %v5213, 0.5
    %v5246 = vmul.f32 %v5214, 0.5
    %v5247 = vmul.f32 %v5215, 0.5
    %v5248 = vmul.f32 %v5216, 0.5
    %v5249 = vmul.f32 %v5217, 0.5
    %v5250 = vmul.f32 %v5218, 0.5
    %v5251 = vmul.f32 %v5219, 0.5
    %v5252 = vmul.f32 %v5220, 0.5
    %v5253 = vmul.f32 %v5221, 0.5
    %v5254 = vmul.f32 %v5222, 0.5
    %v5255 = vmul.f32 %v5223, 0.5
    %v5256 = vmul.f32 %v5224, 0.5
    %v5257 = vmul.f32 %v5225, 0.5
    %v5258 = vmul.f32 %v5226, 0.5
    %v5259 = vmul.f32 %v5227, 0.5
    %v5260 = vmul.f32 %v5228, 0.5
    %v5261 = vmul.f32 %v5229, 0.5
    %v5262 = vmul.f32 %v5230, 0.5
    %v5263 = vmul.f32 %v5231, 0.5
    %v5264 = vmul.f32 %v5232, 0.5
    %v5265 = vmul.f32 %v5233, 0.5
    %v5266 = vmul.f32 %v5234, 0.5
    %v5267 = vmul.f32 %v5235, 0.5
    %v5268 = vmul.f32 %v5236, 0.5
    %v5269 = vmul.f32 %v5237, 0.5
    %v5270 = vmul.f32 %v5238, 0.5
    %v5271 = vmul.f32 %v4983, %v5239
    %v5272 = vmul.f32 %v4984, %v5240
    %v5273 = vmul.f32 %v4985, %v5241
    %v5274 = vmul.f32 %v4986, %v5242
    %v5275 = vmul.f32 %v4987, %v5243
    %v5276 = vmul.f32 %v4988, %v5244
    %v5277 = vmul.f32 %v4989, %v5245
    %v5278 = vmul.f32 %v4990, %v5246
    %v5279 = vmul.f32 %v4991, %v5247
    %v5280 = vmul.f32 %v4992, %v5248
    %v5281 = vmul.f32 %v4993, %v5249
    %v5282 = vmul.f32 %v4994, %v5250
    %v5283 = vmul.f32 %v4995, %v5251
    %v5284 = vmul.f32 %v4996, %v5252
    %v5285 = vmul.f32 %v4997, %v5253
    %v5286 = vmul.f32 %v4998, %v5254
    %v5287 = vmul.f32 %v4999, %v5255
    %v5288 = vmul.f32 %v5000, %v5256
    %v5289 = vmul.f32 %v5001, %v5257
    %v5290 = vmul.f32 %v5002, %v5258
    %v5291 = vmul.f32 %v5003, %v5259
    %v5292 = vmul.f32 %v5004, %v5260
    %v5293 = vmul.f32 %v5005, %v5261
    %v5294 = vmul.f32 %v5006, %v5262
    %v5295 = vmul.f32 %v5007, %v5263
    %v5296 = vmul.f32 %v5008, %v5264
    %v5297 = vmul.f32 %v5009, %v5265
    %v5298 = vmul.f32 %v5010, %v5266
    %v5299 = vmul.f32 %v5011, %v5267
    %v5300 = vmul.f32 %v5012, %v5268
    %v5301 = vmul.f32 %v5013, %v5269
    %v5302 = vmul.f32 %v5014, %v5270
    %v5303 = vld [vmem:[%s7] sm:$0xff]
    %v5304 = vld [vmem:[%s7 + $0x8] sm:$0xff]
    %vm5305 = vcmask 523264
    %v5307 = vsel %vm5305, %v5303, 0
    %v5310 = vsel %vm5305, %v5304, 0
    %5312 = vmatprep.subr.mxu0 0.0
    %5313 = vmatpush1.msra.mxu0 0.0
    %5314 = vmatprep.subr.mxu0 0.0
    %5315 = vmatpush1.msra.mxu0 0.0
    %5316 = vmatprep.subr.mxu0 0.0
    %5317 = vmatpush1.msra.mxu0 0.0
    %5318 = vmatprep.subr.mxu0 0.0
    %5319 = vmatpush1.msra.mxu0 0.0
    %5320 = vmatprep.subr.mxu0 0.0
    %5321 = vmatpush1.msra.mxu0 0.0
    %5322 = vmatprep.subr.mxu0 0.0
    %5323 = vmatpush1.msra.mxu0 0.0
    %5324 = vmatprep.subr.mxu0 0.0
    %5325 = vmatpush1.msra.mxu0 0.0
    %5326 = vmatprep.subr.mxu0 0.0
    %5327 = vmatpush1.msra.mxu0 0.0
    %v5328 = vand.u32 %v5300, 4294901760
    %5329 = vmatprep.subr.mxu0 %v5328
    %v5330 = vand.u32 %v5299, 4294901760
    %5331 = vmatpush1.msra.mxu0 %v5330
    %v5332 = vand.u32 %v5296, 4294901760
    %5333 = vmatprep.subr.mxu0 %v5332
    %v5334 = vand.u32 %v5295, 4294901760
    %5335 = vmatpush1.msra.mxu0 %v5334
    %v5336 = vand.u32 %v5292, 4294901760
    %5337 = vmatprep.subr.mxu0 %v5336
    %v5338 = vand.u32 %v5291, 4294901760
    %5339 = vmatpush1.msra.mxu0 %v5338
    %v5340 = vand.u32 %v5288, 4294901760
    %5341 = vmatprep.subr.mxu0 %v5340
    %v5342 = vand.u32 %v5287, 4294901760
    %5343 = vmatpush1.msra.mxu0 %v5342
    %v5344 = vand.u32 %v5284, 4294901760
    %5345 = vmatprep.subr.mxu0 %v5344
    %v5346 = vand.u32 %v5283, 4294901760
    %5347 = vmatpush1.msra.mxu0 %v5346
    %v5348 = vand.u32 %v5280, 4294901760
    %5349 = vmatprep.subr.mxu0 %v5348
    %v5350 = vand.u32 %v5279, 4294901760
    %5351 = vmatpush1.msra.mxu0 %v5350
    %v5352 = vand.u32 %v5276, 4294901760
    %5353 = vmatprep.subr.mxu0 %v5352
    %v5354 = vand.u32 %v5275, 4294901760
    %5355 = vmatpush1.msra.mxu0 %v5354
    %v5356 = vand.u32 %v5272, 4294901760
    %5357 = vmatprep.subr.mxu0 %v5356
    %v5358 = vand.u32 %v5271, 4294901760
    %5359 = vmatpush1.msra.mxu0 %v5358
    %5360 = vmatprep.subr.mxu0 0.0
    %5361 = vmatpush2.msra.mxu0 0.0
    %5362 = vmatprep.subr.mxu0 0.0
    %5363 = vmatpush2.msra.mxu0 0.0
    %5364 = vmatprep.subr.mxu0 0.0
    %5365 = vmatpush2.msra.mxu0 0.0
    %5366 = vmatprep.subr.mxu0 0.0
    %5367 = vmatpush2.msra.mxu0 0.0
    %5368 = vmatprep.subr.mxu0 0.0
    %5369 = vmatpush2.msra.mxu0 0.0
    %5370 = vmatprep.subr.mxu0 0.0
    %5371 = vmatpush2.msra.mxu0 0.0
    %5372 = vmatprep.subr.mxu0 0.0
    %5373 = vmatpush2.msra.mxu0 0.0
    %5374 = vmatprep.subr.mxu0 0.0
    %5375 = vmatpush2.msra.mxu0 0.0
    %5376 = vmatprep.subr.mxu0 0.0
    %5377 = vmatpush2.msra.mxu0 0.0
    %5378 = vmatprep.subr.mxu0 0.0
    %5379 = vmatpush2.msra.mxu0 0.0
    %5380 = vmatprep.subr.mxu0 0.0
    %5381 = vmatpush2.msra.mxu0 0.0
    %5382 = vmatprep.subr.mxu0 0.0
    %5383 = vmatpush2.msra.mxu0 0.0
    %5384 = vmatprep.subr.mxu0 0.0
    %5385 = vmatpush2.msra.mxu0 0.0
    %5386 = vmatprep.subr.mxu0 0.0
    %5387 = vmatpush2.msra.mxu0 0.0
    %5388 = vmatprep.subr.mxu0 0.0
    %5389 = vmatpush2.msra.mxu0 0.0
    %5390 = vmatprep.subr.mxu0 0.0
    %5391 = vmatpush2.msra.mxu0 0.0
    %5392 = vmatprep.mubr.f32.mxu0 0.0
    %v5393 = vand.u32 %v5307, 4294901760
    %v5394 = vsub.f32 %v5307, %v5393
    %v5395 = vand.u32 %v5394, 4294901760
    %v5396 = vsub.f32 %v5394, %v5395
    %v5397 = vand.u32 %v5396, 4294901760
    %5398 = vmatmul.mubr.f32.gmra.mxu0 %v5397
    %v5399 = vpop.f32.mrf.mxu0
    %v5400 = vadd.f32 0.0, %v5399
    %v5401 = vpop.f32.mrf.mxu0
    %v5402 = vadd.f32 0.0, %v5401
    %5403 = vmatprep.mubr.f32.mxu0 0.0
    %v5404 = vand.u32 %v5310, 4294901760
    %v5405 = vsub.f32 %v5310, %v5404
    %v5406 = vand.u32 %v5405, 4294901760
    %v5407 = vsub.f32 %v5405, %v5406
    %v5408 = vand.u32 %v5407, 4294901760
    %5409 = vmatmul.mubr.f32.gmra.mxu0 %v5408
    %v5410 = vpop.f32.mrf.mxu0
    %v5411 = vadd.f32 0.0, %v5410
    %v5412 = vpop.f32.mrf.mxu0
    %v5413 = vadd.f32 0.0, %v5412
    %5414 = vdwg.mxu0
    %5415 = vmatprep.subr.mxu0 0.0
    %5416 = vmatpush1.msra.mxu0 0.0
    %5417 = vmatprep.subr.mxu0 0.0
    %5418 = vmatpush1.msra.mxu0 0.0
    %5419 = vmatprep.subr.mxu0 0.0
    %5420 = vmatpush1.msra.mxu0 0.0
    %5421 = vmatprep.subr.mxu0 0.0
    %5422 = vmatpush1.msra.mxu0 0.0
    %5423 = vmatprep.subr.mxu0 0.0
    %5424 = vmatpush1.msra.mxu0 0.0
    %5425 = vmatprep.subr.mxu0 0.0
    %5426 = vmatpush1.msra.mxu0 0.0
    %5427 = vmatprep.subr.mxu0 0.0
    %5428 = vmatpush1.msra.mxu0 0.0
    %5429 = vmatprep.subr.mxu0 0.0
    %5430 = vmatpush1.msra.mxu0 0.0
    %v5431 = vand.u32 %v5300, 4294901760
    %v5432 = vsub.f32 %v5300, %v5431
    %v5433 = vand.u32 %v5432, 4294901760
    %v5434 = vsub.f32 %v5432, %v5433
    %v5435 = vand.u32 %v5434, 4294901760
    %5436 = vmatprep.subr.mxu0 %v5435
    %v5437 = vand.u32 %v5299, 4294901760
    %v5438 = vsub.f32 %v5299, %v5437
    %v5439 = vand.u32 %v5438, 4294901760
    %v5440 = vsub.f32 %v5438, %v5439
    %v5441 = vand.u32 %v5440, 4294901760
    %5442 = vmatpush1.msra.mxu0 %v5441
    %v5443 = vand.u32 %v5296, 4294901760
    %v5444 = vsub.f32 %v5296, %v5443
    %v5445 = vand.u32 %v5444, 4294901760
    %v5446 = vsub.f32 %v5444, %v5445
    %v5447 = vand.u32 %v5446, 4294901760
    %5448 = vmatprep.subr.mxu0 %v5447
    %v5449 = vand.u32 %v5295, 4294901760
    %v5450 = vsub.f32 %v5295, %v5449
    %v5451 = vand.u32 %v5450, 4294901760
    %v5452 = vsub.f32 %v5450, %v5451
    %v5453 = vand.u32 %v5452, 4294901760
    %5454 = vmatpush1.msra.mxu0 %v5453
    %v5455 = vand.u32 %v5292, 4294901760
    %v5456 = vsub.f32 %v5292, %v5455
    %v5457 = vand.u32 %v5456, 4294901760
    %v5458 = vsub.f32 %v5456, %v5457
    %v5459 = vand.u32 %v5458, 4294901760
    %5460 = vmatprep.subr.mxu0 %v5459
    %v5461 = vand.u32 %v5291, 4294901760
    %v5462 = vsub.f32 %v5291, %v5461
    %v5463 = vand.u32 %v5462, 4294901760
    %v5464 = vsub.f32 %v5462, %v5463
    %v5465 = vand.u32 %v5464, 4294901760
    %5466 = vmatpush1.msra.mxu0 %v5465
    %v5467 = vand.u32 %v5288, 4294901760
    %v5468 = vsub.f32 %v5288, %v5467
    %v5469 = vand.u32 %v5468, 4294901760
    %v5470 = vsub.f32 %v5468, %v5469
    %v5471 = vand.u32 %v5470, 4294901760
    %5472 = vmatprep.subr.mxu0 %v5471
    %v5473 = vand.u32 %v5287, 4294901760
    %v5474 = vsub.f32 %v5287, %v5473
    %v5475 = vand.u32 %v5474, 4294901760
    %v5476 = vsub.f32 %v5474, %v5475
    %v5477 = vand.u32 %v5476, 4294901760
    %5478 = vmatpush1.msra.mxu0 %v5477
    %v5479 = vand.u32 %v5284, 4294901760
    %v5480 = vsub.f32 %v5284, %v5479
    %v5481 = vand.u32 %v5480, 4294901760
    %v5482 = vsub.f32 %v5480, %v5481
    %v5483 = vand.u32 %v5482, 4294901760
    %5484 = vmatprep.subr.mxu0 %v5483
    %v5485 = vand.u32 %v5283, 4294901760
    %v5486 = vsub.f32 %v5283, %v5485
    %v5487 = vand.u32 %v5486, 4294901760
    %v5488 = vsub.f32 %v5486, %v5487
    %v5489 = vand.u32 %v5488, 4294901760
    %5490 = vmatpush1.msra.mxu0 %v5489
    %v5491 = vand.u32 %v5280, 4294901760
    %v5492 = vsub.f32 %v5280, %v5491
    %v5493 = vand.u32 %v5492, 4294901760
    %v5494 = vsub.f32 %v5492, %v5493
    %v5495 = vand.u32 %v5494, 4294901760
    %5496 = vmatprep.subr.mxu0 %v5495
    %v5497 = vand.u32 %v5279, 4294901760
    %v5498 = vsub.f32 %v5279, %v5497
    %v5499 = vand.u32 %v5498, 4294901760
    %v5500 = vsub.f32 %v5498, %v5499
    %v5501 = vand.u32 %v5500, 4294901760
    %5502 = vmatpush1.msra.mxu0 %v5501
    %v5503 = vand.u32 %v5276, 4294901760
    %v5504 = vsub.f32 %v5276, %v5503
    %v5505 = vand.u32 %v5504, 4294901760
    %v5506 = vsub.f32 %v5504, %v5505
    %v5507 = vand.u32 %v5506, 4294901760
    %5508 = vmatprep.subr.mxu0 %v5507
    %v5509 = vand.u32 %v5275, 4294901760
    %v5510 = vsub.f32 %v5275, %v5509
    %v5511 = vand.u32 %v5510, 4294901760
    %v5512 = vsub.f32 %v5510, %v5511
    %v5513 = vand.u32 %v5512, 4294901760
    %5514 = vmatpush1.msra.mxu0 %v5513
    %v5515 = vand.u32 %v5272, 4294901760
    %v5516 = vsub.f32 %v5272, %v5515
    %v5517 = vand.u32 %v5516, 4294901760
    %v5518 = vsub.f32 %v5516, %v5517
    %v5519 = vand.u32 %v5518, 4294901760
    %5520 = vmatprep.subr.mxu0 %v5519
    %v5521 = vand.u32 %v5271, 4294901760
    %v5522 = vsub.f32 %v5271, %v5521
    %v5523 = vand.u32 %v5522, 4294901760
    %v5524 = vsub.f32 %v5522, %v5523
    %v5525 = vand.u32 %v5524, 4294901760
    %5526 = vmatpush1.msra.mxu0 %v5525
    %5527 = vmatprep.subr.mxu0 0.0
    %5528 = vmatpush2.msra.mxu0 0.0
    %5529 = vmatprep.subr.mxu0 0.0
    %5530 = vmatpush2.msra.mxu0 0.0
    %5531 = vmatprep.subr.mxu0 0.0
    %5532 = vmatpush2.msra.mxu0 0.0
    %5533 = vmatprep.subr.mxu0 0.0
    %5534 = vmatpush2.msra.mxu0 0.0
    %5535 = vmatprep.subr.mxu0 0.0
    %5536 = vmatpush2.msra.mxu0 0.0
    %5537 = vmatprep.subr.mxu0 0.0
    %5538 = vmatpush2.msra.mxu0 0.0
    %5539 = vmatprep.subr.mxu0 0.0
    %5540 = vmatpush2.msra.mxu0 0.0
    %5541 = vmatprep.subr.mxu0 0.0
    %5542 = vmatpush2.msra.mxu0 0.0
    %5543 = vmatprep.subr.mxu0 0.0
    %5544 = vmatpush2.msra.mxu0 0.0
    %5545 = vmatprep.subr.mxu0 0.0
    %5546 = vmatpush2.msra.mxu0 0.0
    %5547 = vmatprep.subr.mxu0 0.0
    %5548 = vmatpush2.msra.mxu0 0.0
    %5549 = vmatprep.subr.mxu0 0.0
    %5550 = vmatpush2.msra.mxu0 0.0
    %5551 = vmatprep.subr.mxu0 0.0
    %5552 = vmatpush2.msra.mxu0 0.0
    %5553 = vmatprep.subr.mxu0 0.0
    %5554 = vmatpush2.msra.mxu0 0.0
    %5555 = vmatprep.subr.mxu0 0.0
    %5556 = vmatpush2.msra.mxu0 0.0
    %5557 = vmatprep.subr.mxu0 0.0
    %5558 = vmatpush2.msra.mxu0 0.0
    %5559 = vmatprep.mubr.f32.mxu0 0.0
    %v5560 = vand.u32 %v5307, 4294901760
    %5561 = vmatmul.mubr.f32.gmra.mxu0 %v5560
    %v5562 = vpop.f32.mrf.mxu0
    %v5563 = vadd.f32 %v5400, %v5562
    %v5564 = vpop.f32.mrf.mxu0
    %v5565 = vadd.f32 %v5402, %v5564
    %5566 = vmatprep.mubr.f32.mxu0 0.0
    %v5567 = vand.u32 %v5310, 4294901760
    %5568 = vmatmul.mubr.f32.gmra.mxu0 %v5567
    %v5569 = vpop.f32.mrf.mxu0
    %v5570 = vadd.f32 %v5411, %v5569
    %v5571 = vpop.f32.mrf.mxu0
    %v5572 = vadd.f32 %v5413, %v5571
    %5573 = vdwg.mxu0
    %5574 = vmatprep.subr.mxu0 0.0
    %5575 = vmatpush1.msra.mxu0 0.0
    %5576 = vmatprep.subr.mxu0 0.0
    %5577 = vmatpush1.msra.mxu0 0.0
    %5578 = vmatprep.subr.mxu0 0.0
    %5579 = vmatpush1.msra.mxu0 0.0
    %5580 = vmatprep.subr.mxu0 0.0
    %5581 = vmatpush1.msra.mxu0 0.0
    %5582 = vmatprep.subr.mxu0 0.0
    %5583 = vmatpush1.msra.mxu0 0.0
    %5584 = vmatprep.subr.mxu0 0.0
    %5585 = vmatpush1.msra.mxu0 0.0
    %5586 = vmatprep.subr.mxu0 0.0
    %5587 = vmatpush1.msra.mxu0 0.0
    %5588 = vmatprep.subr.mxu0 0.0
    %5589 = vmatpush1.msra.mxu0 0.0
    %v5590 = vand.u32 %v5300, 4294901760
    %v5591 = vsub.f32 %v5300, %v5590
    %5592 = vmatprep.subr.mxu0 %v5591
    %v5593 = vand.u32 %v5299, 4294901760
    %v5594 = vsub.f32 %v5299, %v5593
    %5595 = vmatpush1.msra.mxu0 %v5594
    %v5596 = vand.u32 %v5296, 4294901760
    %v5597 = vsub.f32 %v5296, %v5596
    %5598 = vmatprep.subr.mxu0 %v5597
    %v5599 = vand.u32 %v5295, 4294901760
    %v5600 = vsub.f32 %v5295, %v5599
    %5601 = vmatpush1.msra.mxu0 %v5600
    %v5602 = vand.u32 %v5292, 4294901760
    %v5603 = vsub.f32 %v5292, %v5602
    %5604 = vmatprep.subr.mxu0 %v5603
    %v5605 = vand.u32 %v5291, 4294901760
    %v5606 = vsub.f32 %v5291, %v5605
    %5607 = vmatpush1.msra.mxu0 %v5606
    %v5608 = vand.u32 %v5288, 4294901760
    %v5609 = vsub.f32 %v5288, %v5608
    %5610 = vmatprep.subr.mxu0 %v5609
    %v5611 = vand.u32 %v5287, 4294901760
    %v5612 = vsub.f32 %v5287, %v5611
    %5613 = vmatpush1.msra.mxu0 %v5612
    %v5614 = vand.u32 %v5284, 4294901760
    %v5615 = vsub.f32 %v5284, %v5614
    %5616 = vmatprep.subr.mxu0 %v5615
    %v5617 = vand.u32 %v5283, 4294901760
    %v5618 = vsub.f32 %v5283, %v5617
    %5619 = vmatpush1.msra.mxu0 %v5618
    %v5620 = vand.u32 %v5280, 4294901760
    %v5621 = vsub.f32 %v5280, %v5620
    %5622 = vmatprep.subr.mxu0 %v5621
    %v5623 = vand.u32 %v5279, 4294901760
    %v5624 = vsub.f32 %v5279, %v5623
    %5625 = vmatpush1.msra.mxu0 %v5624
    %v5626 = vand.u32 %v5276, 4294901760
    %v5627 = vsub.f32 %v5276, %v5626
    %5628 = vmatprep.subr.mxu0 %v5627
    %v5629 = vand.u32 %v5275, 4294901760
    %v5630 = vsub.f32 %v5275, %v5629
    %5631 = vmatpush1.msra.mxu0 %v5630
    %v5632 = vand.u32 %v5272, 4294901760
    %v5633 = vsub.f32 %v5272, %v5632
    %5634 = vmatprep.subr.mxu0 %v5633
    %v5635 = vand.u32 %v5271, 4294901760
    %v5636 = vsub.f32 %v5271, %v5635
    %5637 = vmatpush1.msra.mxu0 %v5636
    %5638 = vmatprep.subr.mxu0 0.0
    %5639 = vmatpush2.msra.mxu0 0.0
    %5640 = vmatprep.subr.mxu0 0.0
    %5641 = vmatpush2.msra.mxu0 0.0
    %5642 = vmatprep.subr.mxu0 0.0
    %5643 = vmatpush2.msra.mxu0 0.0
    %5644 = vmatprep.subr.mxu0 0.0
    %5645 = vmatpush2.msra.mxu0 0.0
    %5646 = vmatprep.subr.mxu0 0.0
    %5647 = vmatpush2.msra.mxu0 0.0
    %5648 = vmatprep.subr.mxu0 0.0
    %5649 = vmatpush2.msra.mxu0 0.0
    %5650 = vmatprep.subr.mxu0 0.0
    %5651 = vmatpush2.msra.mxu0 0.0
    %5652 = vmatprep.subr.mxu0 0.0
    %5653 = vmatpush2.msra.mxu0 0.0
    %5654 = vmatprep.subr.mxu0 0.0
    %5655 = vmatpush2.msra.mxu0 0.0
    %5656 = vmatprep.subr.mxu0 0.0
    %5657 = vmatpush2.msra.mxu0 0.0
    %5658 = vmatprep.subr.mxu0 0.0
    %5659 = vmatpush2.msra.mxu0 0.0
    %5660 = vmatprep.subr.mxu0 0.0
    %5661 = vmatpush2.msra.mxu0 0.0
    %5662 = vmatprep.subr.mxu0 0.0
    %5663 = vmatpush2.msra.mxu0 0.0
    %5664 = vmatprep.subr.mxu0 0.0
    %5665 = vmatpush2.msra.mxu0 0.0
    %5666 = vmatprep.subr.mxu0 0.0
    %5667 = vmatpush2.msra.mxu0 0.0
    %5668 = vmatprep.subr.mxu0 0.0
    %5669 = vmatpush2.msra.mxu0 0.0
    %5670 = vmatprep.mubr.f32.mxu0 0.0
    %v5671 = vand.u32 %v5307, 4294901760
    %v5672 = vsub.f32 %v5307, %v5671
    %5673 = vmatmul.mubr.f32.gmra.mxu0 %v5672
    %v5674 = vpop.f32.mrf.mxu0
    %v5675 = vadd.f32 %v5563, %v5674
    %v5676 = vpop.f32.mrf.mxu0
    %v5677 = vadd.f32 %v5565, %v5676
    %5678 = vmatprep.mubr.f32.mxu0 0.0
    %v5679 = vand.u32 %v5310, 4294901760
    %v5680 = vsub.f32 %v5310, %v5679
    %5681 = vmatmul.mubr.f32.gmra.mxu0 %v5680
    %v5682 = vpop.f32.mrf.mxu0
    %v5683 = vadd.f32 %v5570, %v5682
    %v5684 = vpop.f32.mrf.mxu0
    %v5685 = vadd.f32 %v5572, %v5684
    %5686 = vdwg.mxu0
    %5687 = vmatprep.subr.mxu0 0.0
    %5688 = vmatpush1.msra.mxu0 0.0
    %5689 = vmatprep.subr.mxu0 0.0
    %5690 = vmatpush1.msra.mxu0 0.0
    %5691 = vmatprep.subr.mxu0 0.0
    %5692 = vmatpush1.msra.mxu0 0.0
    %5693 = vmatprep.subr.mxu0 0.0
    %5694 = vmatpush1.msra.mxu0 0.0
    %5695 = vmatprep.subr.mxu0 0.0
    %5696 = vmatpush1.msra.mxu0 0.0
    %5697 = vmatprep.subr.mxu0 0.0
    %5698 = vmatpush1.msra.mxu0 0.0
    %5699 = vmatprep.subr.mxu0 0.0
    %5700 = vmatpush1.msra.mxu0 0.0
    %5701 = vmatprep.subr.mxu0 0.0
    %5702 = vmatpush1.msra.mxu0 0.0
    %v5703 = vand.u32 %v5300, 4294901760
    %5704 = vmatprep.subr.mxu0 %v5703
    %v5705 = vand.u32 %v5299, 4294901760
    %5706 = vmatpush1.msra.mxu0 %v5705
    %v5707 = vand.u32 %v5296, 4294901760
    %5708 = vmatprep.subr.mxu0 %v5707
    %v5709 = vand.u32 %v5295, 4294901760
    %5710 = vmatpush1.msra.mxu0 %v5709
    %v5711 = vand.u32 %v5292, 4294901760
    %5712 = vmatprep.subr.mxu0 %v5711
    %v5713 = vand.u32 %v5291, 4294901760
    %5714 = vmatpush1.msra.mxu0 %v5713
    %v5715 = vand.u32 %v5288, 4294901760
    %5716 = vmatprep.subr.mxu0 %v5715
    %v5717 = vand.u32 %v5287, 4294901760
    %5718 = vmatpush1.msra.mxu0 %v5717
    %v5719 = vand.u32 %v5284, 4294901760
    %5720 = vmatprep.subr.mxu0 %v5719
    %v5721 = vand.u32 %v5283, 4294901760
    %5722 = vmatpush1.msra.mxu0 %v5721
    %v5723 = vand.u32 %v5280, 4294901760
    %5724 = vmatprep.subr.mxu0 %v5723
    %v5725 = vand.u32 %v5279, 4294901760
    %5726 = vmatpush1.msra.mxu0 %v5725
    %v5727 = vand.u32 %v5276, 4294901760
    %5728 = vmatprep.subr.mxu0 %v5727
    %v5729 = vand.u32 %v5275, 4294901760
    %5730 = vmatpush1.msra.mxu0 %v5729
    %v5731 = vand.u32 %v5272, 4294901760
    %5732 = vmatprep.subr.mxu0 %v5731
    %v5733 = vand.u32 %v5271, 4294901760
    %5734 = vmatpush1.msra.mxu0 %v5733
    %5735 = vmatprep.subr.mxu0 0.0
    %5736 = vmatpush2.msra.mxu0 0.0
    %5737 = vmatprep.subr.mxu0 0.0
    %5738 = vmatpush2.msra.mxu0 0.0
    %5739 = vmatprep.subr.mxu0 0.0
    %5740 = vmatpush2.msra.mxu0 0.0
    %5741 = vmatprep.subr.mxu0 0.0
    %5742 = vmatpush2.msra.mxu0 0.0
    %5743 = vmatprep.subr.mxu0 0.0
    %5744 = vmatpush2.msra.mxu0 0.0
    %5745 = vmatprep.subr.mxu0 0.0
    %5746 = vmatpush2.msra.mxu0 0.0
    %5747 = vmatprep.subr.mxu0 0.0
    %5748 = vmatpush2.msra.mxu0 0.0
    %5749 = vmatprep.subr.mxu0 0.0
    %5750 = vmatpush2.msra.mxu0 0.0
    %5751 = vmatprep.subr.mxu0 0.0
    %5752 = vmatpush2.msra.mxu0 0.0
    %5753 = vmatprep.subr.mxu0 0.0
    %5754 = vmatpush2.msra.mxu0 0.0
    %5755 = vmatprep.subr.mxu0 0.0
    %5756 = vmatpush2.msra.mxu0 0.0
    %5757 = vmatprep.subr.mxu0 0.0
    %5758 = vmatpush2.msra.mxu0 0.0
    %5759 = vmatprep.subr.mxu0 0.0
    %5760 = vmatpush2.msra.mxu0 0.0
    %5761 = vmatprep.subr.mxu0 0.0
    %5762 = vmatpush2.msra.mxu0 0.0
    %5763 = vmatprep.subr.mxu0 0.0
    %5764 = vmatpush2.msra.mxu0 0.0
    %5765 = vmatprep.subr.mxu0 0.0
    %5766 = vmatpush2.msra.mxu0 0.0
    %5767 = vmatprep.mubr.f32.mxu0 0.0
    %v5768 = vand.u32 %v5307, 4294901760
    %v5769 = vsub.f32 %v5307, %v5768
    %v5770 = vand.u32 %v5769, 4294901760
    %5771 = vmatmul.mubr.f32.gmra.mxu0 %v5770
    %v5772 = vpop.f32.mrf.mxu0
    %v5773 = vadd.f32 %v5675, %v5772
    %v5774 = vpop.f32.mrf.mxu0
    %v5775 = vadd.f32 %v5677, %v5774
    %5776 = vmatprep.mubr.f32.mxu0 0.0
    %v5777 = vand.u32 %v5310, 4294901760
    %v5778 = vsub.f32 %v5310, %v5777
    %v5779 = vand.u32 %v5778, 4294901760
    %5780 = vmatmul.mubr.f32.gmra.mxu0 %v5779
    %v5781 = vpop.f32.mrf.mxu0
    %v5782 = vadd.f32 %v5683, %v5781
    %v5783 = vpop.f32.mrf.mxu0
    %v5784 = vadd.f32 %v5685, %v5783
    %5785 = vdwg.mxu0
    %5786 = vmatprep.subr.mxu0 0.0
    %5787 = vmatpush1.msra.mxu0 0.0
    %5788 = vmatprep.subr.mxu0 0.0
    %5789 = vmatpush1.msra.mxu0 0.0
    %5790 = vmatprep.subr.mxu0 0.0
    %5791 = vmatpush1.msra.mxu0 0.0
    %5792 = vmatprep.subr.mxu0 0.0
    %5793 = vmatpush1.msra.mxu0 0.0
    %5794 = vmatprep.subr.mxu0 0.0
    %5795 = vmatpush1.msra.mxu0 0.0
    %5796 = vmatprep.subr.mxu0 0.0
    %5797 = vmatpush1.msra.mxu0 0.0
    %5798 = vmatprep.subr.mxu0 0.0
    %5799 = vmatpush1.msra.mxu0 0.0
    %5800 = vmatprep.subr.mxu0 0.0
    %5801 = vmatpush1.msra.mxu0 0.0
    %v5802 = vand.u32 %v5300, 4294901760
    %v5803 = vsub.f32 %v5300, %v5802
    %v5804 = vand.u32 %v5803, 4294901760
    %5805 = vmatprep.subr.mxu0 %v5804
    %v5806 = vand.u32 %v5299, 4294901760
    %v5807 = vsub.f32 %v5299, %v5806
    %v5808 = vand.u32 %v5807, 4294901760
    %5809 = vmatpush1.msra.mxu0 %v5808
    %v5810 = vand.u32 %v5296, 4294901760
    %v5811 = vsub.f32 %v5296, %v5810
    %v5812 = vand.u32 %v5811, 4294901760
    %5813 = vmatprep.subr.mxu0 %v5812
    %v5814 = vand.u32 %v5295, 4294901760
    %v5815 = vsub.f32 %v5295, %v5814
    %v5816 = vand.u32 %v5815, 4294901760
    %5817 = vmatpush1.msra.mxu0 %v5816
    %v5818 = vand.u32 %v5292, 4294901760
    %v5819 = vsub.f32 %v5292, %v5818
    %v5820 = vand.u32 %v5819, 4294901760
    %5821 = vmatprep.subr.mxu0 %v5820
    %v5822 = vand.u32 %v5291, 4294901760
    %v5823 = vsub.f32 %v5291, %v5822
    %v5824 = vand.u32 %v5823, 4294901760
    %5825 = vmatpush1.msra.mxu0 %v5824
    %v5826 = vand.u32 %v5288, 4294901760
    %v5827 = vsub.f32 %v5288, %v5826
    %v5828 = vand.u32 %v5827, 4294901760
    %5829 = vmatprep.subr.mxu0 %v5828
    %v5830 = vand.u32 %v5287, 4294901760
    %v5831 = vsub.f32 %v5287, %v5830
    %v5832 = vand.u32 %v5831, 4294901760
    %5833 = vmatpush1.msra.mxu0 %v5832
    %v5834 = vand.u32 %v5284, 4294901760
    %v5835 = vsub.f32 %v5284, %v5834
    %v5836 = vand.u32 %v5835, 4294901760
    %5837 = vmatprep.subr.mxu0 %v5836
    %v5838 = vand.u32 %v5283, 4294901760
    %v5839 = vsub.f32 %v5283, %v5838
    %v5840 = vand.u32 %v5839, 4294901760
    %5841 = vmatpush1.msra.mxu0 %v5840
    %v5842 = vand.u32 %v5280, 4294901760
    %v5843 = vsub.f32 %v5280, %v5842
    %v5844 = vand.u32 %v5843, 4294901760
    %5845 = vmatprep.subr.mxu0 %v5844
    %v5846 = vand.u32 %v5279, 4294901760
    %v5847 = vsub.f32 %v5279, %v5846
    %v5848 = vand.u32 %v5847, 4294901760
    %5849 = vmatpush1.msra.mxu0 %v5848
    %v5850 = vand.u32 %v5276, 4294901760
    %v5851 = vsub.f32 %v5276, %v5850
    %v5852 = vand.u32 %v5851, 4294901760
    %5853 = vmatprep.subr.mxu0 %v5852
    %v5854 = vand.u32 %v5275, 4294901760
    %v5855 = vsub.f32 %v5275, %v5854
    %v5856 = vand.u32 %v5855, 4294901760
    %5857 = vmatpush1.msra.mxu0 %v5856
    %v5858 = vand.u32 %v5272, 4294901760
    %v5859 = vsub.f32 %v5272, %v5858
    %v5860 = vand.u32 %v5859, 4294901760
    %5861 = vmatprep.subr.mxu0 %v5860
    %v5862 = vand.u32 %v5271, 4294901760
    %v5863 = vsub.f32 %v5271, %v5862
    %v5864 = vand.u32 %v5863, 4294901760
    %5865 = vmatpush1.msra.mxu0 %v5864
    %5866 = vmatprep.subr.mxu0 0.0
    %5867 = vmatpush2.msra.mxu0 0.0
    %5868 = vmatprep.subr.mxu0 0.0
    %5869 = vmatpush2.msra.mxu0 0.0
    %5870 = vmatprep.subr.mxu0 0.0
    %5871 = vmatpush2.msra.mxu0 0.0
    %5872 = vmatprep.subr.mxu0 0.0
    %5873 = vmatpush2.msra.mxu0 0.0
    %5874 = vmatprep.subr.mxu0 0.0
    %5875 = vmatpush2.msra.mxu0 0.0
    %5876 = vmatprep.subr.mxu0 0.0
    %5877 = vmatpush2.msra.mxu0 0.0
    %5878 = vmatprep.subr.mxu0 0.0
    %5879 = vmatpush2.msra.mxu0 0.0
    %5880 = vmatprep.subr.mxu0 0.0
    %5881 = vmatpush2.msra.mxu0 0.0
    %5882 = vmatprep.subr.mxu0 0.0
    %5883 = vmatpush2.msra.mxu0 0.0
    %5884 = vmatprep.subr.mxu0 0.0
    %5885 = vmatpush2.msra.mxu0 0.0
    %5886 = vmatprep.subr.mxu0 0.0
    %5887 = vmatpush2.msra.mxu0 0.0
    %5888 = vmatprep.subr.mxu0 0.0
    %5889 = vmatpush2.msra.mxu0 0.0
    %5890 = vmatprep.subr.mxu0 0.0
    %5891 = vmatpush2.msra.mxu0 0.0
    %5892 = vmatprep.subr.mxu0 0.0
    %5893 = vmatpush2.msra.mxu0 0.0
    %5894 = vmatprep.subr.mxu0 0.0
    %5895 = vmatpush2.msra.mxu0 0.0
    %5896 = vmatprep.subr.mxu0 0.0
    %5897 = vmatpush2.msra.mxu0 0.0
    %5898 = vmatprep.mubr.f32.mxu0 0.0
    %v5899 = vand.u32 %v5307, 4294901760
    %5900 = vmatmul.mubr.f32.gmra.mxu0 %v5899
    %v5901 = vpop.f32.mrf.mxu0
    %v5902 = vadd.f32 %v5773, %v5901
    %v5903 = vpop.f32.mrf.mxu0
    %v5904 = vadd.f32 %v5775, %v5903
    %5905 = vmatprep.mubr.f32.mxu0 0.0
    %v5906 = vand.u32 %v5310, 4294901760
    %5907 = vmatmul.mubr.f32.gmra.mxu0 %v5906
    %v5908 = vpop.f32.mrf.mxu0
    %v5909 = vadd.f32 %v5782, %v5908
    %v5910 = vpop.f32.mrf.mxu0
    %v5911 = vadd.f32 %v5784, %v5910
    %5912 = vdwg.mxu0
    %5913 = vmatprep.subr.mxu0 0.0
    %5914 = vmatpush1.msra.mxu0 0.0
    %5915 = vmatprep.subr.mxu0 0.0
    %5916 = vmatpush1.msra.mxu0 0.0
    %5917 = vmatprep.subr.mxu0 0.0
    %5918 = vmatpush1.msra.mxu0 0.0
    %5919 = vmatprep.subr.mxu0 0.0
    %5920 = vmatpush1.msra.mxu0 0.0
    %5921 = vmatprep.subr.mxu0 0.0
    %5922 = vmatpush1.msra.mxu0 0.0
    %5923 = vmatprep.subr.mxu0 0.0
    %5924 = vmatpush1.msra.mxu0 0.0
    %5925 = vmatprep.subr.mxu0 0.0
    %5926 = vmatpush1.msra.mxu0 0.0
    %5927 = vmatprep.subr.mxu0 0.0
    %5928 = vmatpush1.msra.mxu0 0.0
    %v5929 = vand.u32 %v5300, 4294901760
    %5930 = vmatprep.subr.mxu0 %v5929
    %v5931 = vand.u32 %v5299, 4294901760
    %5932 = vmatpush1.msra.mxu0 %v5931
    %v5933 = vand.u32 %v5296, 4294901760
    %5934 = vmatprep.subr.mxu0 %v5933
    %v5935 = vand.u32 %v5295, 4294901760
    %5936 = vmatpush1.msra.mxu0 %v5935
    %v5937 = vand.u32 %v5292, 4294901760
    %5938 = vmatprep.subr.mxu0 %v5937
    %v5939 = vand.u32 %v5291, 4294901760
    %5940 = vmatpush1.msra.mxu0 %v5939
    %v5941 = vand.u32 %v5288, 4294901760
    %5942 = vmatprep.subr.mxu0 %v5941
    %v5943 = vand.u32 %v5287, 4294901760
    %5944 = vmatpush1.msra.mxu0 %v5943
    %v5945 = vand.u32 %v5284, 4294901760
    %5946 = vmatprep.subr.mxu0 %v5945
    %v5947 = vand.u32 %v5283, 4294901760
    %5948 = vmatpush1.msra.mxu0 %v5947
    %v5949 = vand.u32 %v5280, 4294901760
    %5950 = vmatprep.subr.mxu0 %v5949
    %v5951 = vand.u32 %v5279, 4294901760
    %5952 = vmatpush1.msra.mxu0 %v5951
    %v5953 = vand.u32 %v5276, 4294901760
    %5954 = vmatprep.subr.mxu0 %v5953
    %v5955 = vand.u32 %v5275, 4294901760
    %5956 = vmatpush1.msra.mxu0 %v5955
    %v5957 = vand.u32 %v5272, 4294901760
    %5958 = vmatprep.subr.mxu0 %v5957
    %v5959 = vand.u32 %v5271, 4294901760
    %5960 = vmatpush1.msra.mxu0 %v5959
    %5961 = vmatprep.subr.mxu0 0.0
    %5962 = vmatpush2.msra.mxu0 0.0
    %5963 = vmatprep.subr.mxu0 0.0
    %5964 = vmatpush2.msra.mxu0 0.0
    %5965 = vmatprep.subr.mxu0 0.0
    %5966 = vmatpush2.msra.mxu0 0.0
    %5967 = vmatprep.subr.mxu0 0.0
    %5968 = vmatpush2.msra.mxu0 0.0
    %5969 = vmatprep.subr.mxu0 0.0
    %5970 = vmatpush2.msra.mxu0 0.0
    %5971 = vmatprep.subr.mxu0 0.0
    %5972 = vmatpush2.msra.mxu0 0.0
    %5973 = vmatprep.subr.mxu0 0.0
    %5974 = vmatpush2.msra.mxu0 0.0
    %5975 = vmatprep.subr.mxu0 0.0
    %5976 = vmatpush2.msra.mxu0 0.0
    %5977 = vmatprep.subr.mxu0 0.0
    %5978 = vmatpush2.msra.mxu0 0.0
    %5979 = vmatprep.subr.mxu0 0.0
    %5980 = vmatpush2.msra.mxu0 0.0
    %5981 = vmatprep.subr.mxu0 0.0
    %5982 = vmatpush2.msra.mxu0 0.0
    %5983 = vmatprep.subr.mxu0 0.0
    %5984 = vmatpush2.msra.mxu0 0.0
    %5985 = vmatprep.subr.mxu0 0.0
    %5986 = vmatpush2.msra.mxu0 0.0
    %5987 = vmatprep.subr.mxu0 0.0
    %5988 = vmatpush2.msra.mxu0 0.0
    %5989 = vmatprep.subr.mxu0 0.0
    %5990 = vmatpush2.msra.mxu0 0.0
    %5991 = vmatprep.subr.mxu0 0.0
    %5992 = vmatpush2.msra.mxu0 0.0
    %5993 = vmatprep.mubr.f32.mxu0 0.0
    %v5994 = vand.u32 %v5307, 4294901760
    %5995 = vmatmul.mubr.f32.gmra.mxu0 %v5994
    %v5996 = vpop.f32.mrf.mxu0
    %v5997 = vadd.f32 %v5902, %v5996
    %v5998 = vpop.f32.mrf.mxu0
    %v5999 = vadd.f32 %v5904, %v5998
    %6000 = vmatprep.mubr.f32.mxu0 0.0
    %v6001 = vand.u32 %v5310, 4294901760
    %6002 = vmatmul.mubr.f32.gmra.mxu0 %v6001
    %v6003 = vpop.f32.mrf.mxu0
    %v6004 = vadd.f32 %v5909, %v6003
    %v6005 = vpop.f32.mrf.mxu0
    %v6006 = vadd.f32 %v5911, %v6005
    %6007 = vdwg.mxu0
    %6008 = vmatprep.subr.mxu0 0.0
    %6009 = vmatpush1.msra.mxu0 0.0
    %6010 = vmatprep.subr.mxu0 0.0
    %6011 = vmatpush1.msra.mxu0 0.0
    %6012 = vmatprep.subr.mxu0 0.0
    %6013 = vmatpush1.msra.mxu0 0.0
    %6014 = vmatprep.subr.mxu0 0.0
    %6015 = vmatpush1.msra.mxu0 0.0
    %6016 = vmatprep.subr.mxu0 0.0
    %6017 = vmatpush1.msra.mxu0 0.0
    %6018 = vmatprep.subr.mxu0 0.0
    %6019 = vmatpush1.msra.mxu0 0.0
    %6020 = vmatprep.subr.mxu0 0.0
    %6021 = vmatpush1.msra.mxu0 0.0
    %6022 = vmatprep.subr.mxu0 0.0
    %6023 = vmatpush1.msra.mxu0 0.0
    %v6024 = vand.u32 %v5302, 4294901760
    %6025 = vmatprep.subr.mxu0 %v6024
    %v6026 = vand.u32 %v5301, 4294901760
    %6027 = vmatpush1.msra.mxu0 %v6026
    %v6028 = vand.u32 %v5298, 4294901760
    %6029 = vmatprep.subr.mxu0 %v6028
    %v6030 = vand.u32 %v5297, 4294901760
    %6031 = vmatpush1.msra.mxu0 %v6030
    %v6032 = vand.u32 %v5294, 4294901760
    %6033 = vmatprep.subr.mxu0 %v6032
    %v6034 = vand.u32 %v5293, 4294901760
    %6035 = vmatpush1.msra.mxu0 %v6034
    %v6036 = vand.u32 %v5290, 4294901760
    %6037 = vmatprep.subr.mxu0 %v6036
    %v6038 = vand.u32 %v5289, 4294901760
    %6039 = vmatpush1.msra.mxu0 %v6038
    %v6040 = vand.u32 %v5286, 4294901760
    %6041 = vmatprep.subr.mxu0 %v6040
    %v6042 = vand.u32 %v5285, 4294901760
    %6043 = vmatpush1.msra.mxu0 %v6042
    %v6044 = vand.u32 %v5282, 4294901760
    %6045 = vmatprep.subr.mxu0 %v6044
    %v6046 = vand.u32 %v5281, 4294901760
    %6047 = vmatpush1.msra.mxu0 %v6046
    %v6048 = vand.u32 %v5278, 4294901760
    %6049 = vmatprep.subr.mxu0 %v6048
    %v6050 = vand.u32 %v5277, 4294901760
    %6051 = vmatpush1.msra.mxu0 %v6050
    %v6052 = vand.u32 %v5274, 4294901760
    %6053 = vmatprep.subr.mxu0 %v6052
    %v6054 = vand.u32 %v5273, 4294901760
    %6055 = vmatpush1.msra.mxu0 %v6054
    %6056 = vmatprep.subr.mxu0 0.0
    %6057 = vmatpush2.msra.mxu0 0.0
    %6058 = vmatprep.subr.mxu0 0.0
    %6059 = vmatpush2.msra.mxu0 0.0
    %6060 = vmatprep.subr.mxu0 0.0
    %6061 = vmatpush2.msra.mxu0 0.0
    %6062 = vmatprep.subr.mxu0 0.0
    %6063 = vmatpush2.msra.mxu0 0.0
    %6064 = vmatprep.subr.mxu0 0.0
    %6065 = vmatpush2.msra.mxu0 0.0
    %6066 = vmatprep.subr.mxu0 0.0
    %6067 = vmatpush2.msra.mxu0 0.0
    %6068 = vmatprep.subr.mxu0 0.0
    %6069 = vmatpush2.msra.mxu0 0.0
    %6070 = vmatprep.subr.mxu0 0.0
    %6071 = vmatpush2.msra.mxu0 0.0
    %6072 = vmatprep.subr.mxu0 0.0
    %6073 = vmatpush2.msra.mxu0 0.0
    %6074 = vmatprep.subr.mxu0 0.0
    %6075 = vmatpush2.msra.mxu0 0.0
    %6076 = vmatprep.subr.mxu0 0.0
    %6077 = vmatpush2.msra.mxu0 0.0
    %6078 = vmatprep.subr.mxu0 0.0
    %6079 = vmatpush2.msra.mxu0 0.0
    %6080 = vmatprep.subr.mxu0 0.0
    %6081 = vmatpush2.msra.mxu0 0.0
    %6082 = vmatprep.subr.mxu0 0.0
    %6083 = vmatpush2.msra.mxu0 0.0
    %6084 = vmatprep.subr.mxu0 0.0
    %6085 = vmatpush2.msra.mxu0 0.0
    %6086 = vmatprep.subr.mxu0 0.0
    %6087 = vmatpush2.msra.mxu0 0.0
    %6088 = vmatprep.mubr.f32.mxu0 0.0
    %v6089 = vand.u32 %v5307, 4294901760
    %v6090 = vsub.f32 %v5307, %v6089
    %v6091 = vand.u32 %v6090, 4294901760
    %v6092 = vsub.f32 %v6090, %v6091
    %v6093 = vand.u32 %v6092, 4294901760
    %6094 = vmatmul.mubr.f32.gmra.mxu0 %v6093
    %v6095 = vpop.f32.mrf.mxu0
    %v6096 = vadd.f32 0.0, %v6095
    %v6097 = vpop.f32.mrf.mxu0
    %v6098 = vadd.f32 0.0, %v6097
    %6099 = vmatprep.mubr.f32.mxu0 0.0
    %v6100 = vand.u32 %v5310, 4294901760
    %v6101 = vsub.f32 %v5310, %v6100
    %v6102 = vand.u32 %v6101, 4294901760
    %v6103 = vsub.f32 %v6101, %v6102
    %v6104 = vand.u32 %v6103, 4294901760
    %6105 = vmatmul.mubr.f32.gmra.mxu0 %v6104
    %v6106 = vpop.f32.mrf.mxu0
    %v6107 = vadd.f32 0.0, %v6106
    %v6108 = vpop.f32.mrf.mxu0
    %v6109 = vadd.f32 0.0, %v6108
    %6110 = vdwg.mxu0
    %6111 = vmatprep.subr.mxu0 0.0
    %6112 = vmatpush1.msra.mxu0 0.0
    %6113 = vmatprep.subr.mxu0 0.0
    %6114 = vmatpush1.msra.mxu0 0.0
    %6115 = vmatprep.subr.mxu0 0.0
    %6116 = vmatpush1.msra.mxu0 0.0
    %6117 = vmatprep.subr.mxu0 0.0
    %6118 = vmatpush1.msra.mxu0 0.0
    %6119 = vmatprep.subr.mxu0 0.0
    %6120 = vmatpush1.msra.mxu0 0.0
    %6121 = vmatprep.subr.mxu0 0.0
    %6122 = vmatpush1.msra.mxu0 0.0
    %6123 = vmatprep.subr.mxu0 0.0
    %6124 = vmatpush1.msra.mxu0 0.0
    %6125 = vmatprep.subr.mxu0 0.0
    %6126 = vmatpush1.msra.mxu0 0.0
    %v6127 = vand.u32 %v5302, 4294901760
    %v6128 = vsub.f32 %v5302, %v6127
    %v6129 = vand.u32 %v6128, 4294901760
    %v6130 = vsub.f32 %v6128, %v6129
    %v6131 = vand.u32 %v6130, 4294901760
    %6132 = vmatprep.subr.mxu0 %v6131
    %v6133 = vand.u32 %v5301, 4294901760
    %v6134 = vsub.f32 %v5301, %v6133
    %v6135 = vand.u32 %v6134, 4294901760
    %v6136 = vsub.f32 %v6134, %v6135
    %v6137 = vand.u32 %v6136, 4294901760
    %6138 = vmatpush1.msra.mxu0 %v6137
    %v6139 = vand.u32 %v5298, 4294901760
    %v6140 = vsub.f32 %v5298, %v6139
    %v6141 = vand.u32 %v6140, 4294901760
    %v6142 = vsub.f32 %v6140, %v6141
    %v6143 = vand.u32 %v6142, 4294901760
    %6144 = vmatprep.subr.mxu0 %v6143
    %v6145 = vand.u32 %v5297, 4294901760
    %v6146 = vsub.f32 %v5297, %v6145
    %v6147 = vand.u32 %v6146, 4294901760
    %v6148 = vsub.f32 %v6146, %v6147
    %v6149 = vand.u32 %v6148, 4294901760
    %6150 = vmatpush1.msra.mxu0 %v6149
    %v6151 = vand.u32 %v5294, 4294901760
    %v6152 = vsub.f32 %v5294, %v6151
    %v6153 = vand.u32 %v6152, 4294901760
    %v6154 = vsub.f32 %v6152, %v6153
    %v6155 = vand.u32 %v6154, 4294901760
    %6156 = vmatprep.subr.mxu0 %v6155
    %v6157 = vand.u32 %v5293, 4294901760
    %v6158 = vsub.f32 %v5293, %v6157
    %v6159 = vand.u32 %v6158, 4294901760
    %v6160 = vsub.f32 %v6158, %v6159
    %v6161 = vand.u32 %v6160, 4294901760
    %6162 = vmatpush1.msra.mxu0 %v6161
    %v6163 = vand.u32 %v5290, 4294901760
    %v6164 = vsub.f32 %v5290, %v6163
    %v6165 = vand.u32 %v6164, 4294901760
    %v6166 = vsub.f32 %v6164, %v6165
    %v6167 = vand.u32 %v6166, 4294901760
    %6168 = vmatprep.subr.mxu0 %v6167
    %v6169 = vand.u32 %v5289, 4294901760
    %v6170 = vsub.f32 %v5289, %v6169
    %v6171 = vand.u32 %v6170, 4294901760
    %v6172 = vsub.f32 %v6170, %v6171
    %v6173 = vand.u32 %v6172, 4294901760
    %6174 = vmatpush1.msra.mxu0 %v6173
    %v6175 = vand.u32 %v5286, 4294901760
    %v6176 = vsub.f32 %v5286, %v6175
    %v6177 = vand.u32 %v6176, 4294901760
    %v6178 = vsub.f32 %v6176, %v6177
    %v6179 = vand.u32 %v6178, 4294901760
    %6180 = vmatprep.subr.mxu0 %v6179
    %v6181 = vand.u32 %v5285, 4294901760
    %v6182 = vsub.f32 %v5285, %v6181
    %v6183 = vand.u32 %v6182, 4294901760
    %v6184 = vsub.f32 %v6182, %v6183
    %v6185 = vand.u32 %v6184, 4294901760
    %6186 = vmatpush1.msra.mxu0 %v6185
    %v6187 = vand.u32 %v5282, 4294901760
    %v6188 = vsub.f32 %v5282, %v6187
    %v6189 = vand.u32 %v6188, 4294901760
    %v6190 = vsub.f32 %v6188, %v6189
    %v6191 = vand.u32 %v6190, 4294901760
    %6192 = vmatprep.subr.mxu0 %v6191
    %v6193 = vand.u32 %v5281, 4294901760
    %v6194 = vsub.f32 %v5281, %v6193
    %v6195 = vand.u32 %v6194, 4294901760
    %v6196 = vsub.f32 %v6194, %v6195
    %v6197 = vand.u32 %v6196, 4294901760
    %6198 = vmatpush1.msra.mxu0 %v6197
    %v6199 = vand.u32 %v5278, 4294901760
    %v6200 = vsub.f32 %v5278, %v6199
    %v6201 = vand.u32 %v6200, 4294901760
    %v6202 = vsub.f32 %v6200, %v6201
    %v6203 = vand.u32 %v6202, 4294901760
    %6204 = vmatprep.subr.mxu0 %v6203
    %v6205 = vand.u32 %v5277, 4294901760
    %v6206 = vsub.f32 %v5277, %v6205
    %v6207 = vand.u32 %v6206, 4294901760
    %v6208 = vsub.f32 %v6206, %v6207
    %v6209 = vand.u32 %v6208, 4294901760
    %6210 = vmatpush1.msra.mxu0 %v6209
    %v6211 = vand.u32 %v5274, 4294901760
    %v6212 = vsub.f32 %v5274, %v6211
    %v6213 = vand.u32 %v6212, 4294901760
    %v6214 = vsub.f32 %v6212, %v6213
    %v6215 = vand.u32 %v6214, 4294901760
    %6216 = vmatprep.subr.mxu0 %v6215
    %v6217 = vand.u32 %v5273, 4294901760
    %v6218 = vsub.f32 %v5273, %v6217
    %v6219 = vand.u32 %v6218, 4294901760
    %v6220 = vsub.f32 %v6218, %v6219
    %v6221 = vand.u32 %v6220, 4294901760
    %6222 = vmatpush1.msra.mxu0 %v6221
    %6223 = vmatprep.subr.mxu0 0.0
    %6224 = vmatpush2.msra.mxu0 0.0
    %6225 = vmatprep.subr.mxu0 0.0
    %6226 = vmatpush2.msra.mxu0 0.0
    %6227 = vmatprep.subr.mxu0 0.0
    %6228 = vmatpush2.msra.mxu0 0.0
    %6229 = vmatprep.subr.mxu0 0.0
    %6230 = vmatpush2.msra.mxu0 0.0
    %6231 = vmatprep.subr.mxu0 0.0
    %6232 = vmatpush2.msra.mxu0 0.0
    %6233 = vmatprep.subr.mxu0 0.0
    %6234 = vmatpush2.msra.mxu0 0.0
    %6235 = vmatprep.subr.mxu0 0.0
    %6236 = vmatpush2.msra.mxu0 0.0
    %6237 = vmatprep.subr.mxu0 0.0
    %6238 = vmatpush2.msra.mxu0 0.0
    %6239 = vmatprep.subr.mxu0 0.0
    %6240 = vmatpush2.msra.mxu0 0.0
    %6241 = vmatprep.subr.mxu0 0.0
    %6242 = vmatpush2.msra.mxu0 0.0
    %6243 = vmatprep.subr.mxu0 0.0
    %6244 = vmatpush2.msra.mxu0 0.0
    %6245 = vmatprep.subr.mxu0 0.0
    %6246 = vmatpush2.msra.mxu0 0.0
    %6247 = vmatprep.subr.mxu0 0.0
    %6248 = vmatpush2.msra.mxu0 0.0
    %6249 = vmatprep.subr.mxu0 0.0
    %6250 = vmatpush2.msra.mxu0 0.0
    %6251 = vmatprep.subr.mxu0 0.0
    %6252 = vmatpush2.msra.mxu0 0.0
    %6253 = vmatprep.subr.mxu0 0.0
    %6254 = vmatpush2.msra.mxu0 0.0
    %6255 = vmatprep.mubr.f32.mxu0 0.0
    %v6256 = vand.u32 %v5307, 4294901760
    %6257 = vmatmul.mubr.f32.gmra.mxu0 %v6256
    %v6258 = vpop.f32.mrf.mxu0
    %v6259 = vadd.f32 %v6096, %v6258
    %v6260 = vpop.f32.mrf.mxu0
    %v6261 = vadd.f32 %v6098, %v6260
    %6262 = vmatprep.mubr.f32.mxu0 0.0
    %v6263 = vand.u32 %v5310, 4294901760
    %6264 = vmatmul.mubr.f32.gmra.mxu0 %v6263
    %v6265 = vpop.f32.mrf.mxu0
    %v6266 = vadd.f32 %v6107, %v6265
    %v6267 = vpop.f32.mrf.mxu0
    %v6268 = vadd.f32 %v6109, %v6267
    %6269 = vdwg.mxu0
    %6270 = vmatprep.subr.mxu0 0.0
    %6271 = vmatpush1.msra.mxu0 0.0
    %6272 = vmatprep.subr.mxu0 0.0
    %6273 = vmatpush1.msra.mxu0 0.0
    %6274 = vmatprep.subr.mxu0 0.0
    %6275 = vmatpush1.msra.mxu0 0.0
    %6276 = vmatprep.subr.mxu0 0.0
    %6277 = vmatpush1.msra.mxu0 0.0
    %6278 = vmatprep.subr.mxu0 0.0
    %6279 = vmatpush1.msra.mxu0 0.0
    %6280 = vmatprep.subr.mxu0 0.0
    %6281 = vmatpush1.msra.mxu0 0.0
    %6282 = vmatprep.subr.mxu0 0.0
    %6283 = vmatpush1.msra.mxu0 0.0
    %6284 = vmatprep.subr.mxu0 0.0
    %6285 = vmatpush1.msra.mxu0 0.0
    %v6286 = vand.u32 %v5302, 4294901760
    %v6287 = vsub.f32 %v5302, %v6286
    %6288 = vmatprep.subr.mxu0 %v6287
    %v6289 = vand.u32 %v5301, 4294901760
    %v6290 = vsub.f32 %v5301, %v6289
    %6291 = vmatpush1.msra.mxu0 %v6290
    %v6292 = vand.u32 %v5298, 4294901760
    %v6293 = vsub.f32 %v5298, %v6292
    %6294 = vmatprep.subr.mxu0 %v6293
    %v6295 = vand.u32 %v5297, 4294901760
    %v6296 = vsub.f32 %v5297, %v6295
    %6297 = vmatpush1.msra.mxu0 %v6296
    %v6298 = vand.u32 %v5294, 4294901760
    %v6299 = vsub.f32 %v5294, %v6298
    %6300 = vmatprep.subr.mxu0 %v6299
    %v6301 = vand.u32 %v5293, 4294901760
    %v6302 = vsub.f32 %v5293, %v6301
    %6303 = vmatpush1.msra.mxu0 %v6302
    %v6304 = vand.u32 %v5290, 4294901760
    %v6305 = vsub.f32 %v5290, %v6304
    %6306 = vmatprep.subr.mxu0 %v6305
    %v6307 = vand.u32 %v5289, 4294901760
    %v6308 = vsub.f32 %v5289, %v6307
    %6309 = vmatpush1.msra.mxu0 %v6308
    %v6310 = vand.u32 %v5286, 4294901760
    %v6311 = vsub.f32 %v5286, %v6310
    %6312 = vmatprep.subr.mxu0 %v6311
    %v6313 = vand.u32 %v5285, 4294901760
    %v6314 = vsub.f32 %v5285, %v6313
    %6315 = vmatpush1.msra.mxu0 %v6314
    %v6316 = vand.u32 %v5282, 4294901760
    %v6317 = vsub.f32 %v5282, %v6316
    %6318 = vmatprep.subr.mxu0 %v6317
    %v6319 = vand.u32 %v5281, 4294901760
    %v6320 = vsub.f32 %v5281, %v6319
    %6321 = vmatpush1.msra.mxu0 %v6320
    %v6322 = vand.u32 %v5278, 4294901760
    %v6323 = vsub.f32 %v5278, %v6322
    %6324 = vmatprep.subr.mxu0 %v6323
    %v6325 = vand.u32 %v5277, 4294901760
    %v6326 = vsub.f32 %v5277, %v6325
    %6327 = vmatpush1.msra.mxu0 %v6326
    %v6328 = vand.u32 %v5274, 4294901760
    %v6329 = vsub.f32 %v5274, %v6328
    %6330 = vmatprep.subr.mxu0 %v6329
    %v6331 = vand.u32 %v5273, 4294901760
    %v6332 = vsub.f32 %v5273, %v6331
    %6333 = vmatpush1.msra.mxu0 %v6332
    %6334 = vmatprep.subr.mxu0 0.0
    %6335 = vmatpush2.msra.mxu0 0.0
    %6336 = vmatprep.subr.mxu0 0.0
    %6337 = vmatpush2.msra.mxu0 0.0
    %6338 = vmatprep.subr.mxu0 0.0
    %6339 = vmatpush2.msra.mxu0 0.0
    %6340 = vmatprep.subr.mxu0 0.0
    %6341 = vmatpush2.msra.mxu0 0.0
    %6342 = vmatprep.subr.mxu0 0.0
    %6343 = vmatpush2.msra.mxu0 0.0
    %6344 = vmatprep.subr.mxu0 0.0
    %6345 = vmatpush2.msra.mxu0 0.0
    %6346 = vmatprep.subr.mxu0 0.0
    %6347 = vmatpush2.msra.mxu0 0.0
    %6348 = vmatprep.subr.mxu0 0.0
    %6349 = vmatpush2.msra.mxu0 0.0
    %6350 = vmatprep.subr.mxu0 0.0
    %6351 = vmatpush2.msra.mxu0 0.0
    %6352 = vmatprep.subr.mxu0 0.0
    %6353 = vmatpush2.msra.mxu0 0.0
    %6354 = vmatprep.subr.mxu0 0.0
    %6355 = vmatpush2.msra.mxu0 0.0
    %6356 = vmatprep.subr.mxu0 0.0
    %6357 = vmatpush2.msra.mxu0 0.0
    %6358 = vmatprep.subr.mxu0 0.0
    %6359 = vmatpush2.msra.mxu0 0.0
    %6360 = vmatprep.subr.mxu0 0.0
    %6361 = vmatpush2.msra.mxu0 0.0
    %6362 = vmatprep.subr.mxu0 0.0
    %6363 = vmatpush2.msra.mxu0 0.0
    %6364 = vmatprep.subr.mxu0 0.0
    %6365 = vmatpush2.msra.mxu0 0.0
    %6366 = vmatprep.mubr.f32.mxu0 0.0
    %v6367 = vand.u32 %v5307, 4294901760
    %v6368 = vsub.f32 %v5307, %v6367
    %6369 = vmatmul.mubr.f32.gmra.mxu0 %v6368
    %v6370 = vpop.f32.mrf.mxu0
    %v6371 = vadd.f32 %v6259, %v6370
    %v6372 = vpop.f32.mrf.mxu0
    %v6373 = vadd.f32 %v6261, %v6372
    %6374 = vmatprep.mubr.f32.mxu0 0.0
    %v6375 = vand.u32 %v5310, 4294901760
    %v6376 = vsub.f32 %v5310, %v6375
    %6377 = vmatmul.mubr.f32.gmra.mxu0 %v6376
    %v6378 = vpop.f32.mrf.mxu0
    %v6379 = vadd.f32 %v6266, %v6378
    %v6380 = vpop.f32.mrf.mxu0
    %v6381 = vadd.f32 %v6268, %v6380
    %6382 = vdwg.mxu0
    %6383 = vmatprep.subr.mxu0 0.0
    %6384 = vmatpush1.msra.mxu0 0.0
    %6385 = vmatprep.subr.mxu0 0.0
    %6386 = vmatpush1.msra.mxu0 0.0
    %6387 = vmatprep.subr.mxu0 0.0
    %6388 = vmatpush1.msra.mxu0 0.0
    %6389 = vmatprep.subr.mxu0 0.0
    %6390 = vmatpush1.msra.mxu0 0.0
    %6391 = vmatprep.subr.mxu0 0.0
    %6392 = vmatpush1.msra.mxu0 0.0
    %6393 = vmatprep.subr.mxu0 0.0
    %6394 = vmatpush1.msra.mxu0 0.0
    %6395 = vmatprep.subr.mxu0 0.0
    %6396 = vmatpush1.msra.mxu0 0.0
    %6397 = vmatprep.subr.mxu0 0.0
    %6398 = vmatpush1.msra.mxu0 0.0
    %v6399 = vand.u32 %v5302, 4294901760
    %6400 = vmatprep.subr.mxu0 %v6399
    %v6401 = vand.u32 %v5301, 4294901760
    %6402 = vmatpush1.msra.mxu0 %v6401
    %v6403 = vand.u32 %v5298, 4294901760
    %6404 = vmatprep.subr.mxu0 %v6403
    %v6405 = vand.u32 %v5297, 4294901760
    %6406 = vmatpush1.msra.mxu0 %v6405
    %v6407 = vand.u32 %v5294, 4294901760
    %6408 = vmatprep.subr.mxu0 %v6407
    %v6409 = vand.u32 %v5293, 4294901760
    %6410 = vmatpush1.msra.mxu0 %v6409
    %v6411 = vand.u32 %v5290, 4294901760
    %6412 = vmatprep.subr.mxu0 %v6411
    %v6413 = vand.u32 %v5289, 4294901760
    %6414 = vmatpush1.msra.mxu0 %v6413
    %v6415 = vand.u32 %v5286, 4294901760
    %6416 = vmatprep.subr.mxu0 %v6415
    %v6417 = vand.u32 %v5285, 4294901760
    %6418 = vmatpush1.msra.mxu0 %v6417
    %v6419 = vand.u32 %v5282, 4294901760
    %6420 = vmatprep.subr.mxu0 %v6419
    %v6421 = vand.u32 %v5281, 4294901760
    %6422 = vmatpush1.msra.mxu0 %v6421
    %v6423 = vand.u32 %v5278, 4294901760
    %6424 = vmatprep.subr.mxu0 %v6423
    %v6425 = vand.u32 %v5277, 4294901760
    %6426 = vmatpush1.msra.mxu0 %v6425
    %v6427 = vand.u32 %v5274, 4294901760
    %6428 = vmatprep.subr.mxu0 %v6427
    %v6429 = vand.u32 %v5273, 4294901760
    %6430 = vmatpush1.msra.mxu0 %v6429
    %6431 = vmatprep.subr.mxu0 0.0
    %6432 = vmatpush2.msra.mxu0 0.0
    %6433 = vmatprep.subr.mxu0 0.0
    %6434 = vmatpush2.msra.mxu0 0.0
    %6435 = vmatprep.subr.mxu0 0.0
    %6436 = vmatpush2.msra.mxu0 0.0
    %6437 = vmatprep.subr.mxu0 0.0
    %6438 = vmatpush2.msra.mxu0 0.0
    %6439 = vmatprep.subr.mxu0 0.0
    %6440 = vmatpush2.msra.mxu0 0.0
    %6441 = vmatprep.subr.mxu0 0.0
    %6442 = vmatpush2.msra.mxu0 0.0
    %6443 = vmatprep.subr.mxu0 0.0
    %6444 = vmatpush2.msra.mxu0 0.0
    %6445 = vmatprep.subr.mxu0 0.0
    %6446 = vmatpush2.msra.mxu0 0.0
    %6447 = vmatprep.subr.mxu0 0.0
    %6448 = vmatpush2.msra.mxu0 0.0
    %6449 = vmatprep.subr.mxu0 0.0
    %6450 = vmatpush2.msra.mxu0 0.0
    %6451 = vmatprep.subr.mxu0 0.0
    %6452 = vmatpush2.msra.mxu0 0.0
    %6453 = vmatprep.subr.mxu0 0.0
    %6454 = vmatpush2.msra.mxu0 0.0
    %6455 = vmatprep.subr.mxu0 0.0
    %6456 = vmatpush2.msra.mxu0 0.0
    %6457 = vmatprep.subr.mxu0 0.0
    %6458 = vmatpush2.msra.mxu0 0.0
    %6459 = vmatprep.subr.mxu0 0.0
    %6460 = vmatpush2.msra.mxu0 0.0
    %6461 = vmatprep.subr.mxu0 0.0
    %6462 = vmatpush2.msra.mxu0 0.0
    %6463 = vmatprep.mubr.f32.mxu0 0.0
    %v6464 = vand.u32 %v5307, 4294901760
    %v6465 = vsub.f32 %v5307, %v6464
    %v6466 = vand.u32 %v6465, 4294901760
    %6467 = vmatmul.mubr.f32.gmra.mxu0 %v6466
    %v6468 = vpop.f32.mrf.mxu0
    %v6469 = vadd.f32 %v6371, %v6468
    %v6470 = vpop.f32.mrf.mxu0
    %v6471 = vadd.f32 %v6373, %v6470
    %6472 = vmatprep.mubr.f32.mxu0 0.0
    %v6473 = vand.u32 %v5310, 4294901760
    %v6474 = vsub.f32 %v5310, %v6473
    %v6475 = vand.u32 %v6474, 4294901760
    %6476 = vmatmul.mubr.f32.gmra.mxu0 %v6475
    %v6477 = vpop.f32.mrf.mxu0
    %v6478 = vadd.f32 %v6379, %v6477
    %v6479 = vpop.f32.mrf.mxu0
    %v6480 = vadd.f32 %v6381, %v6479
    %6481 = vdwg.mxu0
    %6482 = vmatprep.subr.mxu0 0.0
    %6483 = vmatpush1.msra.mxu0 0.0
    %6484 = vmatprep.subr.mxu0 0.0
    %6485 = vmatpush1.msra.mxu0 0.0
    %6486 = vmatprep.subr.mxu0 0.0
    %6487 = vmatpush1.msra.mxu0 0.0
    %6488 = vmatprep.subr.mxu0 0.0
    %6489 = vmatpush1.msra.mxu0 0.0
    %6490 = vmatprep.subr.mxu0 0.0
    %6491 = vmatpush1.msra.mxu0 0.0
    %6492 = vmatprep.subr.mxu0 0.0
    %6493 = vmatpush1.msra.mxu0 0.0
    %6494 = vmatprep.subr.mxu0 0.0
    %6495 = vmatpush1.msra.mxu0 0.0
    %6496 = vmatprep.subr.mxu0 0.0
    %6497 = vmatpush1.msra.mxu0 0.0
    %v6498 = vand.u32 %v5302, 4294901760
    %v6499 = vsub.f32 %v5302, %v6498
    %v6500 = vand.u32 %v6499, 4294901760
    %6501 = vmatprep.subr.mxu0 %v6500
    %v6502 = vand.u32 %v5301, 4294901760
    %v6503 = vsub.f32 %v5301, %v6502
    %v6504 = vand.u32 %v6503, 4294901760
    %6505 = vmatpush1.msra.mxu0 %v6504
    %v6506 = vand.u32 %v5298, 4294901760
    %v6507 = vsub.f32 %v5298, %v6506
    %v6508 = vand.u32 %v6507, 4294901760
    %6509 = vmatprep.subr.mxu0 %v6508
    %v6510 = vand.u32 %v5297, 4294901760
    %v6511 = vsub.f32 %v5297, %v6510
    %v6512 = vand.u32 %v6511, 4294901760
    %6513 = vmatpush1.msra.mxu0 %v6512
    %v6514 = vand.u32 %v5294, 4294901760
    %v6515 = vsub.f32 %v5294, %v6514
    %v6516 = vand.u32 %v6515, 4294901760
    %6517 = vmatprep.subr.mxu0 %v6516
    %v6518 = vand.u32 %v5293, 4294901760
    %v6519 = vsub.f32 %v5293, %v6518
    %v6520 = vand.u32 %v6519, 4294901760
    %6521 = vmatpush1.msra.mxu0 %v6520
    %v6522 = vand.u32 %v5290, 4294901760
    %v6523 = vsub.f32 %v5290, %v6522
    %v6524 = vand.u32 %v6523, 4294901760
    %6525 = vmatprep.subr.mxu0 %v6524
    %v6526 = vand.u32 %v5289, 4294901760
    %v6527 = vsub.f32 %v5289, %v6526
    %v6528 = vand.u32 %v6527, 4294901760
    %6529 = vmatpush1.msra.mxu0 %v6528
    %v6530 = vand.u32 %v5286, 4294901760
    %v6531 = vsub.f32 %v5286, %v6530
    %v6532 = vand.u32 %v6531, 4294901760
    %6533 = vmatprep.subr.mxu0 %v6532
    %v6534 = vand.u32 %v5285, 4294901760
    %v6535 = vsub.f32 %v5285, %v6534
    %v6536 = vand.u32 %v6535, 4294901760
    %6537 = vmatpush1.msra.mxu0 %v6536
    %v6538 = vand.u32 %v5282, 4294901760
    %v6539 = vsub.f32 %v5282, %v6538
    %v6540 = vand.u32 %v6539, 4294901760
    %6541 = vmatprep.subr.mxu0 %v6540
    %v6542 = vand.u32 %v5281, 4294901760
    %v6543 = vsub.f32 %v5281, %v6542
    %v6544 = vand.u32 %v6543, 4294901760
    %6545 = vmatpush1.msra.mxu0 %v6544
    %v6546 = vand.u32 %v5278, 4294901760
    %v6547 = vsub.f32 %v5278, %v6546
    %v6548 = vand.u32 %v6547, 4294901760
    %6549 = vmatprep.subr.mxu0 %v6548
    %v6550 = vand.u32 %v5277, 4294901760
    %v6551 = vsub.f32 %v5277, %v6550
    %v6552 = vand.u32 %v6551, 4294901760
    %6553 = vmatpush1.msra.mxu0 %v6552
    %v6554 = vand.u32 %v5274, 4294901760
    %v6555 = vsub.f32 %v5274, %v6554
    %v6556 = vand.u32 %v6555, 4294901760
    %6557 = vmatprep.subr.mxu0 %v6556
    %v6558 = vand.u32 %v5273, 4294901760
    %v6559 = vsub.f32 %v5273, %v6558
    %v6560 = vand.u32 %v6559, 4294901760
    %6561 = vmatpush1.msra.mxu0 %v6560
    %6562 = vmatprep.subr.mxu0 0.0
    %6563 = vmatpush2.msra.mxu0 0.0
    %6564 = vmatprep.subr.mxu0 0.0
    %6565 = vmatpush2.msra.mxu0 0.0
    %6566 = vmatprep.subr.mxu0 0.0
    %6567 = vmatpush2.msra.mxu0 0.0
    %6568 = vmatprep.subr.mxu0 0.0
    %6569 = vmatpush2.msra.mxu0 0.0
    %6570 = vmatprep.subr.mxu0 0.0
    %6571 = vmatpush2.msra.mxu0 0.0
    %6572 = vmatprep.subr.mxu0 0.0
    %6573 = vmatpush2.msra.mxu0 0.0
    %6574 = vmatprep.subr.mxu0 0.0
    %6575 = vmatpush2.msra.mxu0 0.0
    %6576 = vmatprep.subr.mxu0 0.0
    %6577 = vmatpush2.msra.mxu0 0.0
    %6578 = vmatprep.subr.mxu0 0.0
    %6579 = vmatpush2.msra.mxu0 0.0
    %6580 = vmatprep.subr.mxu0 0.0
    %6581 = vmatpush2.msra.mxu0 0.0
    %6582 = vmatprep.subr.mxu0 0.0
    %6583 = vmatpush2.msra.mxu0 0.0
    %6584 = vmatprep.subr.mxu0 0.0
    %6585 = vmatpush2.msra.mxu0 0.0
    %6586 = vmatprep.subr.mxu0 0.0
    %6587 = vmatpush2.msra.mxu0 0.0
    %6588 = vmatprep.subr.mxu0 0.0
    %6589 = vmatpush2.msra.mxu0 0.0
    %6590 = vmatprep.subr.mxu0 0.0
    %6591 = vmatpush2.msra.mxu0 0.0
    %6592 = vmatprep.subr.mxu0 0.0
    %6593 = vmatpush2.msra.mxu0 0.0
    %6594 = vmatprep.mubr.f32.mxu0 0.0
    %v6595 = vand.u32 %v5307, 4294901760
    %6596 = vmatmul.mubr.f32.gmra.mxu0 %v6595
    %v6597 = vpop.f32.mrf.mxu0
    %v6598 = vadd.f32 %v6469, %v6597
    %v6599 = vpop.f32.mrf.mxu0
    %v6600 = vadd.f32 %v6471, %v6599
    %6601 = vmatprep.mubr.f32.mxu0 0.0
    %v6602 = vand.u32 %v5310, 4294901760
    %6603 = vmatmul.mubr.f32.gmra.mxu0 %v6602
    %v6604 = vpop.f32.mrf.mxu0
    %v6605 = vadd.f32 %v6478, %v6604
    %v6606 = vpop.f32.mrf.mxu0
    %v6607 = vadd.f32 %v6480, %v6606
    %6608 = vdwg.mxu0
    %6609 = vmatprep.subr.mxu0 0.0
    %6610 = vmatpush1.msra.mxu0 0.0
    %6611 = vmatprep.subr.mxu0 0.0
    %6612 = vmatpush1.msra.mxu0 0.0
    %6613 = vmatprep.subr.mxu0 0.0
    %6614 = vmatpush1.msra.mxu0 0.0
    %6615 = vmatprep.subr.mxu0 0.0
    %6616 = vmatpush1.msra.mxu0 0.0
    %6617 = vmatprep.subr.mxu0 0.0
    %6618 = vmatpush1.msra.mxu0 0.0
    %6619 = vmatprep.subr.mxu0 0.0
    %6620 = vmatpush1.msra.mxu0 0.0
    %6621 = vmatprep.subr.mxu0 0.0
    %6622 = vmatpush1.msra.mxu0 0.0
    %6623 = vmatprep.subr.mxu0 0.0
    %6624 = vmatpush1.msra.mxu0 0.0
    %v6625 = vand.u32 %v5302, 4294901760
    %6626 = vmatprep.subr.mxu0 %v6625
    %v6627 = vand.u32 %v5301, 4294901760
    %6628 = vmatpush1.msra.mxu0 %v6627
    %v6629 = vand.u32 %v5298, 4294901760
    %6630 = vmatprep.subr.mxu0 %v6629
    %v6631 = vand.u32 %v5297, 4294901760
    %6632 = vmatpush1.msra.mxu0 %v6631
    %v6633 = vand.u32 %v5294, 4294901760
    %6634 = vmatprep.subr.mxu0 %v6633
    %v6635 = vand.u32 %v5293, 4294901760
    %6636 = vmatpush1.msra.mxu0 %v6635
    %v6637 = vand.u32 %v5290, 4294901760
    %6638 = vmatprep.subr.mxu0 %v6637
    %v6639 = vand.u32 %v5289, 4294901760
    %6640 = vmatpush1.msra.mxu0 %v6639
    %v6641 = vand.u32 %v5286, 4294901760
    %6642 = vmatprep.subr.mxu0 %v6641
    %v6643 = vand.u32 %v5285, 4294901760
    %6644 = vmatpush1.msra.mxu0 %v6643
    %v6645 = vand.u32 %v5282, 4294901760
    %6646 = vmatprep.subr.mxu0 %v6645
    %v6647 = vand.u32 %v5281, 4294901760
    %6648 = vmatpush1.msra.mxu0 %v6647
    %v6649 = vand.u32 %v5278, 4294901760
    %6650 = vmatprep.subr.mxu0 %v6649
    %v6651 = vand.u32 %v5277, 4294901760
    %6652 = vmatpush1.msra.mxu0 %v6651
    %v6653 = vand.u32 %v5274, 4294901760
    %6654 = vmatprep.subr.mxu0 %v6653
    %v6655 = vand.u32 %v5273, 4294901760
    %6656 = vmatpush1.msra.mxu0 %v6655
    %6657 = vmatprep.subr.mxu0 0.0
    %6658 = vmatpush2.msra.mxu0 0.0
    %6659 = vmatprep.subr.mxu0 0.0
    %6660 = vmatpush2.msra.mxu0 0.0
    %6661 = vmatprep.subr.mxu0 0.0
    %6662 = vmatpush2.msra.mxu0 0.0
    %6663 = vmatprep.subr.mxu0 0.0
    %6664 = vmatpush2.msra.mxu0 0.0
    %6665 = vmatprep.subr.mxu0 0.0
    %6666 = vmatpush2.msra.mxu0 0.0
    %6667 = vmatprep.subr.mxu0 0.0
    %6668 = vmatpush2.msra.mxu0 0.0
    %6669 = vmatprep.subr.mxu0 0.0
    %6670 = vmatpush2.msra.mxu0 0.0
    %6671 = vmatprep.subr.mxu0 0.0
    %6672 = vmatpush2.msra.mxu0 0.0
    %6673 = vmatprep.subr.mxu0 0.0
    %6674 = vmatpush2.msra.mxu0 0.0
    %6675 = vmatprep.subr.mxu0 0.0
    %6676 = vmatpush2.msra.mxu0 0.0
    %6677 = vmatprep.subr.mxu0 0.0
    %6678 = vmatpush2.msra.mxu0 0.0
    %6679 = vmatprep.subr.mxu0 0.0
    %6680 = vmatpush2.msra.mxu0 0.0
    %6681 = vmatprep.subr.mxu0 0.0
    %6682 = vmatpush2.msra.mxu0 0.0
    %6683 = vmatprep.subr.mxu0 0.0
    %6684 = vmatpush2.msra.mxu0 0.0
    %6685 = vmatprep.subr.mxu0 0.0
    %6686 = vmatpush2.msra.mxu0 0.0
    %6687 = vmatprep.subr.mxu0 0.0
    %6688 = vmatpush2.msra.mxu0 0.0
    %6689 = vmatprep.mubr.f32.mxu0 0.0
    %v6690 = vand.u32 %v5307, 4294901760
    %6691 = vmatmul.mubr.f32.gmra.mxu0 %v6690
    %v6692 = vpop.f32.mrf.mxu0
    %v6693 = vadd.f32 %v6598, %v6692
    %v6694 = vpop.f32.mrf.mxu0
    %v6695 = vadd.f32 %v6600, %v6694
    %6696 = vmatprep.mubr.f32.mxu0 0.0
    %v6697 = vand.u32 %v5310, 4294901760
    %6698 = vmatmul.mubr.f32.gmra.mxu0 %v6697
    %v6699 = vpop.f32.mrf.mxu0
    %v6700 = vadd.f32 %v6605, %v6699
    %v6701 = vpop.f32.mrf.mxu0
    %v6702 = vadd.f32 %v6607, %v6701
    %6703 = vdwg.mxu0
    %v6704 = vadd.f32 %v5997, %v5999
    %v6705 = vadd.f32 %v6704, %v6693
    %v6706 = vadd.f32 %v6705, %v6695
    %6707 = vadd.xlane.f32.xlu0 %v6706
    %v6708 = vpop.xlane.xlu0 %6707
    %v6709 = vadd.f32 %v6004, %v6006
    %v6710 = vadd.f32 %v6709, %v6700
    %v6711 = vadd.f32 %v6710, %v6702
    %6712 = vadd.xlane.f32.xlu0 %v6711
    %v6713 = vpop.xlane.xlu0 %6712
    %v6714 = vmul.f32 %v6708, 0.001953125
    %v6715 = vmul.f32 %v6713, 0.001953125
    %v6716 = vsub.f32 %v5997, %v6714
    %v6717 = vsub.f32 %v5999, %v6714
    %v6718 = vsub.f32 %v6693, %v6714
    %v6719 = vsub.f32 %v6695, %v6714
    %v6720 = vsub.f32 %v6004, %v6715
    %v6721 = vsub.f32 %v6006, %v6715
    %v6722 = vsub.f32 %v6700, %v6715
    %v6723 = vsub.f32 %v6702, %v6715
    %v6724 = vmul.f32 %v6716, %v6716
    %v6725 = vmul.f32 %v6717, %v6717
    %v6726 = vmul.f32 %v6718, %v6718
    %v6727 = vmul.f32 %v6719, %v6719
    %v6728 = vmul.f32 %v6720, %v6720
    %v6729 = vmul.f32 %v6721, %v6721
    %v6730 = vmul.f32 %v6722, %v6722
    %v6731 = vmul.f32 %v6723, %v6723
    %v6732 = vadd.f32 %v6724, %v6725
    %v6733 = vadd.f32 %v6732, %v6726
    %v6734 = vadd.f32 %v6733, %v6727
    %6735 = vadd.xlane.f32.xlu0 %v6734
    %v6736 = vpop.xlane.xlu0 %6735
    %v6737 = vadd.f32 %v6728, %v6729
    %v6738 = vadd.f32 %v6737, %v6730
    %v6739 = vadd.f32 %v6738, %v6731
    %6740 = vadd.xlane.f32.xlu0 %v6739
    %v6741 = vpop.xlane.xlu0 %6740
    %v6742 = vmul.f32 %v6736, 0.001953125
    %v6743 = vmul.f32 %v6741, 0.001953125
    %v6744 = vadd.f32 %v6742, 1e-05
    %v6745 = vadd.f32 %v6743, 1e-05
    %v6746 = vrsqrt.pop %v6744
    %v6747 = vrsqrt.pop %v6745
    %v6748 = vld [vmem:[%s8] sm:$0xff]
    %v6749 = vld [vmem:[%s8 + $0x8] sm:$0xff]
    %v6750 = vmul.f32 %v6746, %v6748
    %v6751 = vmul.f32 %v6747, %v6749
    %v6752 = vld [vmem:[%s9] sm:$0xff]
    %v6753 = vld [vmem:[%s9 + $0x8] sm:$0xff]
    %v6754 = vmul.f32 %v6714, %v6750
    %v6755 = vmul.f32 %v6715, %v6751
    %v6756 = vsub.f32 %v6752, %v6754
    %v6757 = vsub.f32 %v6753, %v6755
    %6759 = vset.pattern.permute.xlu0 0
    %6760 = vperm.xlu0 %6759, %v6750
    %v6761 = vpop.permute.xlu0 %6760
    %6764 = vset.pattern.permute.xlu0 0
    %6765 = vperm.xlu0 %6764, %v6751
    %v6766 = vpop.permute.xlu0 %6765
    %v6768 = vmul.f32 %v5997, %v6761
    %v6769 = vmul.f32 %v5999, %v6761
    %v6770 = vmul.f32 %v6693, %v6761
    %v6771 = vmul.f32 %v6695, %v6761
    %v6772 = vmul.f32 %v6004, %v6766
    %v6773 = vmul.f32 %v6006, %v6766
    %v6774 = vmul.f32 %v6700, %v6766
    %v6775 = vmul.f32 %v6702, %v6766
    %6777 = vset.pattern.permute.xlu0 0
    %6778 = vperm.xlu0 %6777, %v6756
    %v6779 = vpop.permute.xlu0 %6778
    %6782 = vset.pattern.permute.xlu0 0
    %6783 = vperm.xlu0 %6782, %v6757
    %v6784 = vpop.permute.xlu0 %6783
    %v6786 = vadd.f32 %v6768, %v6779
    %v6787 = vadd.f32 %v6769, %v6779
    %v6788 = vadd.f32 %v6770, %v6779
    %v6789 = vadd.f32 %v6771, %v6779
    %v6790 = vadd.f32 %v6772, %v6784
    %v6791 = vadd.f32 %v6773, %v6784
    %v6792 = vadd.f32 %v6774, %v6784
    %v6793 = vadd.f32 %v6775, %v6784
    %v6794 = vadd.f32 %v6786, %v2946
    %v6795 = vadd.f32 %v6787, %v2947
    %v6796 = vadd.f32 %v6788, %v2948
    %v6797 = vadd.f32 %v6789, %v2949
    %v6798 = vadd.f32 %v6790, %v2950
    %v6799 = vadd.f32 %v6791, %v2951
    %v6800 = vadd.f32 %v6792, %v2952
    %v6801 = vadd.f32 %v6793, %v2953
    %6802 = vst [vmem:[#allocation5] sm:$0xff] %v6794
    %6803 = vst [vmem:[#allocation5 + $0x8] sm:$0xff] %v6795
    %6804 = vst [vmem:[#allocation5 + $0x10] sm:$0xff] %v6796
    %6805 = vst [vmem:[#allocation5 + $0x18] sm:$0xff] %v6797
    %6806 = vst [vmem:[#allocation5 + $0x20] sm:$0xff] %v6798
    %6807 = vst [vmem:[#allocation5 + $0x28] sm:$0xff] %v6799
    %6808 = vst [vmem:[#allocation5 + $0x30] sm:$0xff] %v6800
    %6809 = vst [vmem:[#allocation5 + $0x38] sm:$0xff] %v6801
    // Predicated region
    $region46: #{tpu_custom_call.1} parent=1 // pred_check
      _
    $region47: #{tpu_custom_call.1} parent=1 // pred_check_branch
      %6811 = sbr.rel (0) target = $region49
    $region48: #{tpu_custom_call.1} parent=1 // pred_region
      %s6813 = ssub.s32 1024, 1024
      %6814 = vsyncadd [#allocation4], %s6813
      %s6815 = sshll.u32 [#allocation5], 4
      %s6816 = int_to_ptr.vmem [resolvable:$true] %s6815
      %6821 = dma.vmem_to_hbm [thread:$0]  %s6816, 1024, %s10, [#allocation4], 512, 512, 32
    $region49: #{tpu_custom_call.1} parent=1 // pred_fallthru
      _
    // Predicated region
    $region50: #{tpu_custom_call.1} parent=1 // pred_check
      _
    $region51: #{tpu_custom_call.1} parent=1 // pred_check_branch
      %6823 = sbr.rel (0) target = $region53
    $region52: #{tpu_custom_call.1} parent=1 // pred_region
      %6824 = dma.done [#allocation4], 1024
    $region53: #{tpu_custom_call.1} parent=1 // pred_fallthru
      _
    %6825 = vsyncpa [#allocation3], 1
    %6826 = vsyncpa [#allocation4], 1

</llo_original>
